<compile_context>
chip_gen: v6e
topology: v6e:2x2x1
jax: 0.10.0
libtpu: 0.0.40
codegen_flags: <defaults>
</compile_context>

<pallas_src>
import functools
import math

import jax
import jax.numpy as jnp
from jax import lax
from jax.experimental import pallas as pl
from jax.experimental.pallas import tpu as pltpu

# ----------------------------- hyper-parameters (small synthetic config) ----
HIDDEN = 32          # hidden_channels
NUM_HEADS = 4
HEAD_DIM = HIDDEN // NUM_HEADS
NUM_RBF = 16
NUM_LAYERS = 2
CUTOFF_LOWER = 0.0
CUTOFF_UPPER = 5.0
MAX_Z = 100
LN_EPS = 1e-5
EQLN_EPS = 1e-5

# O(N^2) edge streams live in HBM as bf16 and are upcast to f32 after load
# (v5e has no bf16 VALU/EUP, so all vector math stays f32 on every chip).
EDGE_DTYPE = jnp.bfloat16

# Tile limits: TI = target rows per step, TJ = source chunk per step.  Sized
# so the ~8 live f32 (TI, TJ, 128-lane) edge intermediates stay well under
# v7x's 64 MiB/TC VMEM; on v5e/v6e (128 MiB) both could be doubled.
MAX_ROW_TILE = 64
MAX_SRC_TILE = 128


def _pick_row_tile(n, max_t=MAX_ROW_TILE):
    best = n                                  # full extent is always legal
    for t in range(8, min(n, max_t) + 1, 8):
        if n % t == 0:
            best = t
    return best


def _pick_src_tile(n, max_t=MAX_SRC_TILE):
    if n <= max_t:
        return n
    best = None
    for t in range(128, max_t + 1, 128):
        if n % t == 0:
            best = t
    # TODO(synk): N not a multiple of 128 falls back to un-chunked sources;
    # pad the atom count to a multiple of 128 for very large systems.
    return best if best is not None else n


@functools.lru_cache(maxsize=None)
def _vmem_limit_bytes():
    # Per-generation scoped-VMEM limit: ~3/4 of physical (96 MiB on v5e/v6e,
    # 48 MiB on v7x's 64 MiB/TC).  Falls back to a safe constant.
    try:
        cap = int(pltpu.get_tpu_info().vmem_capacity_bytes)
        return int(min(cap * 3 // 4, 96 * 1024 * 1024))
    except Exception:
        return 48 * 1024 * 1024


def _silu(x):
    # x * sigmoid(x) == x * 0.5 * (1 + tanh(x/2)): exact, single EUP push.
    return x * (0.5 * (1.0 + jnp.tanh(0.5 * x)))


def _ln_nonaffine(v, eps=LN_EPS):
    mu = jnp.mean(v, axis=-1, keepdims=True)
    vc = v - mu
    var = jnp.mean(vc * vc, axis=-1, keepdims=True)
    return vc * lax.rsqrt(var + eps)


# ============================================================================
# Pallas kernel 1: NeighborEmbedding (dense message passing, no self loops)
# ============================================================================
def neighbor_embedding_kernel(x_t_ref, xnbr_ref, f_ref, cw_ref,
                              wdist_ref, bdist_ref, wcomb_ref, bcomb_ref,
                              out_ref, acc_ref):
    f32 = jnp.float32
    TI, C = x_t_ref.shape
    TJ = xnbr_ref.shape[0]
    R = f_ref.shape[-1]
    j = pl.program_id(1)

    @pl.when(j == 0)
    def _():
        acc_ref[...] = jnp.zeros_like(acc_ref)

    f2 = f_ref[...].astype(f32).reshape(TI * TJ, R)
    W = (jnp.dot(f2, wdist_ref[...], preferred_element_type=f32)
         + bdist_ref[...]).reshape(TI, TJ, C)
    # cw = cosine_cutoff(d_ij) * adjacency mask without self loops (precomputed)
    W = W * cw_ref[...].astype(f32)[:, :, None]
    # xn[i, c] = sum_j x_nbr[j, c] * W[i, j, c]
    acc_ref[...] += jnp.sum(xnbr_ref[...][None, :, :] * W, axis=1)

    @pl.when(j == pl.num_programs(1) - 1)
    def _():
        comb_in = jnp.concatenate([x_t_ref[...], acc_ref[...]], axis=-1)
        out_ref[...] = (jnp.dot(comb_in, wcomb_ref[...],
                                preferred_element_type=f32) + bcomb_ref[...])


def neighbor_embedding(x, x_nbr, f, cw, params):
    N, C = x.shape
    R = f.shape[-1]
    ti = _pick_row_tile(N)
    tj = _pick_src_tile(N)
    return pl.pallas_call(
        neighbor_embedding_kernel,
        out_shape=jax.ShapeDtypeStruct((N, C), jnp.float32),
        grid=(N // ti, N // tj),
        in_specs=[
            pl.BlockSpec((ti, C), lambda i, j: (i, 0)),          # x, target tile
            pl.BlockSpec((tj, C), lambda i, j: (j, 0)),          # neighbor embeds
            pl.BlockSpec((ti, tj, R), lambda i, j: (i, j, 0)),   # rbf features
            pl.BlockSpec((ti, tj), lambda i, j: (i, j)),         # cutoff * mask (no self)
            pl.BlockSpec((R, C), lambda i, j: (0, 0)),
            pl.BlockSpec((1, C), lambda i, j: (0, 0)),
            pl.BlockSpec((2 * C, C), lambda i, j: (0, 0)),
            pl.BlockSpec((1, C), lambda i, j: (0, 0)),
        ],
        out_specs=pl.BlockSpec((ti, C), lambda i, j: (i, 0)),
        scratch_shapes=[pltpu.VMEM((ti, C), jnp.float32)],
        compiler_params=pltpu.CompilerParams(
            dimension_semantics=("parallel", "arbitrary"),
            vmem_limit_bytes=_vmem_limit_bytes()),
    )(x, x_nbr, f, cw,
      params['ne_wdist'], params['ne_bdist'],
      params['ne_wcomb'], params['ne_bcomb'])


# ============================================================================
# Pallas kernel 2: one EquivariantMultiHeadAttention layer (the hot path),
# fused with the residual adds and the non-affine LayerNorm on x.
# Node projections (LN, q, kv, vec_proj) are hoisted to the wrapper.
# ============================================================================
def attention_layer_kernel(
    x_t_ref, qs_ref, vdot_ref, vec3_ref, vec_t_ref,      # target-tile node data
    kv_ref, vsrc_ref,                                    # source-chunk node data
    f_ref, cm_ref, mask_ref, ut_ref,                     # edge chunk (bf16)
    wdkv_ref, bdkv_ref, hb_ref, wo_ref, bo_ref,          # weights
    out_ref,                                             # (TI, 4C) packed output
    acc1_ref, acc2_ref,                                  # accumulators
):
    f32 = jnp.float32
    TI, C = x_t_ref.shape
    TJ = kv_ref.shape[0]
    R = f_ref.shape[-1]
    j = pl.program_id(1)

    @pl.when(j == 0)
    def _():
        acc1_ref[...] = jnp.zeros_like(acc1_ref)
        acc2_ref[...] = jnp.zeros_like(acc2_ref)

    # ---- fused per-edge distance projections: [dk | dv_x | dv_1 | dv_2] ----
    f2 = f_ref[...].astype(f32).reshape(TI * TJ, R)
    dkv = _silu(jnp.dot(f2, wdkv_ref[...], preferred_element_type=f32)
                + bdkv_ref[...]).reshape(TI, TJ, 4 * C)

    # ---- lane-dense edge slab: two 128-lane VPU passes give all four products
    #        e = [q*k*dk | dv_x*v_x | dv_1*v_1 | dv_2*v_2]
    e = dkv * kv_ref[...][None, :, :] * qs_ref[...][:, None, :]

    # ---- attention: per-head sum + broadcast via block-ones matmul ----
    s = jnp.dot(e[:, :, :C].reshape(TI * TJ, C), hb_ref[...],
                preferred_element_type=f32).reshape(TI, TJ, C)
    attn = _silu(s) * cm_ref[...].astype(f32)[:, :, None]

    # ---- messages + aggregation over the source chunk ----
    m3 = mask_ref[...].astype(f32)[:, :, None]
    v1m = e[:, :, 2 * C:3 * C] * m3
    vsrc = vsrc_ref[...]                                  # (TJ, 3C) [vx|vy|vz]
    xagg = jnp.sum(attn * e[:, :, C:2 * C], axis=1)
    t1x = jnp.sum(v1m * vsrc[None, :, :C], axis=1)
    t1y = jnp.sum(v1m * vsrc[None, :, C:2 * C], axis=1)
    t1z = jnp.sum(v1m * vsrc[None, :, 2 * C:], axis=1)
    acc1_ref[...] += jnp.concatenate([xagg, t1x, t1y, t1z], axis=-1)

    # directional term t2: batched MXU contraction over sources (adjacency
    # mask is pre-folded into ut by the wrapper, xyz padded to 8 sublanes).
    acc2_ref[...] += jnp.einsum('iaj,ijc->iac',
                                ut_ref[...].astype(f32), e[:, :, 3 * C:],
                                preferred_element_type=f32)

    # ---- epilogue: output projection + residual + non-affine LayerNorm ----
    @pl.when(j == pl.num_programs(1) - 1)
    def _():
        acc1 = acc1_ref[...]
        t2 = acc2_ref[...]                                # (TI, 8, C)
        xagg_tot = acc1[:, :C]
        t1 = acc1[:, C:]
        o = (jnp.dot(xagg_tot, wo_ref[...], preferred_element_type=f32)
             + bo_ref[...])
        o1 = o[:, :C]
        o2 = o[:, C:2 * C]
        o3 = o[:, 2 * C:]
        x_new = _ln_nonaffine(x_t_ref[...] + vdot_ref[...] * o2 + o3)
        vec3 = vec3_ref[...]                              # (TI, 3C)
        dvec = jnp.concatenate(
            [vec3[:, a * C:(a + 1) * C] * o1
             + t1[:, a * C:(a + 1) * C] + t2[:, a, :]
             for a in range(3)], axis=-1)
        # single lane-dense (TI, 4C) store: [x_next | vec_x | vec_y | vec_z]
        out_ref[...] = jnp.concatenate([x_new, vec_t_ref[...] + dvec], axis=-1)


def attention_layer(x, vec_packed, f, cm, mask, ut, lp, hb):
    N, C = x.shape
    R = f.shape[-1]
    ti = _pick_row_tile(N)
    tj = _pick_src_tile(N)

    # ---- hoisted node-level projections (O(N*C^2), plain XLA, once/layer) ---
    xn = layer_norm(x, lp['ln_w'], lp['ln_b'])
    kv = xn @ lp['wkv'] + lp['bkv']                      # (N, 4C) [k|v_x|v_1|v_2]
    q = xn @ lp['wq'] + lp['bq']                         # (N, C)
    q_slab = jnp.concatenate(
        [q, jnp.ones((N, 3 * C), jnp.float32)], axis=-1)  # (N, 4C) [q|1|1|1]
    vec3d = vec_packed.reshape(N, 3, C)
    vecp = (vec3d.reshape(N * 3, C) @ lp['wvec']).reshape(N, 3, 3 * C)
    vec_dot = jnp.sum(vecp[:, :, :C] * vecp[:, :, C:2 * C], axis=1)   # (N, C)
    vec3_packed = vecp[:, :, 2 * C:].reshape(N, 3 * C)

    def _const(shape):
        return pl.BlockSpec(shape, lambda i, j: tuple(0 for _ in shape))

    in_specs = [
        pl.BlockSpec((ti, C), lambda i, j: (i, 0)),          # x (residual)
        pl.BlockSpec((ti, 4 * C), lambda i, j: (i, 0)),      # [q | 1 | 1 | 1]
        pl.BlockSpec((ti, C), lambda i, j: (i, 0)),          # vec_dot
        pl.BlockSpec((ti, 3 * C), lambda i, j: (i, 0)),      # vec3 (packed)
        pl.BlockSpec((ti, 3 * C), lambda i, j: (i, 0)),      # vec (target residual)
        pl.BlockSpec((tj, 4 * C), lambda i, j: (j, 0)),      # kv (sources)
        pl.BlockSpec((tj, 3 * C), lambda i, j: (j, 0)),      # vec (sources, for t1)
        pl.BlockSpec((ti, tj, R), lambda i, j: (i, j, 0)),   # rbf features
        pl.BlockSpec((ti, tj), lambda i, j: (i, j)),         # cutoff * mask
        pl.BlockSpec((ti, tj), lambda i, j: (i, j)),         # mask
        pl.BlockSpec((ti, 8, tj), lambda i, j: (i, 0, j)),   # masked unit dirs
        _const((R, 4 * C)), _const((1, 4 * C)),              # wdkv, bdkv (fused)
        _const((C, C)),                                      # head block-ones
        _const((C, 3 * C)), _const((1, 3 * C)),              # wo, bo
    ]
    out = pl.pallas_call(
        attention_layer_kernel,
        out_shape=jax.ShapeDtypeStruct((N, 4 * C), jnp.float32),
        grid=(N // ti, N // tj),
        in_specs=in_specs,
        out_specs=pl.BlockSpec((ti, 4 * C), lambda i, j: (i, 0)),
        scratch_shapes=[pltpu.VMEM((ti, 4 * C), jnp.float32),
                        pltpu.VMEM((ti, 8, C), jnp.float32)],
        compiler_params=pltpu.CompilerParams(
            dimension_semantics=("parallel", "arbitrary"),
            vmem_limit_bytes=_vmem_limit_bytes()),
    )(x, q_slab, vec_dot, vec3_packed, vec_packed,
      kv, vec_packed,
      f, cm, mask, ut,
      lp['wdkv'], lp['bdkv'], hb, lp['wo'], lp['bo'])
    return out[:, :C], out[:, C:]


# ============================================================================
# plain-JAX glue
# ============================================================================
def cosine_cutoff(r):
    return 0.5 * (jnp.cos(r * (math.pi / CUTOFF_UPPER)) + 1.0) * \
        (r < CUTOFF_UPPER).astype(jnp.float32)


def expnorm_rbf(dist, means, betas):
    d = dist[..., None]
    alpha = 5.0 / (CUTOFF_UPPER - CUTOFF_LOWER)
    return cosine_cutoff(d) * jnp.exp(
        -betas * (jnp.exp(alpha * (CUTOFF_LOWER - d)) - means) ** 2)


def layer_norm(x, w=None, b=None, eps=LN_EPS):
    y = _ln_nonaffine(x, eps)
    if w is not None:
        y = y * w + b
    return y


def equivariant_layer_norm_packed(vec_packed, weight, eps=EQLN_EPS):
    # TODO(synk): torch runs this in float64 via SVD with rank truncation; TPU
    # has no native f64 and no Pallas SVD, so use f32 eigh (the matrix is
    # symmetric PD after the +eps*diag(1,2,3) regulariser).
    N = vec_packed.shape[0]
    C = weight.shape[0]
    vec = vec_packed.reshape(N, 3, C)
    v = vec - jnp.mean(vec, axis=-1, keepdims=True)
    reg = jnp.diag(jnp.array([1.0, 2.0, 3.0], dtype=v.dtype))
    covar = jnp.einsum('nac,nbc->nab', v, v) / C + eps * reg
    s, V = jnp.linalg.eigh(covar)
    inv_sqrt = jnp.einsum('nab,nb,ncb->nac', V, 1.0 / jnp.sqrt(s + eps), V)
    out = jnp.einsum('nab,nbc->nac', inv_sqrt, v) * weight.reshape(1, 1, C)
    return out.reshape(N, 3 * C)


# ----------------------------- parameter init (deterministic, synthetic) ----
def _xavier(key, fan_in, fan_out):
    bound = math.sqrt(6.0 / (fan_in + fan_out))
    return jax.random.uniform(key, (fan_in, fan_out), jnp.float32, -bound, bound)


def _v_col_perm():
    # PyTorch v/dv column layout: per head h, blocks [x(D) | v1(D) | v2(D)].
    # Kernel layout: [x(C) | v1(C) | v2(C)], each part head-major.
    idx = []
    for part in range(3):
        for h in range(NUM_HEADS):
            for d in range(HEAD_DIM):
                idx.append(h * 3 * HEAD_DIM + part * HEAD_DIM + d)
    return jnp.array(idx, dtype=jnp.int32)


def init_params(key):
    keys = iter(jax.random.split(key, 128))
    p = {}
    p['embedding'] = jax.random.normal(next(keys), (MAX_Z, HIDDEN), jnp.float32)

    start = math.exp(-(CUTOFF_UPPER - CUTOFF_LOWER))
    p['rbf_means'] = jnp.linspace(start, 1.0, NUM_RBF, dtype=jnp.float32)
    p['rbf_betas'] = jnp.full((NUM_RBF,), (2.0 / NUM_RBF * (1.0 - start)) ** -2,
                              jnp.float32)

    p['ne_embedding'] = jax.random.normal(next(keys), (MAX_Z, HIDDEN), jnp.float32)
    p['ne_wdist'] = _xavier(next(keys), NUM_RBF, HIDDEN)
    p['ne_bdist'] = jnp.zeros((1, HIDDEN), jnp.float32)
    p['ne_wcomb'] = _xavier(next(keys), 2 * HIDDEN, HIDDEN)
    p['ne_bcomb'] = jnp.zeros((1, HIDDEN), jnp.float32)

    # block-ones matrix: 1 where both channels belong to the same head.
    head = jnp.arange(HIDDEN) // HEAD_DIM
    p['head_block'] = (head[:, None] == head[None, :]).astype(jnp.float32)

    perm = _v_col_perm()
    layers = []
    for _ in range(NUM_LAYERS):
        wq = _xavier(next(keys), HIDDEN, HIDDEN)
        wk = _xavier(next(keys), HIDDEN, HIDDEN)
        wv = _xavier(next(keys), HIDDEN, 3 * HIDDEN)
        wvec = _xavier(next(keys), HIDDEN, 3 * HIDDEN)
        wdk = _xavier(next(keys), NUM_RBF, HIDDEN)
        wdv = _xavier(next(keys), NUM_RBF, 3 * HIDDEN)
        wo = _xavier(next(keys), HIDDEN, 3 * HIDDEN)
        layers.append({
            'ln_w': jnp.ones((1, HIDDEN), jnp.float32),
            'ln_b': jnp.zeros((1, HIDDEN), jnp.float32),
            'wq': wq,
            'bq': jnp.zeros((1, HIDDEN), jnp.float32),
            # fused key/value weight with v columns permuted into [x | v1 | v2]
            'wkv': jnp.concatenate([wk, wv[:, perm]], axis=1),        # (C, 4C)
            'bkv': jnp.zeros((1, 4 * HIDDEN), jnp.float32),
            'wvec': wvec,
            'wdkv': jnp.concatenate([wdk, wdv[:, perm]], axis=1),     # (R, 4C)
            'bdkv': jnp.zeros((1, 4 * HIDDEN), jnp.float32),
            'wo': wo,
            'bo': jnp.zeros((1, 3 * HIDDEN), jnp.float32),
        })
    p['layers'] = layers
    p['vec_norm_w'] = [jnp.ones((HIDDEN,), jnp.float32) for _ in range(NUM_LAYERS)]
    p['out_norm_w'] = jnp.ones((HIDDEN,), jnp.float32)
    p['out_norm_b'] = jnp.zeros((HIDDEN,), jnp.float32)
    return p


# ----------------------------- full forward ---------------------------------
def torchmd_et_forward(params, z, pos, batch):
    N = z.shape[0]
    C = HIDDEN

    x = params['embedding'][z]                                   # (N, C)

    # Dense all-pairs graph per molecule with self loops (radius_graph loop=True).
    # diff[i, j] = pos[j] - pos[i] (source_to_target convention).
    # TODO(synk): max_num_neighbors truncation of radius_graph is not modeled.
    diff = pos[None, :, :] - pos[:, None, :]
    dist = jnp.sqrt(jnp.sum(diff * diff, axis=-1))               # (N, N)
    same_mol = (batch[:, None] == batch[None, :])
    mask = (same_mol & (dist < CUTOFF_UPPER)).astype(jnp.float32)
    eye = jnp.eye(N, dtype=jnp.float32)
    mask_noself = mask * (1.0 - eye)
    nz = (dist > 0).astype(jnp.float32)
    u = diff / jnp.where(dist > 0, dist, 1.0)[:, :, None] * nz[:, :, None]
    # masked unit dirs in (target, xyz padded to 8, source) layout: the
    # in-kernel t2 contraction needs no extra mask pass and is sublane-aligned.
    ut = jnp.transpose(u, (0, 2, 1)) * mask[:, None, :]
    ut = jnp.pad(ut, ((0, 0), (0, 5), (0, 0)))
    cut = cosine_cutoff(dist)                                    # (N, N)
    f = expnorm_rbf(dist, params['rbf_means'], params['rbf_betas'])

    # O(N^2) edge streams go to HBM as bf16; kernels upcast right after load.
    f = f.astype(EDGE_DTYPE)
    cm = (cut * mask).astype(EDGE_DTYPE)
    mask_e = mask.astype(EDGE_DTYPE)
    ut = ut.astype(EDGE_DTYPE)

    # Neighbor embedding (Pallas kernel; self loops removed).
    # TODO(synk): NE is a separate pallas_call so `f` is streamed 1+NUM_LAYERS
    # times; fusing it into layer 0 would need the full NE output before the
    # hoisted kv projection of layer 0.
    x_nbr = params['ne_embedding'][z]
    x = neighbor_embedding(x, x_nbr, f, (cut * mask_noself).astype(EDGE_DTYPE),
                           params)

    vec = jnp.zeros((N, 3 * C), jnp.float32)                     # packed [vx|vy|vz]
    hb = params['head_block']
    for lidx in range(NUM_LAYERS):
        # Kernel returns x with residual + non-affine LayerNorm applied, and
        # vec (packed) with residual applied.
        x, vec = attention_layer(x, vec, f, cm, mask_e, ut,
                                 params['layers'][lidx], hb)
        vec = equivariant_layer_norm_packed(vec, params['vec_norm_w'][lidx])

    xnew = layer_norm(x, params['out_norm_w'], params['out_norm_b'])
    return xnew, vec.reshape(N, 3, C), z, pos, batch


# ----------------------------- main ------------------------------------------
if __name__ == "__main__":
    key = jax.random.PRNGKey(0)
    kp, kz, kpos = jax.random.split(key, 3)
    params = init_params(kp)

    N = 16  # two molecules of 8 atoms each
    z = jax.random.randint(kz, (N,), 1, MAX_Z)
    pos = jax.random.normal(kpos, (N, 3), jnp.float32) * 1.5
    batch = jnp.concatenate([jnp.zeros((N // 2,), jnp.int32),
                             jnp.ones((N // 2,), jnp.int32)])

    xnew, vec, z_out, pos_out, batch_out = jax.jit(torchmd_et_forward)(
        params, z, pos, batch)
    jax.block_until_ready((xnew, vec))

    assert xnew.shape == (N, HIDDEN)
    assert vec.shape == (N, 3, HIDDEN)
    assert bool(jnp.all(jnp.isfinite(xnew)))
    assert bool(jnp.all(jnp.isfinite(vec)))
    print("KERNEL_OK")
</pallas_src>

<mosaic_0001>
module attributes {stable_mosaic.version = 11 : i64} {
  func.func @neighbor_embedding_kernel(%arg0: i32, %arg1: i32, %arg2: memref<16x32xf32, #tpu.memory_space<vmem>>, %arg3: memref<16x32xf32, #tpu.memory_space<vmem>>, %arg4: memref<16x16x16xbf16, #tpu.memory_space<vmem>>, %arg5: memref<16x16xbf16, #tpu.memory_space<vmem>>, %arg6: memref<16x32xf32, #tpu.memory_space<vmem>>, %arg7: memref<1x32xf32, #tpu.memory_space<vmem>>, %arg8: memref<64x32xf32, #tpu.memory_space<vmem>>, %arg9: memref<1x32xf32, #tpu.memory_space<vmem>>, %arg10: memref<16x32xf32, #tpu.memory_space<vmem>>, %arg11: memref<16x32xf32, #tpu.memory_space<vmem>>) attributes {dimension_semantics = [#tpu.dimension_semantics<parallel>, #tpu.dimension_semantics<arbitrary>], iteration_bounds = array<i64: 1, 1>, scalar_prefetch = 0 : i64, scratch_operands = 1 : i64, tpu.core_type = #tpu.core_type<tc>, window_params = [{transform_indices = @transform_0, window_bounds = array<i64: 16, 32>}, {transform_indices = @transform_1, window_bounds = array<i64: 16, 32>}, {transform_indices = @transform_2, window_bounds = array<i64: 16, 16, 16>}, {transform_indices = @transform_3, window_bounds = array<i64: 16, 16>}, {pipeline_mode = #tpu.pipeline_mode<synchronous>, transform_indices = @transform_4, window_bounds = array<i64: 16, 32>}, {pipeline_mode = #tpu.pipeline_mode<synchronous>, transform_indices = @transform_5, window_bounds = array<i64: 1, 32>}, {pipeline_mode = #tpu.pipeline_mode<synchronous>, transform_indices = @transform_6, window_bounds = array<i64: 64, 32>}, {pipeline_mode = #tpu.pipeline_mode<synchronous>, transform_indices = @transform_7, window_bounds = array<i64: 1, 32>}, {transform_indices = @transform_8, window_bounds = array<i64: 16, 32>}]} {
    %c0_i32 = arith.constant 0 : i32
    %0 = arith.cmpi eq, %arg1, %c0_i32 : i32
    %1 = arith.extui %0 : i1 to i32
    %c0_i32_0 = arith.constant 0 : i32
    %2 = arith.cmpi ne, %1, %c0_i32_0 : i32
    scf.if %2 {
      %cst_18 = arith.constant 0.000000e+00 : f32
      %28 = vector.broadcast %cst_18 : f32 to vector<16x32xf32>
      %c0_19 = arith.constant 0 : index
      %c0_20 = arith.constant 0 : index
      %29 = vector.load %arg11[%c0_19, %c0_20] : memref<16x32xf32, #tpu.memory_space<vmem>>, vector<16x32xf32>
      tpu.vector_store %arg11[%c0_19, %c0_20], %28 {strides = array<i32>} : memref<16x32xf32, #tpu.memory_space<vmem>>, vector<16x32xf32>,
    } else {
    }
    %c0 = arith.constant 0 : index
    %c0_1 = arith.constant 0 : index
    %c0_2 = arith.constant 0 : index
    %3 = vector.load %arg4[%c0, %c0_1, %c0_2] : memref<16x16x16xbf16, #tpu.memory_space<vmem>>, vector<16x16x16xbf16>
    %4 = arith.extf %3 : vector<16x16x16xbf16> to vector<16x16x16xf32>
    %5 = vector.shape_cast %4 : vector<16x16x16xf32> to vector<256x16xf32>
    %c0_3 = arith.constant 0 : index
    %c0_4 = arith.constant 0 : index
    %6 = vector.load %arg6[%c0_3, %c0_4] : memref<16x32xf32, #tpu.memory_space<vmem>>, vector<16x32xf32>
    %cst = arith.constant dense<0.000000e+00> : vector<256x32xf32>
    %7 = tpu.matmul %5, %6, %cst {dimension_numbers = #tpu.dot_dimension_numbers<[1], [0], [0], [1], [0, 0, 1, 1], [], []>} : vector<256x16xf32>, vector<16x32xf32>, vector<256x32xf32> -> vector<256x32xf32>
    %c0_5 = arith.constant 0 : index
    %c0_6 = arith.constant 0 : index
    %8 = vector.load %arg7[%c0_5, %c0_6] : memref<1x32xf32, #tpu.memory_space<vmem>>, vector<1x32xf32>
    %9 = vector.broadcast %8 : vector<1x32xf32> to vector<256x32xf32>
    %10 = arith.addf %7, %9 : vector<256x32xf32>
    %11 = vector.shape_cast %10 : vector<256x32xf32> to vector<16x16x32xf32>
    %c0_7 = arith.constant 0 : index
    %c0_8 = arith.constant 0 : index
    %12 = vector.load %arg5[%c0_7, %c0_8] : memref<16x16xbf16, #tpu.memory_space<vmem>>, vector<16x16xbf16>
    %13 = arith.extf %12 : vector<16x16xbf16> to vector<16x16xf32>
    %14 = vector.shape_cast %13 : vector<16x16xf32> to vector<16x16x1xf32>
    %15 = vector.broadcast %14 : vector<16x16x1xf32> to vector<16x16x32xf32>
    %16 = arith.mulf %11, %15 : vector<16x16x32xf32>
    %c0_9 = arith.constant 0 : index
    %c0_10 = arith.constant 0 : index
    %17 = vector.load %arg11[%c0_9, %c0_10] : memref<16x32xf32, #tpu.memory_space<vmem>>, vector<16x32xf32>
    %c0_11 = arith.constant 0 : index
    %c0_12 = arith.constant 0 : index
    %18 = vector.load %arg3[%c0_11, %c0_12] : memref<16x32xf32, #tpu.memory_space<vmem>>, vector<16x32xf32>
    %19 = vector.shape_cast %18 : vector<16x32xf32> to vector<1x16x32xf32>
    %20 = vector.broadcast %19 : vector<1x16x32xf32> to vector<16x16x32xf32>
    %21 = arith.mulf %20, %16 : vector<16x16x32xf32>
    %cst_13 = arith.constant dense<0.000000e+00> : vector<16x32xf32>
    %22 = vector.multi_reduction <add>, %21, %cst_13 [1] : vector<16x16x32xf32> to vector<16x32xf32>
    %23 = arith.addf %17, %22 : vector<16x32xf32>
    %c0_14 = arith.constant 0 : index
    %c0_15 = arith.constant 0 : index
    %24 = vector.load %arg11[%c0_14, %c0_15] : memref<16x32xf32, #tpu.memory_space<vmem>>, vector<16x32xf32>
    tpu.vector_store %arg11[%c0_14, %c0_15], %23 {strides = array<i32>} : memref<16x32xf32, #tpu.memory_space<vmem>>, vector<16x32xf32>,
    %c0_i32_16 = arith.constant 0 : i32
    %25 = arith.cmpi eq, %arg1, %c0_i32_16 : i32
    %26 = arith.extui %25 : i1 to i32
    %c0_i32_17 = arith.constant 0 : i32
    %27 = arith.cmpi ne, %26, %c0_i32_17 : i32
    scf.if %27 {
      %c0_18 = arith.constant 0 : index
      %c0_19 = arith.constant 0 : index
      %28 = vector.load %arg2[%c0_18, %c0_19] : memref<16x32xf32, #tpu.memory_space<vmem>>, vector<16x32xf32>
      %c0_20 = arith.constant 0 : index
      %c0_21 = arith.constant 0 : index
      %29 = vector.load %arg11[%c0_20, %c0_21] : memref<16x32xf32, #tpu.memory_space<vmem>>, vector<16x32xf32>
      %30 = tpu.concatenate %28, %29 in 1 : vector<16x32xf32>, vector<16x32xf32> -> vector<16x64xf32>
      %c0_22 = arith.constant 0 : index
      %c0_23 = arith.constant 0 : index
      %31 = vector.load %arg8[%c0_22, %c0_23] : memref<64x32xf32, #tpu.memory_space<vmem>>, vector<64x32xf32>
      %cst_24 = arith.constant dense<0.000000e+00> : vector<16x32xf32>
      %32 = tpu.matmul %30, %31, %cst_24 {dimension_numbers = #tpu.dot_dimension_numbers<[1], [0], [0], [1], [0, 0, 1, 1], [], []>} : vector<16x64xf32>, vector<64x32xf32>, vector<16x32xf32> -> vector<16x32xf32>
      %c0_25 = arith.constant 0 : index
      %c0_26 = arith.constant 0 : index
      %33 = vector.load %arg9[%c0_25, %c0_26] : memref<1x32xf32, #tpu.memory_space<vmem>>, vector<1x32xf32>
      %34 = vector.broadcast %33 : vector<1x32xf32> to vector<16x32xf32>
      %35 = arith.addf %32, %34 : vector<16x32xf32>
      %c0_27 = arith.constant 0 : index
      %c0_28 = arith.constant 0 : index
      %36 = vector.load %arg10[%c0_27, %c0_28] : memref<16x32xf32, #tpu.memory_space<vmem>>, vector<16x32xf32>
      tpu.vector_store %arg10[%c0_27, %c0_28], %35 {strides = array<i32>} : memref<16x32xf32, #tpu.memory_space<vmem>>, vector<16x32xf32>,
    } else {
    }
    return
  }
  func.func @transform_0(%arg0: i32, %arg1: i32) -> (i32, i32) {
    %c0_i32 = arith.constant 0 : i32
    %c0_i32_0 = arith.constant 0 : i32
    return %arg0, %c0_i32 : i32, i32
  }
  func.func @transform_1(%arg0: i32, %arg1: i32) -> (i32, i32) {
    %c0_i32 = arith.constant 0 : i32
    %c0_i32_0 = arith.constant 0 : i32
    return %arg1, %c0_i32 : i32, i32
  }
  func.func @transform_2(%arg0: i32, %arg1: i32) -> (i32, i32, i32) {
    %c0_i32 = arith.constant 0 : i32
    %c0_i32_0 = arith.constant 0 : i32
    return %arg0, %arg1, %c0_i32 : i32, i32, i32
  }
  func.func @transform_3(%arg0: i32, %arg1: i32) -> (i32, i32) {
    %c0_i32 = arith.constant 0 : i32
    return %arg0, %arg1 : i32, i32
  }
  func.func @transform_4(%arg0: i32, %arg1: i32) -> (i32, i32) {
    %c0_i32 = arith.constant 0 : i32
    %c0_i32_0 = arith.constant 0 : i32
    %c0_i32_1 = arith.constant 0 : i32
    return %c0_i32, %c0_i32_0 : i32, i32
  }
  func.func @transform_5(%arg0: i32, %arg1: i32) -> (i32, i32) {
    %c0_i32 = arith.constant 0 : i32
    %c0_i32_0 = arith.constant 0 : i32
    %c0_i32_1 = arith.constant 0 : i32
    return %c0_i32, %c0_i32_0 : i32, i32
  }
  func.func @transform_6(%arg0: i32, %arg1: i32) -> (i32, i32) {
    %c0_i32 = arith.constant 0 : i32
    %c0_i32_0 = arith.constant 0 : i32
    %c0_i32_1 = arith.constant 0 : i32
    return %c0_i32, %c0_i32_0 : i32, i32
  }
  func.func @transform_7(%arg0: i32, %arg1: i32) -> (i32, i32) {
    %c0_i32 = arith.constant 0 : i32
    %c0_i32_0 = arith.constant 0 : i32
    %c0_i32_1 = arith.constant 0 : i32
    return %c0_i32, %c0_i32_0 : i32, i32
  }
  func.func @transform_8(%arg0: i32, %arg1: i32) -> (i32, i32) {
    %c0_i32 = arith.constant 0 : i32
    %c0_i32_0 = arith.constant 0 : i32
    return %arg0, %c0_i32 : i32, i32
  }
}

module attributes {stable_mosaic.version = 11 : i64} {
  func.func @attention_layer_kernel(%arg0: i32, %arg1: i32, %arg2: memref<16x32xf32, #tpu.memory_space<vmem>>, %arg3: memref<16x128xf32, #tpu.memory_space<vmem>>, %arg4: memref<16x32xf32, #tpu.memory_space<vmem>>, %arg5: memref<16x96xf32, #tpu.memory_space<vmem>>, %arg6: memref<16x96xf32, #tpu.memory_space<vmem>>, %arg7: memref<16x128xf32, #tpu.memory_space<vmem>>, %arg8: memref<16x96xf32, #tpu.memory_space<vmem>>, %arg9: memref<16x16x16xbf16, #tpu.memory_space<vmem>>, %arg10: memref<16x16xbf16, #tpu.memory_space<vmem>>, %arg11: memref<16x16xbf16, #tpu.memory_space<vmem>>, %arg12: memref<16x8x16xbf16, #tpu.memory_space<vmem>>, %arg13: memref<16x128xf32, #tpu.memory_space<vmem>>, %arg14: memref<1x128xf32, #tpu.memory_space<vmem>>, %arg15: memref<32x32xf32, #tpu.memory_space<vmem>>, %arg16: memref<32x96xf32, #tpu.memory_space<vmem>>, %arg17: memref<1x96xf32, #tpu.memory_space<vmem>>, %arg18: memref<16x128xf32, #tpu.memory_space<vmem>>, %arg19: memref<16x128xf32, #tpu.memory_space<vmem>>, %arg20: memref<16x8x32xf32, #tpu.memory_space<vmem>>) attributes {dimension_semantics = [#tpu.dimension_semantics<parallel>, #tpu.dimension_semantics<arbitrary>], iteration_bounds = array<i64: 1, 1>, scalar_prefetch = 0 : i64, scratch_operands = 2 : i64, tpu.core_type = #tpu.core_type<tc>, window_params = [{transform_indices = @transform_0, window_bounds = array<i64: 16, 32>}, {transform_indices = @transform_1, window_bounds = array<i64: 16, 128>}, {transform_indices = @transform_2, window_bounds = array<i64: 16, 32>}, {transform_indices = @transform_3, window_bounds = array<i64: 16, 96>}, {transform_indices = @transform_4, window_bounds = array<i64: 16, 96>}, {transform_indices = @transform_5, window_bounds = array<i64: 16, 128>}, {transform_indices = @transform_6, window_bounds = array<i64: 16, 96>}, {transform_indices = @transform_7, window_bounds = array<i64: 16, 16, 16>}, {transform_indices = @transform_8, window_bounds = array<i64: 16, 16>}, {transform_indices = @transform_9, window_bounds = array<i64: 16, 16>}, {transform_indices = @transform_10, window_bounds = array<i64: 16, 8, 16>}, {pipeline_mode = #tpu.pipeline_mode<synchronous>, transform_indices = @transform_11, window_bounds = array<i64: 16, 128>}, {pipeline_mode = #tpu.pipeline_mode<synchronous>, transform_indices = @transform_12, window_bounds = array<i64: 1, 128>}, {pipeline_mode = #tpu.pipeline_mode<synchronous>, transform_indices = @transform_13, window_bounds = array<i64: 32, 32>}, {pipeline_mode = #tpu.pipeline_mode<synchronous>, transform_indices = @transform_14, window_bounds = array<i64: 32, 96>}, {pipeline_mode = #tpu.pipeline_mode<synchronous>, transform_indices = @transform_15, window_bounds = array<i64: 1, 96>}, {transform_indices = @transform_16, window_bounds = array<i64: 16, 128>}]} {
    %c0_i32 = arith.constant 0 : i32
    %0 = arith.cmpi eq, %arg1, %c0_i32 : i32
    %1 = arith.extui %0 : i1 to i32
    %c0_i32_0 = arith.constant 0 : i32
    %2 = arith.cmpi ne, %1, %c0_i32_0 : i32
    scf.if %2 {
      %cst_46 = arith.constant 0.000000e+00 : f32
      %85 = vector.broadcast %cst_46 : f32 to vector<16x128xf32>
      %c0_47 = arith.constant 0 : index
      %c0_48 = arith.constant 0 : index
      %86 = vector.load %arg19[%c0_47, %c0_48] : memref<16x128xf32, #tpu.memory_space<vmem>>, vector<16x128xf32>
      tpu.vector_store %arg19[%c0_47, %c0_48], %85 {strides = array<i32>} : memref<16x128xf32, #tpu.memory_space<vmem>>, vector<16x128xf32>,
      %cst_49 = arith.constant 0.000000e+00 : f32
      %87 = vector.broadcast %cst_49 : f32 to vector<16x8x32xf32>
      %c0_50 = arith.constant 0 : index
      %c0_51 = arith.constant 0 : index
      %c0_52 = arith.constant 0 : index
      %88 = vector.load %arg20[%c0_50, %c0_51, %c0_52] : memref<16x8x32xf32, #tpu.memory_space<vmem>>, vector<16x8x32xf32>
      tpu.vector_store %arg20[%c0_50, %c0_51, %c0_52], %87 {strides = array<i32>} : memref<16x8x32xf32, #tpu.memory_space<vmem>>, vector<16x8x32xf32>,
    } else {
    }
    %c0 = arith.constant 0 : index
    %c0_1 = arith.constant 0 : index
    %c0_2 = arith.constant 0 : index
    %3 = vector.load %arg9[%c0, %c0_1, %c0_2] : memref<16x16x16xbf16, #tpu.memory_space<vmem>>, vector<16x16x16xbf16>
    %4 = arith.extf %3 : vector<16x16x16xbf16> to vector<16x16x16xf32>
    %5 = vector.shape_cast %4 : vector<16x16x16xf32> to vector<256x16xf32>
    %c0_3 = arith.constant 0 : index
    %c0_4 = arith.constant 0 : index
    %6 = vector.load %arg13[%c0_3, %c0_4] : memref<16x128xf32, #tpu.memory_space<vmem>>, vector<16x128xf32>
    %cst = arith.constant dense<0.000000e+00> : vector<256x128xf32>
    %7 = tpu.matmul %5, %6, %cst {dimension_numbers = #tpu.dot_dimension_numbers<[1], [0], [0], [1], [0, 0, 1, 1], [], []>} : vector<256x16xf32>, vector<16x128xf32>, vector<256x128xf32> -> vector<256x128xf32>
    %c0_5 = arith.constant 0 : index
    %c0_6 = arith.constant 0 : index
    %8 = vector.load %arg14[%c0_5, %c0_6] : memref<1x128xf32, #tpu.memory_space<vmem>>, vector<1x128xf32>
    %9 = vector.broadcast %8 : vector<1x128xf32> to vector<256x128xf32>
    %10 = arith.addf %7, %9 : vector<256x128xf32>
    %cst_7 = arith.constant 5.000000e-01 : f32
    %11 = vector.broadcast %cst_7 : f32 to vector<256x128xf32>
    %12 = arith.mulf %11, %10 : vector<256x128xf32>
    %13 = math.tanh %12 : vector<256x128xf32>
    %cst_8 = arith.constant 1.000000e+00 : f32
    %14 = vector.broadcast %cst_8 : f32 to vector<256x128xf32>
    %15 = arith.addf %14, %13 : vector<256x128xf32>
    %cst_9 = arith.constant 5.000000e-01 : f32
    %16 = vector.broadcast %cst_9 : f32 to vector<256x128xf32>
    %17 = arith.mulf %16, %15 : vector<256x128xf32>
    %18 = arith.mulf %10, %17 : vector<256x128xf32>
    %19 = vector.shape_cast %18 : vector<256x128xf32> to vector<16x16x128xf32>
    %c0_10 = arith.constant 0 : index
    %c0_11 = arith.constant 0 : index
    %20 = vector.load %arg7[%c0_10, %c0_11] : memref<16x128xf32, #tpu.memory_space<vmem>>, vector<16x128xf32>
    %21 = vector.shape_cast %20 : vector<16x128xf32> to vector<1x16x128xf32>
    %22 = vector.broadcast %21 : vector<1x16x128xf32> to vector<16x16x128xf32>
    %23 = arith.mulf %19, %22 : vector<16x16x128xf32>
    %c0_12 = arith.constant 0 : index
    %c0_13 = arith.constant 0 : index
    %24 = vector.load %arg3[%c0_12, %c0_13] : memref<16x128xf32, #tpu.memory_space<vmem>>, vector<16x128xf32>
    %25 = vector.shape_cast %24 : vector<16x128xf32> to vector<16x1x128xf32>
    %26 = vector.broadcast %25 : vector<16x1x128xf32> to vector<16x16x128xf32>
    %27 = arith.mulf %23, %26 : vector<16x16x128xf32>
    %28 = vector.extract_strided_slice %27 {offsets = [0, 0, 0], sizes = [16, 16, 32], strides = [1, 1, 1]} : vector<16x16x128xf32> to vector<16x16x32xf32>
    %29 = vector.shape_cast %28 : vector<16x16x32xf32> to vector<256x32xf32>
    %c0_14 = arith.constant 0 : index
    %c0_15 = arith.constant 0 : index
    %30 = vector.load %arg15[%c0_14, %c0_15] : memref<32x32xf32, #tpu.memory_space<vmem>>, vector<32x32xf32>
    %cst_16 = arith.constant dense<0.000000e+00> : vector<256x32xf32>
    %31 = tpu.matmul %29, %30, %cst_16 {dimension_numbers = #tpu.dot_dimension_numbers<[1], [0], [0], [1], [0, 0, 1, 1], [], []>} : vector<256x32xf32>, vector<32x32xf32>, vector<256x32xf32> -> vector<256x32xf32>
    %32 = vector.shape_cast %31 : vector<256x32xf32> to vector<16x16x32xf32>
    %cst_17 = arith.constant 5.000000e-01 : f32
    %33 = vector.broadcast %cst_17 : f32 to vector<16x16x32xf32>
    %34 = arith.mulf %33, %32 : vector<16x16x32xf32>
    %35 = math.tanh %34 : vector<16x16x32xf32>
    %cst_18 = arith.constant 1.000000e+00 : f32
    %36 = vector.broadcast %cst_18 : f32 to vector<16x16x32xf32>
    %37 = arith.addf %36, %35 : vector<16x16x32xf32>
    %cst_19 = arith.constant 5.000000e-01 : f32
    %38 = vector.broadcast %cst_19 : f32 to vector<16x16x32xf32>
    %39 = arith.mulf %38, %37 : vector<16x16x32xf32>
    %40 = arith.mulf %32, %39 : vector<16x16x32xf32>
    %c0_20 = arith.constant 0 : index
    %c0_21 = arith.constant 0 : index
    %41 = vector.load %arg10[%c0_20, %c0_21] : memref<16x16xbf16, #tpu.memory_space<vmem>>, vector<16x16xbf16>
    %42 = arith.extf %41 : vector<16x16xbf16> to vector<16x16xf32>
    %43 = vector.shape_cast %42 : vector<16x16xf32> to vector<16x16x1xf32>
    %44 = vector.broadcast %43 : vector<16x16x1xf32> to vector<16x16x32xf32>
    %45 = arith.mulf %40, %44 : vector<16x16x32xf32>
    %c0_22 = arith.constant 0 : index
    %c0_23 = arith.constant 0 : index
    %46 = vector.load %arg11[%c0_22, %c0_23] : memref<16x16xbf16, #tpu.memory_space<vmem>>, vector<16x16xbf16>
    %47 = arith.extf %46 : vector<16x16xbf16> to vector<16x16xf32>
    %48 = vector.shape_cast %47 : vector<16x16xf32> to vector<16x16x1xf32>
    %49 = vector.extract_strided_slice %27 {offsets = [0, 0, 64], sizes = [16, 16, 32], strides = [1, 1, 1]} : vector<16x16x128xf32> to vector<16x16x32xf32>
    %50 = vector.broadcast %48 : vector<16x16x1xf32> to vector<16x16x32xf32>
    %51 = arith.mulf %49, %50 : vector<16x16x32xf32>
    %c0_24 = arith.constant 0 : index
    %c0_25 = arith.constant 0 : index
    %52 = vector.load %arg8[%c0_24, %c0_25] : memref<16x96xf32, #tpu.memory_space<vmem>>, vector<16x96xf32>
    %53 = vector.extract_strided_slice %27 {offsets = [0, 0, 32], sizes = [16, 16, 32], strides = [1, 1, 1]} : vector<16x16x128xf32> to vector<16x16x32xf32>
    %54 = arith.mulf %45, %53 : vector<16x16x32xf32>
    %cst_26 = arith.constant dense<0.000000e+00> : vector<16x32xf32>
    %55 = vector.multi_reduction <add>, %54, %cst_26 [1] : vector<16x16x32xf32> to vector<16x32xf32>
    %56 = vector.extract_strided_slice %52 {offsets = [0, 0], sizes = [16, 32], strides = [1, 1]} : vector<16x96xf32> to vector<16x32xf32>
    %57 = vector.shape_cast %56 : vector<16x32xf32> to vector<1x16x32xf32>
    %58 = vector.broadcast %57 : vector<1x16x32xf32> to vector<16x16x32xf32>
    %59 = arith.mulf %51, %58 : vector<16x16x32xf32>
    %cst_27 = arith.constant dense<0.000000e+00> : vector<16x32xf32>
    %60 = vector.multi_reduction <add>, %59, %cst_27 [1] : vector<16x16x32xf32> to vector<16x32xf32>
    %61 = vector.extract_strided_slice %52 {offsets = [0, 32], sizes = [16, 32], strides = [1, 1]} : vector<16x96xf32> to vector<16x32xf32>
    %62 = vector.shape_cast %61 : vector<16x32xf32> to vector<1x16x32xf32>
    %63 = vector.broadcast %62 : vector<1x16x32xf32> to vector<16x16x32xf32>
    %64 = arith.mulf %51, %63 : vector<16x16x32xf32>
    %cst_28 = arith.constant dense<0.000000e+00> : vector<16x32xf32>
    %65 = vector.multi_reduction <add>, %64, %cst_28 [1] : vector<16x16x32xf32> to vector<16x32xf32>
    %66 = vector.extract_strided_slice %52 {offsets = [0, 64], sizes = [16, 32], strides = [1, 1]} : vector<16x96xf32> to vector<16x32xf32>
    %67 = vector.shape_cast %66 : vector<16x32xf32> to vector<1x16x32xf32>
    %68 = vector.broadcast %67 : vector<1x16x32xf32> to vector<16x16x32xf32>
    %69 = arith.mulf %51, %68 : vector<16x16x32xf32>
    %cst_29 = arith.constant dense<0.000000e+00> : vector<16x32xf32>
    %70 = vector.multi_reduction <add>, %69, %cst_29 [1] : vector<16x16x32xf32> to vector<16x32xf32>
    %c0_30 = arith.constant 0 : index
    %c0_31 = arith.constant 0 : index
    %71 = vector.load %arg19[%c0_30, %c0_31] : memref<16x128xf32, #tpu.memory_space<vmem>>, vector<16x128xf32>
    %72 = tpu.concatenate %55, %60, %65, %70 in 1 : vector<16x32xf32>, vector<16x32xf32>, vector<16x32xf32>, vector<16x32xf32> -> vector<16x128xf32>
    %73 = arith.addf %71, %72 : vector<16x128xf32>
    %c0_32 = arith.constant 0 : index
    %c0_33 = arith.constant 0 : index
    %74 = vector.load %arg19[%c0_32, %c0_33] : memref<16x128xf32, #tpu.memory_space<vmem>>, vector<16x128xf32>
    tpu.vector_store %arg19[%c0_32, %c0_33], %73 {strides = array<i32>} : memref<16x128xf32, #tpu.memory_space<vmem>>, vector<16x128xf32>,
    %c0_34 = arith.constant 0 : index
    %c0_35 = arith.constant 0 : index
    %c0_36 = arith.constant 0 : index
    %75 = vector.load %arg20[%c0_34, %c0_35, %c0_36] : memref<16x8x32xf32, #tpu.memory_space<vmem>>, vector<16x8x32xf32>
    %c0_37 = arith.constant 0 : index
    %c0_38 = arith.constant 0 : index
    %c0_39 = arith.constant 0 : index
    %76 = vector.load %arg12[%c0_37, %c0_38, %c0_39] : memref<16x8x16xbf16, #tpu.memory_space<vmem>>, vector<16x8x16xbf16>
    %77 = arith.extf %76 : vector<16x8x16xbf16> to vector<16x8x16xf32>
    %78 = vector.extract_strided_slice %27 {offsets = [0, 0, 96], sizes = [16, 16, 32], strides = [1, 1, 1]} : vector<16x16x128xf32> to vector<16x16x32xf32>
    "tpu.trace_start"() <{level = 10 : i32, message = "iaj,ijc->iac"}> : () -> ()
    %cst_40 = arith.constant dense<0.000000e+00> : vector<16x8x32xf32>
    %79 = tpu.matmul %77, %78, %cst_40 {dimension_numbers = #tpu.dot_dimension_numbers<[2], [1], [1], [2], [0, 0, 0, 1, 1, 2], [0], [0]>} : vector<16x8x16xf32>, vector<16x16x32xf32>, vector<16x8x32xf32> -> vector<16x8x32xf32>
    "tpu.trace_stop"() : () -> ()
    %80 = arith.addf %75, %79 : vector<16x8x32xf32>
    %c0_41 = arith.constant 0 : index
    %c0_42 = arith.constant 0 : index
    %c0_43 = arith.constant 0 : index
    %81 = vector.load %arg20[%c0_41, %c0_42, %c0_43] : memref<16x8x32xf32, #tpu.memory_space<vmem>>, vector<16x8x32xf32>
    tpu.vector_store %arg20[%c0_41, %c0_42, %c0_43], %80 {strides = array<i32>} : memref<16x8x32xf32, #tpu.memory_space<vmem>>, vector<16x8x32xf32>,
    %c0_i32_44 = arith.constant 0 : i32
    %82 = arith.cmpi eq, %arg1, %c0_i32_44 : i32
    %83 = arith.extui %82 : i1 to i32
    %c0_i32_45 = arith.constant 0 : i32
    %84 = arith.cmpi ne, %83, %c0_i32_45 : i32
    scf.if %84 {
      %c0_46 = arith.constant 0 : index
      %c0_47 = arith.constant 0 : index
      %85 = vector.load %arg19[%c0_46, %c0_47] : memref<16x128xf32, #tpu.memory_space<vmem>>, vector<16x128xf32>
      %c0_48 = arith.constant 0 : index
      %c0_49 = arith.constant 0 : index
      %c0_50 = arith.constant 0 : index
      %86 = vector.load %arg20[%c0_48, %c0_49, %c0_50] : memref<16x8x32xf32, #tpu.memory_space<vmem>>, vector<16x8x32xf32>
      %87 = vector.extract_strided_slice %85 {offsets = [0, 0], sizes = [16, 32], strides = [1, 1]} : vector<16x128xf32> to vector<16x32xf32>
      %88 = vector.extract_strided_slice %85 {offsets = [0, 32], sizes = [16, 96], strides = [1, 1]} : vector<16x128xf32> to vector<16x96xf32>
      %c0_51 = arith.constant 0 : index
      %c0_52 = arith.constant 0 : index
      %89 = vector.load %arg16[%c0_51, %c0_52] : memref<32x96xf32, #tpu.memory_space<vmem>>, vector<32x96xf32>
      %cst_53 = arith.constant dense<0.000000e+00> : vector<16x96xf32>
      %90 = tpu.matmul %87, %89, %cst_53 {dimension_numbers = #tpu.dot_dimension_numbers<[1], [0], [0], [1], [0, 0, 1, 1], [], []>} : vector<16x32xf32>, vector<32x96xf32>, vector<16x96xf32> -> vector<16x96xf32>
      %c0_54 = arith.constant 0 : index
      %c0_55 = arith.constant 0 : index
      %91 = vector.load %arg17[%c0_54, %c0_55] : memref<1x96xf32, #tpu.memory_space<vmem>>, vector<1x96xf32>
      %92 = vector.broadcast %91 : vector<1x96xf32> to vector<16x96xf32>
      %93 = arith.addf %90, %92 : vector<16x96xf32>
      %94 = vector.extract_strided_slice %93 {offsets = [0, 0], sizes = [16, 32], strides = [1, 1]} : vector<16x96xf32> to vector<16x32xf32>
      %95 = vector.extract_strided_slice %93 {offsets = [0, 32], sizes = [16, 32], strides = [1, 1]} : vector<16x96xf32> to vector<16x32xf32>
      %96 = vector.extract_strided_slice %93 {offsets = [0, 64], sizes = [16, 32], strides = [1, 1]} : vector<16x96xf32> to vector<16x32xf32>
      %c0_56 = arith.constant 0 : index
      %c0_57 = arith.constant 0 : index
      %97 = vector.load %arg2[%c0_56, %c0_57] : memref<16x32xf32, #tpu.memory_space<vmem>>, vector<16x32xf32>
      %c0_58 = arith.constant 0 : index
      %c0_59 = arith.constant 0 : index
      %98 = vector.load %arg4[%c0_58, %c0_59] : memref<16x32xf32, #tpu.memory_space<vmem>>, vector<16x32xf32>
      %99 = arith.mulf %98, %95 : vector<16x32xf32>
      %100 = arith.addf %97, %99 : vector<16x32xf32>
      %101 = arith.addf %100, %96 : vector<16x32xf32>
      %cst_60 = arith.constant dense<0.000000e+00> : vector<16xf32>
      %102 = vector.multi_reduction <add>, %101, %cst_60 [1] : vector<16x32xf32> to vector<16xf32>
      %103 = vector.shape_cast %102 : vector<16xf32> to vector<16x1xf32>
      %cst_61 = arith.constant 3.200000e+01 : f32
      %104 = vector.broadcast %cst_61 : f32 to vector<16x1xf32>
      %105 = arith.divf %103, %104 : vector<16x1xf32>
      %106 = vector.broadcast %105 : vector<16x1xf32> to vector<16x32xf32>
      %107 = arith.subf %101, %106 : vector<16x32xf32>
      %108 = arith.mulf %107, %107 : vector<16x32xf32>
      %cst_62 = arith.constant dense<0.000000e+00> : vector<16xf32>
      %109 = vector.multi_reduction <add>, %108, %cst_62 [1] : vector<16x32xf32> to vector<16xf32>
      %110 = vector.shape_cast %109 : vector<16xf32> to vector<16x1xf32>
      %cst_63 = arith.constant 3.200000e+01 : f32
      %111 = vector.broadcast %cst_63 : f32 to vector<16x1xf32>
      %112 = arith.divf %110, %111 : vector<16x1xf32>
      %cst_64 = arith.constant 9.99999974E-6 : f32
      %113 = vector.broadcast %cst_64 : f32 to vector<16x1xf32>
      %114 = arith.addf %112, %113 : vector<16x1xf32>
      %115 = math.rsqrt %114 : vector<16x1xf32>
      %116 = vector.broadcast %115 : vector<16x1xf32> to vector<16x32xf32>
      %117 = arith.mulf %107, %116 : vector<16x32xf32>
      %c0_65 = arith.constant 0 : index
      %c0_66 = arith.constant 0 : index
      %118 = vector.load %arg5[%c0_65, %c0_66] : memref<16x96xf32, #tpu.memory_space<vmem>>, vector<16x96xf32>
      %119 = vector.extract_strided_slice %118 {offsets = [0, 0], sizes = [16, 32], strides = [1, 1]} : vector<16x96xf32> to vector<16x32xf32>
      %120 = arith.mulf %119, %94 : vector<16x32xf32>
      %121 = vector.extract_strided_slice %88 {offsets = [0, 0], sizes = [16, 32], strides = [1, 1]} : vector<16x96xf32> to vector<16x32xf32>
      %122 = arith.addf %120, %121 : vector<16x32xf32>
      %123 = vector.extract_strided_slice %86 {offsets = [0, 0, 0], sizes = [16, 1, 32], strides = [1, 1, 1]} : vector<16x8x32xf32> to vector<16x1x32xf32>
      %124 = vector.shape_cast %123 : vector<16x1x32xf32> to vector<16x32xf32>
      %125 = arith.addf %122, %124 : vector<16x32xf32>
      %126 = vector.extract_strided_slice %118 {offsets = [0, 32], sizes = [16, 32], strides = [1, 1]} : vector<16x96xf32> to vector<16x32xf32>
      %127 = arith.mulf %126, %94 : vector<16x32xf32>
      %128 = vector.extract_strided_slice %88 {offsets = [0, 32], sizes = [16, 32], strides = [1, 1]} : vector<16x96xf32> to vector<16x32xf32>
      %129 = arith.addf %127, %128 : vector<16x32xf32>
      %130 = vector.extract_strided_slice %86 {offsets = [0, 1, 0], sizes = [16, 1, 32], strides = [1, 1, 1]} : vector<16x8x32xf32> to vector<16x1x32xf32>
      %131 = vector.shape_cast %130 : vector<16x1x32xf32> to vector<16x32xf32>
      %132 = arith.addf %129, %131 : vector<16x32xf32>
      %133 = vector.extract_strided_slice %118 {offsets = [0, 64], sizes = [16, 32], strides = [1, 1]} : vector<16x96xf32> to vector<16x32xf32>
      %134 = arith.mulf %133, %94 : vector<16x32xf32>
      %135 = vector.extract_strided_slice %88 {offsets = [0, 64], sizes = [16, 32], strides = [1, 1]} : vector<16x96xf32> to vector<16x32xf32>
      %136 = arith.addf %134, %135 : vector<16x32xf32>
      %137 = vector.extract_strided_slice %86 {offsets = [0, 2, 0], sizes = [16, 1, 32], strides = [1, 1, 1]} : vector<16x8x32xf32> to vector<16x1x32xf32>
      %138 = vector.shape_cast %137 : vector<16x1x32xf32> to vector<16x32xf32>
      %139 = arith.addf %136, %138 : vector<16x32xf32>
      %140 = tpu.concatenate %125, %132, %139 in 1 : vector<16x32xf32>, vector<16x32xf32>, vector<16x32xf32> -> vector<16x96xf32>
      %c0_67 = arith.constant 0 : index
      %c0_68 = arith.constant 0 : index
      %141 = vector.load %arg6[%c0_67, %c0_68] : memref<16x96xf32, #tpu.memory_space<vmem>>, vector<16x96xf32>
      %142 = arith.addf %141, %140 : vector<16x96xf32>
      %143 = tpu.concatenate %117, %142 in 1 : vector<16x32xf32>, vector<16x96xf32> -> vector<16x128xf32>
      %c0_69 = arith.constant 0 : index
      %c0_70 = arith.constant 0 : index
      %144 = vector.load %arg18[%c0_69, %c0_70] : memref<16x128xf32, #tpu.memory_space<vmem>>, vector<16x128xf32>
      tpu.vector_store %arg18[%c0_69, %c0_70], %143 {strides = array<i32>} : memref<16x128xf32, #tpu.memory_space<vmem>>, vector<16x128xf32>,
    } else {
    }
    return
  }
  func.func @transform_0(%arg0: i32, %arg1: i32) -> (i32, i32) {
    %c0_i32 = arith.constant 0 : i32
    %c0_i32_0 = arith.constant 0 : i32
    return %arg0, %c0_i32 : i32, i32
  }
  func.func @transform_1(%arg0: i32, %arg1: i32) -> (i32, i32) {
    %c0_i32 = arith.constant 0 : i32
    %c0_i32_0 = arith.constant 0 : i32
    return %arg0, %c0_i32 : i32, i32
  }
  func.func @transform_2(%arg0: i32, %arg1: i32) -> (i32, i32) {
    %c0_i32 = arith.constant 0 : i32
    %c0_i32_0 = arith.constant 0 : i32
    return %arg0, %c0_i32 : i32, i32
  }
  func.func @transform_3(%arg0: i32, %arg1: i32) -> (i32, i32) {
    %c0_i32 = arith.constant 0 : i32
    %c0_i32_0 = arith.constant 0 : i32
    return %arg0, %c0_i32 : i32, i32
  }
  func.func @transform_4(%arg0: i32, %arg1: i32) -> (i32, i32) {
    %c0_i32 = arith.constant 0 : i32
    %c0_i32_0 = arith.constant 0 : i32
    return %arg0, %c0_i32 : i32, i32
  }
  func.func @transform_5(%arg0: i32, %arg1: i32) -> (i32, i32) {
    %c0_i32 = arith.constant 0 : i32
    %c0_i32_0 = arith.constant 0 : i32
    return %arg1, %c0_i32 : i32, i32
  }
  func.func @transform_6(%arg0: i32, %arg1: i32) -> (i32, i32) {
    %c0_i32 = arith.constant 0 : i32
    %c0_i32_0 = arith.constant 0 : i32
    return %arg1, %c0_i32 : i32, i32
  }
  func.func @transform_7(%arg0: i32, %arg1: i32) -> (i32, i32, i32) {
    %c0_i32 = arith.constant 0 : i32
    %c0_i32_0 = arith.constant 0 : i32
    return %arg0, %arg1, %c0_i32 : i32, i32, i32
  }
  func.func @transform_8(%arg0: i32, %arg1: i32) -> (i32, i32) {
    %c0_i32 = arith.constant 0 : i32
    return %arg0, %arg1 : i32, i32
  }
  func.func @transform_9(%arg0: i32, %arg1: i32) -> (i32, i32) {
    %c0_i32 = arith.constant 0 : i32
    return %arg0, %arg1 : i32, i32
  }
  func.func @transform_10(%arg0: i32, %arg1: i32) -> (i32, i32, i32) {
    %c0_i32 = arith.constant 0 : i32
    %c0_i32_0 = arith.constant 0 : i32
    return %arg0, %c0_i32, %arg1 : i32, i32, i32
  }
  func.func @transform_11(%arg0: i32, %arg1: i32) -> (i32, i32) {
    %c0_i32 = arith.constant 0 : i32
    %c0_i32_0 = arith.constant 0 : i32
    %c0_i32_1 = arith.constant 0 : i32
    return %c0_i32, %c0_i32_0 : i32, i32
  }
  func.func @transform_12(%arg0: i32, %arg1: i32) -> (i32, i32) {
    %c0_i32 = arith.constant 0 : i32
    %c0_i32_0 = arith.constant 0 : i32
    %c0_i32_1 = arith.constant 0 : i32
    return %c0_i32, %c0_i32_0 : i32, i32
  }
  func.func @transform_13(%arg0: i32, %arg1: i32) -> (i32, i32) {
    %c0_i32 = arith.constant 0 : i32
    %c0_i32_0 = arith.constant 0 : i32
    %c0_i32_1 = arith.constant 0 : i32
    return %c0_i32, %c0_i32_0 : i32, i32
  }
  func.func @transform_14(%arg0: i32, %arg1: i32) -> (i32, i32) {
    %c0_i32 = arith.constant 0 : i32
    %c0_i32_0 = arith.constant 0 : i32
    %c0_i32_1 = arith.constant 0 : i32
    return %c0_i32, %c0_i32_0 : i32, i32
  }
  func.func @transform_15(%arg0: i32, %arg1: i32) -> (i32, i32) {
    %c0_i32 = arith.constant 0 : i32
    %c0_i32_0 = arith.constant 0 : i32
    %c0_i32_1 = arith.constant 0 : i32
    return %c0_i32, %c0_i32_0 : i32, i32
  }
  func.func @transform_16(%arg0: i32, %arg1: i32) -> (i32, i32) {
    %c0_i32 = arith.constant 0 : i32
    %c0_i32_0 = arith.constant 0 : i32
    return %arg0, %c0_i32 : i32, i32
  }
}

</mosaic_0001>

<llo_original>
// kernel: neg.1
$region0: #{neg.1}
  #allocation0 [shape = 's32[1]{0}', space=sflag, size = 0x4, scoped, tag = 'scoped memory for neg.1']
  %s0 = inlined_call_operand.vmem [shape: f32[16], index: 0, kind: input, shape index: {}]
  %s1 = inlined_call_operand.vmem [shape: f32[16], index: 1, kind: output, shape index: {}]
  %v2 = vld [vmem:[%s0] sm:$0x1]
  %3 = xla_tuple %v2
  %4 = xla_tuple %3
  %v5 = vxor.u32 %v2, 2147483648
  %6 = xla_tuple %v5
  %7 = vst [vmem:[%s1] sm:$0x1] %v5

// kernel: custom-call.3
$region0: #{custom-call.3}
  %s0 = inlined_call_operand.vmem [shape: f32[16,2,2], index: 0, kind: input, shape index: {}]
  %s1 = inlined_call_operand.vmem [shape: f32[16,2,2], index: 1, kind: input, shape index: {}]
  %s2 = inlined_call_operand.vmem [shape: f32[16,2,2], index: 2, kind: input, shape index: {}]
  %s3 = inlined_call_operand.vmem [shape: f32[16,2,2], index: 3, kind: input, shape index: {}]
  %s4 = inlined_call_operand.vmem [shape: f32[16,2], index: 4, kind: output, shape index: {0}]
  %s5 = inlined_call_operand.vmem [shape: f32[16,2], index: 5, kind: output, shape index: {1}]
  %s6 = inlined_call_operand.vmem [shape: f32[16,2,2], index: 6, kind: output, shape index: {2}]
  %s7 = inlined_call_operand.vmem [shape: f32[16,2,2], index: 7, kind: output, shape index: {3}]
  %s8 = inlined_call_operand.vmem [shape: f32[16,2,2], index: 8, kind: output, shape index: {4}]
  %s9 = inlined_call_operand.vmem [shape: f32[16,2,2], index: 9, kind: output, shape index: {5}]
  %10 = xla_tuple %s4, %s5, %s6, %s7, %s8, %s9
  $region1: #{custom-call.3} parent=0
    #allocation0 [shape = 'u8[4096]{0}', space=vmem, size = 0x1000, scoped, tag = 'operand span for operand 0']
    #allocation1 [shape = 'u8[2048]{0}', space=vmem, size = 0x800, scoped, tag = 'packed  for operand 0']
    #allocation2 [shape = 'u8[4096]{0}', space=vmem, size = 0x1000, scoped, tag = 'operand span for operand 1']
    #allocation3 [shape = 'u8[2048]{0}', space=vmem, size = 0x800, scoped, tag = 'packed  for operand 1']
    #allocation4 [shape = 'u8[4096]{0}', space=vmem, size = 0x1000, scoped, tag = 'operand span for operand 2']
    #allocation5 [shape = 'u8[2048]{0}', space=vmem, size = 0x800, scoped, tag = 'packed  for operand 2']
    #allocation6 [shape = 'u8[4096]{0}', space=vmem, size = 0x1000, scoped, tag = 'operand span for operand 3']
    #allocation7 [shape = 'u8[2048]{0}', space=vmem, size = 0x800, scoped, tag = 'packed  for operand 3']
    #allocation8 [shape = 'u8[8192]{0}', space=vmem, size = 0x2000, scoped, tag = 'operand span for operand 4']
    #allocation9 [shape = 'u8[8192]{0}', space=vmem, size = 0x2000, scoped, tag = 'operand span for operand 5']
    #allocation10 [shape = 'u8[4096]{0}', space=vmem, size = 0x1000, scoped, tag = 'operand span for operand 6']
    #allocation11 [shape = 'u8[2048]{0}', space=vmem, size = 0x800, scoped, tag = 'packed  for operand 6']
    #allocation12 [shape = 'u8[4096]{0}', space=vmem, size = 0x1000, scoped, tag = 'operand span for operand 7']
    #allocation13 [shape = 'u8[2048]{0}', space=vmem, size = 0x800, scoped, tag = 'packed  for operand 7']
    #allocation14 [shape = 'u8[4096]{0}', space=vmem, size = 0x1000, scoped, tag = 'operand span for operand 8']
    #allocation15 [shape = 'u8[2048]{0}', space=vmem, size = 0x800, scoped, tag = 'packed  for operand 8']
    #allocation16 [shape = 'u8[4096]{0}', space=vmem, size = 0x1000, scoped, tag = 'operand span for operand 9']
    #allocation17 [shape = 'u8[2048]{0}', space=vmem, size = 0x800, scoped, tag = 'packed  for operand 9']
    loop: start=0, step=1, limit=18
    $region2: #{custom-call.3} parent=1 // loop_pre_header
      _
    $region3: #{custom-call.3} parent=1 // loop_header
      %s12 = sphi 0, %s16
      %p13 = scmp.ge.s32.totalorder %s12, 18
      %s24 = sphi 0, %s26
      %s27 = sphi 0, %s24
      %s28 = sphi 0, %s27
      %s44 = sphi 0, %s28
      %s52 = sphi 0, %s54
      %s55 = sphi 0, %s52
      %s56 = sphi 0, %s55
      %s72 = sphi 0, %s56
    $region4: #{custom-call.3} parent=1 // loop_header_branch
      %15 = sbr.rel (%p13) target = $region8
    $region5: #{custom-call.3} parent=1 // loop_body
      %s17 = ssub.s32 %s12, 1
      %s18 = ssub.s32 %s12, 2
      %s19 = sadd.s32 %s12, 1
      %s20 = sshrl.u32 %s12, 3
      %s21 = sshrl.u32 %s19, 3
      %s22 = ssub.s32 %s20, %s21
      %p23 = scmp.eq.s32.totalorder %s22, 0
      %s25 = sadd.s32 %s24, 1
      %s26 = scalar_select %p23, %s24, %s25
      %p29 = pneg %p23
      %p30 = scmp.eq.s32.totalorder %s12, 15
      %p31 = por %p29, %p30
      %p32 = scmp.ne.s32.totalorder %s24, %s27
      %p33 = scmp.eq.s32.totalorder %s12, 0
      %p34 = por %p32, %p33
      %p35 = scmp.ne.s32.totalorder %s24, %s27
      %p36 = scmp.eq.s32.totalorder %s17, 15
      %p37 = por %p35, %p36
      %p38 = scmp.ne.s32.totalorder %s27, %s28
      %p39 = scmp.eq.s32.totalorder %s17, 0
      %p40 = por %p38, %p39
      %p41 = scmp.ne.s32.totalorder %s27, %s28
      %p42 = scmp.eq.s32.totalorder %s18, 15
      %p43 = por %p41, %p42
      %p45 = scmp.ne.s32.totalorder %s28, %s44
      %p46 = scmp.eq.s32.totalorder %s18, 0
      %p47 = por %p45, %p46
      %s48 = sshrl.u32 %s12, 3
      %s49 = sshrl.u32 %s19, 3
      %s50 = ssub.s32 %s48, %s49
      %p51 = scmp.eq.s32.totalorder %s50, 0
      %s53 = sadd.s32 %s52, 1
      %s54 = scalar_select %p51, %s52, %s53
      %p57 = pneg %p51
      %p58 = scmp.eq.s32.totalorder %s12, 15
      %p59 = por %p57, %p58
      %p60 = scmp.ne.s32.totalorder %s52, %s55
      %p61 = scmp.eq.s32.totalorder %s12, 0
      %p62 = por %p60, %p61
      %p63 = scmp.ne.s32.totalorder %s52, %s55
      %p64 = scmp.eq.s32.totalorder %s17, 15
      %p65 = por %p63, %p64
      %p66 = scmp.ne.s32.totalorder %s55, %s56
      %p67 = scmp.eq.s32.totalorder %s17, 0
      %p68 = por %p66, %p67
      %p69 = scmp.ne.s32.totalorder %s55, %s56
      %p70 = scmp.eq.s32.totalorder %s18, 15
      %p71 = por %p69, %p70
      %p73 = scmp.ne.s32.totalorder %s56, %s72
      %p74 = scmp.eq.s32.totalorder %s18, 0
      %p75 = por %p73, %p74
      %p76 = scmp.le.s32.totalorder 1, %s12
      %p77 = scmp.lt.s32.totalorder %s12, 17
      %p78 = pnand %p76, %p77
      %p79 = pneg %p78
      // Predicated region
      $region9: #{custom-call.3} parent=5 // pred_check
        _
      $region10: #{custom-call.3} parent=5 // pred_check_branch
        %81 = sbr.rel (%p78) target = $region12
      $region11: #{custom-call.3} parent=5 // pred_region
        %s82 = ssub.s32 %s12, 1
      $region12: #{custom-call.3} parent=5 // pred_fallthru
        _
      %p83 = scmp.lt.s32.totalorder %s12, 16
      // Predicated region
      $region13: #{custom-call.3} parent=5 // pred_check
        %p84 = pneg %p83
      $region14: #{custom-call.3} parent=5 // pred_check_branch
        %86 = sbr.rel (%p84) target = $region16
      $region15: #{custom-call.3} parent=5 // pred_region
        %s87 = sand.u32 %s12, 1
        %s88 = sand.u32 %s12, 1
        %s89 = smul.addr %s88, 2
        %s90 = scalar_lea.vmem [#allocation1], %s89
        %s91 = smul.addr %s12, 2
        %s92 = scalar_lea.vmem %s0, %s91
        // Predicated region
        $region17: #{custom-call.3} parent=15 // pred_check
          _
        $region18: #{custom-call.3} parent=15 // pred_check_branch
          %94 = sbr.rel (0) target = $region20
        $region19: #{custom-call.3} parent=15 // pred_region
          // Predicated region
          $region21: #{custom-call.3} parent=19 // pred_check
            _
          $region22: #{custom-call.3} parent=19 // pred_check_branch
            %96 = sbr.rel target = $region24
          $region23: #{custom-call.3} parent=19 // pred_region
            // Predicated region
            $region36: #{custom-call.3} parent=23 // pred_check
              _
            $region37: #{custom-call.3} parent=23 // pred_check_branch
              %112 = sbr.rel (0) target = $region39
            $region38: #{custom-call.3} parent=23 // pred_region
              %s114 = ssub.s32 4, 1
              loop: start=0, step=1, limit=1
              $region40: #{custom-call.3} parent=38 // loop_pre_header
                _
              $region41: #{custom-call.3} parent=38 // loop_header
                %s116 = sphi 0, %s120
                %p117 = scmp.ge.s32.totalorder %s116, 1
                %s121 = sphi %s92, %s92
                %s122 = sphi %s90, %s90
              $region42: #{custom-call.3} parent=38 // loop_header_branch
                %119 = sbr.rel (%p117) target = $region46
              $region43: #{custom-call.3} parent=38 // loop_body
                %v123 = vld [vmem:[%s121] sm:%s114]
                %124 = vst [vmem:[%s122] sm:%s114] %v123
              $region44: #{custom-call.3} parent=38 // loop_footer
                %s120 = sadd.s32 1, %s116
              $region45: #{custom-call.3} parent=38 // loop_footer_branch
                %115 = sbr.rel target = $region41
              $region46: #{custom-call.3} parent=38 // loop_exit
                _
            $region39: #{custom-call.3} parent=23 // pred_fallthru
              _
          $region24: #{custom-call.3} parent=19 // pred_fallthru
            _
          // Predicated region
          $region25: #{custom-call.3} parent=19 // pred_check
            _
          $region26: #{custom-call.3} parent=19 // pred_check_branch
            %98 = sbr.rel (0) target = $region28
          $region27: #{custom-call.3} parent=19 // pred_region
            %s100 = ssub.s32 4, 1
            loop: start=0, step=1, limit=1
            $region29: #{custom-call.3} parent=27 // loop_pre_header
              _
            $region30: #{custom-call.3} parent=27 // loop_header
              %s102 = sphi 0, %s106
              %p103 = scmp.ge.s32.totalorder %s102, 1
              %s107 = sphi %s92, %s92
              %s108 = sphi %s90, %s90
            $region31: #{custom-call.3} parent=27 // loop_header_branch
              %105 = sbr.rel (%p103) target = $region35
            $region32: #{custom-call.3} parent=27 // loop_body
              %v109 = vld [vmem:[%s107] sm:%s100]
              %110 = vst [vmem:[%s108] sm:%s100] %v109
            $region33: #{custom-call.3} parent=27 // loop_footer
              %s106 = sadd.s32 1, %s102
            $region34: #{custom-call.3} parent=27 // loop_footer_branch
              %101 = sbr.rel target = $region30
            $region35: #{custom-call.3} parent=27 // loop_exit
              _
          $region28: #{custom-call.3} parent=19 // pred_fallthru
            _
        $region20: #{custom-call.3} parent=15 // pred_fallthru
          _
        %125 = vnop
        %s126 = sand.u32 %s12, 1
        %s127 = sand.u32 %s12, 1
        %s128 = smul.addr %s127, 2
        %s129 = scalar_lea.vmem [#allocation3], %s128
        %s130 = smul.addr %s12, 2
        %s131 = scalar_lea.vmem %s1, %s130
        // Predicated region
        $region47: #{custom-call.3} parent=15 // pred_check
          _
        $region48: #{custom-call.3} parent=15 // pred_check_branch
          %133 = sbr.rel (0) target = $region50
        $region49: #{custom-call.3} parent=15 // pred_region
          // Predicated region
          $region51: #{custom-call.3} parent=49 // pred_check
            _
          $region52: #{custom-call.3} parent=49 // pred_check_branch
            %135 = sbr.rel target = $region54
          $region53: #{custom-call.3} parent=49 // pred_region
            // Predicated region
            $region66: #{custom-call.3} parent=53 // pred_check
              _
            $region67: #{custom-call.3} parent=53 // pred_check_branch
              %151 = sbr.rel (0) target = $region69
            $region68: #{custom-call.3} parent=53 // pred_region
              %s153 = ssub.s32 4, 1
              loop: start=0, step=1, limit=1
              $region70: #{custom-call.3} parent=68 // loop_pre_header
                _
              $region71: #{custom-call.3} parent=68 // loop_header
                %s155 = sphi 0, %s159
                %p156 = scmp.ge.s32.totalorder %s155, 1
                %s160 = sphi %s131, %s131
                %s161 = sphi %s129, %s129
              $region72: #{custom-call.3} parent=68 // loop_header_branch
                %158 = sbr.rel (%p156) target = $region76
              $region73: #{custom-call.3} parent=68 // loop_body
                %v162 = vld [vmem:[%s160] sm:%s153]
                %163 = vst [vmem:[%s161] sm:%s153] %v162
              $region74: #{custom-call.3} parent=68 // loop_footer
                %s159 = sadd.s32 1, %s155
              $region75: #{custom-call.3} parent=68 // loop_footer_branch
                %154 = sbr.rel target = $region71
              $region76: #{custom-call.3} parent=68 // loop_exit
                _
            $region69: #{custom-call.3} parent=53 // pred_fallthru
              _
          $region54: #{custom-call.3} parent=49 // pred_fallthru
            _
          // Predicated region
          $region55: #{custom-call.3} parent=49 // pred_check
            _
          $region56: #{custom-call.3} parent=49 // pred_check_branch
            %137 = sbr.rel (0) target = $region58
          $region57: #{custom-call.3} parent=49 // pred_region
            %s139 = ssub.s32 4, 1
            loop: start=0, step=1, limit=1
            $region59: #{custom-call.3} parent=57 // loop_pre_header
              _
            $region60: #{custom-call.3} parent=57 // loop_header
              %s141 = sphi 0, %s145
              %p142 = scmp.ge.s32.totalorder %s141, 1
              %s146 = sphi %s131, %s131
              %s147 = sphi %s129, %s129
            $region61: #{custom-call.3} parent=57 // loop_header_branch
              %144 = sbr.rel (%p142) target = $region65
            $region62: #{custom-call.3} parent=57 // loop_body
              %v148 = vld [vmem:[%s146] sm:%s139]
              %149 = vst [vmem:[%s147] sm:%s139] %v148
            $region63: #{custom-call.3} parent=57 // loop_footer
              %s145 = sadd.s32 1, %s141
            $region64: #{custom-call.3} parent=57 // loop_footer_branch
              %140 = sbr.rel target = $region60
            $region65: #{custom-call.3} parent=57 // loop_exit
              _
          $region58: #{custom-call.3} parent=49 // pred_fallthru
            _
        $region50: #{custom-call.3} parent=15 // pred_fallthru
          _
        %164 = vnop
        %s165 = sand.u32 %s12, 1
        %s166 = sand.u32 %s12, 1
        %s167 = smul.addr %s166, 2
        %s168 = scalar_lea.vmem [#allocation5], %s167
        %s169 = smul.addr %s12, 2
        %s170 = scalar_lea.vmem %s2, %s169
        // Predicated region
        $region77: #{custom-call.3} parent=15 // pred_check
          _
        $region78: #{custom-call.3} parent=15 // pred_check_branch
          %172 = sbr.rel (0) target = $region80
        $region79: #{custom-call.3} parent=15 // pred_region
          // Predicated region
          $region81: #{custom-call.3} parent=79 // pred_check
            _
          $region82: #{custom-call.3} parent=79 // pred_check_branch
            %174 = sbr.rel target = $region84
          $region83: #{custom-call.3} parent=79 // pred_region
            // Predicated region
            $region96: #{custom-call.3} parent=83 // pred_check
              _
            $region97: #{custom-call.3} parent=83 // pred_check_branch
              %190 = sbr.rel (0) target = $region99
            $region98: #{custom-call.3} parent=83 // pred_region
              %s192 = ssub.s32 4, 1
              loop: start=0, step=1, limit=1
              $region100: #{custom-call.3} parent=98 // loop_pre_header
                _
              $region101: #{custom-call.3} parent=98 // loop_header
                %s194 = sphi 0, %s198
                %p195 = scmp.ge.s32.totalorder %s194, 1
                %s199 = sphi %s170, %s170
                %s200 = sphi %s168, %s168
              $region102: #{custom-call.3} parent=98 // loop_header_branch
                %197 = sbr.rel (%p195) target = $region106
              $region103: #{custom-call.3} parent=98 // loop_body
                %v201 = vld [vmem:[%s199] sm:%s192]
                %202 = vst [vmem:[%s200] sm:%s192] %v201
              $region104: #{custom-call.3} parent=98 // loop_footer
                %s198 = sadd.s32 1, %s194
              $region105: #{custom-call.3} parent=98 // loop_footer_branch
                %193 = sbr.rel target = $region101
              $region106: #{custom-call.3} parent=98 // loop_exit
                _
            $region99: #{custom-call.3} parent=83 // pred_fallthru
              _
          $region84: #{custom-call.3} parent=79 // pred_fallthru
            _
          // Predicated region
          $region85: #{custom-call.3} parent=79 // pred_check
            _
          $region86: #{custom-call.3} parent=79 // pred_check_branch
            %176 = sbr.rel (0) target = $region88
          $region87: #{custom-call.3} parent=79 // pred_region
            %s178 = ssub.s32 4, 1
            loop: start=0, step=1, limit=1
            $region89: #{custom-call.3} parent=87 // loop_pre_header
              _
            $region90: #{custom-call.3} parent=87 // loop_header
              %s180 = sphi 0, %s184
              %p181 = scmp.ge.s32.totalorder %s180, 1
              %s185 = sphi %s170, %s170
              %s186 = sphi %s168, %s168
            $region91: #{custom-call.3} parent=87 // loop_header_branch
              %183 = sbr.rel (%p181) target = $region95
            $region92: #{custom-call.3} parent=87 // loop_body
              %v187 = vld [vmem:[%s185] sm:%s178]
              %188 = vst [vmem:[%s186] sm:%s178] %v187
            $region93: #{custom-call.3} parent=87 // loop_footer
              %s184 = sadd.s32 1, %s180
            $region94: #{custom-call.3} parent=87 // loop_footer_branch
              %179 = sbr.rel target = $region90
            $region95: #{custom-call.3} parent=87 // loop_exit
              _
          $region88: #{custom-call.3} parent=79 // pred_fallthru
            _
        $region80: #{custom-call.3} parent=15 // pred_fallthru
          _
        %203 = vnop
        %s204 = sand.u32 %s12, 1
        %s205 = sand.u32 %s12, 1
        %s206 = smul.addr %s205, 2
        %s207 = scalar_lea.vmem [#allocation7], %s206
        %s208 = smul.addr %s12, 2
        %s209 = scalar_lea.vmem %s3, %s208
        // Predicated region
        $region107: #{custom-call.3} parent=15 // pred_check
          _
        $region108: #{custom-call.3} parent=15 // pred_check_branch
          %211 = sbr.rel (0) target = $region110
        $region109: #{custom-call.3} parent=15 // pred_region
          // Predicated region
          $region111: #{custom-call.3} parent=109 // pred_check
            _
          $region112: #{custom-call.3} parent=109 // pred_check_branch
            %213 = sbr.rel target = $region114
          $region113: #{custom-call.3} parent=109 // pred_region
            // Predicated region
            $region126: #{custom-call.3} parent=113 // pred_check
              _
            $region127: #{custom-call.3} parent=113 // pred_check_branch
              %229 = sbr.rel (0) target = $region129
            $region128: #{custom-call.3} parent=113 // pred_region
              %s231 = ssub.s32 4, 1
              loop: start=0, step=1, limit=1
              $region130: #{custom-call.3} parent=128 // loop_pre_header
                _
              $region131: #{custom-call.3} parent=128 // loop_header
                %s233 = sphi 0, %s237
                %p234 = scmp.ge.s32.totalorder %s233, 1
                %s238 = sphi %s209, %s209
                %s239 = sphi %s207, %s207
              $region132: #{custom-call.3} parent=128 // loop_header_branch
                %236 = sbr.rel (%p234) target = $region136
              $region133: #{custom-call.3} parent=128 // loop_body
                %v240 = vld [vmem:[%s238] sm:%s231]
                %241 = vst [vmem:[%s239] sm:%s231] %v240
              $region134: #{custom-call.3} parent=128 // loop_footer
                %s237 = sadd.s32 1, %s233
              $region135: #{custom-call.3} parent=128 // loop_footer_branch
                %232 = sbr.rel target = $region131
              $region136: #{custom-call.3} parent=128 // loop_exit
                _
            $region129: #{custom-call.3} parent=113 // pred_fallthru
              _
          $region114: #{custom-call.3} parent=109 // pred_fallthru
            _
          // Predicated region
          $region115: #{custom-call.3} parent=109 // pred_check
            _
          $region116: #{custom-call.3} parent=109 // pred_check_branch
            %215 = sbr.rel (0) target = $region118
          $region117: #{custom-call.3} parent=109 // pred_region
            %s217 = ssub.s32 4, 1
            loop: start=0, step=1, limit=1
            $region119: #{custom-call.3} parent=117 // loop_pre_header
              _
            $region120: #{custom-call.3} parent=117 // loop_header
              %s219 = sphi 0, %s223
              %p220 = scmp.ge.s32.totalorder %s219, 1
              %s224 = sphi %s209, %s209
              %s225 = sphi %s207, %s207
            $region121: #{custom-call.3} parent=117 // loop_header_branch
              %222 = sbr.rel (%p220) target = $region125
            $region122: #{custom-call.3} parent=117 // loop_body
              %v226 = vld [vmem:[%s224] sm:%s217]
              %227 = vst [vmem:[%s225] sm:%s217] %v226
            $region123: #{custom-call.3} parent=117 // loop_footer
              %s223 = sadd.s32 1, %s219
            $region124: #{custom-call.3} parent=117 // loop_footer_branch
              %218 = sbr.rel target = $region120
            $region125: #{custom-call.3} parent=117 // loop_exit
              _
          $region118: #{custom-call.3} parent=109 // pred_fallthru
            _
        $region110: #{custom-call.3} parent=15 // pred_fallthru
          _
        %242 = vnop
      $region16: #{custom-call.3} parent=5 // pred_fallthru
        _
      %p243 = scmp.le.s32.totalorder 1, %s12
      %p244 = scmp.lt.s32.totalorder %s12, 17
      %p245 = pnand %p243, %p244
      %p246 = pneg %p245
      // Predicated region
      $region137: #{custom-call.3} parent=5 // pred_check
        _
      $region138: #{custom-call.3} parent=5 // pred_check_branch
        %248 = sbr.rel (%p245) target = $region140
      $region139: #{custom-call.3} parent=5 // pred_region
        #allocation18 [shape = 'f32[2,2]{1,0}', space=vmem, size = 0x1000, scoped, tag = 'a top-left matrix']
        #allocation19 [shape = 'f32[2,2]{1,0}', space=vmem, size = 0x1000, scoped, tag = 'a top-right matrix']
        #allocation20 [shape = 'f32[2,2]{1,0}', space=vmem, size = 0x1000, scoped, tag = 'a bottom-left matrix']
        #allocation21 [shape = 'f32[2,2]{1,0}', space=vmem, size = 0x1000, scoped, tag = 'a bottom-right matrix']
        %s249 = ssub.s32 %s12, 1
        %s250 = sand.u32 %s17, 1
        %s251 = sand.u32 %s17, 1
        %s252 = smul.addr %s251, 2
        %s253 = scalar_lea.vmem [#allocation1], %s252
        %s254 = sand.u32 %s17, 1
        %s255 = sand.u32 %s17, 1
        %s256 = smul.addr %s255, 2
        %s257 = scalar_lea.vmem [#allocation3], %s256
        %s258 = sand.u32 %s17, 1
        %s259 = sand.u32 %s17, 1
        %s260 = smul.addr %s259, 2
        %s261 = scalar_lea.vmem [#allocation5], %s260
        %s262 = sand.u32 %s17, 1
        %s263 = sand.u32 %s17, 1
        %s264 = smul.addr %s263, 2
        %s265 = scalar_lea.vmem [#allocation7], %s264
        %s266 = sand.u32 %s17, 1
        %s267 = sand.u32 %s17, 1
        %s268 = smul.addr %s267, 2
        %s269 = scalar_lea.vmem [#allocation1], %s268
        %s270 = sand.u32 %s17, 1
        %s271 = sand.u32 %s17, 1
        %s272 = smul.addr %s271, 2
        %s273 = scalar_lea.vmem [#allocation3], %s272
        %s274 = sand.u32 %s17, 1
        %s275 = sand.u32 %s17, 1
        %s276 = smul.addr %s275, 2
        %s277 = scalar_lea.vmem [#allocation5], %s276
        %s278 = sand.u32 %s17, 1
        %s279 = sand.u32 %s17, 1
        %s280 = smul.addr %s279, 2
        %s281 = scalar_lea.vmem [#allocation7], %s280
        %p282 = pneg %p40
        %p283 = pneg %p37
        %s284 = sand.u32 %s27, 1
        %s285 = sand.u32 %s27, 1
        %s286 = smul.addr %s285, 8
        %s287 = scalar_lea.vmem [#allocation8], %s286
        %p288 = pneg %p68
        %p289 = pneg %p65
        %s290 = sand.u32 %s55, 1
        %s291 = sand.u32 %s55, 1
        %s292 = smul.addr %s291, 8
        %s293 = scalar_lea.vmem [#allocation9], %s292
        %s294 = sand.u32 %s17, 1
        %s295 = sand.u32 %s17, 1
        %s296 = smul.addr %s295, 2
        %s297 = scalar_lea.vmem [#allocation11], %s296
        %s298 = sand.u32 %s17, 1
        %s299 = sand.u32 %s17, 1
        %s300 = smul.addr %s299, 2
        %s301 = scalar_lea.vmem [#allocation13], %s300
        %s302 = sand.u32 %s17, 1
        %s303 = sand.u32 %s17, 1
        %s304 = smul.addr %s303, 2
        %s305 = scalar_lea.vmem [#allocation15], %s304
        %s306 = sand.u32 %s17, 1
        %s307 = sand.u32 %s17, 1
        %s308 = smul.addr %s307, 2
        %s309 = scalar_lea.vmem [#allocation17], %s308
        %s311 = sshll.u32 1, 2
        %s312 = ssub.s32 %s311, 1
        %v313 = vld [vmem:[%s269] sm:%s312]
        %314 = vst [vmem:[#allocation0] sm:%s312] %v313
        %s316 = sshll.u32 1, 2
        %s317 = ssub.s32 %s316, 1
        %v318 = vld [vmem:[%s273] sm:%s317]
        %319 = vst [vmem:[#allocation2] sm:%s317] %v318
        %s321 = sshll.u32 1, 2
        %s322 = ssub.s32 %s321, 1
        %v323 = vld [vmem:[%s277] sm:%s322]
        %324 = vst [vmem:[#allocation4] sm:%s322] %v323
        %s326 = sshll.u32 1, 2
        %s327 = ssub.s32 %s326, 1
        %v328 = vld [vmem:[%s281] sm:%s327]
        %329 = vst [vmem:[#allocation6] sm:%s327] %v328
        %s330 = sshrl.u32 %s17, 3
        %s331 = sshrl.u32 %s17, 3
        %s332 = smov [#allocation18]
        %v333 = vld [vmem:[#allocation0] sm:$0xff]
        %334 = vst [vmem:[%s332] sm:$0xff] %v333
        %s335 = smov [#allocation19]
        %v336 = vld [vmem:[#allocation2] sm:$0xff]
        %337 = vst [vmem:[%s335] sm:$0xff] %v336
        %s338 = smov [#allocation20]
        %v339 = vld [vmem:[#allocation4] sm:$0xff]
        %340 = vst [vmem:[%s338] sm:$0xff] %v339
        %s341 = smov [#allocation21]
        %v342 = vld [vmem:[#allocation6] sm:$0xff]
        %343 = vst [vmem:[%s341] sm:$0xff] %v342
        %344 = vst [vmem:[#allocation10] sm:$0xff] 0.0
        %345 = vst [vmem:[#allocation12] sm:$0xff] 0.0
        %346 = vst [vmem:[#allocation14] sm:$0xff] 0.0
        %347 = vst [vmem:[#allocation16] sm:$0xff] 0.0
        %s348 = smov [#allocation10]
        %v349 = vlaneseq
        %v350 = vand.u32 %v349, 127
        %v351 = vmov %v350
        %v352 = vlaneseq
        %v353 = vshrl.u32 %v352, 7
        %v354 = vmov %v353
        %v355 = vld [vmem:[%s348] sm:$0x3]
        %vm358 = vcmp.eq.s32.totalorder %v354, %v351
        %v359 = vsel %vm358, 1.0, %v355
        %360 = vst [vmem:[%s348] sm:$0x3] %v359
        %s361 = smov [#allocation16]
        %v362 = vlaneseq
        %v363 = vand.u32 %v362, 127
        %v364 = vmov %v363
        %v365 = vlaneseq
        %v366 = vshrl.u32 %v365, 7
        %v367 = vmov %v366
        %v368 = vld [vmem:[%s361] sm:$0x3]
        %vm371 = vcmp.eq.s32.totalorder %v367, %v364
        %v372 = vsel %vm371, 1.0, %v368
        %373 = vst [vmem:[%s361] sm:$0x3] %v372
        // While loop
        $region141: #{custom-call.3} parent=139 // loop_pre_header
          _
        $region142: #{custom-call.3} parent=139 // loop_header
          %s375 = sphi 0, %s917
          %v376 = vlaneseq
          %v377 = vand.u32 %v376, 127
          %v378 = vmov %v377
          %v379 = vlaneseq
          %v380 = vshrl.u32 %v379, 7
          %v381 = vmov %v380
          %s382 = smov [#allocation18]
          %v383 = vlaneseq
          %v384 = vand.u32 %v383, 127
          %vm385 = vcmp.ge.s32.totalorder %v384, 0
          %vm386 = vcmp.lt.s32.totalorder %v384, 2
          %vm387 = vmand %vm385, %vm386
          %v388 = vld [vmem:[%s382] sm:$0x3]
          %v389 = vsel %vm387, %v388, 0.0
          %v390 = vmul.f32 %v389, %v389
          %vm393 = vcmp.eq.s32.totalorder %v381, %v378
          %v394 = vsel %vm393, 0.0, %v390
          %v395 = vlaneseq
          %v396 = vand.u32 %v395, 127
          %v397 = vmov %v396
          %v398 = vlaneseq
          %v399 = vshrl.u32 %v398, 7
          %v400 = vmov %v399
          %s401 = smov [#allocation19]
          %v402 = vlaneseq
          %v403 = vand.u32 %v402, 127
          %vm404 = vcmp.ge.s32.totalorder %v403, 0
          %vm405 = vcmp.lt.s32.totalorder %v403, 2
          %vm406 = vmand %vm404, %vm405
          %v407 = vld [vmem:[%s401] sm:$0x3]
          %v408 = vsel %vm406, %v407, 0.0
          %v409 = vmul.f32 %v408, %v408
          %v410 = vadd.f32 %v394, %v409
          %v411 = vadd.f32 %v390, %v409
          %v412 = vlaneseq
          %v413 = vand.u32 %v412, 127
          %v414 = vmov %v413
          %v415 = vlaneseq
          %v416 = vshrl.u32 %v415, 7
          %v417 = vmov %v416
          %s418 = smov [#allocation20]
          %v419 = vlaneseq
          %v420 = vand.u32 %v419, 127
          %vm421 = vcmp.ge.s32.totalorder %v420, 0
          %vm422 = vcmp.lt.s32.totalorder %v420, 2
          %vm423 = vmand %vm421, %vm422
          %v424 = vld [vmem:[%s418] sm:$0x3]
          %v425 = vsel %vm423, %v424, 0.0
          %v426 = vmul.f32 %v425, %v425
          %v427 = vadd.f32 %v410, %v426
          %v428 = vadd.f32 %v411, %v426
          %v429 = vlaneseq
          %v430 = vand.u32 %v429, 127
          %v431 = vmov %v430
          %v432 = vlaneseq
          %v433 = vshrl.u32 %v432, 7
          %v434 = vmov %v433
          %s435 = smov [#allocation21]
          %v436 = vlaneseq
          %v437 = vand.u32 %v436, 127
          %vm438 = vcmp.ge.s32.totalorder %v437, 0
          %vm439 = vcmp.lt.s32.totalorder %v437, 2
          %vm440 = vmand %vm438, %vm439
          %v441 = vld [vmem:[%s435] sm:$0x3]
          %v442 = vsel %vm440, %v441, 0.0
          %v443 = vmul.f32 %v442, %v442
          %vm446 = vcmp.eq.s32.totalorder %v434, %v431
          %v447 = vsel %vm446, 0.0, %v443
          %v448 = vadd.f32 %v427, %v447
          %v449 = vadd.f32 %v428, %v443
          %450 = vadd.xlane.f32.xlu0 %v449
          %v451 = vpop.xlane.xlu0 %450
          %v452 = vrot.slane %v451, 4
          %v453 = vadd.f32 %v451, %v452
          %v454 = vrot.slane %v453, 2
          %v455 = vadd.f32 %v453, %v454
          %v456 = vrot.slane %v455, 1
          %v457 = vadd.f32 %v455, %v456
          %458 = vadd.xlane.f32.xlu0 %v448
          %v459 = vpop.xlane.xlu0 %458
          %v460 = vrot.slane %v459, 4
          %v461 = vadd.f32 %v459, %v460
          %v462 = vrot.slane %v461, 2
          %v463 = vadd.f32 %v461, %v462
          %v464 = vrot.slane %v463, 1
          %v465 = vadd.f32 %v463, %v464
          %s466 = vtos %v465
          %s467 = vtos %v457
          %s468 = smul.f32 1e-10, %s467
          %p469 = scmp.le.f32.partialorder %s466, %s468
          %p470 = scmp.ge.s32.totalorder %s375, 15
          %p471 = por %p469, %p470
        $region143: #{custom-call.3} parent=139 // loop_header_branch
          %919 = sbr.rel (%p471) target = $region147
        $region144: #{custom-call.3} parent=139 // loop_body
          loop: start=0, step=1, limit=3
          $region148: #{custom-call.3} parent=144 // loop_pre_header
            _
          $region149: #{custom-call.3} parent=144 // loop_header
            %s473 = sphi 0, %s477
            %p474 = scmp.ge.s32.totalorder %s473, 3
          $region150: #{custom-call.3} parent=144 // loop_header_branch
            %476 = sbr.rel (%p474) target = $region154
          $region151: #{custom-call.3} parent=144 // loop_body
            #allocation22 [shape = 'f32[1024]{0}', space=vmem, size = 0x1000, scoped, tag = 'a_tl_diag vmem']
            #allocation23 [shape = 'f32[1024]{0}', space=vmem, size = 0x1000, scoped, tag = 'a_tr_diag vmem']
            #allocation24 [shape = 'f32[1024]{0}', space=vmem, size = 0x1000, scoped, tag = 'a_br_diag vmem']
            #allocation25 [shape = 'f32[1024]{0}', space=vmem, size = 0x1000, scoped, tag = 'rt1 vmem']
            #allocation26 [shape = 'f32[1024]{0}', space=vmem, size = 0x1000, scoped, tag = 'rt2 vmem']
            #allocation27 [shape = 'f32[1024]{0}', space=vmem, size = 0x1000, scoped, tag = 'c vmem']
            #allocation28 [shape = 'f32[1024]{0}', space=vmem, size = 0x1000, scoped, tag = 's vmem']
            #allocation29 [shape = 'f32[4096]{0}', space=vmem, size = 0x4000, scoped, tag = 'c broadcast']
            #allocation30 [shape = 'f32[4096]{0}', space=vmem, size = 0x4000, scoped, tag = 's broadcast']
            %s478 = smov [#allocation18]
            %s479 = smov [#allocation22]
            %v480 = vlaneseq
            %v481 = vand.u32 %v480, 127
            %v482 = vmov %v481
            %v483 = vlaneseq
            %v484 = vshrl.u32 %v483, 7
            %v485 = vmov %v484
            %v486 = vld [vmem:[%s478] sm:$0x3]
            %vm489 = vcmp.eq.s32.totalorder %v485, %v482
            %v490 = vsel %vm489, %v486, 0.0
            %v491 = vrot.slane %v490, 4
            %v492 = vadd.f32 %v490, %v491
            %v493 = vrot.slane %v492, 2
            %v494 = vadd.f32 %v492, %v493
            %v495 = vrot.slane %v494, 1
            %v496 = vadd.f32 %v494, %v495
            %497 = vst [vmem:[%s479] sm:$0x1] %v496
            %s498 = smov [#allocation19]
            %s499 = smov [#allocation23]
            %v500 = vlaneseq
            %v501 = vand.u32 %v500, 127
            %v502 = vmov %v501
            %v503 = vlaneseq
            %v504 = vshrl.u32 %v503, 7
            %v505 = vmov %v504
            %v506 = vld [vmem:[%s498] sm:$0x3]
            %vm509 = vcmp.eq.s32.totalorder %v505, %v502
            %v510 = vsel %vm509, %v506, 0.0
            %v511 = vrot.slane %v510, 4
            %v512 = vadd.f32 %v510, %v511
            %v513 = vrot.slane %v512, 2
            %v514 = vadd.f32 %v512, %v513
            %v515 = vrot.slane %v514, 1
            %v516 = vadd.f32 %v514, %v515
            %517 = vst [vmem:[%s499] sm:$0x1] %v516
            %s518 = smov [#allocation21]
            %s519 = smov [#allocation24]
            %v520 = vlaneseq
            %v521 = vand.u32 %v520, 127
            %v522 = vmov %v521
            %v523 = vlaneseq
            %v524 = vshrl.u32 %v523, 7
            %v525 = vmov %v524
            %v526 = vld [vmem:[%s518] sm:$0x3]
            %vm529 = vcmp.eq.s32.totalorder %v525, %v522
            %v530 = vsel %vm529, %v526, 0.0
            %v531 = vrot.slane %v530, 4
            %v532 = vadd.f32 %v530, %v531
            %v533 = vrot.slane %v532, 2
            %v534 = vadd.f32 %v532, %v533
            %v535 = vrot.slane %v534, 1
            %v536 = vadd.f32 %v534, %v535
            %537 = vst [vmem:[%s519] sm:$0x1] %v536
            %s538 = smov [#allocation27]
            %s539 = smov [#allocation28]
            %s540 = smov [#allocation22]
            %v541 = vld [vmem:[%s540] sm:$0xff]
            %s542 = smov [#allocation23]
            %v543 = vld [vmem:[%s542] sm:$0xff]
            %s544 = smov [#allocation24]
            %v545 = vld [vmem:[%s544] sm:$0xff]
            %v546 = vsub.f32 %v545, %v541
            %v547 = vmul.f32 2.0, %v543
            %v548 = vrcp.pop %v547
            %v549 = vmul.f32 %v546, %v548
            %vm550 = vcmp.ge.f32.partialorder %v549, 0.0
            %v551 = vmul.f32 %v549, %v549
            %v552 = vadd.f32 1.0, %v551
            %v553 = vrsqrt.pop %v552
            %v554 = vmul.f32 %v552, %v553
            %vm555 = vcmp.eq.f32.partialorder %v552, inf
            %v556 = vsel %vm555, %v552, %v554
            %vm557 = vcmp.eq.f32.partialorder %v552, 0.0
            %v558 = vand.u32 %v552, 2147483648
            %v559 = vsel %vm557, %v558, %v556
            %v560 = vxor.u32 %v559, 2147483648
            %v561 = vsel %vm550, %v559, %v560
            %v562 = vadd.f32 %v549, %v561
            %v563 = vrcp.pop %v562
            %v564 = vand.u32 2147483647, %v541
            %v565 = vand.u32 2147483647, %v543
            %v566 = vand.u32 2147483647, %v545
            %v567 = vmin.f32 %v564, %v566
            %v568 = vmul.f32 1.1920929e-08, %v567
            %vm569 = vcmp.le.f32.partialorder %v565, %v568
            %v570 = vsel %vm569, 0.0, %v563
            %v571 = vmul.f32 %v570, %v570
            %v572 = vadd.f32 1.0, %v571
            %v573 = vrsqrt.pop %v572
            %v574 = vmul.f32 %v570, %v573
            %v575 = vmul.f32 %v570, %v543
            %v576 = vsub.f32 %v541, %v575
            %v577 = vmul.f32 %v570, %v543
            %v578 = vadd.f32 %v545, %v577
            %s579 = smov [#allocation25]
            %580 = vst [vmem:[%s579] sm:$0xff] %v576
            %s581 = smov [#allocation26]
            %582 = vst [vmem:[%s581] sm:$0xff] %v578
            %s583 = smov %s538
            %584 = vst [vmem:[%s583] sm:$0xff] %v573
            %s585 = smov %s539
            %586 = vst [vmem:[%s585] sm:$0xff] %v574
            %s587 = smov [#allocation27]
            %v588 = vld [vmem:[%s587] ss:$0 sm:$0xff]
            %v589 = vlaneseq
            %v590 = vand.u32 %v589, 127
            %v591 = vmov %v590
            %v592 = vlaneseq
            %v593 = vshrl.u32 %v592, 7
            %v594 = vmov %v593
            %vm596 = vcmp.eq.s32.totalorder %v594, %v591
            %v597 = vsel %vm596, %v588, 0.0
            %598 = vadd.xlane.f32.xlu0 %v597
            %v599 = vpop.xlane.xlu0 %598
            %s600 = smov [#allocation29]
            %601 = vst [vmem:[%s600] sm:$0xff] %v599
            %s602 = smov [#allocation28]
            %v603 = vld [vmem:[%s602] ss:$0 sm:$0xff]
            %v604 = vlaneseq
            %v605 = vand.u32 %v604, 127
            %v606 = vmov %v605
            %v607 = vlaneseq
            %v608 = vshrl.u32 %v607, 7
            %v609 = vmov %v608
            %vm611 = vcmp.eq.s32.totalorder %v609, %v606
            %v612 = vsel %vm611, %v603, 0.0
            %613 = vadd.xlane.f32.xlu0 %v612
            %v614 = vpop.xlane.xlu0 %613
            %s615 = smov [#allocation30]
            %616 = vst [vmem:[%s615] sm:$0xff] %v614
            %s617 = smov [#allocation29]
            %v618 = vld [vmem:[%s617] sm:$0xff]
            %s619 = smov [#allocation30]
            %v620 = vld [vmem:[%s619] sm:$0xff]
            %s621 = smov [#allocation18]
            %s622 = smov [#allocation19]
            %s623 = smov [#allocation20]
            %s624 = smov [#allocation21]
            %v625 = vld [vmem:[%s621] sm:$0x3]
            %v626 = vld [vmem:[%s622] sm:$0x3]
            %v627 = vld [vmem:[%s623] sm:$0x3]
            %v628 = vld [vmem:[%s624] sm:$0x3]
            %v629 = vmul.f32 %v618, %v625
            %v630 = vmul.f32 %v620, %v627
            %v631 = vsub.f32 %v629, %v630
            %v632 = vmul.f32 %v618, %v626
            %v633 = vmul.f32 %v620, %v628
            %v634 = vsub.f32 %v632, %v633
            %v635 = vmul.f32 %v620, %v625
            %v636 = vmul.f32 %v618, %v627
            %v637 = vadd.f32 %v635, %v636
            %v638 = vmul.f32 %v620, %v626
            %v639 = vmul.f32 %v618, %v628
            %v640 = vadd.f32 %v638, %v639
            %641 = vst [vmem:[%s621] sm:$0x3] %v631
            %642 = vst [vmem:[%s622] sm:$0x3] %v634
            %643 = vst [vmem:[%s623] sm:$0x3] %v637
            %644 = vst [vmem:[%s624] sm:$0x3] %v640
            %s645 = smov [#allocation27]
            %v646 = vld [vmem:[%s645] ss:$0 sm:$0xff]
            %s647 = smov [#allocation28]
            %v648 = vld [vmem:[%s647] ss:$0 sm:$0xff]
            %s649 = smov [#allocation18]
            %s650 = smov [#allocation19]
            %s651 = smov [#allocation20]
            %s652 = smov [#allocation21]
            %v653 = vld [vmem:[%s649] sm:$0x3]
            %v654 = vld [vmem:[%s650] sm:$0x3]
            %v655 = vld [vmem:[%s651] sm:$0x3]
            %v656 = vld [vmem:[%s652] sm:$0x3]
            %v657 = vmul.f32 %v646, %v653
            %v658 = vmul.f32 %v648, %v654
            %v659 = vsub.f32 %v657, %v658
            %v660 = vmul.f32 %v648, %v653
            %v661 = vmul.f32 %v646, %v654
            %v662 = vadd.f32 %v660, %v661
            %v663 = vmul.f32 %v646, %v655
            %v664 = vmul.f32 %v648, %v656
            %v665 = vsub.f32 %v663, %v664
            %v666 = vmul.f32 %v648, %v655
            %v667 = vmul.f32 %v646, %v656
            %v668 = vadd.f32 %v666, %v667
            %669 = vst [vmem:[%s649] sm:$0x3] %v659
            %670 = vst [vmem:[%s650] sm:$0x3] %v662
            %671 = vst [vmem:[%s651] sm:$0x3] %v665
            %672 = vst [vmem:[%s652] sm:$0x3] %v668
            %s673 = smov [#allocation18]
            %s674 = smov [#allocation25]
            %v675 = vlaneseq
            %v676 = vand.u32 %v675, 127
            %v677 = vmov %v676
            %v678 = vlaneseq
            %v679 = vshrl.u32 %v678, 7
            %v680 = vmov %v679
            %v681 = vld [vmem:[%s674] ss:$0 sm:$0xff]
            %v682 = vld [vmem:[%s673] sm:$0x3]
            %vm685 = vcmp.eq.s32.totalorder %v680, %v677
            %v686 = vsel %vm685, %v681, %v682
            %687 = vst [vmem:[%s673] sm:$0x3] %v686
            %s688 = smov [#allocation19]
            %v689 = vlaneseq
            %v690 = vand.u32 %v689, 127
            %v691 = vmov %v690
            %v692 = vlaneseq
            %v693 = vshrl.u32 %v692, 7
            %v694 = vmov %v693
            %v695 = vld [vmem:[%s688] sm:$0x3]
            %vm698 = vcmp.eq.s32.totalorder %v694, %v691
            %v699 = vsel %vm698, 0.0, %v695
            %700 = vst [vmem:[%s688] sm:$0x3] %v699
            %s701 = smov [#allocation20]
            %v702 = vlaneseq
            %v703 = vand.u32 %v702, 127
            %v704 = vmov %v703
            %v705 = vlaneseq
            %v706 = vshrl.u32 %v705, 7
            %v707 = vmov %v706
            %v708 = vld [vmem:[%s701] sm:$0x3]
            %vm711 = vcmp.eq.s32.totalorder %v707, %v704
            %v712 = vsel %vm711, 0.0, %v708
            %713 = vst [vmem:[%s701] sm:$0x3] %v712
            %s714 = smov [#allocation21]
            %s715 = smov [#allocation26]
            %v716 = vlaneseq
            %v717 = vand.u32 %v716, 127
            %v718 = vmov %v717
            %v719 = vlaneseq
            %v720 = vshrl.u32 %v719, 7
            %v721 = vmov %v720
            %v722 = vld [vmem:[%s715] ss:$0 sm:$0xff]
            %v723 = vld [vmem:[%s714] sm:$0x3]
            %vm726 = vcmp.eq.s32.totalorder %v721, %v718
            %v727 = vsel %vm726, %v722, %v723
            %728 = vst [vmem:[%s714] sm:$0x3] %v727
            %s729 = smov [#allocation18]
            %s730 = smov [#allocation19]
            %v731 = vld [vmem:[%s730] sm:$0x3]
            %732 = vrot.lane.b32.xlu0 %v731, 1
            %v733 = vpop.permute.xlu0 %732
            %v734 = vld [vmem:[%s729] sm:$0x3]
            %v735 = vld [vmem:[%s729] sm:$0x3]
            %736 = vrot.lane.b32.xlu0 %v735, 1
            %v737 = vpop.permute.xlu0 %736
            %v738 = vlaneseq
            %v739 = vand.u32 %v738, 127
            %vm740 = vcmp.eq.s32.totalorder %v739, 0
            %v741 = vsel %vm740, %v735, %v737
            %v742 = vlaneseq
            %v743 = vand.u32 %v742, 127
            %vm744 = vcmp.eq.s32.totalorder %v743, 1
            %v745 = vsel %vm744, %v733, %v741
            %v746 = vlaneseq
            %v747 = vand.u32 %v746, 127
            %vm748 = vcmp.ge.s32.totalorder %v747, 0
            %vm749 = vcmp.lt.s32.totalorder %v747, 2
            %vm750 = vmand %vm748, %vm749
            %v751 = vsel %vm750, %v745, 0.0
            %v752 = vld [vmem:[%s730] sm:$0x3]
            %753 = vrot.lane.b32.xlu0 %v752, 127
            %v754 = vpop.permute.xlu0 %753
            %v755 = vlaneseq
            %v756 = vand.u32 %v755, 127
            %vm757 = vcmp.eq.s32.totalorder %v756, 1
            %v758 = vsel %vm757, %v734, %v754
            %759 = vst [vmem:[%s729] sm:$0x3] %v751
            %760 = vst [vmem:[%s730] sm:$0x3] %v758
            %s761 = smov [#allocation20]
            %s762 = smov [#allocation21]
            %v763 = vld [vmem:[%s762] sm:$0x3]
            %764 = vrot.lane.b32.xlu0 %v763, 1
            %v765 = vpop.permute.xlu0 %764
            %v766 = vld [vmem:[%s761] sm:$0x3]
            %v767 = vld [vmem:[%s761] sm:$0x3]
            %768 = vrot.lane.b32.xlu0 %v767, 1
            %v769 = vpop.permute.xlu0 %768
            %v770 = vlaneseq
            %v771 = vand.u32 %v770, 127
            %vm772 = vcmp.eq.s32.totalorder %v771, 0
            %v773 = vsel %vm772, %v767, %v769
            %v774 = vlaneseq
            %v775 = vand.u32 %v774, 127
            %vm776 = vcmp.eq.s32.totalorder %v775, 1
            %v777 = vsel %vm776, %v765, %v773
            %v778 = vlaneseq
            %v779 = vand.u32 %v778, 127
            %vm780 = vcmp.ge.s32.totalorder %v779, 0
            %vm781 = vcmp.lt.s32.totalorder %v779, 2
            %vm782 = vmand %vm780, %vm781
            %v783 = vsel %vm782, %v777, 0.0
            %v784 = vld [vmem:[%s762] sm:$0x3]
            %785 = vrot.lane.b32.xlu0 %v784, 127
            %v786 = vpop.permute.xlu0 %785
            %v787 = vlaneseq
            %v788 = vand.u32 %v787, 127
            %vm789 = vcmp.eq.s32.totalorder %v788, 1
            %v790 = vsel %vm789, %v766, %v786
            %791 = vst [vmem:[%s761] sm:$0x3] %v783
            %792 = vst [vmem:[%s762] sm:$0x3] %v790
            %s793 = smov [#allocation18]
            %s794 = smov [#allocation20]
            %v795 = vld [vmem:[%s793] ss:$0 sm:$0xff]
            %s797 = scalar_lea.vmem %s793, 4294967295
            %v798 = vld [vmem:[%s797] sm:$0x2]
            %v799 = vlaneseq
            %v800 = vshrl.u32 %v799, 7
            %vm801 = vcmp.eq.s32.totalorder %v800, 0
            %v802 = vsel %vm801, %v795, %v798
            %s803 = scalar_lea.vmem %s793, 1
            %v804 = vld [vmem:[%s803] ss:$0 sm:$0xff]
            %805 = vst [vmem:[%s793] sm:$0x3] %v802
            %v806 = vld [vmem:[%s794] ss:$0 sm:$0xff]
            %s807 = scalar_lea.vmem %s793, 1
            %808 = vst [vmem:[%s807] sm:$0x1] %v806
            %s809 = scalar_lea.vmem %s794, 1
            %v810 = vld [vmem:[%s809] sm:$0x1]
            %v811 = vlaneseq
            %v812 = vshrl.u32 %v811, 7
            %vm813 = vcmp.eq.s32.totalorder %v812, 1
            %v814 = vsel %vm813, %v804, %v810
            %v815 = vld [vmem:[%s794] ss:$0 sm:$0xff]
            %816 = vst [vmem:[%s794] sm:$0x3] %v814
            %s817 = smov [#allocation19]
            %s818 = smov [#allocation21]
            %v819 = vld [vmem:[%s817] ss:$0 sm:$0xff]
            %s821 = scalar_lea.vmem %s817, 4294967295
            %v822 = vld [vmem:[%s821] sm:$0x2]
            %v823 = vlaneseq
            %v824 = vshrl.u32 %v823, 7
            %vm825 = vcmp.eq.s32.totalorder %v824, 0
            %v826 = vsel %vm825, %v819, %v822
            %s827 = scalar_lea.vmem %s817, 1
            %v828 = vld [vmem:[%s827] ss:$0 sm:$0xff]
            %829 = vst [vmem:[%s817] sm:$0x3] %v826
            %v830 = vld [vmem:[%s818] ss:$0 sm:$0xff]
            %s831 = scalar_lea.vmem %s817, 1
            %832 = vst [vmem:[%s831] sm:$0x1] %v830
            %s833 = scalar_lea.vmem %s818, 1
            %v834 = vld [vmem:[%s833] sm:$0x1]
            %v835 = vlaneseq
            %v836 = vshrl.u32 %v835, 7
            %vm837 = vcmp.eq.s32.totalorder %v836, 1
            %v838 = vsel %vm837, %v828, %v834
            %v839 = vld [vmem:[%s818] ss:$0 sm:$0xff]
            %840 = vst [vmem:[%s818] sm:$0x3] %v838
            %s841 = smov [#allocation29]
            %v842 = vld [vmem:[%s841] sm:$0xff]
            %s843 = smov [#allocation30]
            %v844 = vld [vmem:[%s843] sm:$0xff]
            %s845 = smov [#allocation10]
            %s846 = smov [#allocation12]
            %s847 = smov [#allocation14]
            %s848 = smov [#allocation16]
            %v849 = vld [vmem:[%s845] sm:$0x3]
            %v850 = vld [vmem:[%s846] sm:$0x3]
            %v851 = vld [vmem:[%s847] sm:$0x3]
            %v852 = vld [vmem:[%s848] sm:$0x3]
            %v853 = vmul.f32 %v842, %v849
            %v854 = vmul.f32 %v844, %v851
            %v855 = vsub.f32 %v853, %v854
            %v856 = vmul.f32 %v842, %v850
            %v857 = vmul.f32 %v844, %v852
            %v858 = vsub.f32 %v856, %v857
            %v859 = vmul.f32 %v844, %v849
            %v860 = vmul.f32 %v842, %v851
            %v861 = vadd.f32 %v859, %v860
            %v862 = vmul.f32 %v844, %v850
            %v863 = vmul.f32 %v842, %v852
            %v864 = vadd.f32 %v862, %v863
            %865 = vst [vmem:[%s845] sm:$0x3] %v855
            %866 = vst [vmem:[%s846] sm:$0x3] %v858
            %867 = vst [vmem:[%s847] sm:$0x3] %v861
            %868 = vst [vmem:[%s848] sm:$0x3] %v864
            %s869 = smov [#allocation10]
            %s870 = smov [#allocation14]
            %v871 = vld [vmem:[%s869] ss:$0 sm:$0xff]
            %s873 = scalar_lea.vmem %s869, 4294967295
            %v874 = vld [vmem:[%s873] sm:$0x2]
            %v875 = vlaneseq
            %v876 = vshrl.u32 %v875, 7
            %vm877 = vcmp.eq.s32.totalorder %v876, 0
            %v878 = vsel %vm877, %v871, %v874
            %s879 = scalar_lea.vmem %s869, 1
            %v880 = vld [vmem:[%s879] ss:$0 sm:$0xff]
            %881 = vst [vmem:[%s869] sm:$0x3] %v878
            %v882 = vld [vmem:[%s870] ss:$0 sm:$0xff]
            %s883 = scalar_lea.vmem %s869, 1
            %884 = vst [vmem:[%s883] sm:$0x1] %v882
            %s885 = scalar_lea.vmem %s870, 1
            %v886 = vld [vmem:[%s885] sm:$0x1]
            %v887 = vlaneseq
            %v888 = vshrl.u32 %v887, 7
            %vm889 = vcmp.eq.s32.totalorder %v888, 1
            %v890 = vsel %vm889, %v880, %v886
            %v891 = vld [vmem:[%s870] ss:$0 sm:$0xff]
            %892 = vst [vmem:[%s870] sm:$0x3] %v890
            %s893 = smov [#allocation12]
            %s894 = smov [#allocation16]
            %v895 = vld [vmem:[%s893] ss:$0 sm:$0xff]
            %s897 = scalar_lea.vmem %s893, 4294967295
            %v898 = vld [vmem:[%s897] sm:$0x2]
            %v899 = vlaneseq
            %v900 = vshrl.u32 %v899, 7
            %vm901 = vcmp.eq.s32.totalorder %v900, 0
            %v902 = vsel %vm901, %v895, %v898
            %s903 = scalar_lea.vmem %s893, 1
            %v904 = vld [vmem:[%s903] ss:$0 sm:$0xff]
            %905 = vst [vmem:[%s893] sm:$0x3] %v902
            %v906 = vld [vmem:[%s894] ss:$0 sm:$0xff]
            %s907 = scalar_lea.vmem %s893, 1
            %908 = vst [vmem:[%s907] sm:$0x1] %v906
            %s909 = scalar_lea.vmem %s894, 1
            %v910 = vld [vmem:[%s909] sm:$0x1]
            %v911 = vlaneseq
            %v912 = vshrl.u32 %v911, 7
            %vm913 = vcmp.eq.s32.totalorder %v912, 1
            %v914 = vsel %vm913, %v904, %v910
            %v915 = vld [vmem:[%s894] ss:$0 sm:$0xff]
            %916 = vst [vmem:[%s894] sm:$0x3] %v914
          $region152: #{custom-call.3} parent=144 // loop_footer
            %s477 = sadd.s32 1, %s473
          $region153: #{custom-call.3} parent=144 // loop_footer_branch
            %472 = sbr.rel target = $region149
          $region154: #{custom-call.3} parent=144 // loop_exit
            _
          %s917 = sadd.s32 %s375, 1
        $region145: #{custom-call.3} parent=139 // loop_footer
          _
        $region146: #{custom-call.3} parent=139 // loop_footer_branch
          %374 = sbr.rel target = $region142
        $region147: #{custom-call.3} parent=139 // loop_exit
          _
        %s920 = sand.u32 %s17, 7
        %s921 = scalar_lea.vmem %s287, %s920 [#allocation8]
        %s922 = sand.u32 %s17, 7
        %s923 = scalar_lea.vmem %s293, %s922 [#allocation9]
        %s924 = smov [#allocation18]
        %s925 = smov %s921
        %v926 = vlaneseq
        %v927 = vand.u32 %v926, 127
        %v928 = vmov %v927
        %v929 = vlaneseq
        %v930 = vshrl.u32 %v929, 7
        %v931 = vmov %v930
        %v932 = vld [vmem:[%s924] sm:$0x3]
        %vm935 = vcmp.eq.s32.totalorder %v931, %v928
        %v936 = vsel %vm935, %v932, 0.0
        %v937 = vrot.slane %v936, 4
        %v938 = vadd.f32 %v936, %v937
        %v939 = vrot.slane %v938, 2
        %v940 = vadd.f32 %v938, %v939
        %v941 = vrot.slane %v940, 1
        %v942 = vadd.f32 %v940, %v941
        %943 = vst [vmem:[%s925] sm:$0x1] %v942
        %s944 = smov [#allocation21]
        %s945 = smov %s923
        %v946 = vlaneseq
        %v947 = vand.u32 %v946, 127
        %v948 = vmov %v947
        %v949 = vlaneseq
        %v950 = vshrl.u32 %v949, 7
        %v951 = vmov %v950
        %v952 = vld [vmem:[%s944] sm:$0x3]
        %vm955 = vcmp.eq.s32.totalorder %v951, %v948
        %v956 = vsel %vm955, %v952, 0.0
        %v957 = vrot.slane %v956, 4
        %v958 = vadd.f32 %v956, %v957
        %v959 = vrot.slane %v958, 2
        %v960 = vadd.f32 %v958, %v959
        %v961 = vrot.slane %v960, 1
        %v962 = vadd.f32 %v960, %v961
        %963 = vst [vmem:[%s945] sm:$0x1] %v962
        %s965 = sshll.u32 1, 2
        %s966 = ssub.s32 %s965, 1
        %v968 = vld [vmem:[#allocation10] sm:%s966]
        %s969 = sshll.u32 1, 2
        %s970 = ssub.s32 %s969, 1
        %971 = vst [vmem:[%s297] sm:%s970] %v968
        %s973 = sshll.u32 1, 2
        %s974 = ssub.s32 %s973, 1
        %v976 = vld [vmem:[#allocation12] sm:%s974]
        %s977 = sshll.u32 1, 2
        %s978 = ssub.s32 %s977, 1
        %979 = vst [vmem:[%s301] sm:%s978] %v976
        %s981 = sshll.u32 1, 2
        %s982 = ssub.s32 %s981, 1
        %v984 = vld [vmem:[#allocation14] sm:%s982]
        %s985 = sshll.u32 1, 2
        %s986 = ssub.s32 %s985, 1
        %987 = vst [vmem:[%s305] sm:%s986] %v984
        %s989 = sshll.u32 1, 2
        %s990 = ssub.s32 %s989, 1
        %v992 = vld [vmem:[#allocation16] sm:%s990]
        %s993 = sshll.u32 1, 2
        %s994 = ssub.s32 %s993, 1
        %995 = vst [vmem:[%s309] sm:%s994] %v992
        %s996 = sand.u32 %s27, 1
        %s997 = sand.u32 %s27, 1
        %s998 = smul.addr %s997, 8
        %s999 = scalar_lea.vmem [#allocation8], %s998
        %s1000 = sand.u32 %s55, 1
        %s1001 = sand.u32 %s55, 1
        %s1002 = smul.addr %s1001, 8
        %s1003 = scalar_lea.vmem [#allocation9], %s1002
        %s1004 = sand.u32 %s17, 1
        %s1005 = sand.u32 %s17, 1
        %s1006 = smul.addr %s1005, 2
        %s1007 = scalar_lea.vmem [#allocation11], %s1006
        %s1008 = sand.u32 %s17, 1
        %s1009 = sand.u32 %s17, 1
        %s1010 = smul.addr %s1009, 2
        %s1011 = scalar_lea.vmem [#allocation13], %s1010
        %s1012 = sand.u32 %s17, 1
        %s1013 = sand.u32 %s17, 1
        %s1014 = smul.addr %s1013, 2
        %s1015 = scalar_lea.vmem [#allocation15], %s1014
        %s1016 = sand.u32 %s17, 1
        %s1017 = sand.u32 %s17, 1
        %s1018 = smul.addr %s1017, 2
        %s1019 = scalar_lea.vmem [#allocation17], %s1018
        // Predicated region
        $region155: #{custom-call.3} parent=139 // pred_check
          %p1020 = pneg %p37
        $region156: #{custom-call.3} parent=139 // pred_check_branch
          %1022 = sbr.rel (%p1020) target = $region158
        $region157: #{custom-call.3} parent=139 // pred_region
          %s1023 = sshrl.u32 %s17, 3
          %s1024 = smul.addr %s1023, 8
          %s1025 = scalar_lea.vmem %s4, %s1024
          // Predicated region
          $region159: #{custom-call.3} parent=157 // pred_check
            _
          $region160: #{custom-call.3} parent=157 // pred_check_branch
            %1027 = sbr.rel (0) target = $region162
          $region161: #{custom-call.3} parent=157 // pred_region
            // Predicated region
            $region163: #{custom-call.3} parent=161 // pred_check
              _
            $region164: #{custom-call.3} parent=161 // pred_check_branch
              %1029 = sbr.rel (0) target = $region166
            $region165: #{custom-call.3} parent=161 // pred_region
              // Predicated region
              $region178: #{custom-call.3} parent=165 // pred_check
                _
              $region179: #{custom-call.3} parent=165 // pred_check_branch
                %1045 = sbr.rel (0) target = $region181
              $region180: #{custom-call.3} parent=165 // pred_region
                loop: start=0, step=1, limit=1
                $region182: #{custom-call.3} parent=180 // loop_pre_header
                  _
                $region183: #{custom-call.3} parent=180 // loop_header
                  %s1047 = sphi 0, %s1051
                  %p1048 = scmp.ge.s32.totalorder %s1047, 1
                  %s1052 = sphi %s999, %s999
                  %s1053 = sphi %s1025, %s1025
                $region184: #{custom-call.3} parent=180 // loop_header_branch
                  %1050 = sbr.rel (%p1048) target = $region188
                $region185: #{custom-call.3} parent=180 // loop_body
                  %v1054 = vld [vmem:[%s1052] sm:$0xff]
                  %1055 = vst [vmem:[%s1053] sm:$0xff] %v1054
                $region186: #{custom-call.3} parent=180 // loop_footer
                  %s1051 = sadd.s32 1, %s1047
                $region187: #{custom-call.3} parent=180 // loop_footer_branch
                  %1046 = sbr.rel target = $region183
                $region188: #{custom-call.3} parent=180 // loop_exit
                  _
              $region181: #{custom-call.3} parent=165 // pred_fallthru
                _
              // Predicated region
              $region189: #{custom-call.3} parent=165 // pred_check
                _
              $region190: #{custom-call.3} parent=165 // pred_check_branch
                %1057 = sbr.rel target = $region192
              $region191: #{custom-call.3} parent=165 // pred_region
                _
              $region192: #{custom-call.3} parent=165 // pred_fallthru
                _
            $region166: #{custom-call.3} parent=161 // pred_fallthru
              _
            // Predicated region
            $region167: #{custom-call.3} parent=161 // pred_check
              _
            $region168: #{custom-call.3} parent=161 // pred_check_branch
              %1031 = sbr.rel target = $region170
            $region169: #{custom-call.3} parent=161 // pred_region
              %s1033 = ssub.s32 256, 1
              loop: start=0, step=1, limit=1
              $region171: #{custom-call.3} parent=169 // loop_pre_header
                _
              $region172: #{custom-call.3} parent=169 // loop_header
                %s1035 = sphi 0, %s1039
                %p1036 = scmp.ge.s32.totalorder %s1035, 1
                %s1040 = sphi %s999, %s999
                %s1041 = sphi %s1025, %s1025
              $region173: #{custom-call.3} parent=169 // loop_header_branch
                %1038 = sbr.rel (%p1036) target = $region177
              $region174: #{custom-call.3} parent=169 // loop_body
                %v1042 = vld [vmem:[%s1040] sm:%s1033]
                %1043 = vst [vmem:[%s1041] sm:%s1033] %v1042
              $region175: #{custom-call.3} parent=169 // loop_footer
                %s1039 = sadd.s32 1, %s1035
              $region176: #{custom-call.3} parent=169 // loop_footer_branch
                %1034 = sbr.rel target = $region172
              $region177: #{custom-call.3} parent=169 // loop_exit
                _
            $region170: #{custom-call.3} parent=161 // pred_fallthru
              _
          $region162: #{custom-call.3} parent=157 // pred_fallthru
            _
          %1058 = vnop
        $region158: #{custom-call.3} parent=139 // pred_fallthru
          _
        // Predicated region
        $region193: #{custom-call.3} parent=139 // pred_check
          %p1059 = pneg %p65
        $region194: #{custom-call.3} parent=139 // pred_check_branch
          %1061 = sbr.rel (%p1059) target = $region196
        $region195: #{custom-call.3} parent=139 // pred_region
          %s1062 = sshrl.u32 %s17, 3
          %s1063 = smul.addr %s1062, 8
          %s1064 = scalar_lea.vmem %s5, %s1063
          // Predicated region
          $region197: #{custom-call.3} parent=195 // pred_check
            _
          $region198: #{custom-call.3} parent=195 // pred_check_branch
            %1066 = sbr.rel (0) target = $region200
          $region199: #{custom-call.3} parent=195 // pred_region
            // Predicated region
            $region201: #{custom-call.3} parent=199 // pred_check
              _
            $region202: #{custom-call.3} parent=199 // pred_check_branch
              %1068 = sbr.rel (0) target = $region204
            $region203: #{custom-call.3} parent=199 // pred_region
              // Predicated region
              $region216: #{custom-call.3} parent=203 // pred_check
                _
              $region217: #{custom-call.3} parent=203 // pred_check_branch
                %1084 = sbr.rel (0) target = $region219
              $region218: #{custom-call.3} parent=203 // pred_region
                loop: start=0, step=1, limit=1
                $region220: #{custom-call.3} parent=218 // loop_pre_header
                  _
                $region221: #{custom-call.3} parent=218 // loop_header
                  %s1086 = sphi 0, %s1090
                  %p1087 = scmp.ge.s32.totalorder %s1086, 1
                  %s1091 = sphi %s1003, %s1003
                  %s1092 = sphi %s1064, %s1064
                $region222: #{custom-call.3} parent=218 // loop_header_branch
                  %1089 = sbr.rel (%p1087) target = $region226
                $region223: #{custom-call.3} parent=218 // loop_body
                  %v1093 = vld [vmem:[%s1091] sm:$0xff]
                  %1094 = vst [vmem:[%s1092] sm:$0xff] %v1093
                $region224: #{custom-call.3} parent=218 // loop_footer
                  %s1090 = sadd.s32 1, %s1086
                $region225: #{custom-call.3} parent=218 // loop_footer_branch
                  %1085 = sbr.rel target = $region221
                $region226: #{custom-call.3} parent=218 // loop_exit
                  _
              $region219: #{custom-call.3} parent=203 // pred_fallthru
                _
              // Predicated region
              $region227: #{custom-call.3} parent=203 // pred_check
                _
              $region228: #{custom-call.3} parent=203 // pred_check_branch
                %1096 = sbr.rel target = $region230
              $region229: #{custom-call.3} parent=203 // pred_region
                _
              $region230: #{custom-call.3} parent=203 // pred_fallthru
                _
            $region204: #{custom-call.3} parent=199 // pred_fallthru
              _
            // Predicated region
            $region205: #{custom-call.3} parent=199 // pred_check
              _
            $region206: #{custom-call.3} parent=199 // pred_check_branch
              %1070 = sbr.rel target = $region208
            $region207: #{custom-call.3} parent=199 // pred_region
              %s1072 = ssub.s32 256, 1
              loop: start=0, step=1, limit=1
              $region209: #{custom-call.3} parent=207 // loop_pre_header
                _
              $region210: #{custom-call.3} parent=207 // loop_header
                %s1074 = sphi 0, %s1078
                %p1075 = scmp.ge.s32.totalorder %s1074, 1
                %s1079 = sphi %s1003, %s1003
                %s1080 = sphi %s1064, %s1064
              $region211: #{custom-call.3} parent=207 // loop_header_branch
                %1077 = sbr.rel (%p1075) target = $region215
              $region212: #{custom-call.3} parent=207 // loop_body
                %v1081 = vld [vmem:[%s1079] sm:%s1072]
                %1082 = vst [vmem:[%s1080] sm:%s1072] %v1081
              $region213: #{custom-call.3} parent=207 // loop_footer
                %s1078 = sadd.s32 1, %s1074
              $region214: #{custom-call.3} parent=207 // loop_footer_branch
                %1073 = sbr.rel target = $region210
              $region215: #{custom-call.3} parent=207 // loop_exit
                _
            $region208: #{custom-call.3} parent=199 // pred_fallthru
              _
          $region200: #{custom-call.3} parent=195 // pred_fallthru
            _
          %1097 = vnop
        $region196: #{custom-call.3} parent=139 // pred_fallthru
          _
        %s1098 = smul.addr %s17, 2
        %s1099 = scalar_lea.vmem %s6, %s1098
        // Predicated region
        $region231: #{custom-call.3} parent=139 // pred_check
          _
        $region232: #{custom-call.3} parent=139 // pred_check_branch
          %1101 = sbr.rel (0) target = $region234
        $region233: #{custom-call.3} parent=139 // pred_region
          // Predicated region
          $region235: #{custom-call.3} parent=233 // pred_check
            _
          $region236: #{custom-call.3} parent=233 // pred_check_branch
            %1103 = sbr.rel target = $region238
          $region237: #{custom-call.3} parent=233 // pred_region
            // Predicated region
            $region250: #{custom-call.3} parent=237 // pred_check
              _
            $region251: #{custom-call.3} parent=237 // pred_check_branch
              %1119 = sbr.rel (0) target = $region253
            $region252: #{custom-call.3} parent=237 // pred_region
              %s1121 = ssub.s32 4, 1
              loop: start=0, step=1, limit=1
              $region254: #{custom-call.3} parent=252 // loop_pre_header
                _
              $region255: #{custom-call.3} parent=252 // loop_header
                %s1123 = sphi 0, %s1127
                %p1124 = scmp.ge.s32.totalorder %s1123, 1
                %s1128 = sphi %s1007, %s1007
                %s1129 = sphi %s1099, %s1099
              $region256: #{custom-call.3} parent=252 // loop_header_branch
                %1126 = sbr.rel (%p1124) target = $region260
              $region257: #{custom-call.3} parent=252 // loop_body
                %v1130 = vld [vmem:[%s1128] sm:%s1121]
                %1131 = vst [vmem:[%s1129] sm:%s1121] %v1130
              $region258: #{custom-call.3} parent=252 // loop_footer
                %s1127 = sadd.s32 1, %s1123
              $region259: #{custom-call.3} parent=252 // loop_footer_branch
                %1122 = sbr.rel target = $region255
              $region260: #{custom-call.3} parent=252 // loop_exit
                _
            $region253: #{custom-call.3} parent=237 // pred_fallthru
              _
          $region238: #{custom-call.3} parent=233 // pred_fallthru
            _
          // Predicated region
          $region239: #{custom-call.3} parent=233 // pred_check
            _
          $region240: #{custom-call.3} parent=233 // pred_check_branch
            %1105 = sbr.rel (0) target = $region242
          $region241: #{custom-call.3} parent=233 // pred_region
            %s1107 = ssub.s32 4, 1
            loop: start=0, step=1, limit=1
            $region243: #{custom-call.3} parent=241 // loop_pre_header
              _
            $region244: #{custom-call.3} parent=241 // loop_header
              %s1109 = sphi 0, %s1113
              %p1110 = scmp.ge.s32.totalorder %s1109, 1
              %s1114 = sphi %s1007, %s1007
              %s1115 = sphi %s1099, %s1099
            $region245: #{custom-call.3} parent=241 // loop_header_branch
              %1112 = sbr.rel (%p1110) target = $region249
            $region246: #{custom-call.3} parent=241 // loop_body
              %v1116 = vld [vmem:[%s1114] sm:%s1107]
              %1117 = vst [vmem:[%s1115] sm:%s1107] %v1116
            $region247: #{custom-call.3} parent=241 // loop_footer
              %s1113 = sadd.s32 1, %s1109
            $region248: #{custom-call.3} parent=241 // loop_footer_branch
              %1108 = sbr.rel target = $region244
            $region249: #{custom-call.3} parent=241 // loop_exit
              _
          $region242: #{custom-call.3} parent=233 // pred_fallthru
            _
        $region234: #{custom-call.3} parent=139 // pred_fallthru
          _
        %1132 = vnop
        %s1133 = smul.addr %s17, 2
        %s1134 = scalar_lea.vmem %s7, %s1133
        // Predicated region
        $region261: #{custom-call.3} parent=139 // pred_check
          _
        $region262: #{custom-call.3} parent=139 // pred_check_branch
          %1136 = sbr.rel (0) target = $region264
        $region263: #{custom-call.3} parent=139 // pred_region
          // Predicated region
          $region265: #{custom-call.3} parent=263 // pred_check
            _
          $region266: #{custom-call.3} parent=263 // pred_check_branch
            %1138 = sbr.rel target = $region268
          $region267: #{custom-call.3} parent=263 // pred_region
            // Predicated region
            $region280: #{custom-call.3} parent=267 // pred_check
              _
            $region281: #{custom-call.3} parent=267 // pred_check_branch
              %1154 = sbr.rel (0) target = $region283
            $region282: #{custom-call.3} parent=267 // pred_region
              %s1156 = ssub.s32 4, 1
              loop: start=0, step=1, limit=1
              $region284: #{custom-call.3} parent=282 // loop_pre_header
                _
              $region285: #{custom-call.3} parent=282 // loop_header
                %s1158 = sphi 0, %s1162
                %p1159 = scmp.ge.s32.totalorder %s1158, 1
                %s1163 = sphi %s1011, %s1011
                %s1164 = sphi %s1134, %s1134
              $region286: #{custom-call.3} parent=282 // loop_header_branch
                %1161 = sbr.rel (%p1159) target = $region290
              $region287: #{custom-call.3} parent=282 // loop_body
                %v1165 = vld [vmem:[%s1163] sm:%s1156]
                %1166 = vst [vmem:[%s1164] sm:%s1156] %v1165
              $region288: #{custom-call.3} parent=282 // loop_footer
                %s1162 = sadd.s32 1, %s1158
              $region289: #{custom-call.3} parent=282 // loop_footer_branch
                %1157 = sbr.rel target = $region285
              $region290: #{custom-call.3} parent=282 // loop_exit
                _
            $region283: #{custom-call.3} parent=267 // pred_fallthru
              _
          $region268: #{custom-call.3} parent=263 // pred_fallthru
            _
          // Predicated region
          $region269: #{custom-call.3} parent=263 // pred_check
            _
          $region270: #{custom-call.3} parent=263 // pred_check_branch
            %1140 = sbr.rel (0) target = $region272
          $region271: #{custom-call.3} parent=263 // pred_region
            %s1142 = ssub.s32 4, 1
            loop: start=0, step=1, limit=1
            $region273: #{custom-call.3} parent=271 // loop_pre_header
              _
            $region274: #{custom-call.3} parent=271 // loop_header
              %s1144 = sphi 0, %s1148
              %p1145 = scmp.ge.s32.totalorder %s1144, 1
              %s1149 = sphi %s1011, %s1011
              %s1150 = sphi %s1134, %s1134
            $region275: #{custom-call.3} parent=271 // loop_header_branch
              %1147 = sbr.rel (%p1145) target = $region279
            $region276: #{custom-call.3} parent=271 // loop_body
              %v1151 = vld [vmem:[%s1149] sm:%s1142]
              %1152 = vst [vmem:[%s1150] sm:%s1142] %v1151
            $region277: #{custom-call.3} parent=271 // loop_footer
              %s1148 = sadd.s32 1, %s1144
            $region278: #{custom-call.3} parent=271 // loop_footer_branch
              %1143 = sbr.rel target = $region274
            $region279: #{custom-call.3} parent=271 // loop_exit
              _
          $region272: #{custom-call.3} parent=263 // pred_fallthru
            _
        $region264: #{custom-call.3} parent=139 // pred_fallthru
          _
        %1167 = vnop
        %s1168 = smul.addr %s17, 2
        %s1169 = scalar_lea.vmem %s8, %s1168
        // Predicated region
        $region291: #{custom-call.3} parent=139 // pred_check
          _
        $region292: #{custom-call.3} parent=139 // pred_check_branch
          %1171 = sbr.rel (0) target = $region294
        $region293: #{custom-call.3} parent=139 // pred_region
          // Predicated region
          $region295: #{custom-call.3} parent=293 // pred_check
            _
          $region296: #{custom-call.3} parent=293 // pred_check_branch
            %1173 = sbr.rel target = $region298
          $region297: #{custom-call.3} parent=293 // pred_region
            // Predicated region
            $region310: #{custom-call.3} parent=297 // pred_check
              _
            $region311: #{custom-call.3} parent=297 // pred_check_branch
              %1189 = sbr.rel (0) target = $region313
            $region312: #{custom-call.3} parent=297 // pred_region
              %s1191 = ssub.s32 4, 1
              loop: start=0, step=1, limit=1
              $region314: #{custom-call.3} parent=312 // loop_pre_header
                _
              $region315: #{custom-call.3} parent=312 // loop_header
                %s1193 = sphi 0, %s1197
                %p1194 = scmp.ge.s32.totalorder %s1193, 1
                %s1198 = sphi %s1015, %s1015
                %s1199 = sphi %s1169, %s1169
              $region316: #{custom-call.3} parent=312 // loop_header_branch
                %1196 = sbr.rel (%p1194) target = $region320
              $region317: #{custom-call.3} parent=312 // loop_body
                %v1200 = vld [vmem:[%s1198] sm:%s1191]
                %1201 = vst [vmem:[%s1199] sm:%s1191] %v1200
              $region318: #{custom-call.3} parent=312 // loop_footer
                %s1197 = sadd.s32 1, %s1193
              $region319: #{custom-call.3} parent=312 // loop_footer_branch
                %1192 = sbr.rel target = $region315
              $region320: #{custom-call.3} parent=312 // loop_exit
                _
            $region313: #{custom-call.3} parent=297 // pred_fallthru
              _
          $region298: #{custom-call.3} parent=293 // pred_fallthru
            _
          // Predicated region
          $region299: #{custom-call.3} parent=293 // pred_check
            _
          $region300: #{custom-call.3} parent=293 // pred_check_branch
            %1175 = sbr.rel (0) target = $region302
          $region301: #{custom-call.3} parent=293 // pred_region
            %s1177 = ssub.s32 4, 1
            loop: start=0, step=1, limit=1
            $region303: #{custom-call.3} parent=301 // loop_pre_header
              _
            $region304: #{custom-call.3} parent=301 // loop_header
              %s1179 = sphi 0, %s1183
              %p1180 = scmp.ge.s32.totalorder %s1179, 1
              %s1184 = sphi %s1015, %s1015
              %s1185 = sphi %s1169, %s1169
            $region305: #{custom-call.3} parent=301 // loop_header_branch
              %1182 = sbr.rel (%p1180) target = $region309
            $region306: #{custom-call.3} parent=301 // loop_body
              %v1186 = vld [vmem:[%s1184] sm:%s1177]
              %1187 = vst [vmem:[%s1185] sm:%s1177] %v1186
            $region307: #{custom-call.3} parent=301 // loop_footer
              %s1183 = sadd.s32 1, %s1179
            $region308: #{custom-call.3} parent=301 // loop_footer_branch
              %1178 = sbr.rel target = $region304
            $region309: #{custom-call.3} parent=301 // loop_exit
              _
          $region302: #{custom-call.3} parent=293 // pred_fallthru
            _
        $region294: #{custom-call.3} parent=139 // pred_fallthru
          _
        %1202 = vnop
        %s1203 = smul.addr %s17, 2
        %s1204 = scalar_lea.vmem %s9, %s1203
        // Predicated region
        $region321: #{custom-call.3} parent=139 // pred_check
          _
        $region322: #{custom-call.3} parent=139 // pred_check_branch
          %1206 = sbr.rel (0) target = $region324
        $region323: #{custom-call.3} parent=139 // pred_region
          // Predicated region
          $region325: #{custom-call.3} parent=323 // pred_check
            _
          $region326: #{custom-call.3} parent=323 // pred_check_branch
            %1208 = sbr.rel target = $region328
          $region327: #{custom-call.3} parent=323 // pred_region
            // Predicated region
            $region340: #{custom-call.3} parent=327 // pred_check
              _
            $region341: #{custom-call.3} parent=327 // pred_check_branch
              %1224 = sbr.rel (0) target = $region343
            $region342: #{custom-call.3} parent=327 // pred_region
              %s1226 = ssub.s32 4, 1
              loop: start=0, step=1, limit=1
              $region344: #{custom-call.3} parent=342 // loop_pre_header
                _
              $region345: #{custom-call.3} parent=342 // loop_header
                %s1228 = sphi 0, %s1232
                %p1229 = scmp.ge.s32.totalorder %s1228, 1
                %s1233 = sphi %s1019, %s1019
                %s1234 = sphi %s1204, %s1204
              $region346: #{custom-call.3} parent=342 // loop_header_branch
                %1231 = sbr.rel (%p1229) target = $region350
              $region347: #{custom-call.3} parent=342 // loop_body
                %v1235 = vld [vmem:[%s1233] sm:%s1226]
                %1236 = vst [vmem:[%s1234] sm:%s1226] %v1235
              $region348: #{custom-call.3} parent=342 // loop_footer
                %s1232 = sadd.s32 1, %s1228
              $region349: #{custom-call.3} parent=342 // loop_footer_branch
                %1227 = sbr.rel target = $region345
              $region350: #{custom-call.3} parent=342 // loop_exit
                _
            $region343: #{custom-call.3} parent=327 // pred_fallthru
              _
          $region328: #{custom-call.3} parent=323 // pred_fallthru
            _
          // Predicated region
          $region329: #{custom-call.3} parent=323 // pred_check
            _
          $region330: #{custom-call.3} parent=323 // pred_check_branch
            %1210 = sbr.rel (0) target = $region332
          $region331: #{custom-call.3} parent=323 // pred_region
            %s1212 = ssub.s32 4, 1
            loop: start=0, step=1, limit=1
            $region333: #{custom-call.3} parent=331 // loop_pre_header
              _
            $region334: #{custom-call.3} parent=331 // loop_header
              %s1214 = sphi 0, %s1218
              %p1215 = scmp.ge.s32.totalorder %s1214, 1
              %s1219 = sphi %s1019, %s1019
              %s1220 = sphi %s1204, %s1204
            $region335: #{custom-call.3} parent=331 // loop_header_branch
              %1217 = sbr.rel (%p1215) target = $region339
            $region336: #{custom-call.3} parent=331 // loop_body
              %v1221 = vld [vmem:[%s1219] sm:%s1212]
              %1222 = vst [vmem:[%s1220] sm:%s1212] %v1221
            $region337: #{custom-call.3} parent=331 // loop_footer
              %s1218 = sadd.s32 1, %s1214
            $region338: #{custom-call.3} parent=331 // loop_footer_branch
              %1213 = sbr.rel target = $region334
            $region339: #{custom-call.3} parent=331 // loop_exit
              _
          $region332: #{custom-call.3} parent=323 // pred_fallthru
            _
        $region324: #{custom-call.3} parent=139 // pred_fallthru
          _
        %1237 = vnop
      $region140: #{custom-call.3} parent=5 // pred_fallthru
        _
      %p1238 = scmp.le.s32.totalorder 2, %s12
      // Predicated region
      $region351: #{custom-call.3} parent=5 // pred_check
        %p1239 = pneg %p1238
      $region352: #{custom-call.3} parent=5 // pred_check_branch
        %1241 = sbr.rel (%p1239) target = $region354
      $region353: #{custom-call.3} parent=5 // pred_region
        %s1242 = ssub.s32 %s12, 2
        // Predicated region
        $region355: #{custom-call.3} parent=353 // pred_check
          %p1243 = pneg %p43
        $region356: #{custom-call.3} parent=353 // pred_check_branch
          %1245 = sbr.rel (%p1243) target = $region358
        $region357: #{custom-call.3} parent=353 // pred_region
          %s1246 = sand.u32 %s28, 1
          %s1247 = sand.u32 %s28, 1
          %s1248 = smul.addr %s1247, 8
          %s1249 = scalar_lea.vmem [#allocation8], %s1248
        $region358: #{custom-call.3} parent=353 // pred_fallthru
          _
        // Predicated region
        $region359: #{custom-call.3} parent=353 // pred_check
          %p1250 = pneg %p71
        $region360: #{custom-call.3} parent=353 // pred_check_branch
          %1252 = sbr.rel (%p1250) target = $region362
        $region361: #{custom-call.3} parent=353 // pred_region
          %s1253 = sand.u32 %s56, 1
          %s1254 = sand.u32 %s56, 1
          %s1255 = smul.addr %s1254, 8
          %s1256 = scalar_lea.vmem [#allocation9], %s1255
        $region362: #{custom-call.3} parent=353 // pred_fallthru
          _
        %s1257 = sand.u32 %s18, 1
        %s1258 = sand.u32 %s18, 1
        %s1259 = smul.addr %s1258, 2
        %s1260 = scalar_lea.vmem [#allocation11], %s1259
        %s1261 = sand.u32 %s18, 1
        %s1262 = sand.u32 %s18, 1
        %s1263 = smul.addr %s1262, 2
        %s1264 = scalar_lea.vmem [#allocation13], %s1263
        %s1265 = sand.u32 %s18, 1
        %s1266 = sand.u32 %s18, 1
        %s1267 = smul.addr %s1266, 2
        %s1268 = scalar_lea.vmem [#allocation15], %s1267
        %s1269 = sand.u32 %s18, 1
        %s1270 = sand.u32 %s18, 1
        %s1271 = smul.addr %s1270, 2
        %s1272 = scalar_lea.vmem [#allocation17], %s1271
      $region354: #{custom-call.3} parent=5 // pred_fallthru
        _
    $region6: #{custom-call.3} parent=1 // loop_footer
      %s16 = sadd.s32 1, %s12
    $region7: #{custom-call.3} parent=1 // loop_footer_branch
      %11 = sbr.rel target = $region3
    $region8: #{custom-call.3} parent=1 // loop_exit
      _

// kernel: torchmd_et_forward.3
$region0: #{torchmd_et_forward.3}
  #allocation0 [shape = 'u32[]', space=smem, size = 0x4, offset = 0x4, fixed_abs, tag = 'smem constant byte address 0x4 - core index']
  #allocation1 [shape = 'u32[144,128]{1,0:T(1,128)}', space=vmem, size = 0x12000, scoped, tag = 'internal scratch']
  #allocation2 [shape = 'f32[16,32]{1,0:T(8,128)}', space=vmem, size = 0x2000, scoped, tag = 'scratch operand']
  %s0 = inlined_call_operand.vmem [shape: f32[16,32], index: 0, kind: input, shape index: {}]
  %s1 = inlined_call_operand.vmem [shape: f32[16,32], index: 1, kind: input, shape index: {}]
  %s2 = inlined_call_operand.vmem [shape: bf16[16,16,16], index: 2, kind: input, shape index: {}]
  %s3 = inlined_call_operand.vmem [shape: bf16[16,16], index: 3, kind: input, shape index: {}]
  %s4 = inlined_call_operand.vmem [shape: f32[16,32], index: 4, kind: input, shape index: {}]
  %s5 = inlined_call_operand.vmem [shape: f32[1,32], index: 5, kind: input, shape index: {}]
  %s6 = inlined_call_operand.vmem [shape: f32[64,32], index: 6, kind: input, shape index: {}]
  %s7 = inlined_call_operand.vmem [shape: f32[1,32], index: 7, kind: input, shape index: {}]
  %s8 = inlined_call_operand.vmem [shape: f32[16,32], index: 8, kind: output, shape index: {}]
  %s9 = sld [smem:[#allocation0]]
  $region50: #{torchmd_et_forward.3} parent=0
    _
  %s11 = ssub.s32 1, %s9
  %s12 = scalar_select 0, %s11, %s9
  // Predicated region
  $region2: #{torchmd_et_forward.3} parent=0 // pred_check
    _
  $region3: #{torchmd_et_forward.3} parent=0 // pred_check_branch
    %14 = sbr.rel (0) target = $region5
  $region4: #{torchmd_et_forward.3} parent=0 // pred_region
    _
  $region5: #{torchmd_et_forward.3} parent=0 // pred_fallthru
    _
  // Predicated region
  $region6: #{torchmd_et_forward.3} parent=0 // pred_check
    _
  $region7: #{torchmd_et_forward.3} parent=0 // pred_check_branch
    %16 = sbr.rel (0) target = $region9
  $region8: #{torchmd_et_forward.3} parent=0 // pred_region
    _
  $region9: #{torchmd_et_forward.3} parent=0 // pred_fallthru
    _
  // Predicated region
  $region10: #{torchmd_et_forward.3} parent=0 // pred_check
    _
  $region11: #{torchmd_et_forward.3} parent=0 // pred_check_branch
    %18 = sbr.rel (0) target = $region13
  $region12: #{torchmd_et_forward.3} parent=0 // pred_region
    _
  $region13: #{torchmd_et_forward.3} parent=0 // pred_fallthru
    _
  // Predicated region
  $region14: #{torchmd_et_forward.3} parent=0 // pred_check
    _
  $region15: #{torchmd_et_forward.3} parent=0 // pred_check_branch
    %20 = sbr.rel (0) target = $region17
  $region16: #{torchmd_et_forward.3} parent=0 // pred_region
    _
  $region17: #{torchmd_et_forward.3} parent=0 // pred_fallthru
    _
  // Predicated region
  $region18: #{torchmd_et_forward.3} parent=0 // pred_check
    _
  $region19: #{torchmd_et_forward.3} parent=0 // pred_check_branch
    %22 = sbr.rel (0) target = $region21
  $region20: #{torchmd_et_forward.3} parent=0 // pred_region
    _
  $region21: #{torchmd_et_forward.3} parent=0 // pred_fallthru
    _
  // Predicated region
  $region22: #{torchmd_et_forward.3} parent=0 // pred_check
    _
  $region23: #{torchmd_et_forward.3} parent=0 // pred_check_branch
    %24 = sbr.rel (0) target = $region25
  $region24: #{torchmd_et_forward.3} parent=0 // pred_region
    _
  $region25: #{torchmd_et_forward.3} parent=0 // pred_fallthru
    _
  // Predicated region
  $region26: #{torchmd_et_forward.3} parent=0 // pred_check
    _
  $region27: #{torchmd_et_forward.3} parent=0 // pred_check_branch
    %26 = sbr.rel (0) target = $region29
  $region28: #{torchmd_et_forward.3} parent=0 // pred_region
    _
  $region29: #{torchmd_et_forward.3} parent=0 // pred_fallthru
    _
  // Predicated region
  $region30: #{torchmd_et_forward.3} parent=0 // pred_check
    _
  $region31: #{torchmd_et_forward.3} parent=0 // pred_check_branch
    %28 = sbr.rel (0) target = $region33
  $region32: #{torchmd_et_forward.3} parent=0 // pred_region
    _
  $region33: #{torchmd_et_forward.3} parent=0 // pred_fallthru
    _
  %p29 = scmp.eq.s32.totalorder 0, 0
  // Predicated region
  $region34: #{torchmd_et_forward.3} parent=0 // pred_check
    %p30 = pneg %p29
  $region35: #{torchmd_et_forward.3} parent=0 // pred_check_branch
    %32 = sbr.rel (%p30) target = $region37
  $region36: #{torchmd_et_forward.3} parent=0 // pred_region
    %vm33 = vcmask 261120
    %34 = vst.msk [vmem:[#allocation2] sm:$0xff] %vm33, 0.0
    %35 = vst.msk [vmem:[#allocation2 + $0x8] sm:$0xff] %vm33, 0.0
  $region37: #{torchmd_et_forward.3} parent=0 // pred_fallthru
    _
  %v36 = vld [vmem:[%s2] sm:$0xf]
  %v37 = vld [vmem:[%s2 + $0x4] sm:$0xf]
  %v38 = vld [vmem:[%s2 + $0x8] sm:$0xf]
  %v39 = vld [vmem:[%s2 + $0xc] sm:$0xf]
  %v40 = vld [vmem:[%s2 + $0x10] sm:$0xf]
  %v41 = vld [vmem:[%s2 + $0x14] sm:$0xf]
  %v42 = vld [vmem:[%s2 + $0x18] sm:$0xf]
  %v43 = vld [vmem:[%s2 + $0x1c] sm:$0xf]
  %v44 = vld [vmem:[%s2 + $0x20] sm:$0xf]
  %v45 = vld [vmem:[%s2 + $0x24] sm:$0xf]
  %v46 = vld [vmem:[%s2 + $0x28] sm:$0xf]
  %v47 = vld [vmem:[%s2 + $0x2c] sm:$0xf]
  %v48 = vld [vmem:[%s2 + $0x30] sm:$0xf]
  %v49 = vld [vmem:[%s2 + $0x34] sm:$0xf]
  %v50 = vld [vmem:[%s2 + $0x38] sm:$0xf]
  %v51 = vld [vmem:[%s2 + $0x3c] sm:$0xf]
  %v52 = vld [vmem:[%s2 + $0x40] sm:$0xf]
  %v53 = vld [vmem:[%s2 + $0x44] sm:$0xf]
  %v54 = vld [vmem:[%s2 + $0x48] sm:$0xf]
  %v55 = vld [vmem:[%s2 + $0x4c] sm:$0xf]
  %v56 = vld [vmem:[%s2 + $0x50] sm:$0xf]
  %v57 = vld [vmem:[%s2 + $0x54] sm:$0xf]
  %v58 = vld [vmem:[%s2 + $0x58] sm:$0xf]
  %v59 = vld [vmem:[%s2 + $0x5c] sm:$0xf]
  %v60 = vld [vmem:[%s2 + $0x60] sm:$0xf]
  %v61 = vld [vmem:[%s2 + $0x64] sm:$0xf]
  %v62 = vld [vmem:[%s2 + $0x68] sm:$0xf]
  %v63 = vld [vmem:[%s2 + $0x6c] sm:$0xf]
  %v64 = vld [vmem:[%s2 + $0x70] sm:$0xf]
  %v65 = vld [vmem:[%s2 + $0x74] sm:$0xf]
  %v66 = vld [vmem:[%s2 + $0x78] sm:$0xf]
  %v67 = vld [vmem:[%s2 + $0x7c] sm:$0xf]
  %v68 = vunpack.c.l.bf16 %v36
  %v69 = vunpack.c.l.bf16 %v37
  %v70 = vunpack.c.l.bf16 %v38
  %v71 = vunpack.c.l.bf16 %v39
  %v72 = vunpack.c.l.bf16 %v40
  %v73 = vunpack.c.l.bf16 %v41
  %v74 = vunpack.c.l.bf16 %v42
  %v75 = vunpack.c.l.bf16 %v43
  %v76 = vunpack.c.l.bf16 %v44
  %v77 = vunpack.c.l.bf16 %v45
  %v78 = vunpack.c.l.bf16 %v46
  %v79 = vunpack.c.l.bf16 %v47
  %v80 = vunpack.c.l.bf16 %v48
  %v81 = vunpack.c.l.bf16 %v49
  %v82 = vunpack.c.l.bf16 %v50
  %v83 = vunpack.c.l.bf16 %v51
  %v84 = vunpack.c.l.bf16 %v52
  %v85 = vunpack.c.l.bf16 %v53
  %v86 = vunpack.c.l.bf16 %v54
  %v87 = vunpack.c.l.bf16 %v55
  %v88 = vunpack.c.l.bf16 %v56
  %v89 = vunpack.c.l.bf16 %v57
  %v90 = vunpack.c.l.bf16 %v58
  %v91 = vunpack.c.l.bf16 %v59
  %v92 = vunpack.c.l.bf16 %v60
  %v93 = vunpack.c.l.bf16 %v61
  %v94 = vunpack.c.l.bf16 %v62
  %v95 = vunpack.c.l.bf16 %v63
  %v96 = vunpack.c.l.bf16 %v64
  %v97 = vunpack.c.l.bf16 %v65
  %v98 = vunpack.c.l.bf16 %v66
  %v99 = vunpack.c.l.bf16 %v67
  %v100 = vld [vmem:[%s4] sm:$0xff]
  %v101 = vld [vmem:[%s4 + $0x8] sm:$0xff]
  %v102 = vld [vmem:[%s5] sm:$0x1]
  %v104 = vlaneseq
  %v105 = vshrl.u32 %v104, 7
  %v106 = vsub.s32 0, %v105
  %v107 = vrot.slane %v102, %v106
  %vm109 = vcmask 130048
  %v111 = vsel %vm109, %v68, 0
  %v114 = vsel %vm109, %v69, 0
  %v117 = vsel %vm109, %v70, 0
  %v120 = vsel %vm109, %v71, 0
  %v123 = vsel %vm109, %v72, 0
  %v126 = vsel %vm109, %v73, 0
  %v129 = vsel %vm109, %v74, 0
  %v132 = vsel %vm109, %v75, 0
  %v135 = vsel %vm109, %v76, 0
  %v138 = vsel %vm109, %v77, 0
  %v141 = vsel %vm109, %v78, 0
  %v144 = vsel %vm109, %v79, 0
  %v147 = vsel %vm109, %v80, 0
  %v150 = vsel %vm109, %v81, 0
  %v153 = vsel %vm109, %v82, 0
  %v156 = vsel %vm109, %v83, 0
  %v159 = vsel %vm109, %v84, 0
  %v162 = vsel %vm109, %v85, 0
  %v165 = vsel %vm109, %v86, 0
  %v168 = vsel %vm109, %v87, 0
  %v171 = vsel %vm109, %v88, 0
  %v174 = vsel %vm109, %v89, 0
  %v177 = vsel %vm109, %v90, 0
  %v180 = vsel %vm109, %v91, 0
  %v183 = vsel %vm109, %v92, 0
  %v186 = vsel %vm109, %v93, 0
  %v189 = vsel %vm109, %v94, 0
  %v192 = vsel %vm109, %v95, 0
  %v195 = vsel %vm109, %v96, 0
  %v198 = vsel %vm109, %v97, 0
  %v201 = vsel %vm109, %v98, 0
  %v204 = vsel %vm109, %v99, 0
  %206 = vmatprep.subr.mxu0 0.0
  %207 = vmatpush1.msra.mxu0 0.0
  %208 = vmatprep.subr.mxu0 0.0
  %209 = vmatpush1.msra.mxu0 0.0
  %210 = vmatprep.subr.mxu0 0.0
  %211 = vmatpush1.msra.mxu0 0.0
  %212 = vmatprep.subr.mxu0 0.0
  %213 = vmatpush1.msra.mxu0 0.0
  %214 = vmatprep.subr.mxu0 0.0
  %215 = vmatpush1.msra.mxu0 0.0
  %216 = vmatprep.subr.mxu0 0.0
  %217 = vmatpush1.msra.mxu0 0.0
  %218 = vmatprep.subr.mxu0 0.0
  %219 = vmatpush1.msra.mxu0 0.0
  %220 = vmatprep.subr.mxu0 0.0
  %221 = vmatpush1.msra.mxu0 0.0
  %222 = vmatprep.subr.mxu0 0.0
  %223 = vmatpush1.msra.mxu0 0.0
  %224 = vmatprep.subr.mxu0 0.0
  %225 = vmatpush1.msra.mxu0 0.0
  %226 = vmatprep.subr.mxu0 0.0
  %227 = vmatpush1.msra.mxu0 0.0
  %228 = vmatprep.subr.mxu0 0.0
  %229 = vmatpush1.msra.mxu0 0.0
  %230 = vmatprep.subr.mxu0 0.0
  %231 = vmatpush1.msra.mxu0 0.0
  %232 = vmatprep.subr.mxu0 0.0
  %233 = vmatpush1.msra.mxu0 0.0
  %234 = vmatprep.subr.mxu0 0.0
  %235 = vmatpush1.msra.mxu0 %v101
  %236 = vmatprep.subr.mxu0 0.0
  %237 = vmatpush1.msra.mxu0 %v100
  %238 = vmatprep.subr.mxu0 0.0
  %239 = vmatpush2.msra.mxu0 0.0
  %240 = vmatprep.subr.mxu0 0.0
  %241 = vmatpush2.msra.mxu0 0.0
  %242 = vmatprep.subr.mxu0 0.0
  %243 = vmatpush2.msra.mxu0 0.0
  %244 = vmatprep.subr.mxu0 0.0
  %245 = vmatpush2.msra.mxu0 0.0
  %246 = vmatprep.subr.mxu0 0.0
  %247 = vmatpush2.msra.mxu0 0.0
  %248 = vmatprep.subr.mxu0 0.0
  %249 = vmatpush2.msra.mxu0 0.0
  %250 = vmatprep.subr.mxu0 0.0
  %251 = vmatpush2.msra.mxu0 0.0
  %252 = vmatprep.subr.mxu0 0.0
  %253 = vmatpush2.msra.mxu0 0.0
  %254 = vmatprep.subr.mxu0 0.0
  %255 = vmatpush2.msra.mxu0 0.0
  %256 = vmatprep.subr.mxu0 0.0
  %257 = vmatpush2.msra.mxu0 0.0
  %258 = vmatprep.subr.mxu0 0.0
  %259 = vmatpush2.msra.mxu0 0.0
  %260 = vmatprep.subr.mxu0 0.0
  %261 = vmatpush2.msra.mxu0 0.0
  %262 = vmatprep.subr.mxu0 0.0
  %263 = vmatpush2.msra.mxu0 0.0
  %264 = vmatprep.subr.mxu0 0.0
  %265 = vmatpush2.msra.mxu0 0.0
  %266 = vmatprep.subr.mxu0 0.0
  %267 = vmatpush2.msra.mxu0 0.0
  %268 = vmatprep.subr.mxu0 0.0
  %269 = vmatpush2.msra.mxu0 0.0
  %270 = vmatprep.mubr.f32.mxu0 0.0
  %271 = vmatmul.mubr.f32.gmra.mxu0 %v111
  %v272 = vpop.f32.mrf.mxu0
  %v273 = vadd.f32 %v107, %v272
  %v274 = vpop.f32.mrf.mxu0
  %275 = vmatprep.mubr.f32.mxu0 0.0
  %276 = vmatmul.mubr.f32.gmra.mxu0 %v114
  %v277 = vpop.f32.mrf.mxu0
  %v278 = vadd.f32 %v107, %v277
  %v279 = vpop.f32.mrf.mxu0
  %280 = vmatprep.mubr.f32.mxu0 0.0
  %281 = vmatmul.mubr.f32.gmra.mxu0 %v117
  %v282 = vpop.f32.mrf.mxu0
  %v283 = vadd.f32 %v107, %v282
  %v284 = vpop.f32.mrf.mxu0
  %285 = vmatprep.mubr.f32.mxu0 0.0
  %286 = vmatmul.mubr.f32.gmra.mxu0 %v120
  %v287 = vpop.f32.mrf.mxu0
  %v288 = vadd.f32 %v107, %v287
  %v289 = vpop.f32.mrf.mxu0
  %290 = vmatprep.mubr.f32.mxu0 0.0
  %291 = vmatmul.mubr.f32.gmra.mxu0 %v123
  %v292 = vpop.f32.mrf.mxu0
  %v293 = vadd.f32 %v107, %v292
  %v294 = vpop.f32.mrf.mxu0
  %295 = vmatprep.mubr.f32.mxu0 0.0
  %296 = vmatmul.mubr.f32.gmra.mxu0 %v126
  %v297 = vpop.f32.mrf.mxu0
  %v298 = vadd.f32 %v107, %v297
  %v299 = vpop.f32.mrf.mxu0
  %300 = vmatprep.mubr.f32.mxu0 0.0
  %301 = vmatmul.mubr.f32.gmra.mxu0 %v129
  %v302 = vpop.f32.mrf.mxu0
  %v303 = vadd.f32 %v107, %v302
  %v304 = vpop.f32.mrf.mxu0
  %305 = vmatprep.mubr.f32.mxu0 0.0
  %306 = vmatmul.mubr.f32.gmra.mxu0 %v132
  %v307 = vpop.f32.mrf.mxu0
  %v308 = vadd.f32 %v107, %v307
  %v309 = vpop.f32.mrf.mxu0
  %310 = vmatprep.mubr.f32.mxu0 0.0
  %311 = vmatmul.mubr.f32.gmra.mxu0 %v135
  %v312 = vpop.f32.mrf.mxu0
  %v313 = vadd.f32 %v107, %v312
  %v314 = vpop.f32.mrf.mxu0
  %315 = vmatprep.mubr.f32.mxu0 0.0
  %316 = vmatmul.mubr.f32.gmra.mxu0 %v138
  %v317 = vpop.f32.mrf.mxu0
  %v318 = vadd.f32 %v107, %v317
  %v319 = vpop.f32.mrf.mxu0
  %320 = vmatprep.mubr.f32.mxu0 0.0
  %321 = vmatmul.mubr.f32.gmra.mxu0 %v141
  %v322 = vpop.f32.mrf.mxu0
  %v323 = vadd.f32 %v107, %v322
  %v324 = vpop.f32.mrf.mxu0
  %325 = vmatprep.mubr.f32.mxu0 0.0
  %326 = vmatmul.mubr.f32.gmra.mxu0 %v144
  %v327 = vpop.f32.mrf.mxu0
  %v328 = vadd.f32 %v107, %v327
  %v329 = vpop.f32.mrf.mxu0
  %330 = vmatprep.mubr.f32.mxu0 0.0
  %331 = vmatmul.mubr.f32.gmra.mxu0 %v147
  %v332 = vpop.f32.mrf.mxu0
  %v333 = vadd.f32 %v107, %v332
  %v334 = vpop.f32.mrf.mxu0
  %335 = vmatprep.mubr.f32.mxu0 0.0
  %336 = vmatmul.mubr.f32.gmra.mxu0 %v150
  %v337 = vpop.f32.mrf.mxu0
  %v338 = vadd.f32 %v107, %v337
  %v339 = vpop.f32.mrf.mxu0
  %340 = vmatprep.mubr.f32.mxu0 0.0
  %341 = vmatmul.mubr.f32.gmra.mxu0 %v153
  %v342 = vpop.f32.mrf.mxu0
  %v343 = vadd.f32 %v107, %v342
  %v344 = vpop.f32.mrf.mxu0
  %345 = vmatprep.mubr.f32.mxu0 0.0
  %346 = vmatmul.mubr.f32.gmra.mxu0 %v156
  %v347 = vpop.f32.mrf.mxu0
  %v348 = vadd.f32 %v107, %v347
  %v349 = vpop.f32.mrf.mxu0
  %350 = vmatprep.mubr.f32.mxu0 0.0
  %351 = vmatmul.mubr.f32.gmra.mxu0 %v159
  %v352 = vpop.f32.mrf.mxu0
  %v353 = vadd.f32 %v107, %v352
  %v354 = vpop.f32.mrf.mxu0
  %355 = vmatprep.mubr.f32.mxu0 0.0
  %356 = vmatmul.mubr.f32.gmra.mxu0 %v162
  %v357 = vpop.f32.mrf.mxu0
  %v358 = vadd.f32 %v107, %v357
  %v359 = vpop.f32.mrf.mxu0
  %360 = vmatprep.mubr.f32.mxu0 0.0
  %361 = vmatmul.mubr.f32.gmra.mxu0 %v165
  %v362 = vpop.f32.mrf.mxu0
  %v363 = vadd.f32 %v107, %v362
  %v364 = vpop.f32.mrf.mxu0
  %365 = vmatprep.mubr.f32.mxu0 0.0
  %366 = vmatmul.mubr.f32.gmra.mxu0 %v168
  %v367 = vpop.f32.mrf.mxu0
  %v368 = vadd.f32 %v107, %v367
  %v369 = vpop.f32.mrf.mxu0
  %370 = vmatprep.mubr.f32.mxu0 0.0
  %371 = vmatmul.mubr.f32.gmra.mxu0 %v171
  %v372 = vpop.f32.mrf.mxu0
  %v373 = vadd.f32 %v107, %v372
  %v374 = vpop.f32.mrf.mxu0
  %375 = vmatprep.mubr.f32.mxu0 0.0
  %376 = vmatmul.mubr.f32.gmra.mxu0 %v174
  %v377 = vpop.f32.mrf.mxu0
  %v378 = vadd.f32 %v107, %v377
  %v379 = vpop.f32.mrf.mxu0
  %380 = vmatprep.mubr.f32.mxu0 0.0
  %381 = vmatmul.mubr.f32.gmra.mxu0 %v177
  %v382 = vpop.f32.mrf.mxu0
  %v383 = vadd.f32 %v107, %v382
  %v384 = vpop.f32.mrf.mxu0
  %385 = vmatprep.mubr.f32.mxu0 0.0
  %386 = vmatmul.mubr.f32.gmra.mxu0 %v180
  %v387 = vpop.f32.mrf.mxu0
  %v388 = vadd.f32 %v107, %v387
  %v389 = vpop.f32.mrf.mxu0
  %390 = vmatprep.mubr.f32.mxu0 0.0
  %391 = vmatmul.mubr.f32.gmra.mxu0 %v183
  %v392 = vpop.f32.mrf.mxu0
  %v393 = vadd.f32 %v107, %v392
  %v394 = vpop.f32.mrf.mxu0
  %395 = vmatprep.mubr.f32.mxu0 0.0
  %396 = vmatmul.mubr.f32.gmra.mxu0 %v186
  %v397 = vpop.f32.mrf.mxu0
  %v398 = vadd.f32 %v107, %v397
  %v399 = vpop.f32.mrf.mxu0
  %400 = vmatprep.mubr.f32.mxu0 0.0
  %401 = vmatmul.mubr.f32.gmra.mxu0 %v189
  %v402 = vpop.f32.mrf.mxu0
  %v403 = vadd.f32 %v107, %v402
  %v404 = vpop.f32.mrf.mxu0
  %405 = vmatprep.mubr.f32.mxu0 0.0
  %406 = vmatmul.mubr.f32.gmra.mxu0 %v192
  %v407 = vpop.f32.mrf.mxu0
  %v408 = vadd.f32 %v107, %v407
  %v409 = vpop.f32.mrf.mxu0
  %410 = vmatprep.mubr.f32.mxu0 0.0
  %411 = vmatmul.mubr.f32.gmra.mxu0 %v195
  %v412 = vpop.f32.mrf.mxu0
  %v413 = vadd.f32 %v107, %v412
  %v414 = vpop.f32.mrf.mxu0
  %415 = vmatprep.mubr.f32.mxu0 0.0
  %416 = vmatmul.mubr.f32.gmra.mxu0 %v198
  %v417 = vpop.f32.mrf.mxu0
  %v418 = vadd.f32 %v107, %v417
  %v419 = vpop.f32.mrf.mxu0
  %420 = vmatprep.mubr.f32.mxu0 0.0
  %421 = vmatmul.mubr.f32.gmra.mxu0 %v201
  %v422 = vpop.f32.mrf.mxu0
  %v423 = vadd.f32 %v107, %v422
  %v424 = vpop.f32.mrf.mxu0
  %425 = vmatprep.mubr.f32.mxu0 0.0
  %426 = vmatmul.mubr.f32.gmra.mxu0 %v204
  %v427 = vpop.f32.mrf.mxu0
  %v428 = vadd.f32 %v107, %v427
  %v429 = vpop.f32.mrf.mxu0
  %430 = vdwg.mxu0
  %v431 = vld [vmem:[%s3] sm:$0xf]
  %v432 = vld [vmem:[%s3 + $0x4] sm:$0xf]
  %v433 = vunpack.c.l.bf16 %v431
  %v434 = vunpack.c.l.bf16 %v432
  %v435 = vlaneseq
  %v436 = vshrl.u32 %v435, 7
  %v437 = vsub.s32 0, %v436
  %v438 = vrot.slane %v433, %v437
  %440 = vbcast.lane.b32.xlu0 %v438, 256
  %v441 = vpop.permute.xlu0 %440
  %s443 = sor.u32 256, 8
  %444 = vbcast.lane.b32.xlu0 %v438, %s443
  %v445 = vpop.permute.xlu0 %444
  %v446 = vlaneseq
  %v447 = vshrl.u32 %v446, 7
  %v448 = vsub.s32 1, %v447
  %v449 = vrot.slane %v433, %v448
  %451 = vbcast.lane.b32.xlu0 %v449, 256
  %v452 = vpop.permute.xlu0 %451
  %s454 = sor.u32 256, 8
  %455 = vbcast.lane.b32.xlu0 %v449, %s454
  %v456 = vpop.permute.xlu0 %455
  %v457 = vlaneseq
  %v458 = vshrl.u32 %v457, 7
  %v459 = vsub.s32 2, %v458
  %v460 = vrot.slane %v433, %v459
  %462 = vbcast.lane.b32.xlu0 %v460, 256
  %v463 = vpop.permute.xlu0 %462
  %s465 = sor.u32 256, 8
  %466 = vbcast.lane.b32.xlu0 %v460, %s465
  %v467 = vpop.permute.xlu0 %466
  %v468 = vlaneseq
  %v469 = vshrl.u32 %v468, 7
  %v470 = vsub.s32 3, %v469
  %v471 = vrot.slane %v433, %v470
  %473 = vbcast.lane.b32.xlu0 %v471, 256
  %v474 = vpop.permute.xlu0 %473
  %s476 = sor.u32 256, 8
  %477 = vbcast.lane.b32.xlu0 %v471, %s476
  %v478 = vpop.permute.xlu0 %477
  %v479 = vlaneseq
  %v480 = vshrl.u32 %v479, 7
  %v481 = vsub.s32 4, %v480
  %v482 = vrot.slane %v433, %v481
  %484 = vbcast.lane.b32.xlu0 %v482, 256
  %v485 = vpop.permute.xlu0 %484
  %s487 = sor.u32 256, 8
  %488 = vbcast.lane.b32.xlu0 %v482, %s487
  %v489 = vpop.permute.xlu0 %488
  %v490 = vlaneseq
  %v491 = vshrl.u32 %v490, 7
  %v492 = vsub.s32 5, %v491
  %v493 = vrot.slane %v433, %v492
  %495 = vbcast.lane.b32.xlu0 %v493, 256
  %v496 = vpop.permute.xlu0 %495
  %s498 = sor.u32 256, 8
  %499 = vbcast.lane.b32.xlu0 %v493, %s498
  %v500 = vpop.permute.xlu0 %499
  %v501 = vlaneseq
  %v502 = vshrl.u32 %v501, 7
  %v503 = vsub.s32 6, %v502
  %v504 = vrot.slane %v433, %v503
  %506 = vbcast.lane.b32.xlu0 %v504, 256
  %v507 = vpop.permute.xlu0 %506
  %s509 = sor.u32 256, 8
  %510 = vbcast.lane.b32.xlu0 %v504, %s509
  %v511 = vpop.permute.xlu0 %510
  %v512 = vlaneseq
  %v513 = vshrl.u32 %v512, 7
  %v514 = vsub.s32 7, %v513
  %v515 = vrot.slane %v433, %v514
  %517 = vbcast.lane.b32.xlu0 %v515, 256
  %v518 = vpop.permute.xlu0 %517
  %s520 = sor.u32 256, 8
  %521 = vbcast.lane.b32.xlu0 %v515, %s520
  %v522 = vpop.permute.xlu0 %521
  %v523 = vlaneseq
  %v524 = vshrl.u32 %v523, 7
  %v525 = vsub.s32 0, %v524
  %v526 = vrot.slane %v434, %v525
  %528 = vbcast.lane.b32.xlu0 %v526, 256
  %v529 = vpop.permute.xlu0 %528
  %s531 = sor.u32 256, 8
  %532 = vbcast.lane.b32.xlu0 %v526, %s531
  %v533 = vpop.permute.xlu0 %532
  %v534 = vlaneseq
  %v535 = vshrl.u32 %v534, 7
  %v536 = vsub.s32 1, %v535
  %v537 = vrot.slane %v434, %v536
  %539 = vbcast.lane.b32.xlu0 %v537, 256
  %v540 = vpop.permute.xlu0 %539
  %s542 = sor.u32 256, 8
  %543 = vbcast.lane.b32.xlu0 %v537, %s542
  %v544 = vpop.permute.xlu0 %543
  %v545 = vlaneseq
  %v546 = vshrl.u32 %v545, 7
  %v547 = vsub.s32 2, %v546
  %v548 = vrot.slane %v434, %v547
  %550 = vbcast.lane.b32.xlu0 %v548, 256
  %v551 = vpop.permute.xlu0 %550
  %s553 = sor.u32 256, 8
  %554 = vbcast.lane.b32.xlu0 %v548, %s553
  %v555 = vpop.permute.xlu0 %554
  %v556 = vlaneseq
  %v557 = vshrl.u32 %v556, 7
  %v558 = vsub.s32 3, %v557
  %v559 = vrot.slane %v434, %v558
  %561 = vbcast.lane.b32.xlu0 %v559, 256
  %v562 = vpop.permute.xlu0 %561
  %s564 = sor.u32 256, 8
  %565 = vbcast.lane.b32.xlu0 %v559, %s564
  %v566 = vpop.permute.xlu0 %565
  %v567 = vlaneseq
  %v568 = vshrl.u32 %v567, 7
  %v569 = vsub.s32 4, %v568
  %v570 = vrot.slane %v434, %v569
  %572 = vbcast.lane.b32.xlu0 %v570, 256
  %v573 = vpop.permute.xlu0 %572
  %s575 = sor.u32 256, 8
  %576 = vbcast.lane.b32.xlu0 %v570, %s575
  %v577 = vpop.permute.xlu0 %576
  %v578 = vlaneseq
  %v579 = vshrl.u32 %v578, 7
  %v580 = vsub.s32 5, %v579
  %v581 = vrot.slane %v434, %v580
  %583 = vbcast.lane.b32.xlu0 %v581, 256
  %v584 = vpop.permute.xlu0 %583
  %s586 = sor.u32 256, 8
  %587 = vbcast.lane.b32.xlu0 %v581, %s586
  %v588 = vpop.permute.xlu0 %587
  %v589 = vlaneseq
  %v590 = vshrl.u32 %v589, 7
  %v591 = vsub.s32 6, %v590
  %v592 = vrot.slane %v434, %v591
  %594 = vbcast.lane.b32.xlu0 %v592, 256
  %v595 = vpop.permute.xlu0 %594
  %s597 = sor.u32 256, 8
  %598 = vbcast.lane.b32.xlu0 %v592, %s597
  %v599 = vpop.permute.xlu0 %598
  %v600 = vlaneseq
  %v601 = vshrl.u32 %v600, 7
  %v602 = vsub.s32 7, %v601
  %v603 = vrot.slane %v434, %v602
  %605 = vbcast.lane.b32.xlu0 %v603, 256
  %v606 = vpop.permute.xlu0 %605
  %s608 = sor.u32 256, 8
  %609 = vbcast.lane.b32.xlu0 %v603, %s608
  %v610 = vpop.permute.xlu0 %609
  %v611 = vmul.f32 %v273, %v441
  %v612 = vmul.f32 %v278, %v445
  %v613 = vmul.f32 %v283, %v452
  %v614 = vmul.f32 %v288, %v456
  %v615 = vmul.f32 %v293, %v463
  %v616 = vmul.f32 %v298, %v467
  %v617 = vmul.f32 %v303, %v474
  %v618 = vmul.f32 %v308, %v478
  %v619 = vmul.f32 %v313, %v485
  %v620 = vmul.f32 %v318, %v489
  %v621 = vmul.f32 %v323, %v496
  %v622 = vmul.f32 %v328, %v500
  %v623 = vmul.f32 %v333, %v507
  %v624 = vmul.f32 %v338, %v511
  %v625 = vmul.f32 %v343, %v518
  %v626 = vmul.f32 %v348, %v522
  %v627 = vmul.f32 %v353, %v529
  %v628 = vmul.f32 %v358, %v533
  %v629 = vmul.f32 %v363, %v540
  %v630 = vmul.f32 %v368, %v544
  %v631 = vmul.f32 %v373, %v551
  %v632 = vmul.f32 %v378, %v555
  %v633 = vmul.f32 %v383, %v562
  %v634 = vmul.f32 %v388, %v566
  %v635 = vmul.f32 %v393, %v573
  %v636 = vmul.f32 %v398, %v577
  %v637 = vmul.f32 %v403, %v584
  %v638 = vmul.f32 %v408, %v588
  %v639 = vmul.f32 %v413, %v595
  %v640 = vmul.f32 %v418, %v599
  %v641 = vmul.f32 %v423, %v606
  %v642 = vmul.f32 %v428, %v610
  %v643 = vld [vmem:[#allocation2] sm:$0xff]
  %v644 = vld [vmem:[#allocation2 + $0x8] sm:$0xff]
  %v645 = vld [vmem:[%s1] sm:$0xff]
  %v646 = vld [vmem:[%s1 + $0x8] sm:$0xff]
  %v647 = vmul.f32 %v645, %v611
  %v648 = vmul.f32 %v646, %v612
  %v649 = vmul.f32 %v645, %v613
  %v650 = vmul.f32 %v646, %v614
  %v651 = vmul.f32 %v645, %v615
  %v652 = vmul.f32 %v646, %v616
  %v653 = vmul.f32 %v645, %v617
  %v654 = vmul.f32 %v646, %v618
  %v655 = vmul.f32 %v645, %v619
  %v656 = vmul.f32 %v646, %v620
  %v657 = vmul.f32 %v645, %v621
  %v658 = vmul.f32 %v646, %v622
  %v659 = vmul.f32 %v645, %v623
  %v660 = vmul.f32 %v646, %v624
  %v661 = vmul.f32 %v645, %v625
  %v662 = vmul.f32 %v646, %v626
  %v663 = vmul.f32 %v645, %v627
  %v664 = vmul.f32 %v646, %v628
  %v665 = vmul.f32 %v645, %v629
  %v666 = vmul.f32 %v646, %v630
  %v667 = vmul.f32 %v645, %v631
  %v668 = vmul.f32 %v646, %v632
  %v669 = vmul.f32 %v645, %v633
  %v670 = vmul.f32 %v646, %v634
  %v671 = vmul.f32 %v645, %v635
  %v672 = vmul.f32 %v646, %v636
  %v673 = vmul.f32 %v645, %v637
  %v674 = vmul.f32 %v646, %v638
  %v675 = vmul.f32 %v645, %v639
  %v676 = vmul.f32 %v646, %v640
  %v677 = vmul.f32 %v645, %v641
  %v678 = vmul.f32 %v646, %v642
  %vm679 = vcmask 261120
  %v680 = vsel %vm679, %v647, 0.0
  %v681 = vsel %vm679, %v648, 0.0
  %v682 = vadd.f32 %v680, %v681
  %v683 = vrot.slane %v682, 4
  %v684 = vadd.f32 %v682, %v683
  %v685 = vrot.slane %v684, 2
  %v686 = vadd.f32 %v684, %v685
  %v687 = vrot.slane %v686, 1
  %v688 = vadd.f32 %v686, %v687
  %v689 = vsel %vm679, %v649, 0.0
  %v690 = vsel %vm679, %v650, 0.0
  %v691 = vadd.f32 %v689, %v690
  %v692 = vrot.slane %v691, 4
  %v693 = vadd.f32 %v691, %v692
  %v694 = vrot.slane %v693, 2
  %v695 = vadd.f32 %v693, %v694
  %v696 = vrot.slane %v695, 1
  %v697 = vadd.f32 %v695, %v696
  %v698 = vsel %vm679, %v651, 0.0
  %v699 = vsel %vm679, %v652, 0.0
  %v700 = vadd.f32 %v698, %v699
  %v701 = vrot.slane %v700, 4
  %v702 = vadd.f32 %v700, %v701
  %v703 = vrot.slane %v702, 2
  %v704 = vadd.f32 %v702, %v703
  %v705 = vrot.slane %v704, 1
  %v706 = vadd.f32 %v704, %v705
  %v707 = vsel %vm679, %v653, 0.0
  %v708 = vsel %vm679, %v654, 0.0
  %v709 = vadd.f32 %v707, %v708
  %v710 = vrot.slane %v709, 4
  %v711 = vadd.f32 %v709, %v710
  %v712 = vrot.slane %v711, 2
  %v713 = vadd.f32 %v711, %v712
  %v714 = vrot.slane %v713, 1
  %v715 = vadd.f32 %v713, %v714
  %v716 = vsel %vm679, %v655, 0.0
  %v717 = vsel %vm679, %v656, 0.0
  %v718 = vadd.f32 %v716, %v717
  %v719 = vrot.slane %v718, 4
  %v720 = vadd.f32 %v718, %v719
  %v721 = vrot.slane %v720, 2
  %v722 = vadd.f32 %v720, %v721
  %v723 = vrot.slane %v722, 1
  %v724 = vadd.f32 %v722, %v723
  %v725 = vsel %vm679, %v657, 0.0
  %v726 = vsel %vm679, %v658, 0.0
  %v727 = vadd.f32 %v725, %v726
  %v728 = vrot.slane %v727, 4
  %v729 = vadd.f32 %v727, %v728
  %v730 = vrot.slane %v729, 2
  %v731 = vadd.f32 %v729, %v730
  %v732 = vrot.slane %v731, 1
  %v733 = vadd.f32 %v731, %v732
  %v734 = vsel %vm679, %v659, 0.0
  %v735 = vsel %vm679, %v660, 0.0
  %v736 = vadd.f32 %v734, %v735
  %v737 = vrot.slane %v736, 4
  %v738 = vadd.f32 %v736, %v737
  %v739 = vrot.slane %v738, 2
  %v740 = vadd.f32 %v738, %v739
  %v741 = vrot.slane %v740, 1
  %v742 = vadd.f32 %v740, %v741
  %v743 = vsel %vm679, %v661, 0.0
  %v744 = vsel %vm679, %v662, 0.0
  %v745 = vadd.f32 %v743, %v744
  %v746 = vrot.slane %v745, 4
  %v747 = vadd.f32 %v745, %v746
  %v748 = vrot.slane %v747, 2
  %v749 = vadd.f32 %v747, %v748
  %v750 = vrot.slane %v749, 1
  %v751 = vadd.f32 %v749, %v750
  %v752 = vsel %vm679, %v663, 0.0
  %v753 = vsel %vm679, %v664, 0.0
  %v754 = vadd.f32 %v752, %v753
  %v755 = vrot.slane %v754, 4
  %v756 = vadd.f32 %v754, %v755
  %v757 = vrot.slane %v756, 2
  %v758 = vadd.f32 %v756, %v757
  %v759 = vrot.slane %v758, 1
  %v760 = vadd.f32 %v758, %v759
  %v761 = vsel %vm679, %v665, 0.0
  %v762 = vsel %vm679, %v666, 0.0
  %v763 = vadd.f32 %v761, %v762
  %v764 = vrot.slane %v763, 4
  %v765 = vadd.f32 %v763, %v764
  %v766 = vrot.slane %v765, 2
  %v767 = vadd.f32 %v765, %v766
  %v768 = vrot.slane %v767, 1
  %v769 = vadd.f32 %v767, %v768
  %v770 = vsel %vm679, %v667, 0.0
  %v771 = vsel %vm679, %v668, 0.0
  %v772 = vadd.f32 %v770, %v771
  %v773 = vrot.slane %v772, 4
  %v774 = vadd.f32 %v772, %v773
  %v775 = vrot.slane %v774, 2
  %v776 = vadd.f32 %v774, %v775
  %v777 = vrot.slane %v776, 1
  %v778 = vadd.f32 %v776, %v777
  %v779 = vsel %vm679, %v669, 0.0
  %v780 = vsel %vm679, %v670, 0.0
  %v781 = vadd.f32 %v779, %v780
  %v782 = vrot.slane %v781, 4
  %v783 = vadd.f32 %v781, %v782
  %v784 = vrot.slane %v783, 2
  %v785 = vadd.f32 %v783, %v784
  %v786 = vrot.slane %v785, 1
  %v787 = vadd.f32 %v785, %v786
  %v788 = vsel %vm679, %v671, 0.0
  %v789 = vsel %vm679, %v672, 0.0
  %v790 = vadd.f32 %v788, %v789
  %v791 = vrot.slane %v790, 4
  %v792 = vadd.f32 %v790, %v791
  %v793 = vrot.slane %v792, 2
  %v794 = vadd.f32 %v792, %v793
  %v795 = vrot.slane %v794, 1
  %v796 = vadd.f32 %v794, %v795
  %v797 = vsel %vm679, %v673, 0.0
  %v798 = vsel %vm679, %v674, 0.0
  %v799 = vadd.f32 %v797, %v798
  %v800 = vrot.slane %v799, 4
  %v801 = vadd.f32 %v799, %v800
  %v802 = vrot.slane %v801, 2
  %v803 = vadd.f32 %v801, %v802
  %v804 = vrot.slane %v803, 1
  %v805 = vadd.f32 %v803, %v804
  %v806 = vsel %vm679, %v675, 0.0
  %v807 = vsel %vm679, %v676, 0.0
  %v808 = vadd.f32 %v806, %v807
  %v809 = vrot.slane %v808, 4
  %v810 = vadd.f32 %v808, %v809
  %v811 = vrot.slane %v810, 2
  %v812 = vadd.f32 %v810, %v811
  %v813 = vrot.slane %v812, 1
  %v814 = vadd.f32 %v812, %v813
  %v815 = vsel %vm679, %v677, 0.0
  %v816 = vsel %vm679, %v678, 0.0
  %v817 = vadd.f32 %v815, %v816
  %v818 = vrot.slane %v817, 4
  %v819 = vadd.f32 %v817, %v818
  %v820 = vrot.slane %v819, 2
  %v821 = vadd.f32 %v819, %v820
  %v822 = vrot.slane %v821, 1
  %v823 = vadd.f32 %v821, %v822
  %vm840 = vcmask 1041409
  %v841 = vsel %vm840, %v697, %v688
  %vm842 = vcmask 1042434
  %v843 = vsel %vm842, %v706, %v841
  %vm844 = vcmask 1043459
  %v845 = vsel %vm844, %v715, %v843
  %vm846 = vcmask 1044484
  %v847 = vsel %vm846, %v724, %v845
  %vm848 = vcmask 1045509
  %v849 = vsel %vm848, %v733, %v847
  %vm850 = vcmask 1046534
  %v851 = vsel %vm850, %v742, %v849
  %vm852 = vcmask 1047559
  %v853 = vsel %vm852, %v751, %v851
  %v854 = vsel %vm840, %v769, %v760
  %v855 = vsel %vm842, %v778, %v854
  %v856 = vsel %vm844, %v787, %v855
  %v857 = vsel %vm846, %v796, %v856
  %v858 = vsel %vm848, %v805, %v857
  %v859 = vsel %vm850, %v814, %v858
  %v860 = vsel %vm852, %v823, %v859
  %v863 = vadd.f32 %v643, %v853
  %v864 = vadd.f32 %v644, %v860
  %865 = vst.msk [vmem:[#allocation2] sm:$0xff] %vm679, %v863
  %866 = vst.msk [vmem:[#allocation2 + $0x8] sm:$0xff] %vm679, %v864
  // Predicated region
  $region38: #{torchmd_et_forward.3} parent=0 // pred_check
    %p867 = pneg %p29
  $region39: #{torchmd_et_forward.3} parent=0 // pred_check_branch
    %869 = sbr.rel (%p867) target = $region41
  $region40: #{torchmd_et_forward.3} parent=0 // pred_region
    %v870 = vld [vmem:[%s0] sm:$0xff]
    %v871 = vld [vmem:[%s0 + $0x8] sm:$0xff]
    %v872 = vld [vmem:[#allocation2] sm:$0xff]
    %v873 = vld [vmem:[#allocation2 + $0x8] sm:$0xff]
    %876 = vrot.lane.b32.xlu0 %v872, 32
    %v877 = vpop.permute.xlu0 %876
    %878 = vrot.lane.b32.xlu0 %v873, 32
    %v879 = vpop.permute.xlu0 %878
    %v882 = vsel %vm679, %v870, %v877
    %v883 = vsel %vm679, %v871, %v879
    %v884 = vld [vmem:[%s6] sm:$0xff]
    %v885 = vld [vmem:[%s6 + $0x8] sm:$0xff]
    %v886 = vld [vmem:[%s6 + $0x10] sm:$0xff]
    %v887 = vld [vmem:[%s6 + $0x18] sm:$0xff]
    %v888 = vld [vmem:[%s6 + $0x20] sm:$0xff]
    %v889 = vld [vmem:[%s6 + $0x28] sm:$0xff]
    %v890 = vld [vmem:[%s6 + $0x30] sm:$0xff]
    %v891 = vld [vmem:[%s6 + $0x38] sm:$0xff]
    %v892 = vld [vmem:[%s7] sm:$0x1]
    %v894 = vlaneseq
    %v895 = vshrl.u32 %v894, 7
    %v896 = vsub.s32 0, %v895
    %v897 = vrot.slane %v892, %v896
    %vm899 = vcmask 523264
    %v901 = vsel %vm899, %v882, 0
    %v904 = vsel %vm899, %v883, 0
    %906 = vmatprep.subr.mxu0 0.0
    %907 = vmatpush1.msra.mxu0 0.0
    %908 = vmatprep.subr.mxu0 0.0
    %909 = vmatpush1.msra.mxu0 0.0
    %910 = vmatprep.subr.mxu0 0.0
    %911 = vmatpush1.msra.mxu0 0.0
    %912 = vmatprep.subr.mxu0 0.0
    %913 = vmatpush1.msra.mxu0 0.0
    %914 = vmatprep.subr.mxu0 0.0
    %915 = vmatpush1.msra.mxu0 0.0
    %916 = vmatprep.subr.mxu0 0.0
    %917 = vmatpush1.msra.mxu0 0.0
    %918 = vmatprep.subr.mxu0 0.0
    %919 = vmatpush1.msra.mxu0 0.0
    %920 = vmatprep.subr.mxu0 0.0
    %921 = vmatpush1.msra.mxu0 0.0
    %922 = vmatprep.subr.mxu0 0.0
    %923 = vmatpush1.msra.mxu0 %v891
    %924 = vmatprep.subr.mxu0 0.0
    %925 = vmatpush1.msra.mxu0 %v890
    %926 = vmatprep.subr.mxu0 0.0
    %927 = vmatpush1.msra.mxu0 %v889
    %928 = vmatprep.subr.mxu0 0.0
    %929 = vmatpush1.msra.mxu0 %v888
    %930 = vmatprep.subr.mxu0 0.0
    %931 = vmatpush1.msra.mxu0 %v887
    %932 = vmatprep.subr.mxu0 0.0
    %933 = vmatpush1.msra.mxu0 %v886
    %934 = vmatprep.subr.mxu0 0.0
    %935 = vmatpush1.msra.mxu0 %v885
    %936 = vmatprep.subr.mxu0 0.0
    %937 = vmatpush1.msra.mxu0 %v884
    %938 = vmatprep.subr.mxu0 0.0
    %939 = vmatpush2.msra.mxu0 0.0
    %940 = vmatprep.subr.mxu0 0.0
    %941 = vmatpush2.msra.mxu0 0.0
    %942 = vmatprep.subr.mxu0 0.0
    %943 = vmatpush2.msra.mxu0 0.0
    %944 = vmatprep.subr.mxu0 0.0
    %945 = vmatpush2.msra.mxu0 0.0
    %946 = vmatprep.subr.mxu0 0.0
    %947 = vmatpush2.msra.mxu0 0.0
    %948 = vmatprep.subr.mxu0 0.0
    %949 = vmatpush2.msra.mxu0 0.0
    %950 = vmatprep.subr.mxu0 0.0
    %951 = vmatpush2.msra.mxu0 0.0
    %952 = vmatprep.subr.mxu0 0.0
    %953 = vmatpush2.msra.mxu0 0.0
    %954 = vmatprep.subr.mxu0 0.0
    %955 = vmatpush2.msra.mxu0 0.0
    %956 = vmatprep.subr.mxu0 0.0
    %957 = vmatpush2.msra.mxu0 0.0
    %958 = vmatprep.subr.mxu0 0.0
    %959 = vmatpush2.msra.mxu0 0.0
    %960 = vmatprep.subr.mxu0 0.0
    %961 = vmatpush2.msra.mxu0 0.0
    %962 = vmatprep.subr.mxu0 0.0
    %963 = vmatpush2.msra.mxu0 0.0
    %964 = vmatprep.subr.mxu0 0.0
    %965 = vmatpush2.msra.mxu0 0.0
    %966 = vmatprep.subr.mxu0 0.0
    %967 = vmatpush2.msra.mxu0 0.0
    %968 = vmatprep.subr.mxu0 0.0
    %969 = vmatpush2.msra.mxu0 0.0
    %970 = vmatprep.mubr.f32.mxu0 0.0
    %971 = vmatmul.mubr.f32.gmra.mxu0 %v901
    %v972 = vpop.f32.mrf.mxu0
    %v973 = vadd.f32 %v897, %v972
    %v974 = vpop.f32.mrf.mxu0
    %975 = vmatprep.mubr.f32.mxu0 0.0
    %976 = vmatmul.mubr.f32.gmra.mxu0 %v904
    %v977 = vpop.f32.mrf.mxu0
    %v978 = vadd.f32 %v897, %v977
    %v979 = vpop.f32.mrf.mxu0
    %980 = vdwg.mxu0
    %981 = vst.msk [vmem:[%s8] sm:$0xff] %vm679, %v973
    %982 = vst.msk [vmem:[%s8 + $0x8] sm:$0xff] %vm679, %v978
  $region41: #{torchmd_et_forward.3} parent=0 // pred_fallthru
    _
  // Predicated region
  $region42: #{torchmd_et_forward.3} parent=0 // pred_check
    _
  $region43: #{torchmd_et_forward.3} parent=0 // pred_check_branch
    %984 = sbr.rel (0) target = $region45
  $region44: #{torchmd_et_forward.3} parent=0 // pred_region
    _
  $region45: #{torchmd_et_forward.3} parent=0 // pred_fallthru
    _
  // Predicated region
  $region46: #{torchmd_et_forward.3} parent=0 // pred_check
    _
  $region47: #{torchmd_et_forward.3} parent=0 // pred_check_branch
    %986 = sbr.rel (0) target = $region49
  $region48: #{torchmd_et_forward.3} parent=0 // pred_region
    _
  $region49: #{torchmd_et_forward.3} parent=0 // pred_fallthru
    _

// kernel: torchmd_et_forward.4
$region0: #{torchmd_et_forward.4}
  #allocation0 [shape = 'u32[]', space=smem, size = 0x4, offset = 0x4, fixed_abs, tag = 'smem constant byte address 0x4 - core index']
  #allocation1 [shape = 'u32[144,128]{1,0:T(1,128)}', space=vmem, size = 0x12000, scoped, tag = 'internal scratch']
  #allocation2 [shape = 'f32[16,128]{1,0:T(8,128)}', space=vmem, size = 0x2000, scoped, tag = 'scratch operand']
  #allocation3 [shape = 'f32[16,8,32]{2,1,0:T(8,128)}', space=vmem, size = 0x10000, scoped, tag = 'scratch operand']
  %s0 = inlined_call_operand.vmem [shape: f32[16,32], index: 0, kind: input, shape index: {}]
  %s1 = inlined_call_operand.vmem [shape: f32[16,128], index: 1, kind: input, shape index: {}]
  %s2 = inlined_call_operand.vmem [shape: f32[16,32], index: 2, kind: input, shape index: {}]
  %s3 = inlined_call_operand.vmem [shape: f32[16,96], index: 3, kind: input, shape index: {}]
  %s4 = inlined_call_operand.vmem [shape: f32[16,96], index: 4, kind: input, shape index: {}, may-alias: {4,6}]
  %s5 = inlined_call_operand.vmem [shape: f32[16,128], index: 5, kind: input, shape index: {}]
  %s6 = inlined_call_operand.vmem [shape: f32[16,96], index: 6, kind: input, shape index: {}, may-alias: {4,6}]
  %s7 = inlined_call_operand.vmem [shape: bf16[16,16,16], index: 7, kind: input, shape index: {}]
  %s8 = inlined_call_operand.vmem [shape: bf16[16,16], index: 8, kind: input, shape index: {}]
  %s9 = inlined_call_operand.vmem [shape: bf16[16,16], index: 9, kind: input, shape index: {}]
  %s10 = inlined_call_operand.vmem [shape: bf16[16,8,16], index: 10, kind: input, shape index: {}]
  %s11 = inlined_call_operand.vmem [shape: f32[16,128], index: 11, kind: input, shape index: {}]
  %s12 = inlined_call_operand.vmem [shape: f32[1,128], index: 12, kind: input, shape index: {}]
  %s13 = inlined_call_operand.vmem [shape: f32[32,32], index: 13, kind: input, shape index: {}]
  %s14 = inlined_call_operand.vmem [shape: f32[32,96], index: 14, kind: input, shape index: {}]
  %s15 = inlined_call_operand.vmem [shape: f32[1,96], index: 15, kind: input, shape index: {}]
  %s16 = inlined_call_operand.vmem [shape: f32[16,128], index: 16, kind: output, shape index: {}]
  %s17 = sld [smem:[#allocation0]]
  $region82: #{torchmd_et_forward.4} parent=0
    _
  %s19 = ssub.s32 1, %s17
  %s20 = scalar_select 0, %s19, %s17
  // Predicated region
  $region2: #{torchmd_et_forward.4} parent=0 // pred_check
    _
  $region3: #{torchmd_et_forward.4} parent=0 // pred_check_branch
    %22 = sbr.rel (0) target = $region5
  $region4: #{torchmd_et_forward.4} parent=0 // pred_region
    _
  $region5: #{torchmd_et_forward.4} parent=0 // pred_fallthru
    _
  // Predicated region
  $region6: #{torchmd_et_forward.4} parent=0 // pred_check
    _
  $region7: #{torchmd_et_forward.4} parent=0 // pred_check_branch
    %24 = sbr.rel (0) target = $region9
  $region8: #{torchmd_et_forward.4} parent=0 // pred_region
    _
  $region9: #{torchmd_et_forward.4} parent=0 // pred_fallthru
    _
  // Predicated region
  $region10: #{torchmd_et_forward.4} parent=0 // pred_check
    _
  $region11: #{torchmd_et_forward.4} parent=0 // pred_check_branch
    %26 = sbr.rel (0) target = $region13
  $region12: #{torchmd_et_forward.4} parent=0 // pred_region
    _
  $region13: #{torchmd_et_forward.4} parent=0 // pred_fallthru
    _
  // Predicated region
  $region14: #{torchmd_et_forward.4} parent=0 // pred_check
    _
  $region15: #{torchmd_et_forward.4} parent=0 // pred_check_branch
    %28 = sbr.rel (0) target = $region17
  $region16: #{torchmd_et_forward.4} parent=0 // pred_region
    _
  $region17: #{torchmd_et_forward.4} parent=0 // pred_fallthru
    _
  // Predicated region
  $region18: #{torchmd_et_forward.4} parent=0 // pred_check
    _
  $region19: #{torchmd_et_forward.4} parent=0 // pred_check_branch
    %30 = sbr.rel (0) target = $region21
  $region20: #{torchmd_et_forward.4} parent=0 // pred_region
    _
  $region21: #{torchmd_et_forward.4} parent=0 // pred_fallthru
    _
  // Predicated region
  $region22: #{torchmd_et_forward.4} parent=0 // pred_check
    _
  $region23: #{torchmd_et_forward.4} parent=0 // pred_check_branch
    %32 = sbr.rel (0) target = $region25
  $region24: #{torchmd_et_forward.4} parent=0 // pred_region
    _
  $region25: #{torchmd_et_forward.4} parent=0 // pred_fallthru
    _
  // Predicated region
  $region26: #{torchmd_et_forward.4} parent=0 // pred_check
    _
  $region27: #{torchmd_et_forward.4} parent=0 // pred_check_branch
    %34 = sbr.rel (0) target = $region29
  $region28: #{torchmd_et_forward.4} parent=0 // pred_region
    _
  $region29: #{torchmd_et_forward.4} parent=0 // pred_fallthru
    _
  // Predicated region
  $region30: #{torchmd_et_forward.4} parent=0 // pred_check
    _
  $region31: #{torchmd_et_forward.4} parent=0 // pred_check_branch
    %36 = sbr.rel (0) target = $region33
  $region32: #{torchmd_et_forward.4} parent=0 // pred_region
    _
  $region33: #{torchmd_et_forward.4} parent=0 // pred_fallthru
    _
  // Predicated region
  $region34: #{torchmd_et_forward.4} parent=0 // pred_check
    _
  $region35: #{torchmd_et_forward.4} parent=0 // pred_check_branch
    %38 = sbr.rel (0) target = $region37
  $region36: #{torchmd_et_forward.4} parent=0 // pred_region
    _
  $region37: #{torchmd_et_forward.4} parent=0 // pred_fallthru
    _
  // Predicated region
  $region38: #{torchmd_et_forward.4} parent=0 // pred_check
    _
  $region39: #{torchmd_et_forward.4} parent=0 // pred_check_branch
    %40 = sbr.rel (0) target = $region41
  $region40: #{torchmd_et_forward.4} parent=0 // pred_region
    _
  $region41: #{torchmd_et_forward.4} parent=0 // pred_fallthru
    _
  // Predicated region
  $region42: #{torchmd_et_forward.4} parent=0 // pred_check
    _
  $region43: #{torchmd_et_forward.4} parent=0 // pred_check_branch
    %42 = sbr.rel (0) target = $region45
  $region44: #{torchmd_et_forward.4} parent=0 // pred_region
    _
  $region45: #{torchmd_et_forward.4} parent=0 // pred_fallthru
    _
  // Predicated region
  $region46: #{torchmd_et_forward.4} parent=0 // pred_check
    _
  $region47: #{torchmd_et_forward.4} parent=0 // pred_check_branch
    %44 = sbr.rel (0) target = $region49
  $region48: #{torchmd_et_forward.4} parent=0 // pred_region
    _
  $region49: #{torchmd_et_forward.4} parent=0 // pred_fallthru
    _
  // Predicated region
  $region50: #{torchmd_et_forward.4} parent=0 // pred_check
    _
  $region51: #{torchmd_et_forward.4} parent=0 // pred_check_branch
    %46 = sbr.rel (0) target = $region53
  $region52: #{torchmd_et_forward.4} parent=0 // pred_region
    _
  $region53: #{torchmd_et_forward.4} parent=0 // pred_fallthru
    _
  // Predicated region
  $region54: #{torchmd_et_forward.4} parent=0 // pred_check
    _
  $region55: #{torchmd_et_forward.4} parent=0 // pred_check_branch
    %48 = sbr.rel (0) target = $region57
  $region56: #{torchmd_et_forward.4} parent=0 // pred_region
    _
  $region57: #{torchmd_et_forward.4} parent=0 // pred_fallthru
    _
  // Predicated region
  $region58: #{torchmd_et_forward.4} parent=0 // pred_check
    _
  $region59: #{torchmd_et_forward.4} parent=0 // pred_check_branch
    %50 = sbr.rel (0) target = $region61
  $region60: #{torchmd_et_forward.4} parent=0 // pred_region
    _
  $region61: #{torchmd_et_forward.4} parent=0 // pred_fallthru
    _
  // Predicated region
  $region62: #{torchmd_et_forward.4} parent=0 // pred_check
    _
  $region63: #{torchmd_et_forward.4} parent=0 // pred_check_branch
    %52 = sbr.rel (0) target = $region65
  $region64: #{torchmd_et_forward.4} parent=0 // pred_region
    _
  $region65: #{torchmd_et_forward.4} parent=0 // pred_fallthru
    _
  %p53 = scmp.eq.s32.totalorder 0, 0
  // Predicated region
  $region66: #{torchmd_et_forward.4} parent=0 // pred_check
    %p54 = pneg %p53
  $region67: #{torchmd_et_forward.4} parent=0 // pred_check_branch
    %56 = sbr.rel (%p54) target = $region69
  $region68: #{torchmd_et_forward.4} parent=0 // pred_region
    %57 = vst [vmem:[#allocation2] sm:$0xff] 0.0
    %58 = vst [vmem:[#allocation2 + $0x8] sm:$0xff] 0.0
    %vm59 = vcmask 261120
    %60 = vst.msk [vmem:[#allocation3] sm:$0xff] %vm59, 0.0
    %61 = vst.msk [vmem:[#allocation3 + $0x8] sm:$0xff] %vm59, 0.0
    %62 = vst.msk [vmem:[#allocation3 + $0x10] sm:$0xff] %vm59, 0.0
    %63 = vst.msk [vmem:[#allocation3 + $0x18] sm:$0xff] %vm59, 0.0
    %64 = vst.msk [vmem:[#allocation3 + $0x20] sm:$0xff] %vm59, 0.0
    %65 = vst.msk [vmem:[#allocation3 + $0x28] sm:$0xff] %vm59, 0.0
    %66 = vst.msk [vmem:[#allocation3 + $0x30] sm:$0xff] %vm59, 0.0
    %67 = vst.msk [vmem:[#allocation3 + $0x38] sm:$0xff] %vm59, 0.0
    %68 = vst.msk [vmem:[#allocation3 + $0x40] sm:$0xff] %vm59, 0.0
    %69 = vst.msk [vmem:[#allocation3 + $0x48] sm:$0xff] %vm59, 0.0
    %70 = vst.msk [vmem:[#allocation3 + $0x50] sm:$0xff] %vm59, 0.0
    %71 = vst.msk [vmem:[#allocation3 + $0x58] sm:$0xff] %vm59, 0.0
    %72 = vst.msk [vmem:[#allocation3 + $0x60] sm:$0xff] %vm59, 0.0
    %73 = vst.msk [vmem:[#allocation3 + $0x68] sm:$0xff] %vm59, 0.0
    %74 = vst.msk [vmem:[#allocation3 + $0x70] sm:$0xff] %vm59, 0.0
    %75 = vst.msk [vmem:[#allocation3 + $0x78] sm:$0xff] %vm59, 0.0
  $region69: #{torchmd_et_forward.4} parent=0 // pred_fallthru
    _
  %v76 = vld [vmem:[%s7] sm:$0xf]
  %v77 = vld [vmem:[%s7 + $0x4] sm:$0xf]
  %v78 = vld [vmem:[%s7 + $0x8] sm:$0xf]
  %v79 = vld [vmem:[%s7 + $0xc] sm:$0xf]
  %v80 = vld [vmem:[%s7 + $0x10] sm:$0xf]
  %v81 = vld [vmem:[%s7 + $0x14] sm:$0xf]
  %v82 = vld [vmem:[%s7 + $0x18] sm:$0xf]
  %v83 = vld [vmem:[%s7 + $0x1c] sm:$0xf]
  %v84 = vld [vmem:[%s7 + $0x20] sm:$0xf]
  %v85 = vld [vmem:[%s7 + $0x24] sm:$0xf]
  %v86 = vld [vmem:[%s7 + $0x28] sm:$0xf]
  %v87 = vld [vmem:[%s7 + $0x2c] sm:$0xf]
  %v88 = vld [vmem:[%s7 + $0x30] sm:$0xf]
  %v89 = vld [vmem:[%s7 + $0x34] sm:$0xf]
  %v90 = vld [vmem:[%s7 + $0x38] sm:$0xf]
  %v91 = vld [vmem:[%s7 + $0x3c] sm:$0xf]
  %v92 = vld [vmem:[%s7 + $0x40] sm:$0xf]
  %v93 = vld [vmem:[%s7 + $0x44] sm:$0xf]
  %v94 = vld [vmem:[%s7 + $0x48] sm:$0xf]
  %v95 = vld [vmem:[%s7 + $0x4c] sm:$0xf]
  %v96 = vld [vmem:[%s7 + $0x50] sm:$0xf]
  %v97 = vld [vmem:[%s7 + $0x54] sm:$0xf]
  %v98 = vld [vmem:[%s7 + $0x58] sm:$0xf]
  %v99 = vld [vmem:[%s7 + $0x5c] sm:$0xf]
  %v100 = vld [vmem:[%s7 + $0x60] sm:$0xf]
  %v101 = vld [vmem:[%s7 + $0x64] sm:$0xf]
  %v102 = vld [vmem:[%s7 + $0x68] sm:$0xf]
  %v103 = vld [vmem:[%s7 + $0x6c] sm:$0xf]
  %v104 = vld [vmem:[%s7 + $0x70] sm:$0xf]
  %v105 = vld [vmem:[%s7 + $0x74] sm:$0xf]
  %v106 = vld [vmem:[%s7 + $0x78] sm:$0xf]
  %v107 = vld [vmem:[%s7 + $0x7c] sm:$0xf]
  %v108 = vunpack.c.l.bf16 %v76
  %v109 = vunpack.c.l.bf16 %v77
  %v110 = vunpack.c.l.bf16 %v78
  %v111 = vunpack.c.l.bf16 %v79
  %v112 = vunpack.c.l.bf16 %v80
  %v113 = vunpack.c.l.bf16 %v81
  %v114 = vunpack.c.l.bf16 %v82
  %v115 = vunpack.c.l.bf16 %v83
  %v116 = vunpack.c.l.bf16 %v84
  %v117 = vunpack.c.l.bf16 %v85
  %v118 = vunpack.c.l.bf16 %v86
  %v119 = vunpack.c.l.bf16 %v87
  %v120 = vunpack.c.l.bf16 %v88
  %v121 = vunpack.c.l.bf16 %v89
  %v122 = vunpack.c.l.bf16 %v90
  %v123 = vunpack.c.l.bf16 %v91
  %v124 = vunpack.c.l.bf16 %v92
  %v125 = vunpack.c.l.bf16 %v93
  %v126 = vunpack.c.l.bf16 %v94
  %v127 = vunpack.c.l.bf16 %v95
  %v128 = vunpack.c.l.bf16 %v96
  %v129 = vunpack.c.l.bf16 %v97
  %v130 = vunpack.c.l.bf16 %v98
  %v131 = vunpack.c.l.bf16 %v99
  %v132 = vunpack.c.l.bf16 %v100
  %v133 = vunpack.c.l.bf16 %v101
  %v134 = vunpack.c.l.bf16 %v102
  %v135 = vunpack.c.l.bf16 %v103
  %v136 = vunpack.c.l.bf16 %v104
  %v137 = vunpack.c.l.bf16 %v105
  %v138 = vunpack.c.l.bf16 %v106
  %v139 = vunpack.c.l.bf16 %v107
  %v140 = vld [vmem:[%s11] sm:$0xff]
  %v141 = vld [vmem:[%s11 + $0x8] sm:$0xff]
  %v142 = vld [vmem:[%s12] sm:$0x1]
  %v144 = vlaneseq
  %v145 = vshrl.u32 %v144, 7
  %v146 = vsub.s32 0, %v145
  %v147 = vrot.slane %v142, %v146
  %vm149 = vcmask 130048
  %v151 = vsel %vm149, %v108, 0
  %v154 = vsel %vm149, %v109, 0
  %v157 = vsel %vm149, %v110, 0
  %v160 = vsel %vm149, %v111, 0
  %v163 = vsel %vm149, %v112, 0
  %v166 = vsel %vm149, %v113, 0
  %v169 = vsel %vm149, %v114, 0
  %v172 = vsel %vm149, %v115, 0
  %v175 = vsel %vm149, %v116, 0
  %v178 = vsel %vm149, %v117, 0
  %v181 = vsel %vm149, %v118, 0
  %v184 = vsel %vm149, %v119, 0
  %v187 = vsel %vm149, %v120, 0
  %v190 = vsel %vm149, %v121, 0
  %v193 = vsel %vm149, %v122, 0
  %v196 = vsel %vm149, %v123, 0
  %v199 = vsel %vm149, %v124, 0
  %v202 = vsel %vm149, %v125, 0
  %v205 = vsel %vm149, %v126, 0
  %v208 = vsel %vm149, %v127, 0
  %v211 = vsel %vm149, %v128, 0
  %v214 = vsel %vm149, %v129, 0
  %v217 = vsel %vm149, %v130, 0
  %v220 = vsel %vm149, %v131, 0
  %v223 = vsel %vm149, %v132, 0
  %v226 = vsel %vm149, %v133, 0
  %v229 = vsel %vm149, %v134, 0
  %v232 = vsel %vm149, %v135, 0
  %v235 = vsel %vm149, %v136, 0
  %v238 = vsel %vm149, %v137, 0
  %v241 = vsel %vm149, %v138, 0
  %v244 = vsel %vm149, %v139, 0
  %246 = vmatprep.subr.mxu0 0.0
  %247 = vmatpush1.msra.mxu0 0.0
  %248 = vmatprep.subr.mxu0 0.0
  %249 = vmatpush1.msra.mxu0 0.0
  %250 = vmatprep.subr.mxu0 0.0
  %251 = vmatpush1.msra.mxu0 0.0
  %252 = vmatprep.subr.mxu0 0.0
  %253 = vmatpush1.msra.mxu0 0.0
  %254 = vmatprep.subr.mxu0 0.0
  %255 = vmatpush1.msra.mxu0 0.0
  %256 = vmatprep.subr.mxu0 0.0
  %257 = vmatpush1.msra.mxu0 0.0
  %258 = vmatprep.subr.mxu0 0.0
  %259 = vmatpush1.msra.mxu0 0.0
  %260 = vmatprep.subr.mxu0 0.0
  %261 = vmatpush1.msra.mxu0 0.0
  %262 = vmatprep.subr.mxu0 0.0
  %263 = vmatpush1.msra.mxu0 0.0
  %264 = vmatprep.subr.mxu0 0.0
  %265 = vmatpush1.msra.mxu0 0.0
  %266 = vmatprep.subr.mxu0 0.0
  %267 = vmatpush1.msra.mxu0 0.0
  %268 = vmatprep.subr.mxu0 0.0
  %269 = vmatpush1.msra.mxu0 0.0
  %270 = vmatprep.subr.mxu0 0.0
  %271 = vmatpush1.msra.mxu0 0.0
  %272 = vmatprep.subr.mxu0 0.0
  %273 = vmatpush1.msra.mxu0 0.0
  %274 = vmatprep.subr.mxu0 0.0
  %275 = vmatpush1.msra.mxu0 %v141
  %276 = vmatprep.subr.mxu0 0.0
  %277 = vmatpush1.msra.mxu0 %v140
  %278 = vmatprep.subr.mxu0 0.0
  %279 = vmatpush2.msra.mxu0 0.0
  %280 = vmatprep.subr.mxu0 0.0
  %281 = vmatpush2.msra.mxu0 0.0
  %282 = vmatprep.subr.mxu0 0.0
  %283 = vmatpush2.msra.mxu0 0.0
  %284 = vmatprep.subr.mxu0 0.0
  %285 = vmatpush2.msra.mxu0 0.0
  %286 = vmatprep.subr.mxu0 0.0
  %287 = vmatpush2.msra.mxu0 0.0
  %288 = vmatprep.subr.mxu0 0.0
  %289 = vmatpush2.msra.mxu0 0.0
  %290 = vmatprep.subr.mxu0 0.0
  %291 = vmatpush2.msra.mxu0 0.0
  %292 = vmatprep.subr.mxu0 0.0
  %293 = vmatpush2.msra.mxu0 0.0
  %294 = vmatprep.subr.mxu0 0.0
  %295 = vmatpush2.msra.mxu0 0.0
  %296 = vmatprep.subr.mxu0 0.0
  %297 = vmatpush2.msra.mxu0 0.0
  %298 = vmatprep.subr.mxu0 0.0
  %299 = vmatpush2.msra.mxu0 0.0
  %300 = vmatprep.subr.mxu0 0.0
  %301 = vmatpush2.msra.mxu0 0.0
  %302 = vmatprep.subr.mxu0 0.0
  %303 = vmatpush2.msra.mxu0 0.0
  %304 = vmatprep.subr.mxu0 0.0
  %305 = vmatpush2.msra.mxu0 0.0
  %306 = vmatprep.subr.mxu0 0.0
  %307 = vmatpush2.msra.mxu0 0.0
  %308 = vmatprep.subr.mxu0 0.0
  %309 = vmatpush2.msra.mxu0 0.0
  %310 = vmatprep.mubr.f32.mxu0 0.0
  %311 = vmatmul.mubr.f32.gmra.mxu0 %v151
  %v312 = vpop.f32.mrf.mxu0
  %v313 = vadd.f32 %v147, %v312
  %v314 = vpop.f32.mrf.mxu0
  %315 = vmatprep.mubr.f32.mxu0 0.0
  %316 = vmatmul.mubr.f32.gmra.mxu0 %v154
  %v317 = vpop.f32.mrf.mxu0
  %v318 = vadd.f32 %v147, %v317
  %v319 = vpop.f32.mrf.mxu0
  %320 = vmatprep.mubr.f32.mxu0 0.0
  %321 = vmatmul.mubr.f32.gmra.mxu0 %v157
  %v322 = vpop.f32.mrf.mxu0
  %v323 = vadd.f32 %v147, %v322
  %v324 = vpop.f32.mrf.mxu0
  %325 = vmatprep.mubr.f32.mxu0 0.0
  %326 = vmatmul.mubr.f32.gmra.mxu0 %v160
  %v327 = vpop.f32.mrf.mxu0
  %v328 = vadd.f32 %v147, %v327
  %v329 = vpop.f32.mrf.mxu0
  %330 = vmatprep.mubr.f32.mxu0 0.0
  %331 = vmatmul.mubr.f32.gmra.mxu0 %v163
  %v332 = vpop.f32.mrf.mxu0
  %v333 = vadd.f32 %v147, %v332
  %v334 = vpop.f32.mrf.mxu0
  %335 = vmatprep.mubr.f32.mxu0 0.0
  %336 = vmatmul.mubr.f32.gmra.mxu0 %v166
  %v337 = vpop.f32.mrf.mxu0
  %v338 = vadd.f32 %v147, %v337
  %v339 = vpop.f32.mrf.mxu0
  %340 = vmatprep.mubr.f32.mxu0 0.0
  %341 = vmatmul.mubr.f32.gmra.mxu0 %v169
  %v342 = vpop.f32.mrf.mxu0
  %v343 = vadd.f32 %v147, %v342
  %v344 = vpop.f32.mrf.mxu0
  %345 = vmatprep.mubr.f32.mxu0 0.0
  %346 = vmatmul.mubr.f32.gmra.mxu0 %v172
  %v347 = vpop.f32.mrf.mxu0
  %v348 = vadd.f32 %v147, %v347
  %v349 = vpop.f32.mrf.mxu0
  %350 = vmatprep.mubr.f32.mxu0 0.0
  %351 = vmatmul.mubr.f32.gmra.mxu0 %v175
  %v352 = vpop.f32.mrf.mxu0
  %v353 = vadd.f32 %v147, %v352
  %v354 = vpop.f32.mrf.mxu0
  %355 = vmatprep.mubr.f32.mxu0 0.0
  %356 = vmatmul.mubr.f32.gmra.mxu0 %v178
  %v357 = vpop.f32.mrf.mxu0
  %v358 = vadd.f32 %v147, %v357
  %v359 = vpop.f32.mrf.mxu0
  %360 = vmatprep.mubr.f32.mxu0 0.0
  %361 = vmatmul.mubr.f32.gmra.mxu0 %v181
  %v362 = vpop.f32.mrf.mxu0
  %v363 = vadd.f32 %v147, %v362
  %v364 = vpop.f32.mrf.mxu0
  %365 = vmatprep.mubr.f32.mxu0 0.0
  %366 = vmatmul.mubr.f32.gmra.mxu0 %v184
  %v367 = vpop.f32.mrf.mxu0
  %v368 = vadd.f32 %v147, %v367
  %v369 = vpop.f32.mrf.mxu0
  %370 = vmatprep.mubr.f32.mxu0 0.0
  %371 = vmatmul.mubr.f32.gmra.mxu0 %v187
  %v372 = vpop.f32.mrf.mxu0
  %v373 = vadd.f32 %v147, %v372
  %v374 = vpop.f32.mrf.mxu0
  %375 = vmatprep.mubr.f32.mxu0 0.0
  %376 = vmatmul.mubr.f32.gmra.mxu0 %v190
  %v377 = vpop.f32.mrf.mxu0
  %v378 = vadd.f32 %v147, %v377
  %v379 = vpop.f32.mrf.mxu0
  %380 = vmatprep.mubr.f32.mxu0 0.0
  %381 = vmatmul.mubr.f32.gmra.mxu0 %v193
  %v382 = vpop.f32.mrf.mxu0
  %v383 = vadd.f32 %v147, %v382
  %v384 = vpop.f32.mrf.mxu0
  %385 = vmatprep.mubr.f32.mxu0 0.0
  %386 = vmatmul.mubr.f32.gmra.mxu0 %v196
  %v387 = vpop.f32.mrf.mxu0
  %v388 = vadd.f32 %v147, %v387
  %v389 = vpop.f32.mrf.mxu0
  %390 = vmatprep.mubr.f32.mxu0 0.0
  %391 = vmatmul.mubr.f32.gmra.mxu0 %v199
  %v392 = vpop.f32.mrf.mxu0
  %v393 = vadd.f32 %v147, %v392
  %v394 = vpop.f32.mrf.mxu0
  %395 = vmatprep.mubr.f32.mxu0 0.0
  %396 = vmatmul.mubr.f32.gmra.mxu0 %v202
  %v397 = vpop.f32.mrf.mxu0
  %v398 = vadd.f32 %v147, %v397
  %v399 = vpop.f32.mrf.mxu0
  %400 = vmatprep.mubr.f32.mxu0 0.0
  %401 = vmatmul.mubr.f32.gmra.mxu0 %v205
  %v402 = vpop.f32.mrf.mxu0
  %v403 = vadd.f32 %v147, %v402
  %v404 = vpop.f32.mrf.mxu0
  %405 = vmatprep.mubr.f32.mxu0 0.0
  %406 = vmatmul.mubr.f32.gmra.mxu0 %v208
  %v407 = vpop.f32.mrf.mxu0
  %v408 = vadd.f32 %v147, %v407
  %v409 = vpop.f32.mrf.mxu0
  %410 = vmatprep.mubr.f32.mxu0 0.0
  %411 = vmatmul.mubr.f32.gmra.mxu0 %v211
  %v412 = vpop.f32.mrf.mxu0
  %v413 = vadd.f32 %v147, %v412
  %v414 = vpop.f32.mrf.mxu0
  %415 = vmatprep.mubr.f32.mxu0 0.0
  %416 = vmatmul.mubr.f32.gmra.mxu0 %v214
  %v417 = vpop.f32.mrf.mxu0
  %v418 = vadd.f32 %v147, %v417
  %v419 = vpop.f32.mrf.mxu0
  %420 = vmatprep.mubr.f32.mxu0 0.0
  %421 = vmatmul.mubr.f32.gmra.mxu0 %v217
  %v422 = vpop.f32.mrf.mxu0
  %v423 = vadd.f32 %v147, %v422
  %v424 = vpop.f32.mrf.mxu0
  %425 = vmatprep.mubr.f32.mxu0 0.0
  %426 = vmatmul.mubr.f32.gmra.mxu0 %v220
  %v427 = vpop.f32.mrf.mxu0
  %v428 = vadd.f32 %v147, %v427
  %v429 = vpop.f32.mrf.mxu0
  %430 = vmatprep.mubr.f32.mxu0 0.0
  %431 = vmatmul.mubr.f32.gmra.mxu0 %v223
  %v432 = vpop.f32.mrf.mxu0
  %v433 = vadd.f32 %v147, %v432
  %v434 = vpop.f32.mrf.mxu0
  %435 = vmatprep.mubr.f32.mxu0 0.0
  %436 = vmatmul.mubr.f32.gmra.mxu0 %v226
  %v437 = vpop.f32.mrf.mxu0
  %v438 = vadd.f32 %v147, %v437
  %v439 = vpop.f32.mrf.mxu0
  %440 = vmatprep.mubr.f32.mxu0 0.0
  %441 = vmatmul.mubr.f32.gmra.mxu0 %v229
  %v442 = vpop.f32.mrf.mxu0
  %v443 = vadd.f32 %v147, %v442
  %v444 = vpop.f32.mrf.mxu0
  %445 = vmatprep.mubr.f32.mxu0 0.0
  %446 = vmatmul.mubr.f32.gmra.mxu0 %v232
  %v447 = vpop.f32.mrf.mxu0
  %v448 = vadd.f32 %v147, %v447
  %v449 = vpop.f32.mrf.mxu0
  %450 = vmatprep.mubr.f32.mxu0 0.0
  %451 = vmatmul.mubr.f32.gmra.mxu0 %v235
  %v452 = vpop.f32.mrf.mxu0
  %v453 = vadd.f32 %v147, %v452
  %v454 = vpop.f32.mrf.mxu0
  %455 = vmatprep.mubr.f32.mxu0 0.0
  %456 = vmatmul.mubr.f32.gmra.mxu0 %v238
  %v457 = vpop.f32.mrf.mxu0
  %v458 = vadd.f32 %v147, %v457
  %v459 = vpop.f32.mrf.mxu0
  %460 = vmatprep.mubr.f32.mxu0 0.0
  %461 = vmatmul.mubr.f32.gmra.mxu0 %v241
  %v462 = vpop.f32.mrf.mxu0
  %v463 = vadd.f32 %v147, %v462
  %v464 = vpop.f32.mrf.mxu0
  %465 = vmatprep.mubr.f32.mxu0 0.0
  %466 = vmatmul.mubr.f32.gmra.mxu0 %v244
  %v467 = vpop.f32.mrf.mxu0
  %v468 = vadd.f32 %v147, %v467
  %v469 = vpop.f32.mrf.mxu0
  %470 = vdwg.mxu0
  %v471 = vmul.f32 %v313, 0.5
  %v472 = vmul.f32 %v318, 0.5
  %v473 = vmul.f32 %v323, 0.5
  %v474 = vmul.f32 %v328, 0.5
  %v475 = vmul.f32 %v333, 0.5
  %v476 = vmul.f32 %v338, 0.5
  %v477 = vmul.f32 %v343, 0.5
  %v478 = vmul.f32 %v348, 0.5
  %v479 = vmul.f32 %v353, 0.5
  %v480 = vmul.f32 %v358, 0.5
  %v481 = vmul.f32 %v363, 0.5
  %v482 = vmul.f32 %v368, 0.5
  %v483 = vmul.f32 %v373, 0.5
  %v484 = vmul.f32 %v378, 0.5
  %v485 = vmul.f32 %v383, 0.5
  %v486 = vmul.f32 %v388, 0.5
  %v487 = vmul.f32 %v393, 0.5
  %v488 = vmul.f32 %v398, 0.5
  %v489 = vmul.f32 %v403, 0.5
  %v490 = vmul.f32 %v408, 0.5
  %v491 = vmul.f32 %v413, 0.5
  %v492 = vmul.f32 %v418, 0.5
  %v493 = vmul.f32 %v423, 0.5
  %v494 = vmul.f32 %v428, 0.5
  %v495 = vmul.f32 %v433, 0.5
  %v496 = vmul.f32 %v438, 0.5
  %v497 = vmul.f32 %v443, 0.5
  %v498 = vmul.f32 %v448, 0.5
  %v499 = vmul.f32 %v453, 0.5
  %v500 = vmul.f32 %v458, 0.5
  %v501 = vmul.f32 %v463, 0.5
  %v502 = vmul.f32 %v468, 0.5
  %v503 = vtanh.pop %v471
  %v504 = vtanh.pop %v472
  %v505 = vtanh.pop %v473
  %v506 = vtanh.pop %v474
  %v507 = vtanh.pop %v475
  %v508 = vtanh.pop %v476
  %v509 = vtanh.pop %v477
  %v510 = vtanh.pop %v478
  %v511 = vtanh.pop %v479
  %v512 = vtanh.pop %v480
  %v513 = vtanh.pop %v481
  %v514 = vtanh.pop %v482
  %v515 = vtanh.pop %v483
  %v516 = vtanh.pop %v484
  %v517 = vtanh.pop %v485
  %v518 = vtanh.pop %v486
  %v519 = vtanh.pop %v487
  %v520 = vtanh.pop %v488
  %v521 = vtanh.pop %v489
  %v522 = vtanh.pop %v490
  %v523 = vtanh.pop %v491
  %v524 = vtanh.pop %v492
  %v525 = vtanh.pop %v493
  %v526 = vtanh.pop %v494
  %v527 = vtanh.pop %v495
  %v528 = vtanh.pop %v496
  %v529 = vtanh.pop %v497
  %v530 = vtanh.pop %v498
  %v531 = vtanh.pop %v499
  %v532 = vtanh.pop %v500
  %v533 = vtanh.pop %v501
  %v534 = vtanh.pop %v502
  %v535 = vadd.f32 %v503, 1.0
  %v536 = vadd.f32 %v504, 1.0
  %v537 = vadd.f32 %v505, 1.0
  %v538 = vadd.f32 %v506, 1.0
  %v539 = vadd.f32 %v507, 1.0
  %v540 = vadd.f32 %v508, 1.0
  %v541 = vadd.f32 %v509, 1.0
  %v542 = vadd.f32 %v510, 1.0
  %v543 = vadd.f32 %v511, 1.0
  %v544 = vadd.f32 %v512, 1.0
  %v545 = vadd.f32 %v513, 1.0
  %v546 = vadd.f32 %v514, 1.0
  %v547 = vadd.f32 %v515, 1.0
  %v548 = vadd.f32 %v516, 1.0
  %v549 = vadd.f32 %v517, 1.0
  %v550 = vadd.f32 %v518, 1.0
  %v551 = vadd.f32 %v519, 1.0
  %v552 = vadd.f32 %v520, 1.0
  %v553 = vadd.f32 %v521, 1.0
  %v554 = vadd.f32 %v522, 1.0
  %v555 = vadd.f32 %v523, 1.0
  %v556 = vadd.f32 %v524, 1.0
  %v557 = vadd.f32 %v525, 1.0
  %v558 = vadd.f32 %v526, 1.0
  %v559 = vadd.f32 %v527, 1.0
  %v560 = vadd.f32 %v528, 1.0
  %v561 = vadd.f32 %v529, 1.0
  %v562 = vadd.f32 %v530, 1.0
  %v563 = vadd.f32 %v531, 1.0
  %v564 = vadd.f32 %v532, 1.0
  %v565 = vadd.f32 %v533, 1.0
  %v566 = vadd.f32 %v534, 1.0
  %v567 = vmul.f32 %v535, 0.5
  %v568 = vmul.f32 %v536, 0.5
  %v569 = vmul.f32 %v537, 0.5
  %v570 = vmul.f32 %v538, 0.5
  %v571 = vmul.f32 %v539, 0.5
  %v572 = vmul.f32 %v540, 0.5
  %v573 = vmul.f32 %v541, 0.5
  %v574 = vmul.f32 %v542, 0.5
  %v575 = vmul.f32 %v543, 0.5
  %v576 = vmul.f32 %v544, 0.5
  %v577 = vmul.f32 %v545, 0.5
  %v578 = vmul.f32 %v546, 0.5
  %v579 = vmul.f32 %v547, 0.5
  %v580 = vmul.f32 %v548, 0.5
  %v581 = vmul.f32 %v549, 0.5
  %v582 = vmul.f32 %v550, 0.5
  %v583 = vmul.f32 %v551, 0.5
  %v584 = vmul.f32 %v552, 0.5
  %v585 = vmul.f32 %v553, 0.5
  %v586 = vmul.f32 %v554, 0.5
  %v587 = vmul.f32 %v555, 0.5
  %v588 = vmul.f32 %v556, 0.5
  %v589 = vmul.f32 %v557, 0.5
  %v590 = vmul.f32 %v558, 0.5
  %v591 = vmul.f32 %v559, 0.5
  %v592 = vmul.f32 %v560, 0.5
  %v593 = vmul.f32 %v561, 0.5
  %v594 = vmul.f32 %v562, 0.5
  %v595 = vmul.f32 %v563, 0.5
  %v596 = vmul.f32 %v564, 0.5
  %v597 = vmul.f32 %v565, 0.5
  %v598 = vmul.f32 %v566, 0.5
  %v599 = vmul.f32 %v313, %v567
  %v600 = vmul.f32 %v318, %v568
  %v601 = vmul.f32 %v323, %v569
  %v602 = vmul.f32 %v328, %v570
  %v603 = vmul.f32 %v333, %v571
  %v604 = vmul.f32 %v338, %v572
  %v605 = vmul.f32 %v343, %v573
  %v606 = vmul.f32 %v348, %v574
  %v607 = vmul.f32 %v353, %v575
  %v608 = vmul.f32 %v358, %v576
  %v609 = vmul.f32 %v363, %v577
  %v610 = vmul.f32 %v368, %v578
  %v611 = vmul.f32 %v373, %v579
  %v612 = vmul.f32 %v378, %v580
  %v613 = vmul.f32 %v383, %v581
  %v614 = vmul.f32 %v388, %v582
  %v615 = vmul.f32 %v393, %v583
  %v616 = vmul.f32 %v398, %v584
  %v617 = vmul.f32 %v403, %v585
  %v618 = vmul.f32 %v408, %v586
  %v619 = vmul.f32 %v413, %v587
  %v620 = vmul.f32 %v418, %v588
  %v621 = vmul.f32 %v423, %v589
  %v622 = vmul.f32 %v428, %v590
  %v623 = vmul.f32 %v433, %v591
  %v624 = vmul.f32 %v438, %v592
  %v625 = vmul.f32 %v443, %v593
  %v626 = vmul.f32 %v448, %v594
  %v627 = vmul.f32 %v453, %v595
  %v628 = vmul.f32 %v458, %v596
  %v629 = vmul.f32 %v463, %v597
  %v630 = vmul.f32 %v468, %v598
  %v631 = vld [vmem:[%s5] sm:$0xff]
  %v632 = vld [vmem:[%s5 + $0x8] sm:$0xff]
  %v633 = vmul.f32 %v599, %v631
  %v634 = vmul.f32 %v600, %v632
  %v635 = vmul.f32 %v601, %v631
  %v636 = vmul.f32 %v602, %v632
  %v637 = vmul.f32 %v603, %v631
  %v638 = vmul.f32 %v604, %v632
  %v639 = vmul.f32 %v605, %v631
  %v640 = vmul.f32 %v606, %v632
  %v641 = vmul.f32 %v607, %v631
  %v642 = vmul.f32 %v608, %v632
  %v643 = vmul.f32 %v609, %v631
  %v644 = vmul.f32 %v610, %v632
  %v645 = vmul.f32 %v611, %v631
  %v646 = vmul.f32 %v612, %v632
  %v647 = vmul.f32 %v613, %v631
  %v648 = vmul.f32 %v614, %v632
  %v649 = vmul.f32 %v615, %v631
  %v650 = vmul.f32 %v616, %v632
  %v651 = vmul.f32 %v617, %v631
  %v652 = vmul.f32 %v618, %v632
  %v653 = vmul.f32 %v619, %v631
  %v654 = vmul.f32 %v620, %v632
  %v655 = vmul.f32 %v621, %v631
  %v656 = vmul.f32 %v622, %v632
  %v657 = vmul.f32 %v623, %v631
  %v658 = vmul.f32 %v624, %v632
  %v659 = vmul.f32 %v625, %v631
  %v660 = vmul.f32 %v626, %v632
  %v661 = vmul.f32 %v627, %v631
  %v662 = vmul.f32 %v628, %v632
  %v663 = vmul.f32 %v629, %v631
  %v664 = vmul.f32 %v630, %v632
  %v665 = vld [vmem:[%s1] sm:$0xff]
  %v666 = vld [vmem:[%s1 + $0x8] sm:$0xff]
  %v669 = vcombine.high %v665, %v665
  %v671 = vunpack.c.l.s4 1966171168
  %v672 = vunpack.c.0.s8 %v671
  %v673 = vlaneseq
  %v674 = vshrl.u32 %v673, 7
  %v675 = vsub.s32 %v672, %v674
  %v676 = vrot.slane %v665, %v675
  %v678 = vunpack.c.l.s4 1966171168
  %v679 = vunpack.c.0.s8 %v678
  %v680 = vlaneseq
  %v681 = vshrl.u32 %v680, 7
  %v682 = vsub.s32 %v679, %v681
  %v683 = vrot.slane %v669, %v682
  %v684 = vcombine.high %v676, %v676
  %v685 = vcombine.high %v683, %v683
  %v687 = vunpack.c.l.s4 1966171168
  %v688 = vunpack.c.0.s8 %v687
  %v689 = vlaneseq
  %v690 = vshrl.u32 %v689, 7
  %v691 = vsub.s32 %v688, %v690
  %v692 = vrot.slane %v676, %v691
  %v694 = vunpack.c.l.s4 1966171168
  %v695 = vunpack.c.0.s8 %v694
  %v696 = vlaneseq
  %v697 = vshrl.u32 %v696, 7
  %v698 = vsub.s32 %v695, %v697
  %v699 = vrot.slane %v683, %v698
  %v701 = vunpack.c.l.s4 1966171168
  %v702 = vunpack.c.0.s8 %v701
  %v703 = vlaneseq
  %v704 = vshrl.u32 %v703, 7
  %v705 = vsub.s32 %v702, %v704
  %v706 = vrot.slane %v684, %v705
  %v708 = vunpack.c.l.s4 1966171168
  %v709 = vunpack.c.0.s8 %v708
  %v710 = vlaneseq
  %v711 = vshrl.u32 %v710, 7
  %v712 = vsub.s32 %v709, %v711
  %v713 = vrot.slane %v685, %v712
  %v714 = vcombine.high %v692, %v692
  %v715 = vcombine.high %v699, %v699
  %v716 = vcombine.high %v706, %v706
  %v717 = vcombine.high %v713, %v713
  %v718 = vcombine.high %v666, %v666
  %v720 = vunpack.c.l.s4 1966171168
  %v721 = vunpack.c.0.s8 %v720
  %v722 = vlaneseq
  %v723 = vshrl.u32 %v722, 7
  %v724 = vsub.s32 %v721, %v723
  %v725 = vrot.slane %v666, %v724
  %v727 = vunpack.c.l.s4 1966171168
  %v728 = vunpack.c.0.s8 %v727
  %v729 = vlaneseq
  %v730 = vshrl.u32 %v729, 7
  %v731 = vsub.s32 %v728, %v730
  %v732 = vrot.slane %v718, %v731
  %v733 = vcombine.high %v725, %v725
  %v734 = vcombine.high %v732, %v732
  %v736 = vunpack.c.l.s4 1966171168
  %v737 = vunpack.c.0.s8 %v736
  %v738 = vlaneseq
  %v739 = vshrl.u32 %v738, 7
  %v740 = vsub.s32 %v737, %v739
  %v741 = vrot.slane %v725, %v740
  %v743 = vunpack.c.l.s4 1966171168
  %v744 = vunpack.c.0.s8 %v743
  %v745 = vlaneseq
  %v746 = vshrl.u32 %v745, 7
  %v747 = vsub.s32 %v744, %v746
  %v748 = vrot.slane %v732, %v747
  %v750 = vunpack.c.l.s4 1966171168
  %v751 = vunpack.c.0.s8 %v750
  %v752 = vlaneseq
  %v753 = vshrl.u32 %v752, 7
  %v754 = vsub.s32 %v751, %v753
  %v755 = vrot.slane %v733, %v754
  %v757 = vunpack.c.l.s4 1966171168
  %v758 = vunpack.c.0.s8 %v757
  %v759 = vlaneseq
  %v760 = vshrl.u32 %v759, 7
  %v761 = vsub.s32 %v758, %v760
  %v762 = vrot.slane %v734, %v761
  %v763 = vcombine.high %v741, %v741
  %v764 = vcombine.high %v748, %v748
  %v765 = vcombine.high %v755, %v755
  %v766 = vcombine.high %v762, %v762
  %v767 = vlaneseq
  %v768 = vshrl.u32 %v767, 7
  %v769 = vsub.s32 0, %v768
  %v770 = vrot.slane %v692, %v769
  %v771 = vlaneseq
  %v772 = vshrl.u32 %v771, 7
  %v773 = vsub.s32 0, %v772
  %v774 = vrot.slane %v706, %v773
  %v775 = vlaneseq
  %v776 = vshrl.u32 %v775, 7
  %v777 = vsub.s32 0, %v776
  %v778 = vrot.slane %v714, %v777
  %v779 = vlaneseq
  %v780 = vshrl.u32 %v779, 7
  %v781 = vsub.s32 0, %v780
  %v782 = vrot.slane %v716, %v781
  %v783 = vlaneseq
  %v784 = vshrl.u32 %v783, 7
  %v785 = vsub.s32 0, %v784
  %v786 = vrot.slane %v699, %v785
  %v787 = vlaneseq
  %v788 = vshrl.u32 %v787, 7
  %v789 = vsub.s32 0, %v788
  %v790 = vrot.slane %v713, %v789
  %v791 = vlaneseq
  %v792 = vshrl.u32 %v791, 7
  %v793 = vsub.s32 0, %v792
  %v794 = vrot.slane %v715, %v793
  %v795 = vlaneseq
  %v796 = vshrl.u32 %v795, 7
  %v797 = vsub.s32 0, %v796
  %v798 = vrot.slane %v717, %v797
  %v799 = vlaneseq
  %v800 = vshrl.u32 %v799, 7
  %v801 = vsub.s32 0, %v800
  %v802 = vrot.slane %v741, %v801
  %v803 = vlaneseq
  %v804 = vshrl.u32 %v803, 7
  %v805 = vsub.s32 0, %v804
  %v806 = vrot.slane %v755, %v805
  %v807 = vlaneseq
  %v808 = vshrl.u32 %v807, 7
  %v809 = vsub.s32 0, %v808
  %v810 = vrot.slane %v763, %v809
  %v811 = vlaneseq
  %v812 = vshrl.u32 %v811, 7
  %v813 = vsub.s32 0, %v812
  %v814 = vrot.slane %v765, %v813
  %v815 = vlaneseq
  %v816 = vshrl.u32 %v815, 7
  %v817 = vsub.s32 0, %v816
  %v818 = vrot.slane %v748, %v817
  %v819 = vlaneseq
  %v820 = vshrl.u32 %v819, 7
  %v821 = vsub.s32 0, %v820
  %v822 = vrot.slane %v762, %v821
  %v823 = vlaneseq
  %v824 = vshrl.u32 %v823, 7
  %v825 = vsub.s32 0, %v824
  %v826 = vrot.slane %v764, %v825
  %v827 = vlaneseq
  %v828 = vshrl.u32 %v827, 7
  %v829 = vsub.s32 0, %v828
  %v830 = vrot.slane %v766, %v829
  %v847 = vmul.f32 %v633, %v770
  %v848 = vmul.f32 %v634, %v770
  %v849 = vmul.f32 %v635, %v774
  %v850 = vmul.f32 %v636, %v774
  %v851 = vmul.f32 %v637, %v778
  %v852 = vmul.f32 %v638, %v778
  %v853 = vmul.f32 %v639, %v782
  %v854 = vmul.f32 %v640, %v782
  %v855 = vmul.f32 %v641, %v786
  %v856 = vmul.f32 %v642, %v786
  %v857 = vmul.f32 %v643, %v790
  %v858 = vmul.f32 %v644, %v790
  %v859 = vmul.f32 %v645, %v794
  %v860 = vmul.f32 %v646, %v794
  %v861 = vmul.f32 %v647, %v798
  %v862 = vmul.f32 %v648, %v798
  %v863 = vmul.f32 %v649, %v802
  %v864 = vmul.f32 %v650, %v802
  %v865 = vmul.f32 %v651, %v806
  %v866 = vmul.f32 %v652, %v806
  %v867 = vmul.f32 %v653, %v810
  %v868 = vmul.f32 %v654, %v810
  %v869 = vmul.f32 %v655, %v814
  %v870 = vmul.f32 %v656, %v814
  %v871 = vmul.f32 %v657, %v818
  %v872 = vmul.f32 %v658, %v818
  %v873 = vmul.f32 %v659, %v822
  %v874 = vmul.f32 %v660, %v822
  %v875 = vmul.f32 %v661, %v826
  %v876 = vmul.f32 %v662, %v826
  %v877 = vmul.f32 %v663, %v830
  %v878 = vmul.f32 %v664, %v830
  %v879 = vld [vmem:[%s13] sm:$0xff]
  %v880 = vld [vmem:[%s13 + $0x8] sm:$0xff]
  %v881 = vld [vmem:[%s13 + $0x10] sm:$0xff]
  %v882 = vld [vmem:[%s13 + $0x18] sm:$0xff]
  %vm883 = vcmask 261120
  %v885 = vsel %vm883, %v847, 0
  %v888 = vsel %vm883, %v848, 0
  %v891 = vsel %vm883, %v849, 0
  %v894 = vsel %vm883, %v850, 0
  %v897 = vsel %vm883, %v851, 0
  %v900 = vsel %vm883, %v852, 0
  %v903 = vsel %vm883, %v853, 0
  %v906 = vsel %vm883, %v854, 0
  %v909 = vsel %vm883, %v855, 0
  %v912 = vsel %vm883, %v856, 0
  %v915 = vsel %vm883, %v857, 0
  %v918 = vsel %vm883, %v858, 0
  %v921 = vsel %vm883, %v859, 0
  %v924 = vsel %vm883, %v860, 0
  %v927 = vsel %vm883, %v861, 0
  %v930 = vsel %vm883, %v862, 0
  %v933 = vsel %vm883, %v863, 0
  %v936 = vsel %vm883, %v864, 0
  %v939 = vsel %vm883, %v865, 0
  %v942 = vsel %vm883, %v866, 0
  %v945 = vsel %vm883, %v867, 0
  %v948 = vsel %vm883, %v868, 0
  %v951 = vsel %vm883, %v869, 0
  %v954 = vsel %vm883, %v870, 0
  %v957 = vsel %vm883, %v871, 0
  %v960 = vsel %vm883, %v872, 0
  %v963 = vsel %vm883, %v873, 0
  %v966 = vsel %vm883, %v874, 0
  %v969 = vsel %vm883, %v875, 0
  %v972 = vsel %vm883, %v876, 0
  %v975 = vsel %vm883, %v877, 0
  %v978 = vsel %vm883, %v878, 0
  %980 = vmatprep.subr.mxu0 0.0
  %981 = vmatpush1.msra.mxu0 0.0
  %982 = vmatprep.subr.mxu0 0.0
  %983 = vmatpush1.msra.mxu0 0.0
  %984 = vmatprep.subr.mxu0 0.0
  %985 = vmatpush1.msra.mxu0 0.0
  %986 = vmatprep.subr.mxu0 0.0
  %987 = vmatpush1.msra.mxu0 0.0
  %988 = vmatprep.subr.mxu0 0.0
  %989 = vmatpush1.msra.mxu0 0.0
  %990 = vmatprep.subr.mxu0 0.0
  %991 = vmatpush1.msra.mxu0 0.0
  %992 = vmatprep.subr.mxu0 0.0
  %993 = vmatpush1.msra.mxu0 0.0
  %994 = vmatprep.subr.mxu0 0.0
  %995 = vmatpush1.msra.mxu0 0.0
  %996 = vmatprep.subr.mxu0 0.0
  %997 = vmatpush1.msra.mxu0 0.0
  %998 = vmatprep.subr.mxu0 0.0
  %999 = vmatpush1.msra.mxu0 0.0
  %1000 = vmatprep.subr.mxu0 0.0
  %1001 = vmatpush1.msra.mxu0 0.0
  %1002 = vmatprep.subr.mxu0 0.0
  %1003 = vmatpush1.msra.mxu0 0.0
  %1004 = vmatprep.subr.mxu0 0.0
  %1005 = vmatpush1.msra.mxu0 %v882
  %1006 = vmatprep.subr.mxu0 0.0
  %1007 = vmatpush1.msra.mxu0 %v881
  %1008 = vmatprep.subr.mxu0 0.0
  %1009 = vmatpush1.msra.mxu0 %v880
  %1010 = vmatprep.subr.mxu0 0.0
  %1011 = vmatpush1.msra.mxu0 %v879
  %1012 = vmatprep.subr.mxu0 0.0
  %1013 = vmatpush2.msra.mxu0 0.0
  %1014 = vmatprep.subr.mxu0 0.0
  %1015 = vmatpush2.msra.mxu0 0.0
  %1016 = vmatprep.subr.mxu0 0.0
  %1017 = vmatpush2.msra.mxu0 0.0
  %1018 = vmatprep.subr.mxu0 0.0
  %1019 = vmatpush2.msra.mxu0 0.0
  %1020 = vmatprep.subr.mxu0 0.0
  %1021 = vmatpush2.msra.mxu0 0.0
  %1022 = vmatprep.subr.mxu0 0.0
  %1023 = vmatpush2.msra.mxu0 0.0
  %1024 = vmatprep.subr.mxu0 0.0
  %1025 = vmatpush2.msra.mxu0 0.0
  %1026 = vmatprep.subr.mxu0 0.0
  %1027 = vmatpush2.msra.mxu0 0.0
  %1028 = vmatprep.subr.mxu0 0.0
  %1029 = vmatpush2.msra.mxu0 0.0
  %1030 = vmatprep.subr.mxu0 0.0
  %1031 = vmatpush2.msra.mxu0 0.0
  %1032 = vmatprep.subr.mxu0 0.0
  %1033 = vmatpush2.msra.mxu0 0.0
  %1034 = vmatprep.subr.mxu0 0.0
  %1035 = vmatpush2.msra.mxu0 0.0
  %1036 = vmatprep.subr.mxu0 0.0
  %1037 = vmatpush2.msra.mxu0 0.0
  %1038 = vmatprep.subr.mxu0 0.0
  %1039 = vmatpush2.msra.mxu0 0.0
  %1040 = vmatprep.subr.mxu0 0.0
  %1041 = vmatpush2.msra.mxu0 0.0
  %1042 = vmatprep.subr.mxu0 0.0
  %1043 = vmatpush2.msra.mxu0 0.0
  %1044 = vmatprep.mubr.f32.mxu0 0.0
  %1045 = vmatmul.mubr.f32.gmra.mxu0 %v885
  %v1046 = vpop.f32.mrf.mxu0
  %v1047 = vadd.f32 0.0, %v1046
  %v1048 = vpop.f32.mrf.mxu0
  %1049 = vmatprep.mubr.f32.mxu0 0.0
  %1050 = vmatmul.mubr.f32.gmra.mxu0 %v888
  %v1051 = vpop.f32.mrf.mxu0
  %v1052 = vadd.f32 0.0, %v1051
  %v1053 = vpop.f32.mrf.mxu0
  %1054 = vmatprep.mubr.f32.mxu0 0.0
  %1055 = vmatmul.mubr.f32.gmra.mxu0 %v891
  %v1056 = vpop.f32.mrf.mxu0
  %v1057 = vadd.f32 0.0, %v1056
  %v1058 = vpop.f32.mrf.mxu0
  %1059 = vmatprep.mubr.f32.mxu0 0.0
  %1060 = vmatmul.mubr.f32.gmra.mxu0 %v894
  %v1061 = vpop.f32.mrf.mxu0
  %v1062 = vadd.f32 0.0, %v1061
  %v1063 = vpop.f32.mrf.mxu0
  %1064 = vmatprep.mubr.f32.mxu0 0.0
  %1065 = vmatmul.mubr.f32.gmra.mxu0 %v897
  %v1066 = vpop.f32.mrf.mxu0
  %v1067 = vadd.f32 0.0, %v1066
  %v1068 = vpop.f32.mrf.mxu0
  %1069 = vmatprep.mubr.f32.mxu0 0.0
  %1070 = vmatmul.mubr.f32.gmra.mxu0 %v900
  %v1071 = vpop.f32.mrf.mxu0
  %v1072 = vadd.f32 0.0, %v1071
  %v1073 = vpop.f32.mrf.mxu0
  %1074 = vmatprep.mubr.f32.mxu0 0.0
  %1075 = vmatmul.mubr.f32.gmra.mxu0 %v903
  %v1076 = vpop.f32.mrf.mxu0
  %v1077 = vadd.f32 0.0, %v1076
  %v1078 = vpop.f32.mrf.mxu0
  %1079 = vmatprep.mubr.f32.mxu0 0.0
  %1080 = vmatmul.mubr.f32.gmra.mxu0 %v906
  %v1081 = vpop.f32.mrf.mxu0
  %v1082 = vadd.f32 0.0, %v1081
  %v1083 = vpop.f32.mrf.mxu0
  %1084 = vmatprep.mubr.f32.mxu0 0.0
  %1085 = vmatmul.mubr.f32.gmra.mxu0 %v909
  %v1086 = vpop.f32.mrf.mxu0
  %v1087 = vadd.f32 0.0, %v1086
  %v1088 = vpop.f32.mrf.mxu0
  %1089 = vmatprep.mubr.f32.mxu0 0.0
  %1090 = vmatmul.mubr.f32.gmra.mxu0 %v912
  %v1091 = vpop.f32.mrf.mxu0
  %v1092 = vadd.f32 0.0, %v1091
  %v1093 = vpop.f32.mrf.mxu0
  %1094 = vmatprep.mubr.f32.mxu0 0.0
  %1095 = vmatmul.mubr.f32.gmra.mxu0 %v915
  %v1096 = vpop.f32.mrf.mxu0
  %v1097 = vadd.f32 0.0, %v1096
  %v1098 = vpop.f32.mrf.mxu0
  %1099 = vmatprep.mubr.f32.mxu0 0.0
  %1100 = vmatmul.mubr.f32.gmra.mxu0 %v918
  %v1101 = vpop.f32.mrf.mxu0
  %v1102 = vadd.f32 0.0, %v1101
  %v1103 = vpop.f32.mrf.mxu0
  %1104 = vmatprep.mubr.f32.mxu0 0.0
  %1105 = vmatmul.mubr.f32.gmra.mxu0 %v921
  %v1106 = vpop.f32.mrf.mxu0
  %v1107 = vadd.f32 0.0, %v1106
  %v1108 = vpop.f32.mrf.mxu0
  %1109 = vmatprep.mubr.f32.mxu0 0.0
  %1110 = vmatmul.mubr.f32.gmra.mxu0 %v924
  %v1111 = vpop.f32.mrf.mxu0
  %v1112 = vadd.f32 0.0, %v1111
  %v1113 = vpop.f32.mrf.mxu0
  %1114 = vmatprep.mubr.f32.mxu0 0.0
  %1115 = vmatmul.mubr.f32.gmra.mxu0 %v927
  %v1116 = vpop.f32.mrf.mxu0
  %v1117 = vadd.f32 0.0, %v1116
  %v1118 = vpop.f32.mrf.mxu0
  %1119 = vmatprep.mubr.f32.mxu0 0.0
  %1120 = vmatmul.mubr.f32.gmra.mxu0 %v930
  %v1121 = vpop.f32.mrf.mxu0
  %v1122 = vadd.f32 0.0, %v1121
  %v1123 = vpop.f32.mrf.mxu0
  %1124 = vmatprep.mubr.f32.mxu0 0.0
  %1125 = vmatmul.mubr.f32.gmra.mxu0 %v933
  %v1126 = vpop.f32.mrf.mxu0
  %v1127 = vadd.f32 0.0, %v1126
  %v1128 = vpop.f32.mrf.mxu0
  %1129 = vmatprep.mubr.f32.mxu0 0.0
  %1130 = vmatmul.mubr.f32.gmra.mxu0 %v936
  %v1131 = vpop.f32.mrf.mxu0
  %v1132 = vadd.f32 0.0, %v1131
  %v1133 = vpop.f32.mrf.mxu0
  %1134 = vmatprep.mubr.f32.mxu0 0.0
  %1135 = vmatmul.mubr.f32.gmra.mxu0 %v939
  %v1136 = vpop.f32.mrf.mxu0
  %v1137 = vadd.f32 0.0, %v1136
  %v1138 = vpop.f32.mrf.mxu0
  %1139 = vmatprep.mubr.f32.mxu0 0.0
  %1140 = vmatmul.mubr.f32.gmra.mxu0 %v942
  %v1141 = vpop.f32.mrf.mxu0
  %v1142 = vadd.f32 0.0, %v1141
  %v1143 = vpop.f32.mrf.mxu0
  %1144 = vmatprep.mubr.f32.mxu0 0.0
  %1145 = vmatmul.mubr.f32.gmra.mxu0 %v945
  %v1146 = vpop.f32.mrf.mxu0
  %v1147 = vadd.f32 0.0, %v1146
  %v1148 = vpop.f32.mrf.mxu0
  %1149 = vmatprep.mubr.f32.mxu0 0.0
  %1150 = vmatmul.mubr.f32.gmra.mxu0 %v948
  %v1151 = vpop.f32.mrf.mxu0
  %v1152 = vadd.f32 0.0, %v1151
  %v1153 = vpop.f32.mrf.mxu0
  %1154 = vmatprep.mubr.f32.mxu0 0.0
  %1155 = vmatmul.mubr.f32.gmra.mxu0 %v951
  %v1156 = vpop.f32.mrf.mxu0
  %v1157 = vadd.f32 0.0, %v1156
  %v1158 = vpop.f32.mrf.mxu0
  %1159 = vmatprep.mubr.f32.mxu0 0.0
  %1160 = vmatmul.mubr.f32.gmra.mxu0 %v954
  %v1161 = vpop.f32.mrf.mxu0
  %v1162 = vadd.f32 0.0, %v1161
  %v1163 = vpop.f32.mrf.mxu0
  %1164 = vmatprep.mubr.f32.mxu0 0.0
  %1165 = vmatmul.mubr.f32.gmra.mxu0 %v957
  %v1166 = vpop.f32.mrf.mxu0
  %v1167 = vadd.f32 0.0, %v1166
  %v1168 = vpop.f32.mrf.mxu0
  %1169 = vmatprep.mubr.f32.mxu0 0.0
  %1170 = vmatmul.mubr.f32.gmra.mxu0 %v960
  %v1171 = vpop.f32.mrf.mxu0
  %v1172 = vadd.f32 0.0, %v1171
  %v1173 = vpop.f32.mrf.mxu0
  %1174 = vmatprep.mubr.f32.mxu0 0.0
  %1175 = vmatmul.mubr.f32.gmra.mxu0 %v963
  %v1176 = vpop.f32.mrf.mxu0
  %v1177 = vadd.f32 0.0, %v1176
  %v1178 = vpop.f32.mrf.mxu0
  %1179 = vmatprep.mubr.f32.mxu0 0.0
  %1180 = vmatmul.mubr.f32.gmra.mxu0 %v966
  %v1181 = vpop.f32.mrf.mxu0
  %v1182 = vadd.f32 0.0, %v1181
  %v1183 = vpop.f32.mrf.mxu0
  %1184 = vmatprep.mubr.f32.mxu0 0.0
  %1185 = vmatmul.mubr.f32.gmra.mxu0 %v969
  %v1186 = vpop.f32.mrf.mxu0
  %v1187 = vadd.f32 0.0, %v1186
  %v1188 = vpop.f32.mrf.mxu0
  %1189 = vmatprep.mubr.f32.mxu0 0.0
  %1190 = vmatmul.mubr.f32.gmra.mxu0 %v972
  %v1191 = vpop.f32.mrf.mxu0
  %v1192 = vadd.f32 0.0, %v1191
  %v1193 = vpop.f32.mrf.mxu0
  %1194 = vmatprep.mubr.f32.mxu0 0.0
  %1195 = vmatmul.mubr.f32.gmra.mxu0 %v975
  %v1196 = vpop.f32.mrf.mxu0
  %v1197 = vadd.f32 0.0, %v1196
  %v1198 = vpop.f32.mrf.mxu0
  %1199 = vmatprep.mubr.f32.mxu0 0.0
  %1200 = vmatmul.mubr.f32.gmra.mxu0 %v978
  %v1201 = vpop.f32.mrf.mxu0
  %v1202 = vadd.f32 0.0, %v1201
  %v1203 = vpop.f32.mrf.mxu0
  %1204 = vdwg.mxu0
  %v1205 = vmul.f32 %v1047, 0.5
  %v1206 = vmul.f32 %v1052, 0.5
  %v1207 = vmul.f32 %v1057, 0.5
  %v1208 = vmul.f32 %v1062, 0.5
  %v1209 = vmul.f32 %v1067, 0.5
  %v1210 = vmul.f32 %v1072, 0.5
  %v1211 = vmul.f32 %v1077, 0.5
  %v1212 = vmul.f32 %v1082, 0.5
  %v1213 = vmul.f32 %v1087, 0.5
  %v1214 = vmul.f32 %v1092, 0.5
  %v1215 = vmul.f32 %v1097, 0.5
  %v1216 = vmul.f32 %v1102, 0.5
  %v1217 = vmul.f32 %v1107, 0.5
  %v1218 = vmul.f32 %v1112, 0.5
  %v1219 = vmul.f32 %v1117, 0.5
  %v1220 = vmul.f32 %v1122, 0.5
  %v1221 = vmul.f32 %v1127, 0.5
  %v1222 = vmul.f32 %v1132, 0.5
  %v1223 = vmul.f32 %v1137, 0.5
  %v1224 = vmul.f32 %v1142, 0.5
  %v1225 = vmul.f32 %v1147, 0.5
  %v1226 = vmul.f32 %v1152, 0.5
  %v1227 = vmul.f32 %v1157, 0.5
  %v1228 = vmul.f32 %v1162, 0.5
  %v1229 = vmul.f32 %v1167, 0.5
  %v1230 = vmul.f32 %v1172, 0.5
  %v1231 = vmul.f32 %v1177, 0.5
  %v1232 = vmul.f32 %v1182, 0.5
  %v1233 = vmul.f32 %v1187, 0.5
  %v1234 = vmul.f32 %v1192, 0.5
  %v1235 = vmul.f32 %v1197, 0.5
  %v1236 = vmul.f32 %v1202, 0.5
  %v1237 = vtanh.pop %v1205
  %v1238 = vtanh.pop %v1206
  %v1239 = vtanh.pop %v1207
  %v1240 = vtanh.pop %v1208
  %v1241 = vtanh.pop %v1209
  %v1242 = vtanh.pop %v1210
  %v1243 = vtanh.pop %v1211
  %v1244 = vtanh.pop %v1212
  %v1245 = vtanh.pop %v1213
  %v1246 = vtanh.pop %v1214
  %v1247 = vtanh.pop %v1215
  %v1248 = vtanh.pop %v1216
  %v1249 = vtanh.pop %v1217
  %v1250 = vtanh.pop %v1218
  %v1251 = vtanh.pop %v1219
  %v1252 = vtanh.pop %v1220
  %v1253 = vtanh.pop %v1221
  %v1254 = vtanh.pop %v1222
  %v1255 = vtanh.pop %v1223
  %v1256 = vtanh.pop %v1224
  %v1257 = vtanh.pop %v1225
  %v1258 = vtanh.pop %v1226
  %v1259 = vtanh.pop %v1227
  %v1260 = vtanh.pop %v1228
  %v1261 = vtanh.pop %v1229
  %v1262 = vtanh.pop %v1230
  %v1263 = vtanh.pop %v1231
  %v1264 = vtanh.pop %v1232
  %v1265 = vtanh.pop %v1233
  %v1266 = vtanh.pop %v1234
  %v1267 = vtanh.pop %v1235
  %v1268 = vtanh.pop %v1236
  %v1269 = vadd.f32 %v1237, 1.0
  %v1270 = vadd.f32 %v1238, 1.0
  %v1271 = vadd.f32 %v1239, 1.0
  %v1272 = vadd.f32 %v1240, 1.0
  %v1273 = vadd.f32 %v1241, 1.0
  %v1274 = vadd.f32 %v1242, 1.0
  %v1275 = vadd.f32 %v1243, 1.0
  %v1276 = vadd.f32 %v1244, 1.0
  %v1277 = vadd.f32 %v1245, 1.0
  %v1278 = vadd.f32 %v1246, 1.0
  %v1279 = vadd.f32 %v1247, 1.0
  %v1280 = vadd.f32 %v1248, 1.0
  %v1281 = vadd.f32 %v1249, 1.0
  %v1282 = vadd.f32 %v1250, 1.0
  %v1283 = vadd.f32 %v1251, 1.0
  %v1284 = vadd.f32 %v1252, 1.0
  %v1285 = vadd.f32 %v1253, 1.0
  %v1286 = vadd.f32 %v1254, 1.0
  %v1287 = vadd.f32 %v1255, 1.0
  %v1288 = vadd.f32 %v1256, 1.0
  %v1289 = vadd.f32 %v1257, 1.0
  %v1290 = vadd.f32 %v1258, 1.0
  %v1291 = vadd.f32 %v1259, 1.0
  %v1292 = vadd.f32 %v1260, 1.0
  %v1293 = vadd.f32 %v1261, 1.0
  %v1294 = vadd.f32 %v1262, 1.0
  %v1295 = vadd.f32 %v1263, 1.0
  %v1296 = vadd.f32 %v1264, 1.0
  %v1297 = vadd.f32 %v1265, 1.0
  %v1298 = vadd.f32 %v1266, 1.0
  %v1299 = vadd.f32 %v1267, 1.0
  %v1300 = vadd.f32 %v1268, 1.0
  %v1301 = vmul.f32 %v1269, 0.5
  %v1302 = vmul.f32 %v1270, 0.5
  %v1303 = vmul.f32 %v1271, 0.5
  %v1304 = vmul.f32 %v1272, 0.5
  %v1305 = vmul.f32 %v1273, 0.5
  %v1306 = vmul.f32 %v1274, 0.5
  %v1307 = vmul.f32 %v1275, 0.5
  %v1308 = vmul.f32 %v1276, 0.5
  %v1309 = vmul.f32 %v1277, 0.5
  %v1310 = vmul.f32 %v1278, 0.5
  %v1311 = vmul.f32 %v1279, 0.5
  %v1312 = vmul.f32 %v1280, 0.5
  %v1313 = vmul.f32 %v1281, 0.5
  %v1314 = vmul.f32 %v1282, 0.5
  %v1315 = vmul.f32 %v1283, 0.5
  %v1316 = vmul.f32 %v1284, 0.5
  %v1317 = vmul.f32 %v1285, 0.5
  %v1318 = vmul.f32 %v1286, 0.5
  %v1319 = vmul.f32 %v1287, 0.5
  %v1320 = vmul.f32 %v1288, 0.5
  %v1321 = vmul.f32 %v1289, 0.5
  %v1322 = vmul.f32 %v1290, 0.5
  %v1323 = vmul.f32 %v1291, 0.5
  %v1324 = vmul.f32 %v1292, 0.5
  %v1325 = vmul.f32 %v1293, 0.5
  %v1326 = vmul.f32 %v1294, 0.5
  %v1327 = vmul.f32 %v1295, 0.5
  %v1328 = vmul.f32 %v1296, 0.5
  %v1329 = vmul.f32 %v1297, 0.5
  %v1330 = vmul.f32 %v1298, 0.5
  %v1331 = vmul.f32 %v1299, 0.5
  %v1332 = vmul.f32 %v1300, 0.5
  %v1333 = vmul.f32 %v1047, %v1301
  %v1334 = vmul.f32 %v1052, %v1302
  %v1335 = vmul.f32 %v1057, %v1303
  %v1336 = vmul.f32 %v1062, %v1304
  %v1337 = vmul.f32 %v1067, %v1305
  %v1338 = vmul.f32 %v1072, %v1306
  %v1339 = vmul.f32 %v1077, %v1307
  %v1340 = vmul.f32 %v1082, %v1308
  %v1341 = vmul.f32 %v1087, %v1309
  %v1342 = vmul.f32 %v1092, %v1310
  %v1343 = vmul.f32 %v1097, %v1311
  %v1344 = vmul.f32 %v1102, %v1312
  %v1345 = vmul.f32 %v1107, %v1313
  %v1346 = vmul.f32 %v1112, %v1314
  %v1347 = vmul.f32 %v1117, %v1315
  %v1348 = vmul.f32 %v1122, %v1316
  %v1349 = vmul.f32 %v1127, %v1317
  %v1350 = vmul.f32 %v1132, %v1318
  %v1351 = vmul.f32 %v1137, %v1319
  %v1352 = vmul.f32 %v1142, %v1320
  %v1353 = vmul.f32 %v1147, %v1321
  %v1354 = vmul.f32 %v1152, %v1322
  %v1355 = vmul.f32 %v1157, %v1323
  %v1356 = vmul.f32 %v1162, %v1324
  %v1357 = vmul.f32 %v1167, %v1325
  %v1358 = vmul.f32 %v1172, %v1326
  %v1359 = vmul.f32 %v1177, %v1327
  %v1360 = vmul.f32 %v1182, %v1328
  %v1361 = vmul.f32 %v1187, %v1329
  %v1362 = vmul.f32 %v1192, %v1330
  %v1363 = vmul.f32 %v1197, %v1331
  %v1364 = vmul.f32 %v1202, %v1332
  %v1365 = vld [vmem:[%s8] sm:$0xf]
  %v1366 = vld [vmem:[%s8 + $0x4] sm:$0xf]
  %v1367 = vunpack.c.l.bf16 %v1365
  %v1368 = vunpack.c.l.bf16 %v1366
  %v1369 = vlaneseq
  %v1370 = vshrl.u32 %v1369, 7
  %v1371 = vsub.s32 0, %v1370
  %v1372 = vrot.slane %v1367, %v1371
  %1374 = vbcast.lane.b32.xlu0 %v1372, 256
  %v1375 = vpop.permute.xlu0 %1374
  %s1377 = sor.u32 256, 8
  %1378 = vbcast.lane.b32.xlu0 %v1372, %s1377
  %v1379 = vpop.permute.xlu0 %1378
  %v1380 = vlaneseq
  %v1381 = vshrl.u32 %v1380, 7
  %v1382 = vsub.s32 1, %v1381
  %v1383 = vrot.slane %v1367, %v1382
  %1385 = vbcast.lane.b32.xlu0 %v1383, 256
  %v1386 = vpop.permute.xlu0 %1385
  %s1388 = sor.u32 256, 8
  %1389 = vbcast.lane.b32.xlu0 %v1383, %s1388
  %v1390 = vpop.permute.xlu0 %1389
  %v1391 = vlaneseq
  %v1392 = vshrl.u32 %v1391, 7
  %v1393 = vsub.s32 2, %v1392
  %v1394 = vrot.slane %v1367, %v1393
  %1396 = vbcast.lane.b32.xlu0 %v1394, 256
  %v1397 = vpop.permute.xlu0 %1396
  %s1399 = sor.u32 256, 8
  %1400 = vbcast.lane.b32.xlu0 %v1394, %s1399
  %v1401 = vpop.permute.xlu0 %1400
  %v1402 = vlaneseq
  %v1403 = vshrl.u32 %v1402, 7
  %v1404 = vsub.s32 3, %v1403
  %v1405 = vrot.slane %v1367, %v1404
  %1407 = vbcast.lane.b32.xlu0 %v1405, 256
  %v1408 = vpop.permute.xlu0 %1407
  %s1410 = sor.u32 256, 8
  %1411 = vbcast.lane.b32.xlu0 %v1405, %s1410
  %v1412 = vpop.permute.xlu0 %1411
  %v1413 = vlaneseq
  %v1414 = vshrl.u32 %v1413, 7
  %v1415 = vsub.s32 4, %v1414
  %v1416 = vrot.slane %v1367, %v1415
  %1418 = vbcast.lane.b32.xlu0 %v1416, 256
  %v1419 = vpop.permute.xlu0 %1418
  %s1421 = sor.u32 256, 8
  %1422 = vbcast.lane.b32.xlu0 %v1416, %s1421
  %v1423 = vpop.permute.xlu0 %1422
  %v1424 = vlaneseq
  %v1425 = vshrl.u32 %v1424, 7
  %v1426 = vsub.s32 5, %v1425
  %v1427 = vrot.slane %v1367, %v1426
  %1429 = vbcast.lane.b32.xlu0 %v1427, 256
  %v1430 = vpop.permute.xlu0 %1429
  %s1432 = sor.u32 256, 8
  %1433 = vbcast.lane.b32.xlu0 %v1427, %s1432
  %v1434 = vpop.permute.xlu0 %1433
  %v1435 = vlaneseq
  %v1436 = vshrl.u32 %v1435, 7
  %v1437 = vsub.s32 6, %v1436
  %v1438 = vrot.slane %v1367, %v1437
  %1440 = vbcast.lane.b32.xlu0 %v1438, 256
  %v1441 = vpop.permute.xlu0 %1440
  %s1443 = sor.u32 256, 8
  %1444 = vbcast.lane.b32.xlu0 %v1438, %s1443
  %v1445 = vpop.permute.xlu0 %1444
  %v1446 = vlaneseq
  %v1447 = vshrl.u32 %v1446, 7
  %v1448 = vsub.s32 7, %v1447
  %v1449 = vrot.slane %v1367, %v1448
  %1451 = vbcast.lane.b32.xlu0 %v1449, 256
  %v1452 = vpop.permute.xlu0 %1451
  %s1454 = sor.u32 256, 8
  %1455 = vbcast.lane.b32.xlu0 %v1449, %s1454
  %v1456 = vpop.permute.xlu0 %1455
  %v1457 = vlaneseq
  %v1458 = vshrl.u32 %v1457, 7
  %v1459 = vsub.s32 0, %v1458
  %v1460 = vrot.slane %v1368, %v1459
  %1462 = vbcast.lane.b32.xlu0 %v1460, 256
  %v1463 = vpop.permute.xlu0 %1462
  %s1465 = sor.u32 256, 8
  %1466 = vbcast.lane.b32.xlu0 %v1460, %s1465
  %v1467 = vpop.permute.xlu0 %1466
  %v1468 = vlaneseq
  %v1469 = vshrl.u32 %v1468, 7
  %v1470 = vsub.s32 1, %v1469
  %v1471 = vrot.slane %v1368, %v1470
  %1473 = vbcast.lane.b32.xlu0 %v1471, 256
  %v1474 = vpop.permute.xlu0 %1473
  %s1476 = sor.u32 256, 8
  %1477 = vbcast.lane.b32.xlu0 %v1471, %s1476
  %v1478 = vpop.permute.xlu0 %1477
  %v1479 = vlaneseq
  %v1480 = vshrl.u32 %v1479, 7
  %v1481 = vsub.s32 2, %v1480
  %v1482 = vrot.slane %v1368, %v1481
  %1484 = vbcast.lane.b32.xlu0 %v1482, 256
  %v1485 = vpop.permute.xlu0 %1484
  %s1487 = sor.u32 256, 8
  %1488 = vbcast.lane.b32.xlu0 %v1482, %s1487
  %v1489 = vpop.permute.xlu0 %1488
  %v1490 = vlaneseq
  %v1491 = vshrl.u32 %v1490, 7
  %v1492 = vsub.s32 3, %v1491
  %v1493 = vrot.slane %v1368, %v1492
  %1495 = vbcast.lane.b32.xlu0 %v1493, 256
  %v1496 = vpop.permute.xlu0 %1495
  %s1498 = sor.u32 256, 8
  %1499 = vbcast.lane.b32.xlu0 %v1493, %s1498
  %v1500 = vpop.permute.xlu0 %1499
  %v1501 = vlaneseq
  %v1502 = vshrl.u32 %v1501, 7
  %v1503 = vsub.s32 4, %v1502
  %v1504 = vrot.slane %v1368, %v1503
  %1506 = vbcast.lane.b32.xlu0 %v1504, 256
  %v1507 = vpop.permute.xlu0 %1506
  %s1509 = sor.u32 256, 8
  %1510 = vbcast.lane.b32.xlu0 %v1504, %s1509
  %v1511 = vpop.permute.xlu0 %1510
  %v1512 = vlaneseq
  %v1513 = vshrl.u32 %v1512, 7
  %v1514 = vsub.s32 5, %v1513
  %v1515 = vrot.slane %v1368, %v1514
  %1517 = vbcast.lane.b32.xlu0 %v1515, 256
  %v1518 = vpop.permute.xlu0 %1517
  %s1520 = sor.u32 256, 8
  %1521 = vbcast.lane.b32.xlu0 %v1515, %s1520
  %v1522 = vpop.permute.xlu0 %1521
  %v1523 = vlaneseq
  %v1524 = vshrl.u32 %v1523, 7
  %v1525 = vsub.s32 6, %v1524
  %v1526 = vrot.slane %v1368, %v1525
  %1528 = vbcast.lane.b32.xlu0 %v1526, 256
  %v1529 = vpop.permute.xlu0 %1528
  %s1531 = sor.u32 256, 8
  %1532 = vbcast.lane.b32.xlu0 %v1526, %s1531
  %v1533 = vpop.permute.xlu0 %1532
  %v1534 = vlaneseq
  %v1535 = vshrl.u32 %v1534, 7
  %v1536 = vsub.s32 7, %v1535
  %v1537 = vrot.slane %v1368, %v1536
  %1539 = vbcast.lane.b32.xlu0 %v1537, 256
  %v1540 = vpop.permute.xlu0 %1539
  %s1542 = sor.u32 256, 8
  %1543 = vbcast.lane.b32.xlu0 %v1537, %s1542
  %v1544 = vpop.permute.xlu0 %1543
  %v1545 = vmul.f32 %v1333, %v1375
  %v1546 = vmul.f32 %v1334, %v1379
  %v1547 = vmul.f32 %v1335, %v1386
  %v1548 = vmul.f32 %v1336, %v1390
  %v1549 = vmul.f32 %v1337, %v1397
  %v1550 = vmul.f32 %v1338, %v1401
  %v1551 = vmul.f32 %v1339, %v1408
  %v1552 = vmul.f32 %v1340, %v1412
  %v1553 = vmul.f32 %v1341, %v1419
  %v1554 = vmul.f32 %v1342, %v1423
  %v1555 = vmul.f32 %v1343, %v1430
  %v1556 = vmul.f32 %v1344, %v1434
  %v1557 = vmul.f32 %v1345, %v1441
  %v1558 = vmul.f32 %v1346, %v1445
  %v1559 = vmul.f32 %v1347, %v1452
  %v1560 = vmul.f32 %v1348, %v1456
  %v1561 = vmul.f32 %v1349, %v1463
  %v1562 = vmul.f32 %v1350, %v1467
  %v1563 = vmul.f32 %v1351, %v1474
  %v1564 = vmul.f32 %v1352, %v1478
  %v1565 = vmul.f32 %v1353, %v1485
  %v1566 = vmul.f32 %v1354, %v1489
  %v1567 = vmul.f32 %v1355, %v1496
  %v1568 = vmul.f32 %v1356, %v1500
  %v1569 = vmul.f32 %v1357, %v1507
  %v1570 = vmul.f32 %v1358, %v1511
  %v1571 = vmul.f32 %v1359, %v1518
  %v1572 = vmul.f32 %v1360, %v1522
  %v1573 = vmul.f32 %v1361, %v1529
  %v1574 = vmul.f32 %v1362, %v1533
  %v1575 = vmul.f32 %v1363, %v1540
  %v1576 = vmul.f32 %v1364, %v1544
  %v1577 = vld [vmem:[%s9] sm:$0xf]
  %v1578 = vld [vmem:[%s9 + $0x4] sm:$0xf]
  %v1579 = vunpack.c.l.bf16 %v1577
  %v1580 = vunpack.c.l.bf16 %v1578
  %v1581 = vlaneseq
  %v1582 = vshrl.u32 %v1581, 7
  %v1583 = vsub.s32 0, %v1582
  %v1584 = vrot.slane %v1579, %v1583
  %1586 = vbcast.lane.b32.xlu0 %v1584, 256
  %v1587 = vpop.permute.xlu0 %1586
  %s1589 = sor.u32 256, 8
  %1590 = vbcast.lane.b32.xlu0 %v1584, %s1589
  %v1591 = vpop.permute.xlu0 %1590
  %v1592 = vlaneseq
  %v1593 = vshrl.u32 %v1592, 7
  %v1594 = vsub.s32 1, %v1593
  %v1595 = vrot.slane %v1579, %v1594
  %1597 = vbcast.lane.b32.xlu0 %v1595, 256
  %v1598 = vpop.permute.xlu0 %1597
  %s1600 = sor.u32 256, 8
  %1601 = vbcast.lane.b32.xlu0 %v1595, %s1600
  %v1602 = vpop.permute.xlu0 %1601
  %v1603 = vlaneseq
  %v1604 = vshrl.u32 %v1603, 7
  %v1605 = vsub.s32 2, %v1604
  %v1606 = vrot.slane %v1579, %v1605
  %1608 = vbcast.lane.b32.xlu0 %v1606, 256
  %v1609 = vpop.permute.xlu0 %1608
  %s1611 = sor.u32 256, 8
  %1612 = vbcast.lane.b32.xlu0 %v1606, %s1611
  %v1613 = vpop.permute.xlu0 %1612
  %v1614 = vlaneseq
  %v1615 = vshrl.u32 %v1614, 7
  %v1616 = vsub.s32 3, %v1615
  %v1617 = vrot.slane %v1579, %v1616
  %1619 = vbcast.lane.b32.xlu0 %v1617, 256
  %v1620 = vpop.permute.xlu0 %1619
  %s1622 = sor.u32 256, 8
  %1623 = vbcast.lane.b32.xlu0 %v1617, %s1622
  %v1624 = vpop.permute.xlu0 %1623
  %v1625 = vlaneseq
  %v1626 = vshrl.u32 %v1625, 7
  %v1627 = vsub.s32 4, %v1626
  %v1628 = vrot.slane %v1579, %v1627
  %1630 = vbcast.lane.b32.xlu0 %v1628, 256
  %v1631 = vpop.permute.xlu0 %1630
  %s1633 = sor.u32 256, 8
  %1634 = vbcast.lane.b32.xlu0 %v1628, %s1633
  %v1635 = vpop.permute.xlu0 %1634
  %v1636 = vlaneseq
  %v1637 = vshrl.u32 %v1636, 7
  %v1638 = vsub.s32 5, %v1637
  %v1639 = vrot.slane %v1579, %v1638
  %1641 = vbcast.lane.b32.xlu0 %v1639, 256
  %v1642 = vpop.permute.xlu0 %1641
  %s1644 = sor.u32 256, 8
  %1645 = vbcast.lane.b32.xlu0 %v1639, %s1644
  %v1646 = vpop.permute.xlu0 %1645
  %v1647 = vlaneseq
  %v1648 = vshrl.u32 %v1647, 7
  %v1649 = vsub.s32 6, %v1648
  %v1650 = vrot.slane %v1579, %v1649
  %1652 = vbcast.lane.b32.xlu0 %v1650, 256
  %v1653 = vpop.permute.xlu0 %1652
  %s1655 = sor.u32 256, 8
  %1656 = vbcast.lane.b32.xlu0 %v1650, %s1655
  %v1657 = vpop.permute.xlu0 %1656
  %v1658 = vlaneseq
  %v1659 = vshrl.u32 %v1658, 7
  %v1660 = vsub.s32 7, %v1659
  %v1661 = vrot.slane %v1579, %v1660
  %1663 = vbcast.lane.b32.xlu0 %v1661, 256
  %v1664 = vpop.permute.xlu0 %1663
  %s1666 = sor.u32 256, 8
  %1667 = vbcast.lane.b32.xlu0 %v1661, %s1666
  %v1668 = vpop.permute.xlu0 %1667
  %v1669 = vlaneseq
  %v1670 = vshrl.u32 %v1669, 7
  %v1671 = vsub.s32 0, %v1670
  %v1672 = vrot.slane %v1580, %v1671
  %1674 = vbcast.lane.b32.xlu0 %v1672, 256
  %v1675 = vpop.permute.xlu0 %1674
  %s1677 = sor.u32 256, 8
  %1678 = vbcast.lane.b32.xlu0 %v1672, %s1677
  %v1679 = vpop.permute.xlu0 %1678
  %v1680 = vlaneseq
  %v1681 = vshrl.u32 %v1680, 7
  %v1682 = vsub.s32 1, %v1681
  %v1683 = vrot.slane %v1580, %v1682
  %1685 = vbcast.lane.b32.xlu0 %v1683, 256
  %v1686 = vpop.permute.xlu0 %1685
  %s1688 = sor.u32 256, 8
  %1689 = vbcast.lane.b32.xlu0 %v1683, %s1688
  %v1690 = vpop.permute.xlu0 %1689
  %v1691 = vlaneseq
  %v1692 = vshrl.u32 %v1691, 7
  %v1693 = vsub.s32 2, %v1692
  %v1694 = vrot.slane %v1580, %v1693
  %1696 = vbcast.lane.b32.xlu0 %v1694, 256
  %v1697 = vpop.permute.xlu0 %1696
  %s1699 = sor.u32 256, 8
  %1700 = vbcast.lane.b32.xlu0 %v1694, %s1699
  %v1701 = vpop.permute.xlu0 %1700
  %v1702 = vlaneseq
  %v1703 = vshrl.u32 %v1702, 7
  %v1704 = vsub.s32 3, %v1703
  %v1705 = vrot.slane %v1580, %v1704
  %1707 = vbcast.lane.b32.xlu0 %v1705, 256
  %v1708 = vpop.permute.xlu0 %1707
  %s1710 = sor.u32 256, 8
  %1711 = vbcast.lane.b32.xlu0 %v1705, %s1710
  %v1712 = vpop.permute.xlu0 %1711
  %v1713 = vlaneseq
  %v1714 = vshrl.u32 %v1713, 7
  %v1715 = vsub.s32 4, %v1714
  %v1716 = vrot.slane %v1580, %v1715
  %1718 = vbcast.lane.b32.xlu0 %v1716, 256
  %v1719 = vpop.permute.xlu0 %1718
  %s1721 = sor.u32 256, 8
  %1722 = vbcast.lane.b32.xlu0 %v1716, %s1721
  %v1723 = vpop.permute.xlu0 %1722
  %v1724 = vlaneseq
  %v1725 = vshrl.u32 %v1724, 7
  %v1726 = vsub.s32 5, %v1725
  %v1727 = vrot.slane %v1580, %v1726
  %1729 = vbcast.lane.b32.xlu0 %v1727, 256
  %v1730 = vpop.permute.xlu0 %1729
  %s1732 = sor.u32 256, 8
  %1733 = vbcast.lane.b32.xlu0 %v1727, %s1732
  %v1734 = vpop.permute.xlu0 %1733
  %v1735 = vlaneseq
  %v1736 = vshrl.u32 %v1735, 7
  %v1737 = vsub.s32 6, %v1736
  %v1738 = vrot.slane %v1580, %v1737
  %1740 = vbcast.lane.b32.xlu0 %v1738, 256
  %v1741 = vpop.permute.xlu0 %1740
  %s1743 = sor.u32 256, 8
  %1744 = vbcast.lane.b32.xlu0 %v1738, %s1743
  %v1745 = vpop.permute.xlu0 %1744
  %v1746 = vlaneseq
  %v1747 = vshrl.u32 %v1746, 7
  %v1748 = vsub.s32 7, %v1747
  %v1749 = vrot.slane %v1580, %v1748
  %1751 = vbcast.lane.b32.xlu0 %v1749, 256
  %v1752 = vpop.permute.xlu0 %1751
  %s1754 = sor.u32 256, 8
  %1755 = vbcast.lane.b32.xlu0 %v1749, %s1754
  %v1756 = vpop.permute.xlu0 %1755
  %v1757 = vmul.f32 %v847, %v1587
  %v1758 = vmul.f32 %v848, %v1591
  %v1759 = vmul.f32 %v849, %v1598
  %v1760 = vmul.f32 %v850, %v1602
  %v1761 = vmul.f32 %v851, %v1609
  %v1762 = vmul.f32 %v852, %v1613
  %v1763 = vmul.f32 %v853, %v1620
  %v1764 = vmul.f32 %v854, %v1624
  %v1765 = vmul.f32 %v855, %v1631
  %v1766 = vmul.f32 %v856, %v1635
  %v1767 = vmul.f32 %v857, %v1642
  %v1768 = vmul.f32 %v858, %v1646
  %v1769 = vmul.f32 %v859, %v1653
  %v1770 = vmul.f32 %v860, %v1657
  %v1771 = vmul.f32 %v861, %v1664
  %v1772 = vmul.f32 %v862, %v1668
  %v1773 = vmul.f32 %v863, %v1675
  %v1774 = vmul.f32 %v864, %v1679
  %v1775 = vmul.f32 %v865, %v1686
  %v1776 = vmul.f32 %v866, %v1690
  %v1777 = vmul.f32 %v867, %v1697
  %v1778 = vmul.f32 %v868, %v1701
  %v1779 = vmul.f32 %v869, %v1708
  %v1780 = vmul.f32 %v870, %v1712
  %v1781 = vmul.f32 %v871, %v1719
  %v1782 = vmul.f32 %v872, %v1723
  %v1783 = vmul.f32 %v873, %v1730
  %v1784 = vmul.f32 %v874, %v1734
  %v1785 = vmul.f32 %v875, %v1741
  %v1786 = vmul.f32 %v876, %v1745
  %v1787 = vmul.f32 %v877, %v1752
  %v1788 = vmul.f32 %v878, %v1756
  %v1789 = vld [vmem:[%s6] sm:$0xff]
  %v1790 = vld [vmem:[%s6 + $0x8] sm:$0xff]
  %1791 = vrot.lane.b32.xlu0 %v847, 96
  %v1792 = vpop.permute.xlu0 %1791
  %1793 = vrot.lane.b32.xlu0 %v848, 96
  %v1794 = vpop.permute.xlu0 %1793
  %1795 = vrot.lane.b32.xlu0 %v849, 96
  %v1796 = vpop.permute.xlu0 %1795
  %1797 = vrot.lane.b32.xlu0 %v850, 96
  %v1798 = vpop.permute.xlu0 %1797
  %1799 = vrot.lane.b32.xlu0 %v851, 96
  %v1800 = vpop.permute.xlu0 %1799
  %1801 = vrot.lane.b32.xlu0 %v852, 96
  %v1802 = vpop.permute.xlu0 %1801
  %1803 = vrot.lane.b32.xlu0 %v853, 96
  %v1804 = vpop.permute.xlu0 %1803
  %1805 = vrot.lane.b32.xlu0 %v854, 96
  %v1806 = vpop.permute.xlu0 %1805
  %1807 = vrot.lane.b32.xlu0 %v855, 96
  %v1808 = vpop.permute.xlu0 %1807
  %1809 = vrot.lane.b32.xlu0 %v856, 96
  %v1810 = vpop.permute.xlu0 %1809
  %1811 = vrot.lane.b32.xlu0 %v857, 96
  %v1812 = vpop.permute.xlu0 %1811
  %1813 = vrot.lane.b32.xlu0 %v858, 96
  %v1814 = vpop.permute.xlu0 %1813
  %1815 = vrot.lane.b32.xlu0 %v859, 96
  %v1816 = vpop.permute.xlu0 %1815
  %1817 = vrot.lane.b32.xlu0 %v860, 96
  %v1818 = vpop.permute.xlu0 %1817
  %1819 = vrot.lane.b32.xlu0 %v861, 96
  %v1820 = vpop.permute.xlu0 %1819
  %1821 = vrot.lane.b32.xlu0 %v862, 96
  %v1822 = vpop.permute.xlu0 %1821
  %1823 = vrot.lane.b32.xlu0 %v863, 96
  %v1824 = vpop.permute.xlu0 %1823
  %1825 = vrot.lane.b32.xlu0 %v864, 96
  %v1826 = vpop.permute.xlu0 %1825
  %1827 = vrot.lane.b32.xlu0 %v865, 96
  %v1828 = vpop.permute.xlu0 %1827
  %1829 = vrot.lane.b32.xlu0 %v866, 96
  %v1830 = vpop.permute.xlu0 %1829
  %1831 = vrot.lane.b32.xlu0 %v867, 96
  %v1832 = vpop.permute.xlu0 %1831
  %1833 = vrot.lane.b32.xlu0 %v868, 96
  %v1834 = vpop.permute.xlu0 %1833
  %1835 = vrot.lane.b32.xlu0 %v869, 96
  %v1836 = vpop.permute.xlu0 %1835
  %1837 = vrot.lane.b32.xlu0 %v870, 96
  %v1838 = vpop.permute.xlu0 %1837
  %1839 = vrot.lane.b32.xlu0 %v871, 96
  %v1840 = vpop.permute.xlu0 %1839
  %1841 = vrot.lane.b32.xlu0 %v872, 96
  %v1842 = vpop.permute.xlu0 %1841
  %1843 = vrot.lane.b32.xlu0 %v873, 96
  %v1844 = vpop.permute.xlu0 %1843
  %1845 = vrot.lane.b32.xlu0 %v874, 96
  %v1846 = vpop.permute.xlu0 %1845
  %1847 = vrot.lane.b32.xlu0 %v875, 96
  %v1848 = vpop.permute.xlu0 %1847
  %1849 = vrot.lane.b32.xlu0 %v876, 96
  %v1850 = vpop.permute.xlu0 %1849
  %1851 = vrot.lane.b32.xlu0 %v877, 96
  %v1852 = vpop.permute.xlu0 %1851
  %1853 = vrot.lane.b32.xlu0 %v878, 96
  %v1854 = vpop.permute.xlu0 %1853
  %v1887 = vmul.f32 %v1545, %v1792
  %v1888 = vmul.f32 %v1546, %v1794
  %v1889 = vmul.f32 %v1547, %v1796
  %v1890 = vmul.f32 %v1548, %v1798
  %v1891 = vmul.f32 %v1549, %v1800
  %v1892 = vmul.f32 %v1550, %v1802
  %v1893 = vmul.f32 %v1551, %v1804
  %v1894 = vmul.f32 %v1552, %v1806
  %v1895 = vmul.f32 %v1553, %v1808
  %v1896 = vmul.f32 %v1554, %v1810
  %v1897 = vmul.f32 %v1555, %v1812
  %v1898 = vmul.f32 %v1556, %v1814
  %v1899 = vmul.f32 %v1557, %v1816
  %v1900 = vmul.f32 %v1558, %v1818
  %v1901 = vmul.f32 %v1559, %v1820
  %v1902 = vmul.f32 %v1560, %v1822
  %v1903 = vmul.f32 %v1561, %v1824
  %v1904 = vmul.f32 %v1562, %v1826
  %v1905 = vmul.f32 %v1563, %v1828
  %v1906 = vmul.f32 %v1564, %v1830
  %v1907 = vmul.f32 %v1565, %v1832
  %v1908 = vmul.f32 %v1566, %v1834
  %v1909 = vmul.f32 %v1567, %v1836
  %v1910 = vmul.f32 %v1568, %v1838
  %v1911 = vmul.f32 %v1569, %v1840
  %v1912 = vmul.f32 %v1570, %v1842
  %v1913 = vmul.f32 %v1571, %v1844
  %v1914 = vmul.f32 %v1572, %v1846
  %v1915 = vmul.f32 %v1573, %v1848
  %v1916 = vmul.f32 %v1574, %v1850
  %v1917 = vmul.f32 %v1575, %v1852
  %v1918 = vmul.f32 %v1576, %v1854
  %v1919 = vsel %vm883, %v1887, 0.0
  %v1920 = vsel %vm883, %v1888, 0.0
  %v1921 = vadd.f32 %v1919, %v1920
  %v1922 = vrot.slane %v1921, 4
  %v1923 = vadd.f32 %v1921, %v1922
  %v1924 = vrot.slane %v1923, 2
  %v1925 = vadd.f32 %v1923, %v1924
  %v1926 = vrot.slane %v1925, 1
  %v1927 = vadd.f32 %v1925, %v1926
  %v1928 = vsel %vm883, %v1889, 0.0
  %v1929 = vsel %vm883, %v1890, 0.0
  %v1930 = vadd.f32 %v1928, %v1929
  %v1931 = vrot.slane %v1930, 4
  %v1932 = vadd.f32 %v1930, %v1931
  %v1933 = vrot.slane %v1932, 2
  %v1934 = vadd.f32 %v1932, %v1933
  %v1935 = vrot.slane %v1934, 1
  %v1936 = vadd.f32 %v1934, %v1935
  %v1937 = vsel %vm883, %v1891, 0.0
  %v1938 = vsel %vm883, %v1892, 0.0
  %v1939 = vadd.f32 %v1937, %v1938
  %v1940 = vrot.slane %v1939, 4
  %v1941 = vadd.f32 %v1939, %v1940
  %v1942 = vrot.slane %v1941, 2
  %v1943 = vadd.f32 %v1941, %v1942
  %v1944 = vrot.slane %v1943, 1
  %v1945 = vadd.f32 %v1943, %v1944
  %v1946 = vsel %vm883, %v1893, 0.0
  %v1947 = vsel %vm883, %v1894, 0.0
  %v1948 = vadd.f32 %v1946, %v1947
  %v1949 = vrot.slane %v1948, 4
  %v1950 = vadd.f32 %v1948, %v1949
  %v1951 = vrot.slane %v1950, 2
  %v1952 = vadd.f32 %v1950, %v1951
  %v1953 = vrot.slane %v1952, 1
  %v1954 = vadd.f32 %v1952, %v1953
  %v1955 = vsel %vm883, %v1895, 0.0
  %v1956 = vsel %vm883, %v1896, 0.0
  %v1957 = vadd.f32 %v1955, %v1956
  %v1958 = vrot.slane %v1957, 4
  %v1959 = vadd.f32 %v1957, %v1958
  %v1960 = vrot.slane %v1959, 2
  %v1961 = vadd.f32 %v1959, %v1960
  %v1962 = vrot.slane %v1961, 1
  %v1963 = vadd.f32 %v1961, %v1962
  %v1964 = vsel %vm883, %v1897, 0.0
  %v1965 = vsel %vm883, %v1898, 0.0
  %v1966 = vadd.f32 %v1964, %v1965
  %v1967 = vrot.slane %v1966, 4
  %v1968 = vadd.f32 %v1966, %v1967
  %v1969 = vrot.slane %v1968, 2
  %v1970 = vadd.f32 %v1968, %v1969
  %v1971 = vrot.slane %v1970, 1
  %v1972 = vadd.f32 %v1970, %v1971
  %v1973 = vsel %vm883, %v1899, 0.0
  %v1974 = vsel %vm883, %v1900, 0.0
  %v1975 = vadd.f32 %v1973, %v1974
  %v1976 = vrot.slane %v1975, 4
  %v1977 = vadd.f32 %v1975, %v1976
  %v1978 = vrot.slane %v1977, 2
  %v1979 = vadd.f32 %v1977, %v1978
  %v1980 = vrot.slane %v1979, 1
  %v1981 = vadd.f32 %v1979, %v1980
  %v1982 = vsel %vm883, %v1901, 0.0
  %v1983 = vsel %vm883, %v1902, 0.0
  %v1984 = vadd.f32 %v1982, %v1983
  %v1985 = vrot.slane %v1984, 4
  %v1986 = vadd.f32 %v1984, %v1985
  %v1987 = vrot.slane %v1986, 2
  %v1988 = vadd.f32 %v1986, %v1987
  %v1989 = vrot.slane %v1988, 1
  %v1990 = vadd.f32 %v1988, %v1989
  %v1991 = vsel %vm883, %v1903, 0.0
  %v1992 = vsel %vm883, %v1904, 0.0
  %v1993 = vadd.f32 %v1991, %v1992
  %v1994 = vrot.slane %v1993, 4
  %v1995 = vadd.f32 %v1993, %v1994
  %v1996 = vrot.slane %v1995, 2
  %v1997 = vadd.f32 %v1995, %v1996
  %v1998 = vrot.slane %v1997, 1
  %v1999 = vadd.f32 %v1997, %v1998
  %v2000 = vsel %vm883, %v1905, 0.0
  %v2001 = vsel %vm883, %v1906, 0.0
  %v2002 = vadd.f32 %v2000, %v2001
  %v2003 = vrot.slane %v2002, 4
  %v2004 = vadd.f32 %v2002, %v2003
  %v2005 = vrot.slane %v2004, 2
  %v2006 = vadd.f32 %v2004, %v2005
  %v2007 = vrot.slane %v2006, 1
  %v2008 = vadd.f32 %v2006, %v2007
  %v2009 = vsel %vm883, %v1907, 0.0
  %v2010 = vsel %vm883, %v1908, 0.0
  %v2011 = vadd.f32 %v2009, %v2010
  %v2012 = vrot.slane %v2011, 4
  %v2013 = vadd.f32 %v2011, %v2012
  %v2014 = vrot.slane %v2013, 2
  %v2015 = vadd.f32 %v2013, %v2014
  %v2016 = vrot.slane %v2015, 1
  %v2017 = vadd.f32 %v2015, %v2016
  %v2018 = vsel %vm883, %v1909, 0.0
  %v2019 = vsel %vm883, %v1910, 0.0
  %v2020 = vadd.f32 %v2018, %v2019
  %v2021 = vrot.slane %v2020, 4
  %v2022 = vadd.f32 %v2020, %v2021
  %v2023 = vrot.slane %v2022, 2
  %v2024 = vadd.f32 %v2022, %v2023
  %v2025 = vrot.slane %v2024, 1
  %v2026 = vadd.f32 %v2024, %v2025
  %v2027 = vsel %vm883, %v1911, 0.0
  %v2028 = vsel %vm883, %v1912, 0.0
  %v2029 = vadd.f32 %v2027, %v2028
  %v2030 = vrot.slane %v2029, 4
  %v2031 = vadd.f32 %v2029, %v2030
  %v2032 = vrot.slane %v2031, 2
  %v2033 = vadd.f32 %v2031, %v2032
  %v2034 = vrot.slane %v2033, 1
  %v2035 = vadd.f32 %v2033, %v2034
  %v2036 = vsel %vm883, %v1913, 0.0
  %v2037 = vsel %vm883, %v1914, 0.0
  %v2038 = vadd.f32 %v2036, %v2037
  %v2039 = vrot.slane %v2038, 4
  %v2040 = vadd.f32 %v2038, %v2039
  %v2041 = vrot.slane %v2040, 2
  %v2042 = vadd.f32 %v2040, %v2041
  %v2043 = vrot.slane %v2042, 1
  %v2044 = vadd.f32 %v2042, %v2043
  %v2045 = vsel %vm883, %v1915, 0.0
  %v2046 = vsel %vm883, %v1916, 0.0
  %v2047 = vadd.f32 %v2045, %v2046
  %v2048 = vrot.slane %v2047, 4
  %v2049 = vadd.f32 %v2047, %v2048
  %v2050 = vrot.slane %v2049, 2
  %v2051 = vadd.f32 %v2049, %v2050
  %v2052 = vrot.slane %v2051, 1
  %v2053 = vadd.f32 %v2051, %v2052
  %v2054 = vsel %vm883, %v1917, 0.0
  %v2055 = vsel %vm883, %v1918, 0.0
  %v2056 = vadd.f32 %v2054, %v2055
  %v2057 = vrot.slane %v2056, 4
  %v2058 = vadd.f32 %v2056, %v2057
  %v2059 = vrot.slane %v2058, 2
  %v2060 = vadd.f32 %v2058, %v2059
  %v2061 = vrot.slane %v2060, 1
  %v2062 = vadd.f32 %v2060, %v2061
  %2065 = vrot.lane.b32.xlu0 %v1789, 64
  %v2066 = vpop.permute.xlu0 %2065
  %2067 = vrot.lane.b32.xlu0 %v1790, 64
  %v2068 = vpop.permute.xlu0 %2067
  %v2071 = vmul.f32 %v1757, %v2066
  %v2072 = vmul.f32 %v1758, %v2068
  %v2073 = vmul.f32 %v1759, %v2066
  %v2074 = vmul.f32 %v1760, %v2068
  %v2075 = vmul.f32 %v1761, %v2066
  %v2076 = vmul.f32 %v1762, %v2068
  %v2077 = vmul.f32 %v1763, %v2066
  %v2078 = vmul.f32 %v1764, %v2068
  %v2079 = vmul.f32 %v1765, %v2066
  %v2080 = vmul.f32 %v1766, %v2068
  %v2081 = vmul.f32 %v1767, %v2066
  %v2082 = vmul.f32 %v1768, %v2068
  %v2083 = vmul.f32 %v1769, %v2066
  %v2084 = vmul.f32 %v1770, %v2068
  %v2085 = vmul.f32 %v1771, %v2066
  %v2086 = vmul.f32 %v1772, %v2068
  %v2087 = vmul.f32 %v1773, %v2066
  %v2088 = vmul.f32 %v1774, %v2068
  %v2089 = vmul.f32 %v1775, %v2066
  %v2090 = vmul.f32 %v1776, %v2068
  %v2091 = vmul.f32 %v1777, %v2066
  %v2092 = vmul.f32 %v1778, %v2068
  %v2093 = vmul.f32 %v1779, %v2066
  %v2094 = vmul.f32 %v1780, %v2068
  %v2095 = vmul.f32 %v1781, %v2066
  %v2096 = vmul.f32 %v1782, %v2068
  %v2097 = vmul.f32 %v1783, %v2066
  %v2098 = vmul.f32 %v1784, %v2068
  %v2099 = vmul.f32 %v1785, %v2066
  %v2100 = vmul.f32 %v1786, %v2068
  %v2101 = vmul.f32 %v1787, %v2066
  %v2102 = vmul.f32 %v1788, %v2068
  %vm2103 = vcmask 785920
  %v2104 = vsel %vm2103, %v2071, 0.0
  %v2105 = vsel %vm2103, %v2072, 0.0
  %v2106 = vadd.f32 %v2104, %v2105
  %v2107 = vrot.slane %v2106, 4
  %v2108 = vadd.f32 %v2106, %v2107
  %v2109 = vrot.slane %v2108, 2
  %v2110 = vadd.f32 %v2108, %v2109
  %v2111 = vrot.slane %v2110, 1
  %v2112 = vadd.f32 %v2110, %v2111
  %v2113 = vsel %vm2103, %v2073, 0.0
  %v2114 = vsel %vm2103, %v2074, 0.0
  %v2115 = vadd.f32 %v2113, %v2114
  %v2116 = vrot.slane %v2115, 4
  %v2117 = vadd.f32 %v2115, %v2116
  %v2118 = vrot.slane %v2117, 2
  %v2119 = vadd.f32 %v2117, %v2118
  %v2120 = vrot.slane %v2119, 1
  %v2121 = vadd.f32 %v2119, %v2120
  %v2122 = vsel %vm2103, %v2075, 0.0
  %v2123 = vsel %vm2103, %v2076, 0.0
  %v2124 = vadd.f32 %v2122, %v2123
  %v2125 = vrot.slane %v2124, 4
  %v2126 = vadd.f32 %v2124, %v2125
  %v2127 = vrot.slane %v2126, 2
  %v2128 = vadd.f32 %v2126, %v2127
  %v2129 = vrot.slane %v2128, 1
  %v2130 = vadd.f32 %v2128, %v2129
  %v2131 = vsel %vm2103, %v2077, 0.0
  %v2132 = vsel %vm2103, %v2078, 0.0
  %v2133 = vadd.f32 %v2131, %v2132
  %v2134 = vrot.slane %v2133, 4
  %v2135 = vadd.f32 %v2133, %v2134
  %v2136 = vrot.slane %v2135, 2
  %v2137 = vadd.f32 %v2135, %v2136
  %v2138 = vrot.slane %v2137, 1
  %v2139 = vadd.f32 %v2137, %v2138
  %v2140 = vsel %vm2103, %v2079, 0.0
  %v2141 = vsel %vm2103, %v2080, 0.0
  %v2142 = vadd.f32 %v2140, %v2141
  %v2143 = vrot.slane %v2142, 4
  %v2144 = vadd.f32 %v2142, %v2143
  %v2145 = vrot.slane %v2144, 2
  %v2146 = vadd.f32 %v2144, %v2145
  %v2147 = vrot.slane %v2146, 1
  %v2148 = vadd.f32 %v2146, %v2147
  %v2149 = vsel %vm2103, %v2081, 0.0
  %v2150 = vsel %vm2103, %v2082, 0.0
  %v2151 = vadd.f32 %v2149, %v2150
  %v2152 = vrot.slane %v2151, 4
  %v2153 = vadd.f32 %v2151, %v2152
  %v2154 = vrot.slane %v2153, 2
  %v2155 = vadd.f32 %v2153, %v2154
  %v2156 = vrot.slane %v2155, 1
  %v2157 = vadd.f32 %v2155, %v2156
  %v2158 = vsel %vm2103, %v2083, 0.0
  %v2159 = vsel %vm2103, %v2084, 0.0
  %v2160 = vadd.f32 %v2158, %v2159
  %v2161 = vrot.slane %v2160, 4
  %v2162 = vadd.f32 %v2160, %v2161
  %v2163 = vrot.slane %v2162, 2
  %v2164 = vadd.f32 %v2162, %v2163
  %v2165 = vrot.slane %v2164, 1
  %v2166 = vadd.f32 %v2164, %v2165
  %v2167 = vsel %vm2103, %v2085, 0.0
  %v2168 = vsel %vm2103, %v2086, 0.0
  %v2169 = vadd.f32 %v2167, %v2168
  %v2170 = vrot.slane %v2169, 4
  %v2171 = vadd.f32 %v2169, %v2170
  %v2172 = vrot.slane %v2171, 2
  %v2173 = vadd.f32 %v2171, %v2172
  %v2174 = vrot.slane %v2173, 1
  %v2175 = vadd.f32 %v2173, %v2174
  %v2176 = vsel %vm2103, %v2087, 0.0
  %v2177 = vsel %vm2103, %v2088, 0.0
  %v2178 = vadd.f32 %v2176, %v2177
  %v2179 = vrot.slane %v2178, 4
  %v2180 = vadd.f32 %v2178, %v2179
  %v2181 = vrot.slane %v2180, 2
  %v2182 = vadd.f32 %v2180, %v2181
  %v2183 = vrot.slane %v2182, 1
  %v2184 = vadd.f32 %v2182, %v2183
  %v2185 = vsel %vm2103, %v2089, 0.0
  %v2186 = vsel %vm2103, %v2090, 0.0
  %v2187 = vadd.f32 %v2185, %v2186
  %v2188 = vrot.slane %v2187, 4
  %v2189 = vadd.f32 %v2187, %v2188
  %v2190 = vrot.slane %v2189, 2
  %v2191 = vadd.f32 %v2189, %v2190
  %v2192 = vrot.slane %v2191, 1
  %v2193 = vadd.f32 %v2191, %v2192
  %v2194 = vsel %vm2103, %v2091, 0.0
  %v2195 = vsel %vm2103, %v2092, 0.0
  %v2196 = vadd.f32 %v2194, %v2195
  %v2197 = vrot.slane %v2196, 4
  %v2198 = vadd.f32 %v2196, %v2197
  %v2199 = vrot.slane %v2198, 2
  %v2200 = vadd.f32 %v2198, %v2199
  %v2201 = vrot.slane %v2200, 1
  %v2202 = vadd.f32 %v2200, %v2201
  %v2203 = vsel %vm2103, %v2093, 0.0
  %v2204 = vsel %vm2103, %v2094, 0.0
  %v2205 = vadd.f32 %v2203, %v2204
  %v2206 = vrot.slane %v2205, 4
  %v2207 = vadd.f32 %v2205, %v2206
  %v2208 = vrot.slane %v2207, 2
  %v2209 = vadd.f32 %v2207, %v2208
  %v2210 = vrot.slane %v2209, 1
  %v2211 = vadd.f32 %v2209, %v2210
  %v2212 = vsel %vm2103, %v2095, 0.0
  %v2213 = vsel %vm2103, %v2096, 0.0
  %v2214 = vadd.f32 %v2212, %v2213
  %v2215 = vrot.slane %v2214, 4
  %v2216 = vadd.f32 %v2214, %v2215
  %v2217 = vrot.slane %v2216, 2
  %v2218 = vadd.f32 %v2216, %v2217
  %v2219 = vrot.slane %v2218, 1
  %v2220 = vadd.f32 %v2218, %v2219
  %v2221 = vsel %vm2103, %v2097, 0.0
  %v2222 = vsel %vm2103, %v2098, 0.0
  %v2223 = vadd.f32 %v2221, %v2222
  %v2224 = vrot.slane %v2223, 4
  %v2225 = vadd.f32 %v2223, %v2224
  %v2226 = vrot.slane %v2225, 2
  %v2227 = vadd.f32 %v2225, %v2226
  %v2228 = vrot.slane %v2227, 1
  %v2229 = vadd.f32 %v2227, %v2228
  %v2230 = vsel %vm2103, %v2099, 0.0
  %v2231 = vsel %vm2103, %v2100, 0.0
  %v2232 = vadd.f32 %v2230, %v2231
  %v2233 = vrot.slane %v2232, 4
  %v2234 = vadd.f32 %v2232, %v2233
  %v2235 = vrot.slane %v2234, 2
  %v2236 = vadd.f32 %v2234, %v2235
  %v2237 = vrot.slane %v2236, 1
  %v2238 = vadd.f32 %v2236, %v2237
  %v2239 = vsel %vm2103, %v2101, 0.0
  %v2240 = vsel %vm2103, %v2102, 0.0
  %v2241 = vadd.f32 %v2239, %v2240
  %v2242 = vrot.slane %v2241, 4
  %v2243 = vadd.f32 %v2241, %v2242
  %v2244 = vrot.slane %v2243, 2
  %v2245 = vadd.f32 %v2243, %v2244
  %v2246 = vrot.slane %v2245, 1
  %v2247 = vadd.f32 %v2245, %v2246
  %2248 = vrot.lane.b32.xlu0 %v1789, 32
  %v2249 = vpop.permute.xlu0 %2248
  %2250 = vrot.lane.b32.xlu0 %v1790, 32
  %v2251 = vpop.permute.xlu0 %2250
  %v2254 = vmul.f32 %v1757, %v2249
  %v2255 = vmul.f32 %v1758, %v2251
  %v2256 = vmul.f32 %v1759, %v2249
  %v2257 = vmul.f32 %v1760, %v2251
  %v2258 = vmul.f32 %v1761, %v2249
  %v2259 = vmul.f32 %v1762, %v2251
  %v2260 = vmul.f32 %v1763, %v2249
  %v2261 = vmul.f32 %v1764, %v2251
  %v2262 = vmul.f32 %v1765, %v2249
  %v2263 = vmul.f32 %v1766, %v2251
  %v2264 = vmul.f32 %v1767, %v2249
  %v2265 = vmul.f32 %v1768, %v2251
  %v2266 = vmul.f32 %v1769, %v2249
  %v2267 = vmul.f32 %v1770, %v2251
  %v2268 = vmul.f32 %v1771, %v2249
  %v2269 = vmul.f32 %v1772, %v2251
  %v2270 = vmul.f32 %v1773, %v2249
  %v2271 = vmul.f32 %v1774, %v2251
  %v2272 = vmul.f32 %v1775, %v2249
  %v2273 = vmul.f32 %v1776, %v2251
  %v2274 = vmul.f32 %v1777, %v2249
  %v2275 = vmul.f32 %v1778, %v2251
  %v2276 = vmul.f32 %v1779, %v2249
  %v2277 = vmul.f32 %v1780, %v2251
  %v2278 = vmul.f32 %v1781, %v2249
  %v2279 = vmul.f32 %v1782, %v2251
  %v2280 = vmul.f32 %v1783, %v2249
  %v2281 = vmul.f32 %v1784, %v2251
  %v2282 = vmul.f32 %v1785, %v2249
  %v2283 = vmul.f32 %v1786, %v2251
  %v2284 = vmul.f32 %v1787, %v2249
  %v2285 = vmul.f32 %v1788, %v2251
  %v2286 = vsel %vm2103, %v2254, 0.0
  %v2287 = vsel %vm2103, %v2255, 0.0
  %v2288 = vadd.f32 %v2286, %v2287
  %v2289 = vrot.slane %v2288, 4
  %v2290 = vadd.f32 %v2288, %v2289
  %v2291 = vrot.slane %v2290, 2
  %v2292 = vadd.f32 %v2290, %v2291
  %v2293 = vrot.slane %v2292, 1
  %v2294 = vadd.f32 %v2292, %v2293
  %v2295 = vsel %vm2103, %v2256, 0.0
  %v2296 = vsel %vm2103, %v2257, 0.0
  %v2297 = vadd.f32 %v2295, %v2296
  %v2298 = vrot.slane %v2297, 4
  %v2299 = vadd.f32 %v2297, %v2298
  %v2300 = vrot.slane %v2299, 2
  %v2301 = vadd.f32 %v2299, %v2300
  %v2302 = vrot.slane %v2301, 1
  %v2303 = vadd.f32 %v2301, %v2302
  %v2304 = vsel %vm2103, %v2258, 0.0
  %v2305 = vsel %vm2103, %v2259, 0.0
  %v2306 = vadd.f32 %v2304, %v2305
  %v2307 = vrot.slane %v2306, 4
  %v2308 = vadd.f32 %v2306, %v2307
  %v2309 = vrot.slane %v2308, 2
  %v2310 = vadd.f32 %v2308, %v2309
  %v2311 = vrot.slane %v2310, 1
  %v2312 = vadd.f32 %v2310, %v2311
  %v2313 = vsel %vm2103, %v2260, 0.0
  %v2314 = vsel %vm2103, %v2261, 0.0
  %v2315 = vadd.f32 %v2313, %v2314
  %v2316 = vrot.slane %v2315, 4
  %v2317 = vadd.f32 %v2315, %v2316
  %v2318 = vrot.slane %v2317, 2
  %v2319 = vadd.f32 %v2317, %v2318
  %v2320 = vrot.slane %v2319, 1
  %v2321 = vadd.f32 %v2319, %v2320
  %v2322 = vsel %vm2103, %v2262, 0.0
  %v2323 = vsel %vm2103, %v2263, 0.0
  %v2324 = vadd.f32 %v2322, %v2323
  %v2325 = vrot.slane %v2324, 4
  %v2326 = vadd.f32 %v2324, %v2325
  %v2327 = vrot.slane %v2326, 2
  %v2328 = vadd.f32 %v2326, %v2327
  %v2329 = vrot.slane %v2328, 1
  %v2330 = vadd.f32 %v2328, %v2329
  %v2331 = vsel %vm2103, %v2264, 0.0
  %v2332 = vsel %vm2103, %v2265, 0.0
  %v2333 = vadd.f32 %v2331, %v2332
  %v2334 = vrot.slane %v2333, 4
  %v2335 = vadd.f32 %v2333, %v2334
  %v2336 = vrot.slane %v2335, 2
  %v2337 = vadd.f32 %v2335, %v2336
  %v2338 = vrot.slane %v2337, 1
  %v2339 = vadd.f32 %v2337, %v2338
  %v2340 = vsel %vm2103, %v2266, 0.0
  %v2341 = vsel %vm2103, %v2267, 0.0
  %v2342 = vadd.f32 %v2340, %v2341
  %v2343 = vrot.slane %v2342, 4
  %v2344 = vadd.f32 %v2342, %v2343
  %v2345 = vrot.slane %v2344, 2
  %v2346 = vadd.f32 %v2344, %v2345
  %v2347 = vrot.slane %v2346, 1
  %v2348 = vadd.f32 %v2346, %v2347
  %v2349 = vsel %vm2103, %v2268, 0.0
  %v2350 = vsel %vm2103, %v2269, 0.0
  %v2351 = vadd.f32 %v2349, %v2350
  %v2352 = vrot.slane %v2351, 4
  %v2353 = vadd.f32 %v2351, %v2352
  %v2354 = vrot.slane %v2353, 2
  %v2355 = vadd.f32 %v2353, %v2354
  %v2356 = vrot.slane %v2355, 1
  %v2357 = vadd.f32 %v2355, %v2356
  %v2358 = vsel %vm2103, %v2270, 0.0
  %v2359 = vsel %vm2103, %v2271, 0.0
  %v2360 = vadd.f32 %v2358, %v2359
  %v2361 = vrot.slane %v2360, 4
  %v2362 = vadd.f32 %v2360, %v2361
  %v2363 = vrot.slane %v2362, 2
  %v2364 = vadd.f32 %v2362, %v2363
  %v2365 = vrot.slane %v2364, 1
  %v2366 = vadd.f32 %v2364, %v2365
  %v2367 = vsel %vm2103, %v2272, 0.0
  %v2368 = vsel %vm2103, %v2273, 0.0
  %v2369 = vadd.f32 %v2367, %v2368
  %v2370 = vrot.slane %v2369, 4
  %v2371 = vadd.f32 %v2369, %v2370
  %v2372 = vrot.slane %v2371, 2
  %v2373 = vadd.f32 %v2371, %v2372
  %v2374 = vrot.slane %v2373, 1
  %v2375 = vadd.f32 %v2373, %v2374
  %v2376 = vsel %vm2103, %v2274, 0.0
  %v2377 = vsel %vm2103, %v2275, 0.0
  %v2378 = vadd.f32 %v2376, %v2377
  %v2379 = vrot.slane %v2378, 4
  %v2380 = vadd.f32 %v2378, %v2379
  %v2381 = vrot.slane %v2380, 2
  %v2382 = vadd.f32 %v2380, %v2381
  %v2383 = vrot.slane %v2382, 1
  %v2384 = vadd.f32 %v2382, %v2383
  %v2385 = vsel %vm2103, %v2276, 0.0
  %v2386 = vsel %vm2103, %v2277, 0.0
  %v2387 = vadd.f32 %v2385, %v2386
  %v2388 = vrot.slane %v2387, 4
  %v2389 = vadd.f32 %v2387, %v2388
  %v2390 = vrot.slane %v2389, 2
  %v2391 = vadd.f32 %v2389, %v2390
  %v2392 = vrot.slane %v2391, 1
  %v2393 = vadd.f32 %v2391, %v2392
  %v2394 = vsel %vm2103, %v2278, 0.0
  %v2395 = vsel %vm2103, %v2279, 0.0
  %v2396 = vadd.f32 %v2394, %v2395
  %v2397 = vrot.slane %v2396, 4
  %v2398 = vadd.f32 %v2396, %v2397
  %v2399 = vrot.slane %v2398, 2
  %v2400 = vadd.f32 %v2398, %v2399
  %v2401 = vrot.slane %v2400, 1
  %v2402 = vadd.f32 %v2400, %v2401
  %v2403 = vsel %vm2103, %v2280, 0.0
  %v2404 = vsel %vm2103, %v2281, 0.0
  %v2405 = vadd.f32 %v2403, %v2404
  %v2406 = vrot.slane %v2405, 4
  %v2407 = vadd.f32 %v2405, %v2406
  %v2408 = vrot.slane %v2407, 2
  %v2409 = vadd.f32 %v2407, %v2408
  %v2410 = vrot.slane %v2409, 1
  %v2411 = vadd.f32 %v2409, %v2410
  %v2412 = vsel %vm2103, %v2282, 0.0
  %v2413 = vsel %vm2103, %v2283, 0.0
  %v2414 = vadd.f32 %v2412, %v2413
  %v2415 = vrot.slane %v2414, 4
  %v2416 = vadd.f32 %v2414, %v2415
  %v2417 = vrot.slane %v2416, 2
  %v2418 = vadd.f32 %v2416, %v2417
  %v2419 = vrot.slane %v2418, 1
  %v2420 = vadd.f32 %v2418, %v2419
  %v2421 = vsel %vm2103, %v2284, 0.0
  %v2422 = vsel %vm2103, %v2285, 0.0
  %v2423 = vadd.f32 %v2421, %v2422
  %v2424 = vrot.slane %v2423, 4
  %v2425 = vadd.f32 %v2423, %v2424
  %v2426 = vrot.slane %v2425, 2
  %v2427 = vadd.f32 %v2425, %v2426
  %v2428 = vrot.slane %v2427, 1
  %v2429 = vadd.f32 %v2427, %v2428
  %v2430 = vmul.f32 %v1757, %v1789
  %v2431 = vmul.f32 %v1758, %v1790
  %v2432 = vmul.f32 %v1759, %v1789
  %v2433 = vmul.f32 %v1760, %v1790
  %v2434 = vmul.f32 %v1761, %v1789
  %v2435 = vmul.f32 %v1762, %v1790
  %v2436 = vmul.f32 %v1763, %v1789
  %v2437 = vmul.f32 %v1764, %v1790
  %v2438 = vmul.f32 %v1765, %v1789
  %v2439 = vmul.f32 %v1766, %v1790
  %v2440 = vmul.f32 %v1767, %v1789
  %v2441 = vmul.f32 %v1768, %v1790
  %v2442 = vmul.f32 %v1769, %v1789
  %v2443 = vmul.f32 %v1770, %v1790
  %v2444 = vmul.f32 %v1771, %v1789
  %v2445 = vmul.f32 %v1772, %v1790
  %v2446 = vmul.f32 %v1773, %v1789
  %v2447 = vmul.f32 %v1774, %v1790
  %v2448 = vmul.f32 %v1775, %v1789
  %v2449 = vmul.f32 %v1776, %v1790
  %v2450 = vmul.f32 %v1777, %v1789
  %v2451 = vmul.f32 %v1778, %v1790
  %v2452 = vmul.f32 %v1779, %v1789
  %v2453 = vmul.f32 %v1780, %v1790
  %v2454 = vmul.f32 %v1781, %v1789
  %v2455 = vmul.f32 %v1782, %v1790
  %v2456 = vmul.f32 %v1783, %v1789
  %v2457 = vmul.f32 %v1784, %v1790
  %v2458 = vmul.f32 %v1785, %v1789
  %v2459 = vmul.f32 %v1786, %v1790
  %v2460 = vmul.f32 %v1787, %v1789
  %v2461 = vmul.f32 %v1788, %v1790
  %v2462 = vsel %vm2103, %v2430, 0.0
  %v2463 = vsel %vm2103, %v2431, 0.0
  %v2464 = vadd.f32 %v2462, %v2463
  %v2465 = vrot.slane %v2464, 4
  %v2466 = vadd.f32 %v2464, %v2465
  %v2467 = vrot.slane %v2466, 2
  %v2468 = vadd.f32 %v2466, %v2467
  %v2469 = vrot.slane %v2468, 1
  %v2470 = vadd.f32 %v2468, %v2469
  %v2471 = vsel %vm2103, %v2432, 0.0
  %v2472 = vsel %vm2103, %v2433, 0.0
  %v2473 = vadd.f32 %v2471, %v2472
  %v2474 = vrot.slane %v2473, 4
  %v2475 = vadd.f32 %v2473, %v2474
  %v2476 = vrot.slane %v2475, 2
  %v2477 = vadd.f32 %v2475, %v2476
  %v2478 = vrot.slane %v2477, 1
  %v2479 = vadd.f32 %v2477, %v2478
  %v2480 = vsel %vm2103, %v2434, 0.0
  %v2481 = vsel %vm2103, %v2435, 0.0
  %v2482 = vadd.f32 %v2480, %v2481
  %v2483 = vrot.slane %v2482, 4
  %v2484 = vadd.f32 %v2482, %v2483
  %v2485 = vrot.slane %v2484, 2
  %v2486 = vadd.f32 %v2484, %v2485
  %v2487 = vrot.slane %v2486, 1
  %v2488 = vadd.f32 %v2486, %v2487
  %v2489 = vsel %vm2103, %v2436, 0.0
  %v2490 = vsel %vm2103, %v2437, 0.0
  %v2491 = vadd.f32 %v2489, %v2490
  %v2492 = vrot.slane %v2491, 4
  %v2493 = vadd.f32 %v2491, %v2492
  %v2494 = vrot.slane %v2493, 2
  %v2495 = vadd.f32 %v2493, %v2494
  %v2496 = vrot.slane %v2495, 1
  %v2497 = vadd.f32 %v2495, %v2496
  %v2498 = vsel %vm2103, %v2438, 0.0
  %v2499 = vsel %vm2103, %v2439, 0.0
  %v2500 = vadd.f32 %v2498, %v2499
  %v2501 = vrot.slane %v2500, 4
  %v2502 = vadd.f32 %v2500, %v2501
  %v2503 = vrot.slane %v2502, 2
  %v2504 = vadd.f32 %v2502, %v2503
  %v2505 = vrot.slane %v2504, 1
  %v2506 = vadd.f32 %v2504, %v2505
  %v2507 = vsel %vm2103, %v2440, 0.0
  %v2508 = vsel %vm2103, %v2441, 0.0
  %v2509 = vadd.f32 %v2507, %v2508
  %v2510 = vrot.slane %v2509, 4
  %v2511 = vadd.f32 %v2509, %v2510
  %v2512 = vrot.slane %v2511, 2
  %v2513 = vadd.f32 %v2511, %v2512
  %v2514 = vrot.slane %v2513, 1
  %v2515 = vadd.f32 %v2513, %v2514
  %v2516 = vsel %vm2103, %v2442, 0.0
  %v2517 = vsel %vm2103, %v2443, 0.0
  %v2518 = vadd.f32 %v2516, %v2517
  %v2519 = vrot.slane %v2518, 4
  %v2520 = vadd.f32 %v2518, %v2519
  %v2521 = vrot.slane %v2520, 2
  %v2522 = vadd.f32 %v2520, %v2521
  %v2523 = vrot.slane %v2522, 1
  %v2524 = vadd.f32 %v2522, %v2523
  %v2525 = vsel %vm2103, %v2444, 0.0
  %v2526 = vsel %vm2103, %v2445, 0.0
  %v2527 = vadd.f32 %v2525, %v2526
  %v2528 = vrot.slane %v2527, 4
  %v2529 = vadd.f32 %v2527, %v2528
  %v2530 = vrot.slane %v2529, 2
  %v2531 = vadd.f32 %v2529, %v2530
  %v2532 = vrot.slane %v2531, 1
  %v2533 = vadd.f32 %v2531, %v2532
  %v2534 = vsel %vm2103, %v2446, 0.0
  %v2535 = vsel %vm2103, %v2447, 0.0
  %v2536 = vadd.f32 %v2534, %v2535
  %v2537 = vrot.slane %v2536, 4
  %v2538 = vadd.f32 %v2536, %v2537
  %v2539 = vrot.slane %v2538, 2
  %v2540 = vadd.f32 %v2538, %v2539
  %v2541 = vrot.slane %v2540, 1
  %v2542 = vadd.f32 %v2540, %v2541
  %v2543 = vsel %vm2103, %v2448, 0.0
  %v2544 = vsel %vm2103, %v2449, 0.0
  %v2545 = vadd.f32 %v2543, %v2544
  %v2546 = vrot.slane %v2545, 4
  %v2547 = vadd.f32 %v2545, %v2546
  %v2548 = vrot.slane %v2547, 2
  %v2549 = vadd.f32 %v2547, %v2548
  %v2550 = vrot.slane %v2549, 1
  %v2551 = vadd.f32 %v2549, %v2550
  %v2552 = vsel %vm2103, %v2450, 0.0
  %v2553 = vsel %vm2103, %v2451, 0.0
  %v2554 = vadd.f32 %v2552, %v2553
  %v2555 = vrot.slane %v2554, 4
  %v2556 = vadd.f32 %v2554, %v2555
  %v2557 = vrot.slane %v2556, 2
  %v2558 = vadd.f32 %v2556, %v2557
  %v2559 = vrot.slane %v2558, 1
  %v2560 = vadd.f32 %v2558, %v2559
  %v2561 = vsel %vm2103, %v2452, 0.0
  %v2562 = vsel %vm2103, %v2453, 0.0
  %v2563 = vadd.f32 %v2561, %v2562
  %v2564 = vrot.slane %v2563, 4
  %v2565 = vadd.f32 %v2563, %v2564
  %v2566 = vrot.slane %v2565, 2
  %v2567 = vadd.f32 %v2565, %v2566
  %v2568 = vrot.slane %v2567, 1
  %v2569 = vadd.f32 %v2567, %v2568
  %v2570 = vsel %vm2103, %v2454, 0.0
  %v2571 = vsel %vm2103, %v2455, 0.0
  %v2572 = vadd.f32 %v2570, %v2571
  %v2573 = vrot.slane %v2572, 4
  %v2574 = vadd.f32 %v2572, %v2573
  %v2575 = vrot.slane %v2574, 2
  %v2576 = vadd.f32 %v2574, %v2575
  %v2577 = vrot.slane %v2576, 1
  %v2578 = vadd.f32 %v2576, %v2577
  %v2579 = vsel %vm2103, %v2456, 0.0
  %v2580 = vsel %vm2103, %v2457, 0.0
  %v2581 = vadd.f32 %v2579, %v2580
  %v2582 = vrot.slane %v2581, 4
  %v2583 = vadd.f32 %v2581, %v2582
  %v2584 = vrot.slane %v2583, 2
  %v2585 = vadd.f32 %v2583, %v2584
  %v2586 = vrot.slane %v2585, 1
  %v2587 = vadd.f32 %v2585, %v2586
  %v2588 = vsel %vm2103, %v2458, 0.0
  %v2589 = vsel %vm2103, %v2459, 0.0
  %v2590 = vadd.f32 %v2588, %v2589
  %v2591 = vrot.slane %v2590, 4
  %v2592 = vadd.f32 %v2590, %v2591
  %v2593 = vrot.slane %v2592, 2
  %v2594 = vadd.f32 %v2592, %v2593
  %v2595 = vrot.slane %v2594, 1
  %v2596 = vadd.f32 %v2594, %v2595
  %v2597 = vsel %vm2103, %v2460, 0.0
  %v2598 = vsel %vm2103, %v2461, 0.0
  %v2599 = vadd.f32 %v2597, %v2598
  %v2600 = vrot.slane %v2599, 4
  %v2601 = vadd.f32 %v2599, %v2600
  %v2602 = vrot.slane %v2601, 2
  %v2603 = vadd.f32 %v2601, %v2602
  %v2604 = vrot.slane %v2603, 1
  %v2605 = vadd.f32 %v2603, %v2604
  %v2606 = vld [vmem:[#allocation2] sm:$0xff]
  %v2607 = vld [vmem:[#allocation2 + $0x8] sm:$0xff]
  %vm2624 = vcmask 1041409
  %v2625 = vsel %vm2624, %v1936, %v1927
  %vm2626 = vcmask 1042434
  %v2627 = vsel %vm2626, %v1945, %v2625
  %vm2628 = vcmask 1043459
  %v2629 = vsel %vm2628, %v1954, %v2627
  %vm2630 = vcmask 1044484
  %v2631 = vsel %vm2630, %v1963, %v2629
  %vm2632 = vcmask 1045509
  %v2633 = vsel %vm2632, %v1972, %v2631
  %vm2634 = vcmask 1046534
  %v2635 = vsel %vm2634, %v1981, %v2633
  %vm2636 = vcmask 1047559
  %v2637 = vsel %vm2636, %v1990, %v2635
  %v2638 = vsel %vm2624, %v2008, %v1999
  %v2639 = vsel %vm2626, %v2017, %v2638
  %v2640 = vsel %vm2628, %v2026, %v2639
  %v2641 = vsel %vm2630, %v2035, %v2640
  %v2642 = vsel %vm2632, %v2044, %v2641
  %v2643 = vsel %vm2634, %v2053, %v2642
  %v2644 = vsel %vm2636, %v2062, %v2643
  %v2663 = vsel %vm2624, %v2121, %v2112
  %v2664 = vsel %vm2626, %v2130, %v2663
  %v2665 = vsel %vm2628, %v2139, %v2664
  %v2666 = vsel %vm2630, %v2148, %v2665
  %v2667 = vsel %vm2632, %v2157, %v2666
  %v2668 = vsel %vm2634, %v2166, %v2667
  %v2669 = vsel %vm2636, %v2175, %v2668
  %v2670 = vsel %vm2624, %v2193, %v2184
  %v2671 = vsel %vm2626, %v2202, %v2670
  %v2672 = vsel %vm2628, %v2211, %v2671
  %v2673 = vsel %vm2630, %v2220, %v2672
  %v2674 = vsel %vm2632, %v2229, %v2673
  %v2675 = vsel %vm2634, %v2238, %v2674
  %v2676 = vsel %vm2636, %v2247, %v2675
  %2677 = vrot.lane.b32.xlu0 %v2669, 96
  %v2678 = vpop.permute.xlu0 %2677
  %2679 = vrot.lane.b32.xlu0 %v2676, 96
  %v2680 = vpop.permute.xlu0 %2679
  %v2699 = vsel %vm2624, %v2303, %v2294
  %v2700 = vsel %vm2626, %v2312, %v2699
  %v2701 = vsel %vm2628, %v2321, %v2700
  %v2702 = vsel %vm2630, %v2330, %v2701
  %v2703 = vsel %vm2632, %v2339, %v2702
  %v2704 = vsel %vm2634, %v2348, %v2703
  %v2705 = vsel %vm2636, %v2357, %v2704
  %v2706 = vsel %vm2624, %v2375, %v2366
  %v2707 = vsel %vm2626, %v2384, %v2706
  %v2708 = vsel %vm2628, %v2393, %v2707
  %v2709 = vsel %vm2630, %v2402, %v2708
  %v2710 = vsel %vm2632, %v2411, %v2709
  %v2711 = vsel %vm2634, %v2420, %v2710
  %v2712 = vsel %vm2636, %v2429, %v2711
  %v2731 = vsel %vm2624, %v2479, %v2470
  %v2732 = vsel %vm2626, %v2488, %v2731
  %v2733 = vsel %vm2628, %v2497, %v2732
  %v2734 = vsel %vm2630, %v2506, %v2733
  %v2735 = vsel %vm2632, %v2515, %v2734
  %v2736 = vsel %vm2634, %v2524, %v2735
  %v2737 = vsel %vm2636, %v2533, %v2736
  %v2738 = vsel %vm2624, %v2551, %v2542
  %v2739 = vsel %vm2626, %v2560, %v2738
  %v2740 = vsel %vm2628, %v2569, %v2739
  %v2741 = vsel %vm2630, %v2578, %v2740
  %v2742 = vsel %vm2632, %v2587, %v2741
  %v2743 = vsel %vm2634, %v2596, %v2742
  %v2744 = vsel %vm2636, %v2605, %v2743
  %2745 = vrot.lane.b32.xlu0 %v2737, 32
  %v2746 = vpop.permute.xlu0 %2745
  %2747 = vrot.lane.b32.xlu0 %v2744, 32
  %v2748 = vpop.permute.xlu0 %2747
  %v2751 = vsel %vm883, %v2637, %v2678
  %v2752 = vsel %vm883, %v2644, %v2680
  %vm2753 = vcmask 523264
  %v2754 = vsel %vm2753, %v2751, %v2705
  %v2755 = vsel %vm2753, %v2752, %v2712
  %vm2756 = vcmask 785408
  %v2757 = vsel %vm2756, %v2754, %v2746
  %v2758 = vsel %vm2756, %v2755, %v2748
  %v2759 = vadd.f32 %v2606, %v2757
  %v2760 = vadd.f32 %v2607, %v2758
  %2761 = vst [vmem:[#allocation2] sm:$0xff] %v2759
  %2762 = vst [vmem:[#allocation2 + $0x8] sm:$0xff] %v2760
  %v2763 = vld [vmem:[#allocation3] sm:$0xff]
  %v2764 = vld [vmem:[#allocation3 + $0x8] sm:$0xff]
  %v2765 = vld [vmem:[#allocation3 + $0x10] sm:$0xff]
  %v2766 = vld [vmem:[#allocation3 + $0x18] sm:$0xff]
  %v2767 = vld [vmem:[#allocation3 + $0x20] sm:$0xff]
  %v2768 = vld [vmem:[#allocation3 + $0x28] sm:$0xff]
  %v2769 = vld [vmem:[#allocation3 + $0x30] sm:$0xff]
  %v2770 = vld [vmem:[#allocation3 + $0x38] sm:$0xff]
  %v2771 = vld [vmem:[#allocation3 + $0x40] sm:$0xff]
  %v2772 = vld [vmem:[#allocation3 + $0x48] sm:$0xff]
  %v2773 = vld [vmem:[#allocation3 + $0x50] sm:$0xff]
  %v2774 = vld [vmem:[#allocation3 + $0x58] sm:$0xff]
  %v2775 = vld [vmem:[#allocation3 + $0x60] sm:$0xff]
  %v2776 = vld [vmem:[#allocation3 + $0x68] sm:$0xff]
  %v2777 = vld [vmem:[#allocation3 + $0x70] sm:$0xff]
  %v2778 = vld [vmem:[#allocation3 + $0x78] sm:$0xff]
  %v2779 = vld [vmem:[%s10] sm:$0xf]
  %v2780 = vld [vmem:[%s10 + $0x4] sm:$0xf]
  %v2781 = vld [vmem:[%s10 + $0x8] sm:$0xf]
  %v2782 = vld [vmem:[%s10 + $0xc] sm:$0xf]
  %v2783 = vld [vmem:[%s10 + $0x10] sm:$0xf]
  %v2784 = vld [vmem:[%s10 + $0x14] sm:$0xf]
  %v2785 = vld [vmem:[%s10 + $0x18] sm:$0xf]
  %v2786 = vld [vmem:[%s10 + $0x1c] sm:$0xf]
  %v2787 = vld [vmem:[%s10 + $0x20] sm:$0xf]
  %v2788 = vld [vmem:[%s10 + $0x24] sm:$0xf]
  %v2789 = vld [vmem:[%s10 + $0x28] sm:$0xf]
  %v2790 = vld [vmem:[%s10 + $0x2c] sm:$0xf]
  %v2791 = vld [vmem:[%s10 + $0x30] sm:$0xf]
  %v2792 = vld [vmem:[%s10 + $0x34] sm:$0xf]
  %v2793 = vld [vmem:[%s10 + $0x38] sm:$0xf]
  %v2794 = vld [vmem:[%s10 + $0x3c] sm:$0xf]
  %v2795 = vunpack.c.l.bf16 %v2779
  %v2796 = vunpack.c.l.bf16 %v2780
  %v2797 = vunpack.c.l.bf16 %v2781
  %v2798 = vunpack.c.l.bf16 %v2782
  %v2799 = vunpack.c.l.bf16 %v2783
  %v2800 = vunpack.c.l.bf16 %v2784
  %v2801 = vunpack.c.l.bf16 %v2785
  %v2802 = vunpack.c.l.bf16 %v2786
  %v2803 = vunpack.c.l.bf16 %v2787
  %v2804 = vunpack.c.l.bf16 %v2788
  %v2805 = vunpack.c.l.bf16 %v2789
  %v2806 = vunpack.c.l.bf16 %v2790
  %v2807 = vunpack.c.l.bf16 %v2791
  %v2808 = vunpack.c.l.bf16 %v2792
  %v2809 = vunpack.c.l.bf16 %v2793
  %v2810 = vunpack.c.l.bf16 %v2794
  %2811 = vrot.lane.b32.xlu0 %v847, 32
  %v2812 = vpop.permute.xlu0 %2811
  %2813 = vrot.lane.b32.xlu0 %v848, 32
  %v2814 = vpop.permute.xlu0 %2813
  %v2818 = vsel %vm149, %v2795, 0
  %2820 = vmatprep.subr.mxu0 0.0
  %2821 = vmatpush1.msra.mxu0 0.0
  %2822 = vmatprep.subr.mxu0 0.0
  %2823 = vmatpush1.msra.mxu0 0.0
  %2824 = vmatprep.subr.mxu0 0.0
  %2825 = vmatpush1.msra.mxu0 0.0
  %2826 = vmatprep.subr.mxu0 0.0
  %2827 = vmatpush1.msra.mxu0 0.0
  %2828 = vmatprep.subr.mxu0 0.0
  %2829 = vmatpush1.msra.mxu0 0.0
  %2830 = vmatprep.subr.mxu0 0.0
  %2831 = vmatpush1.msra.mxu0 0.0
  %2832 = vmatprep.subr.mxu0 0.0
  %2833 = vmatpush1.msra.mxu0 0.0
  %2834 = vmatprep.subr.mxu0 0.0
  %2835 = vmatpush1.msra.mxu0 0.0
  %2836 = vmatprep.subr.mxu0 0.0
  %2837 = vmatpush1.msra.mxu0 0.0
  %2838 = vmatprep.subr.mxu0 0.0
  %2839 = vmatpush1.msra.mxu0 0.0
  %2840 = vmatprep.subr.mxu0 0.0
  %2841 = vmatpush1.msra.mxu0 0.0
  %2842 = vmatprep.subr.mxu0 0.0
  %2843 = vmatpush1.msra.mxu0 0.0
  %2844 = vmatprep.subr.mxu0 0.0
  %2845 = vmatpush1.msra.mxu0 0.0
  %2846 = vmatprep.subr.mxu0 0.0
  %2847 = vmatpush1.msra.mxu0 0.0
  %2848 = vmatprep.subr.mxu0 0.0
  %2849 = vmatpush1.msra.mxu0 %v2814
  %2850 = vmatprep.subr.mxu0 0.0
  %2851 = vmatpush1.msra.mxu0 %v2812
  %2852 = vmatprep.subr.mxu0 0.0
  %2853 = vmatpush2.msra.mxu0 0.0
  %2854 = vmatprep.subr.mxu0 0.0
  %2855 = vmatpush2.msra.mxu0 0.0
  %2856 = vmatprep.subr.mxu0 0.0
  %2857 = vmatpush2.msra.mxu0 0.0
  %2858 = vmatprep.subr.mxu0 0.0
  %2859 = vmatpush2.msra.mxu0 0.0
  %2860 = vmatprep.subr.mxu0 0.0
  %2861 = vmatpush2.msra.mxu0 0.0
  %2862 = vmatprep.subr.mxu0 0.0
  %2863 = vmatpush2.msra.mxu0 0.0
  %2864 = vmatprep.subr.mxu0 0.0
  %2865 = vmatpush2.msra.mxu0 0.0
  %2866 = vmatprep.subr.mxu0 0.0
  %2867 = vmatpush2.msra.mxu0 0.0
  %2868 = vmatprep.subr.mxu0 0.0
  %2869 = vmatpush2.msra.mxu0 0.0
  %2870 = vmatprep.subr.mxu0 0.0
  %2871 = vmatpush2.msra.mxu0 0.0
  %2872 = vmatprep.subr.mxu0 0.0
  %2873 = vmatpush2.msra.mxu0 0.0
  %2874 = vmatprep.subr.mxu0 0.0
  %2875 = vmatpush2.msra.mxu0 0.0
  %2876 = vmatprep.subr.mxu0 0.0
  %2877 = vmatpush2.msra.mxu0 0.0
  %2878 = vmatprep.subr.mxu0 0.0
  %2879 = vmatpush2.msra.mxu0 0.0
  %2880 = vmatprep.subr.mxu0 0.0
  %2881 = vmatpush2.msra.mxu0 0.0
  %2882 = vmatprep.subr.mxu0 0.0
  %2883 = vmatpush2.msra.mxu0 0.0
  %2884 = vmatprep.mubr.f32.mxu0 0.0
  %2885 = vmatmul.mubr.f32.gmra.mxu0 %v2818
  %v2886 = vpop.f32.mrf.mxu0
  %v2887 = vadd.f32 0.0, %v2886
  %v2888 = vpop.f32.mrf.mxu0
  %2889 = vdwg.mxu0
  %2890 = vrot.lane.b32.xlu0 %v849, 32
  %v2891 = vpop.permute.xlu0 %2890
  %2892 = vrot.lane.b32.xlu0 %v850, 32
  %v2893 = vpop.permute.xlu0 %2892
  %v2897 = vsel %vm149, %v2796, 0
  %2899 = vmatprep.subr.mxu0 0.0
  %2900 = vmatpush1.msra.mxu0 0.0
  %2901 = vmatprep.subr.mxu0 0.0
  %2902 = vmatpush1.msra.mxu0 0.0
  %2903 = vmatprep.subr.mxu0 0.0
  %2904 = vmatpush1.msra.mxu0 0.0
  %2905 = vmatprep.subr.mxu0 0.0
  %2906 = vmatpush1.msra.mxu0 0.0
  %2907 = vmatprep.subr.mxu0 0.0
  %2908 = vmatpush1.msra.mxu0 0.0
  %2909 = vmatprep.subr.mxu0 0.0
  %2910 = vmatpush1.msra.mxu0 0.0
  %2911 = vmatprep.subr.mxu0 0.0
  %2912 = vmatpush1.msra.mxu0 0.0
  %2913 = vmatprep.subr.mxu0 0.0
  %2914 = vmatpush1.msra.mxu0 0.0
  %2915 = vmatprep.subr.mxu0 0.0
  %2916 = vmatpush1.msra.mxu0 0.0
  %2917 = vmatprep.subr.mxu0 0.0
  %2918 = vmatpush1.msra.mxu0 0.0
  %2919 = vmatprep.subr.mxu0 0.0
  %2920 = vmatpush1.msra.mxu0 0.0
  %2921 = vmatprep.subr.mxu0 0.0
  %2922 = vmatpush1.msra.mxu0 0.0
  %2923 = vmatprep.subr.mxu0 0.0
  %2924 = vmatpush1.msra.mxu0 0.0
  %2925 = vmatprep.subr.mxu0 0.0
  %2926 = vmatpush1.msra.mxu0 0.0
  %2927 = vmatprep.subr.mxu0 0.0
  %2928 = vmatpush1.msra.mxu0 %v2893
  %2929 = vmatprep.subr.mxu0 0.0
  %2930 = vmatpush1.msra.mxu0 %v2891
  %2931 = vmatprep.subr.mxu0 0.0
  %2932 = vmatpush2.msra.mxu0 0.0
  %2933 = vmatprep.subr.mxu0 0.0
  %2934 = vmatpush2.msra.mxu0 0.0
  %2935 = vmatprep.subr.mxu0 0.0
  %2936 = vmatpush2.msra.mxu0 0.0
  %2937 = vmatprep.subr.mxu0 0.0
  %2938 = vmatpush2.msra.mxu0 0.0
  %2939 = vmatprep.subr.mxu0 0.0
  %2940 = vmatpush2.msra.mxu0 0.0
  %2941 = vmatprep.subr.mxu0 0.0
  %2942 = vmatpush2.msra.mxu0 0.0
  %2943 = vmatprep.subr.mxu0 0.0
  %2944 = vmatpush2.msra.mxu0 0.0
  %2945 = vmatprep.subr.mxu0 0.0
  %2946 = vmatpush2.msra.mxu0 0.0
  %2947 = vmatprep.subr.mxu0 0.0
  %2948 = vmatpush2.msra.mxu0 0.0
  %2949 = vmatprep.subr.mxu0 0.0
  %2950 = vmatpush2.msra.mxu0 0.0
  %2951 = vmatprep.subr.mxu0 0.0
  %2952 = vmatpush2.msra.mxu0 0.0
  %2953 = vmatprep.subr.mxu0 0.0
  %2954 = vmatpush2.msra.mxu0 0.0
  %2955 = vmatprep.subr.mxu0 0.0
  %2956 = vmatpush2.msra.mxu0 0.0
  %2957 = vmatprep.subr.mxu0 0.0
  %2958 = vmatpush2.msra.mxu0 0.0
  %2959 = vmatprep.subr.mxu0 0.0
  %2960 = vmatpush2.msra.mxu0 0.0
  %2961 = vmatprep.subr.mxu0 0.0
  %2962 = vmatpush2.msra.mxu0 0.0
  %2963 = vmatprep.mubr.f32.mxu0 0.0
  %2964 = vmatmul.mubr.f32.gmra.mxu0 %v2897
  %v2965 = vpop.f32.mrf.mxu0
  %v2966 = vadd.f32 0.0, %v2965
  %v2967 = vpop.f32.mrf.mxu0
  %2968 = vdwg.mxu0
  %2969 = vrot.lane.b32.xlu0 %v851, 32
  %v2970 = vpop.permute.xlu0 %2969
  %2971 = vrot.lane.b32.xlu0 %v852, 32
  %v2972 = vpop.permute.xlu0 %2971
  %v2976 = vsel %vm149, %v2797, 0
  %2978 = vmatprep.subr.mxu0 0.0
  %2979 = vmatpush1.msra.mxu0 0.0
  %2980 = vmatprep.subr.mxu0 0.0
  %2981 = vmatpush1.msra.mxu0 0.0
  %2982 = vmatprep.subr.mxu0 0.0
  %2983 = vmatpush1.msra.mxu0 0.0
  %2984 = vmatprep.subr.mxu0 0.0
  %2985 = vmatpush1.msra.mxu0 0.0
  %2986 = vmatprep.subr.mxu0 0.0
  %2987 = vmatpush1.msra.mxu0 0.0
  %2988 = vmatprep.subr.mxu0 0.0
  %2989 = vmatpush1.msra.mxu0 0.0
  %2990 = vmatprep.subr.mxu0 0.0
  %2991 = vmatpush1.msra.mxu0 0.0
  %2992 = vmatprep.subr.mxu0 0.0
  %2993 = vmatpush1.msra.mxu0 0.0
  %2994 = vmatprep.subr.mxu0 0.0
  %2995 = vmatpush1.msra.mxu0 0.0
  %2996 = vmatprep.subr.mxu0 0.0
  %2997 = vmatpush1.msra.mxu0 0.0
  %2998 = vmatprep.subr.mxu0 0.0
  %2999 = vmatpush1.msra.mxu0 0.0
  %3000 = vmatprep.subr.mxu0 0.0
  %3001 = vmatpush1.msra.mxu0 0.0
  %3002 = vmatprep.subr.mxu0 0.0
  %3003 = vmatpush1.msra.mxu0 0.0
  %3004 = vmatprep.subr.mxu0 0.0
  %3005 = vmatpush1.msra.mxu0 0.0
  %3006 = vmatprep.subr.mxu0 0.0
  %3007 = vmatpush1.msra.mxu0 %v2972
  %3008 = vmatprep.subr.mxu0 0.0
  %3009 = vmatpush1.msra.mxu0 %v2970
  %3010 = vmatprep.subr.mxu0 0.0
  %3011 = vmatpush2.msra.mxu0 0.0
  %3012 = vmatprep.subr.mxu0 0.0
  %3013 = vmatpush2.msra.mxu0 0.0
  %3014 = vmatprep.subr.mxu0 0.0
  %3015 = vmatpush2.msra.mxu0 0.0
  %3016 = vmatprep.subr.mxu0 0.0
  %3017 = vmatpush2.msra.mxu0 0.0
  %3018 = vmatprep.subr.mxu0 0.0
  %3019 = vmatpush2.msra.mxu0 0.0
  %3020 = vmatprep.subr.mxu0 0.0
  %3021 = vmatpush2.msra.mxu0 0.0
  %3022 = vmatprep.subr.mxu0 0.0
  %3023 = vmatpush2.msra.mxu0 0.0
  %3024 = vmatprep.subr.mxu0 0.0
  %3025 = vmatpush2.msra.mxu0 0.0
  %3026 = vmatprep.subr.mxu0 0.0
  %3027 = vmatpush2.msra.mxu0 0.0
  %3028 = vmatprep.subr.mxu0 0.0
  %3029 = vmatpush2.msra.mxu0 0.0
  %3030 = vmatprep.subr.mxu0 0.0
  %3031 = vmatpush2.msra.mxu0 0.0
  %3032 = vmatprep.subr.mxu0 0.0
  %3033 = vmatpush2.msra.mxu0 0.0
  %3034 = vmatprep.subr.mxu0 0.0
  %3035 = vmatpush2.msra.mxu0 0.0
  %3036 = vmatprep.subr.mxu0 0.0
  %3037 = vmatpush2.msra.mxu0 0.0
  %3038 = vmatprep.subr.mxu0 0.0
  %3039 = vmatpush2.msra.mxu0 0.0
  %3040 = vmatprep.subr.mxu0 0.0
  %3041 = vmatpush2.msra.mxu0 0.0
  %3042 = vmatprep.mubr.f32.mxu0 0.0
  %3043 = vmatmul.mubr.f32.gmra.mxu0 %v2976
  %v3044 = vpop.f32.mrf.mxu0
  %v3045 = vadd.f32 0.0, %v3044
  %v3046 = vpop.f32.mrf.mxu0
  %3047 = vdwg.mxu0
  %3048 = vrot.lane.b32.xlu0 %v853, 32
  %v3049 = vpop.permute.xlu0 %3048
  %3050 = vrot.lane.b32.xlu0 %v854, 32
  %v3051 = vpop.permute.xlu0 %3050
  %v3055 = vsel %vm149, %v2798, 0
  %3057 = vmatprep.subr.mxu0 0.0
  %3058 = vmatpush1.msra.mxu0 0.0
  %3059 = vmatprep.subr.mxu0 0.0
  %3060 = vmatpush1.msra.mxu0 0.0
  %3061 = vmatprep.subr.mxu0 0.0
  %3062 = vmatpush1.msra.mxu0 0.0
  %3063 = vmatprep.subr.mxu0 0.0
  %3064 = vmatpush1.msra.mxu0 0.0
  %3065 = vmatprep.subr.mxu0 0.0
  %3066 = vmatpush1.msra.mxu0 0.0
  %3067 = vmatprep.subr.mxu0 0.0
  %3068 = vmatpush1.msra.mxu0 0.0
  %3069 = vmatprep.subr.mxu0 0.0
  %3070 = vmatpush1.msra.mxu0 0.0
  %3071 = vmatprep.subr.mxu0 0.0
  %3072 = vmatpush1.msra.mxu0 0.0
  %3073 = vmatprep.subr.mxu0 0.0
  %3074 = vmatpush1.msra.mxu0 0.0
  %3075 = vmatprep.subr.mxu0 0.0
  %3076 = vmatpush1.msra.mxu0 0.0
  %3077 = vmatprep.subr.mxu0 0.0
  %3078 = vmatpush1.msra.mxu0 0.0
  %3079 = vmatprep.subr.mxu0 0.0
  %3080 = vmatpush1.msra.mxu0 0.0
  %3081 = vmatprep.subr.mxu0 0.0
  %3082 = vmatpush1.msra.mxu0 0.0
  %3083 = vmatprep.subr.mxu0 0.0
  %3084 = vmatpush1.msra.mxu0 0.0
  %3085 = vmatprep.subr.mxu0 0.0
  %3086 = vmatpush1.msra.mxu0 %v3051
  %3087 = vmatprep.subr.mxu0 0.0
  %3088 = vmatpush1.msra.mxu0 %v3049
  %3089 = vmatprep.subr.mxu0 0.0
  %3090 = vmatpush2.msra.mxu0 0.0
  %3091 = vmatprep.subr.mxu0 0.0
  %3092 = vmatpush2.msra.mxu0 0.0
  %3093 = vmatprep.subr.mxu0 0.0
  %3094 = vmatpush2.msra.mxu0 0.0
  %3095 = vmatprep.subr.mxu0 0.0
  %3096 = vmatpush2.msra.mxu0 0.0
  %3097 = vmatprep.subr.mxu0 0.0
  %3098 = vmatpush2.msra.mxu0 0.0
  %3099 = vmatprep.subr.mxu0 0.0
  %3100 = vmatpush2.msra.mxu0 0.0
  %3101 = vmatprep.subr.mxu0 0.0
  %3102 = vmatpush2.msra.mxu0 0.0
  %3103 = vmatprep.subr.mxu0 0.0
  %3104 = vmatpush2.msra.mxu0 0.0
  %3105 = vmatprep.subr.mxu0 0.0
  %3106 = vmatpush2.msra.mxu0 0.0
  %3107 = vmatprep.subr.mxu0 0.0
  %3108 = vmatpush2.msra.mxu0 0.0
  %3109 = vmatprep.subr.mxu0 0.0
  %3110 = vmatpush2.msra.mxu0 0.0
  %3111 = vmatprep.subr.mxu0 0.0
  %3112 = vmatpush2.msra.mxu0 0.0
  %3113 = vmatprep.subr.mxu0 0.0
  %3114 = vmatpush2.msra.mxu0 0.0
  %3115 = vmatprep.subr.mxu0 0.0
  %3116 = vmatpush2.msra.mxu0 0.0
  %3117 = vmatprep.subr.mxu0 0.0
  %3118 = vmatpush2.msra.mxu0 0.0
  %3119 = vmatprep.subr.mxu0 0.0
  %3120 = vmatpush2.msra.mxu0 0.0
  %3121 = vmatprep.mubr.f32.mxu0 0.0
  %3122 = vmatmul.mubr.f32.gmra.mxu0 %v3055
  %v3123 = vpop.f32.mrf.mxu0
  %v3124 = vadd.f32 0.0, %v3123
  %v3125 = vpop.f32.mrf.mxu0
  %3126 = vdwg.mxu0
  %3127 = vrot.lane.b32.xlu0 %v855, 32
  %v3128 = vpop.permute.xlu0 %3127
  %3129 = vrot.lane.b32.xlu0 %v856, 32
  %v3130 = vpop.permute.xlu0 %3129
  %v3134 = vsel %vm149, %v2799, 0
  %3136 = vmatprep.subr.mxu0 0.0
  %3137 = vmatpush1.msra.mxu0 0.0
  %3138 = vmatprep.subr.mxu0 0.0
  %3139 = vmatpush1.msra.mxu0 0.0
  %3140 = vmatprep.subr.mxu0 0.0
  %3141 = vmatpush1.msra.mxu0 0.0
  %3142 = vmatprep.subr.mxu0 0.0
  %3143 = vmatpush1.msra.mxu0 0.0
  %3144 = vmatprep.subr.mxu0 0.0
  %3145 = vmatpush1.msra.mxu0 0.0
  %3146 = vmatprep.subr.mxu0 0.0
  %3147 = vmatpush1.msra.mxu0 0.0
  %3148 = vmatprep.subr.mxu0 0.0
  %3149 = vmatpush1.msra.mxu0 0.0
  %3150 = vmatprep.subr.mxu0 0.0
  %3151 = vmatpush1.msra.mxu0 0.0
  %3152 = vmatprep.subr.mxu0 0.0
  %3153 = vmatpush1.msra.mxu0 0.0
  %3154 = vmatprep.subr.mxu0 0.0
  %3155 = vmatpush1.msra.mxu0 0.0
  %3156 = vmatprep.subr.mxu0 0.0
  %3157 = vmatpush1.msra.mxu0 0.0
  %3158 = vmatprep.subr.mxu0 0.0
  %3159 = vmatpush1.msra.mxu0 0.0
  %3160 = vmatprep.subr.mxu0 0.0
  %3161 = vmatpush1.msra.mxu0 0.0
  %3162 = vmatprep.subr.mxu0 0.0
  %3163 = vmatpush1.msra.mxu0 0.0
  %3164 = vmatprep.subr.mxu0 0.0
  %3165 = vmatpush1.msra.mxu0 %v3130
  %3166 = vmatprep.subr.mxu0 0.0
  %3167 = vmatpush1.msra.mxu0 %v3128
  %3168 = vmatprep.subr.mxu0 0.0
  %3169 = vmatpush2.msra.mxu0 0.0
  %3170 = vmatprep.subr.mxu0 0.0
  %3171 = vmatpush2.msra.mxu0 0.0
  %3172 = vmatprep.subr.mxu0 0.0
  %3173 = vmatpush2.msra.mxu0 0.0
  %3174 = vmatprep.subr.mxu0 0.0
  %3175 = vmatpush2.msra.mxu0 0.0
  %3176 = vmatprep.subr.mxu0 0.0
  %3177 = vmatpush2.msra.mxu0 0.0
  %3178 = vmatprep.subr.mxu0 0.0
  %3179 = vmatpush2.msra.mxu0 0.0
  %3180 = vmatprep.subr.mxu0 0.0
  %3181 = vmatpush2.msra.mxu0 0.0
  %3182 = vmatprep.subr.mxu0 0.0
  %3183 = vmatpush2.msra.mxu0 0.0
  %3184 = vmatprep.subr.mxu0 0.0
  %3185 = vmatpush2.msra.mxu0 0.0
  %3186 = vmatprep.subr.mxu0 0.0
  %3187 = vmatpush2.msra.mxu0 0.0
  %3188 = vmatprep.subr.mxu0 0.0
  %3189 = vmatpush2.msra.mxu0 0.0
  %3190 = vmatprep.subr.mxu0 0.0
  %3191 = vmatpush2.msra.mxu0 0.0
  %3192 = vmatprep.subr.mxu0 0.0
  %3193 = vmatpush2.msra.mxu0 0.0
  %3194 = vmatprep.subr.mxu0 0.0
  %3195 = vmatpush2.msra.mxu0 0.0
  %3196 = vmatprep.subr.mxu0 0.0
  %3197 = vmatpush2.msra.mxu0 0.0
  %3198 = vmatprep.subr.mxu0 0.0
  %3199 = vmatpush2.msra.mxu0 0.0
  %3200 = vmatprep.mubr.f32.mxu0 0.0
  %3201 = vmatmul.mubr.f32.gmra.mxu0 %v3134
  %v3202 = vpop.f32.mrf.mxu0
  %v3203 = vadd.f32 0.0, %v3202
  %v3204 = vpop.f32.mrf.mxu0
  %3205 = vdwg.mxu0
  %3206 = vrot.lane.b32.xlu0 %v857, 32
  %v3207 = vpop.permute.xlu0 %3206
  %3208 = vrot.lane.b32.xlu0 %v858, 32
  %v3209 = vpop.permute.xlu0 %3208
  %v3213 = vsel %vm149, %v2800, 0
  %3215 = vmatprep.subr.mxu0 0.0
  %3216 = vmatpush1.msra.mxu0 0.0
  %3217 = vmatprep.subr.mxu0 0.0
  %3218 = vmatpush1.msra.mxu0 0.0
  %3219 = vmatprep.subr.mxu0 0.0
  %3220 = vmatpush1.msra.mxu0 0.0
  %3221 = vmatprep.subr.mxu0 0.0
  %3222 = vmatpush1.msra.mxu0 0.0
  %3223 = vmatprep.subr.mxu0 0.0
  %3224 = vmatpush1.msra.mxu0 0.0
  %3225 = vmatprep.subr.mxu0 0.0
  %3226 = vmatpush1.msra.mxu0 0.0
  %3227 = vmatprep.subr.mxu0 0.0
  %3228 = vmatpush1.msra.mxu0 0.0
  %3229 = vmatprep.subr.mxu0 0.0
  %3230 = vmatpush1.msra.mxu0 0.0
  %3231 = vmatprep.subr.mxu0 0.0
  %3232 = vmatpush1.msra.mxu0 0.0
  %3233 = vmatprep.subr.mxu0 0.0
  %3234 = vmatpush1.msra.mxu0 0.0
  %3235 = vmatprep.subr.mxu0 0.0
  %3236 = vmatpush1.msra.mxu0 0.0
  %3237 = vmatprep.subr.mxu0 0.0
  %3238 = vmatpush1.msra.mxu0 0.0
  %3239 = vmatprep.subr.mxu0 0.0
  %3240 = vmatpush1.msra.mxu0 0.0
  %3241 = vmatprep.subr.mxu0 0.0
  %3242 = vmatpush1.msra.mxu0 0.0
  %3243 = vmatprep.subr.mxu0 0.0
  %3244 = vmatpush1.msra.mxu0 %v3209
  %3245 = vmatprep.subr.mxu0 0.0
  %3246 = vmatpush1.msra.mxu0 %v3207
  %3247 = vmatprep.subr.mxu0 0.0
  %3248 = vmatpush2.msra.mxu0 0.0
  %3249 = vmatprep.subr.mxu0 0.0
  %3250 = vmatpush2.msra.mxu0 0.0
  %3251 = vmatprep.subr.mxu0 0.0
  %3252 = vmatpush2.msra.mxu0 0.0
  %3253 = vmatprep.subr.mxu0 0.0
  %3254 = vmatpush2.msra.mxu0 0.0
  %3255 = vmatprep.subr.mxu0 0.0
  %3256 = vmatpush2.msra.mxu0 0.0
  %3257 = vmatprep.subr.mxu0 0.0
  %3258 = vmatpush2.msra.mxu0 0.0
  %3259 = vmatprep.subr.mxu0 0.0
  %3260 = vmatpush2.msra.mxu0 0.0
  %3261 = vmatprep.subr.mxu0 0.0
  %3262 = vmatpush2.msra.mxu0 0.0
  %3263 = vmatprep.subr.mxu0 0.0
  %3264 = vmatpush2.msra.mxu0 0.0
  %3265 = vmatprep.subr.mxu0 0.0
  %3266 = vmatpush2.msra.mxu0 0.0
  %3267 = vmatprep.subr.mxu0 0.0
  %3268 = vmatpush2.msra.mxu0 0.0
  %3269 = vmatprep.subr.mxu0 0.0
  %3270 = vmatpush2.msra.mxu0 0.0
  %3271 = vmatprep.subr.mxu0 0.0
  %3272 = vmatpush2.msra.mxu0 0.0
  %3273 = vmatprep.subr.mxu0 0.0
  %3274 = vmatpush2.msra.mxu0 0.0
  %3275 = vmatprep.subr.mxu0 0.0
  %3276 = vmatpush2.msra.mxu0 0.0
  %3277 = vmatprep.subr.mxu0 0.0
  %3278 = vmatpush2.msra.mxu0 0.0
  %3279 = vmatprep.mubr.f32.mxu0 0.0
  %3280 = vmatmul.mubr.f32.gmra.mxu0 %v3213
  %v3281 = vpop.f32.mrf.mxu0
  %v3282 = vadd.f32 0.0, %v3281
  %v3283 = vpop.f32.mrf.mxu0
  %3284 = vdwg.mxu0
  %3285 = vrot.lane.b32.xlu0 %v859, 32
  %v3286 = vpop.permute.xlu0 %3285
  %3287 = vrot.lane.b32.xlu0 %v860, 32
  %v3288 = vpop.permute.xlu0 %3287
  %v3292 = vsel %vm149, %v2801, 0
  %3294 = vmatprep.subr.mxu0 0.0
  %3295 = vmatpush1.msra.mxu0 0.0
  %3296 = vmatprep.subr.mxu0 0.0
  %3297 = vmatpush1.msra.mxu0 0.0
  %3298 = vmatprep.subr.mxu0 0.0
  %3299 = vmatpush1.msra.mxu0 0.0
  %3300 = vmatprep.subr.mxu0 0.0
  %3301 = vmatpush1.msra.mxu0 0.0
  %3302 = vmatprep.subr.mxu0 0.0
  %3303 = vmatpush1.msra.mxu0 0.0
  %3304 = vmatprep.subr.mxu0 0.0
  %3305 = vmatpush1.msra.mxu0 0.0
  %3306 = vmatprep.subr.mxu0 0.0
  %3307 = vmatpush1.msra.mxu0 0.0
  %3308 = vmatprep.subr.mxu0 0.0
  %3309 = vmatpush1.msra.mxu0 0.0
  %3310 = vmatprep.subr.mxu0 0.0
  %3311 = vmatpush1.msra.mxu0 0.0
  %3312 = vmatprep.subr.mxu0 0.0
  %3313 = vmatpush1.msra.mxu0 0.0
  %3314 = vmatprep.subr.mxu0 0.0
  %3315 = vmatpush1.msra.mxu0 0.0
  %3316 = vmatprep.subr.mxu0 0.0
  %3317 = vmatpush1.msra.mxu0 0.0
  %3318 = vmatprep.subr.mxu0 0.0
  %3319 = vmatpush1.msra.mxu0 0.0
  %3320 = vmatprep.subr.mxu0 0.0
  %3321 = vmatpush1.msra.mxu0 0.0
  %3322 = vmatprep.subr.mxu0 0.0
  %3323 = vmatpush1.msra.mxu0 %v3288
  %3324 = vmatprep.subr.mxu0 0.0
  %3325 = vmatpush1.msra.mxu0 %v3286
  %3326 = vmatprep.subr.mxu0 0.0
  %3327 = vmatpush2.msra.mxu0 0.0
  %3328 = vmatprep.subr.mxu0 0.0
  %3329 = vmatpush2.msra.mxu0 0.0
  %3330 = vmatprep.subr.mxu0 0.0
  %3331 = vmatpush2.msra.mxu0 0.0
  %3332 = vmatprep.subr.mxu0 0.0
  %3333 = vmatpush2.msra.mxu0 0.0
  %3334 = vmatprep.subr.mxu0 0.0
  %3335 = vmatpush2.msra.mxu0 0.0
  %3336 = vmatprep.subr.mxu0 0.0
  %3337 = vmatpush2.msra.mxu0 0.0
  %3338 = vmatprep.subr.mxu0 0.0
  %3339 = vmatpush2.msra.mxu0 0.0
  %3340 = vmatprep.subr.mxu0 0.0
  %3341 = vmatpush2.msra.mxu0 0.0
  %3342 = vmatprep.subr.mxu0 0.0
  %3343 = vmatpush2.msra.mxu0 0.0
  %3344 = vmatprep.subr.mxu0 0.0
  %3345 = vmatpush2.msra.mxu0 0.0
  %3346 = vmatprep.subr.mxu0 0.0
  %3347 = vmatpush2.msra.mxu0 0.0
  %3348 = vmatprep.subr.mxu0 0.0
  %3349 = vmatpush2.msra.mxu0 0.0
  %3350 = vmatprep.subr.mxu0 0.0
  %3351 = vmatpush2.msra.mxu0 0.0
  %3352 = vmatprep.subr.mxu0 0.0
  %3353 = vmatpush2.msra.mxu0 0.0
  %3354 = vmatprep.subr.mxu0 0.0
  %3355 = vmatpush2.msra.mxu0 0.0
  %3356 = vmatprep.subr.mxu0 0.0
  %3357 = vmatpush2.msra.mxu0 0.0
  %3358 = vmatprep.mubr.f32.mxu0 0.0
  %3359 = vmatmul.mubr.f32.gmra.mxu0 %v3292
  %v3360 = vpop.f32.mrf.mxu0
  %v3361 = vadd.f32 0.0, %v3360
  %v3362 = vpop.f32.mrf.mxu0
  %3363 = vdwg.mxu0
  %3364 = vrot.lane.b32.xlu0 %v861, 32
  %v3365 = vpop.permute.xlu0 %3364
  %3366 = vrot.lane.b32.xlu0 %v862, 32
  %v3367 = vpop.permute.xlu0 %3366
  %v3371 = vsel %vm149, %v2802, 0
  %3373 = vmatprep.subr.mxu0 0.0
  %3374 = vmatpush1.msra.mxu0 0.0
  %3375 = vmatprep.subr.mxu0 0.0
  %3376 = vmatpush1.msra.mxu0 0.0
  %3377 = vmatprep.subr.mxu0 0.0
  %3378 = vmatpush1.msra.mxu0 0.0
  %3379 = vmatprep.subr.mxu0 0.0
  %3380 = vmatpush1.msra.mxu0 0.0
  %3381 = vmatprep.subr.mxu0 0.0
  %3382 = vmatpush1.msra.mxu0 0.0
  %3383 = vmatprep.subr.mxu0 0.0
  %3384 = vmatpush1.msra.mxu0 0.0
  %3385 = vmatprep.subr.mxu0 0.0
  %3386 = vmatpush1.msra.mxu0 0.0
  %3387 = vmatprep.subr.mxu0 0.0
  %3388 = vmatpush1.msra.mxu0 0.0
  %3389 = vmatprep.subr.mxu0 0.0
  %3390 = vmatpush1.msra.mxu0 0.0
  %3391 = vmatprep.subr.mxu0 0.0
  %3392 = vmatpush1.msra.mxu0 0.0
  %3393 = vmatprep.subr.mxu0 0.0
  %3394 = vmatpush1.msra.mxu0 0.0
  %3395 = vmatprep.subr.mxu0 0.0
  %3396 = vmatpush1.msra.mxu0 0.0
  %3397 = vmatprep.subr.mxu0 0.0
  %3398 = vmatpush1.msra.mxu0 0.0
  %3399 = vmatprep.subr.mxu0 0.0
  %3400 = vmatpush1.msra.mxu0 0.0
  %3401 = vmatprep.subr.mxu0 0.0
  %3402 = vmatpush1.msra.mxu0 %v3367
  %3403 = vmatprep.subr.mxu0 0.0
  %3404 = vmatpush1.msra.mxu0 %v3365
  %3405 = vmatprep.subr.mxu0 0.0
  %3406 = vmatpush2.msra.mxu0 0.0
  %3407 = vmatprep.subr.mxu0 0.0
  %3408 = vmatpush2.msra.mxu0 0.0
  %3409 = vmatprep.subr.mxu0 0.0
  %3410 = vmatpush2.msra.mxu0 0.0
  %3411 = vmatprep.subr.mxu0 0.0
  %3412 = vmatpush2.msra.mxu0 0.0
  %3413 = vmatprep.subr.mxu0 0.0
  %3414 = vmatpush2.msra.mxu0 0.0
  %3415 = vmatprep.subr.mxu0 0.0
  %3416 = vmatpush2.msra.mxu0 0.0
  %3417 = vmatprep.subr.mxu0 0.0
  %3418 = vmatpush2.msra.mxu0 0.0
  %3419 = vmatprep.subr.mxu0 0.0
  %3420 = vmatpush2.msra.mxu0 0.0
  %3421 = vmatprep.subr.mxu0 0.0
  %3422 = vmatpush2.msra.mxu0 0.0
  %3423 = vmatprep.subr.mxu0 0.0
  %3424 = vmatpush2.msra.mxu0 0.0
  %3425 = vmatprep.subr.mxu0 0.0
  %3426 = vmatpush2.msra.mxu0 0.0
  %3427 = vmatprep.subr.mxu0 0.0
  %3428 = vmatpush2.msra.mxu0 0.0
  %3429 = vmatprep.subr.mxu0 0.0
  %3430 = vmatpush2.msra.mxu0 0.0
  %3431 = vmatprep.subr.mxu0 0.0
  %3432 = vmatpush2.msra.mxu0 0.0
  %3433 = vmatprep.subr.mxu0 0.0
  %3434 = vmatpush2.msra.mxu0 0.0
  %3435 = vmatprep.subr.mxu0 0.0
  %3436 = vmatpush2.msra.mxu0 0.0
  %3437 = vmatprep.mubr.f32.mxu0 0.0
  %3438 = vmatmul.mubr.f32.gmra.mxu0 %v3371
  %v3439 = vpop.f32.mrf.mxu0
  %v3440 = vadd.f32 0.0, %v3439
  %v3441 = vpop.f32.mrf.mxu0
  %3442 = vdwg.mxu0
  %3443 = vrot.lane.b32.xlu0 %v863, 32
  %v3444 = vpop.permute.xlu0 %3443
  %3445 = vrot.lane.b32.xlu0 %v864, 32
  %v3446 = vpop.permute.xlu0 %3445
  %v3450 = vsel %vm149, %v2803, 0
  %3452 = vmatprep.subr.mxu0 0.0
  %3453 = vmatpush1.msra.mxu0 0.0
  %3454 = vmatprep.subr.mxu0 0.0
  %3455 = vmatpush1.msra.mxu0 0.0
  %3456 = vmatprep.subr.mxu0 0.0
  %3457 = vmatpush1.msra.mxu0 0.0
  %3458 = vmatprep.subr.mxu0 0.0
  %3459 = vmatpush1.msra.mxu0 0.0
  %3460 = vmatprep.subr.mxu0 0.0
  %3461 = vmatpush1.msra.mxu0 0.0
  %3462 = vmatprep.subr.mxu0 0.0
  %3463 = vmatpush1.msra.mxu0 0.0
  %3464 = vmatprep.subr.mxu0 0.0
  %3465 = vmatpush1.msra.mxu0 0.0
  %3466 = vmatprep.subr.mxu0 0.0
  %3467 = vmatpush1.msra.mxu0 0.0
  %3468 = vmatprep.subr.mxu0 0.0
  %3469 = vmatpush1.msra.mxu0 0.0
  %3470 = vmatprep.subr.mxu0 0.0
  %3471 = vmatpush1.msra.mxu0 0.0
  %3472 = vmatprep.subr.mxu0 0.0
  %3473 = vmatpush1.msra.mxu0 0.0
  %3474 = vmatprep.subr.mxu0 0.0
  %3475 = vmatpush1.msra.mxu0 0.0
  %3476 = vmatprep.subr.mxu0 0.0
  %3477 = vmatpush1.msra.mxu0 0.0
  %3478 = vmatprep.subr.mxu0 0.0
  %3479 = vmatpush1.msra.mxu0 0.0
  %3480 = vmatprep.subr.mxu0 0.0
  %3481 = vmatpush1.msra.mxu0 %v3446
  %3482 = vmatprep.subr.mxu0 0.0
  %3483 = vmatpush1.msra.mxu0 %v3444
  %3484 = vmatprep.subr.mxu0 0.0
  %3485 = vmatpush2.msra.mxu0 0.0
  %3486 = vmatprep.subr.mxu0 0.0
  %3487 = vmatpush2.msra.mxu0 0.0
  %3488 = vmatprep.subr.mxu0 0.0
  %3489 = vmatpush2.msra.mxu0 0.0
  %3490 = vmatprep.subr.mxu0 0.0
  %3491 = vmatpush2.msra.mxu0 0.0
  %3492 = vmatprep.subr.mxu0 0.0
  %3493 = vmatpush2.msra.mxu0 0.0
  %3494 = vmatprep.subr.mxu0 0.0
  %3495 = vmatpush2.msra.mxu0 0.0
  %3496 = vmatprep.subr.mxu0 0.0
  %3497 = vmatpush2.msra.mxu0 0.0
  %3498 = vmatprep.subr.mxu0 0.0
  %3499 = vmatpush2.msra.mxu0 0.0
  %3500 = vmatprep.subr.mxu0 0.0
  %3501 = vmatpush2.msra.mxu0 0.0
  %3502 = vmatprep.subr.mxu0 0.0
  %3503 = vmatpush2.msra.mxu0 0.0
  %3504 = vmatprep.subr.mxu0 0.0
  %3505 = vmatpush2.msra.mxu0 0.0
  %3506 = vmatprep.subr.mxu0 0.0
  %3507 = vmatpush2.msra.mxu0 0.0
  %3508 = vmatprep.subr.mxu0 0.0
  %3509 = vmatpush2.msra.mxu0 0.0
  %3510 = vmatprep.subr.mxu0 0.0
  %3511 = vmatpush2.msra.mxu0 0.0
  %3512 = vmatprep.subr.mxu0 0.0
  %3513 = vmatpush2.msra.mxu0 0.0
  %3514 = vmatprep.subr.mxu0 0.0
  %3515 = vmatpush2.msra.mxu0 0.0
  %3516 = vmatprep.mubr.f32.mxu0 0.0
  %3517 = vmatmul.mubr.f32.gmra.mxu0 %v3450
  %v3518 = vpop.f32.mrf.mxu0
  %v3519 = vadd.f32 0.0, %v3518
  %v3520 = vpop.f32.mrf.mxu0
  %3521 = vdwg.mxu0
  %3522 = vrot.lane.b32.xlu0 %v865, 32
  %v3523 = vpop.permute.xlu0 %3522
  %3524 = vrot.lane.b32.xlu0 %v866, 32
  %v3525 = vpop.permute.xlu0 %3524
  %v3529 = vsel %vm149, %v2804, 0
  %3531 = vmatprep.subr.mxu0 0.0
  %3532 = vmatpush1.msra.mxu0 0.0
  %3533 = vmatprep.subr.mxu0 0.0
  %3534 = vmatpush1.msra.mxu0 0.0
  %3535 = vmatprep.subr.mxu0 0.0
  %3536 = vmatpush1.msra.mxu0 0.0
  %3537 = vmatprep.subr.mxu0 0.0
  %3538 = vmatpush1.msra.mxu0 0.0
  %3539 = vmatprep.subr.mxu0 0.0
  %3540 = vmatpush1.msra.mxu0 0.0
  %3541 = vmatprep.subr.mxu0 0.0
  %3542 = vmatpush1.msra.mxu0 0.0
  %3543 = vmatprep.subr.mxu0 0.0
  %3544 = vmatpush1.msra.mxu0 0.0
  %3545 = vmatprep.subr.mxu0 0.0
  %3546 = vmatpush1.msra.mxu0 0.0
  %3547 = vmatprep.subr.mxu0 0.0
  %3548 = vmatpush1.msra.mxu0 0.0
  %3549 = vmatprep.subr.mxu0 0.0
  %3550 = vmatpush1.msra.mxu0 0.0
  %3551 = vmatprep.subr.mxu0 0.0
  %3552 = vmatpush1.msra.mxu0 0.0
  %3553 = vmatprep.subr.mxu0 0.0
  %3554 = vmatpush1.msra.mxu0 0.0
  %3555 = vmatprep.subr.mxu0 0.0
  %3556 = vmatpush1.msra.mxu0 0.0
  %3557 = vmatprep.subr.mxu0 0.0
  %3558 = vmatpush1.msra.mxu0 0.0
  %3559 = vmatprep.subr.mxu0 0.0
  %3560 = vmatpush1.msra.mxu0 %v3525
  %3561 = vmatprep.subr.mxu0 0.0
  %3562 = vmatpush1.msra.mxu0 %v3523
  %3563 = vmatprep.subr.mxu0 0.0
  %3564 = vmatpush2.msra.mxu0 0.0
  %3565 = vmatprep.subr.mxu0 0.0
  %3566 = vmatpush2.msra.mxu0 0.0
  %3567 = vmatprep.subr.mxu0 0.0
  %3568 = vmatpush2.msra.mxu0 0.0
  %3569 = vmatprep.subr.mxu0 0.0
  %3570 = vmatpush2.msra.mxu0 0.0
  %3571 = vmatprep.subr.mxu0 0.0
  %3572 = vmatpush2.msra.mxu0 0.0
  %3573 = vmatprep.subr.mxu0 0.0
  %3574 = vmatpush2.msra.mxu0 0.0
  %3575 = vmatprep.subr.mxu0 0.0
  %3576 = vmatpush2.msra.mxu0 0.0
  %3577 = vmatprep.subr.mxu0 0.0
  %3578 = vmatpush2.msra.mxu0 0.0
  %3579 = vmatprep.subr.mxu0 0.0
  %3580 = vmatpush2.msra.mxu0 0.0
  %3581 = vmatprep.subr.mxu0 0.0
  %3582 = vmatpush2.msra.mxu0 0.0
  %3583 = vmatprep.subr.mxu0 0.0
  %3584 = vmatpush2.msra.mxu0 0.0
  %3585 = vmatprep.subr.mxu0 0.0
  %3586 = vmatpush2.msra.mxu0 0.0
  %3587 = vmatprep.subr.mxu0 0.0
  %3588 = vmatpush2.msra.mxu0 0.0
  %3589 = vmatprep.subr.mxu0 0.0
  %3590 = vmatpush2.msra.mxu0 0.0
  %3591 = vmatprep.subr.mxu0 0.0
  %3592 = vmatpush2.msra.mxu0 0.0
  %3593 = vmatprep.subr.mxu0 0.0
  %3594 = vmatpush2.msra.mxu0 0.0
  %3595 = vmatprep.mubr.f32.mxu0 0.0
  %3596 = vmatmul.mubr.f32.gmra.mxu0 %v3529
  %v3597 = vpop.f32.mrf.mxu0
  %v3598 = vadd.f32 0.0, %v3597
  %v3599 = vpop.f32.mrf.mxu0
  %3600 = vdwg.mxu0
  %3601 = vrot.lane.b32.xlu0 %v867, 32
  %v3602 = vpop.permute.xlu0 %3601
  %3603 = vrot.lane.b32.xlu0 %v868, 32
  %v3604 = vpop.permute.xlu0 %3603
  %v3608 = vsel %vm149, %v2805, 0
  %3610 = vmatprep.subr.mxu0 0.0
  %3611 = vmatpush1.msra.mxu0 0.0
  %3612 = vmatprep.subr.mxu0 0.0
  %3613 = vmatpush1.msra.mxu0 0.0
  %3614 = vmatprep.subr.mxu0 0.0
  %3615 = vmatpush1.msra.mxu0 0.0
  %3616 = vmatprep.subr.mxu0 0.0
  %3617 = vmatpush1.msra.mxu0 0.0
  %3618 = vmatprep.subr.mxu0 0.0
  %3619 = vmatpush1.msra.mxu0 0.0
  %3620 = vmatprep.subr.mxu0 0.0
  %3621 = vmatpush1.msra.mxu0 0.0
  %3622 = vmatprep.subr.mxu0 0.0
  %3623 = vmatpush1.msra.mxu0 0.0
  %3624 = vmatprep.subr.mxu0 0.0
  %3625 = vmatpush1.msra.mxu0 0.0
  %3626 = vmatprep.subr.mxu0 0.0
  %3627 = vmatpush1.msra.mxu0 0.0
  %3628 = vmatprep.subr.mxu0 0.0
  %3629 = vmatpush1.msra.mxu0 0.0
  %3630 = vmatprep.subr.mxu0 0.0
  %3631 = vmatpush1.msra.mxu0 0.0
  %3632 = vmatprep.subr.mxu0 0.0
  %3633 = vmatpush1.msra.mxu0 0.0
  %3634 = vmatprep.subr.mxu0 0.0
  %3635 = vmatpush1.msra.mxu0 0.0
  %3636 = vmatprep.subr.mxu0 0.0
  %3637 = vmatpush1.msra.mxu0 0.0
  %3638 = vmatprep.subr.mxu0 0.0
  %3639 = vmatpush1.msra.mxu0 %v3604
  %3640 = vmatprep.subr.mxu0 0.0
  %3641 = vmatpush1.msra.mxu0 %v3602
  %3642 = vmatprep.subr.mxu0 0.0
  %3643 = vmatpush2.msra.mxu0 0.0
  %3644 = vmatprep.subr.mxu0 0.0
  %3645 = vmatpush2.msra.mxu0 0.0
  %3646 = vmatprep.subr.mxu0 0.0
  %3647 = vmatpush2.msra.mxu0 0.0
  %3648 = vmatprep.subr.mxu0 0.0
  %3649 = vmatpush2.msra.mxu0 0.0
  %3650 = vmatprep.subr.mxu0 0.0
  %3651 = vmatpush2.msra.mxu0 0.0
  %3652 = vmatprep.subr.mxu0 0.0
  %3653 = vmatpush2.msra.mxu0 0.0
  %3654 = vmatprep.subr.mxu0 0.0
  %3655 = vmatpush2.msra.mxu0 0.0
  %3656 = vmatprep.subr.mxu0 0.0
  %3657 = vmatpush2.msra.mxu0 0.0
  %3658 = vmatprep.subr.mxu0 0.0
  %3659 = vmatpush2.msra.mxu0 0.0
  %3660 = vmatprep.subr.mxu0 0.0
  %3661 = vmatpush2.msra.mxu0 0.0
  %3662 = vmatprep.subr.mxu0 0.0
  %3663 = vmatpush2.msra.mxu0 0.0
  %3664 = vmatprep.subr.mxu0 0.0
  %3665 = vmatpush2.msra.mxu0 0.0
  %3666 = vmatprep.subr.mxu0 0.0
  %3667 = vmatpush2.msra.mxu0 0.0
  %3668 = vmatprep.subr.mxu0 0.0
  %3669 = vmatpush2.msra.mxu0 0.0
  %3670 = vmatprep.subr.mxu0 0.0
  %3671 = vmatpush2.msra.mxu0 0.0
  %3672 = vmatprep.subr.mxu0 0.0
  %3673 = vmatpush2.msra.mxu0 0.0
  %3674 = vmatprep.mubr.f32.mxu0 0.0
  %3675 = vmatmul.mubr.f32.gmra.mxu0 %v3608
  %v3676 = vpop.f32.mrf.mxu0
  %v3677 = vadd.f32 0.0, %v3676
  %v3678 = vpop.f32.mrf.mxu0
  %3679 = vdwg.mxu0
  %3680 = vrot.lane.b32.xlu0 %v869, 32
  %v3681 = vpop.permute.xlu0 %3680
  %3682 = vrot.lane.b32.xlu0 %v870, 32
  %v3683 = vpop.permute.xlu0 %3682
  %v3687 = vsel %vm149, %v2806, 0
  %3689 = vmatprep.subr.mxu0 0.0
  %3690 = vmatpush1.msra.mxu0 0.0
  %3691 = vmatprep.subr.mxu0 0.0
  %3692 = vmatpush1.msra.mxu0 0.0
  %3693 = vmatprep.subr.mxu0 0.0
  %3694 = vmatpush1.msra.mxu0 0.0
  %3695 = vmatprep.subr.mxu0 0.0
  %3696 = vmatpush1.msra.mxu0 0.0
  %3697 = vmatprep.subr.mxu0 0.0
  %3698 = vmatpush1.msra.mxu0 0.0
  %3699 = vmatprep.subr.mxu0 0.0
  %3700 = vmatpush1.msra.mxu0 0.0
  %3701 = vmatprep.subr.mxu0 0.0
  %3702 = vmatpush1.msra.mxu0 0.0
  %3703 = vmatprep.subr.mxu0 0.0
  %3704 = vmatpush1.msra.mxu0 0.0
  %3705 = vmatprep.subr.mxu0 0.0
  %3706 = vmatpush1.msra.mxu0 0.0
  %3707 = vmatprep.subr.mxu0 0.0
  %3708 = vmatpush1.msra.mxu0 0.0
  %3709 = vmatprep.subr.mxu0 0.0
  %3710 = vmatpush1.msra.mxu0 0.0
  %3711 = vmatprep.subr.mxu0 0.0
  %3712 = vmatpush1.msra.mxu0 0.0
  %3713 = vmatprep.subr.mxu0 0.0
  %3714 = vmatpush1.msra.mxu0 0.0
  %3715 = vmatprep.subr.mxu0 0.0
  %3716 = vmatpush1.msra.mxu0 0.0
  %3717 = vmatprep.subr.mxu0 0.0
  %3718 = vmatpush1.msra.mxu0 %v3683
  %3719 = vmatprep.subr.mxu0 0.0
  %3720 = vmatpush1.msra.mxu0 %v3681
  %3721 = vmatprep.subr.mxu0 0.0
  %3722 = vmatpush2.msra.mxu0 0.0
  %3723 = vmatprep.subr.mxu0 0.0
  %3724 = vmatpush2.msra.mxu0 0.0
  %3725 = vmatprep.subr.mxu0 0.0
  %3726 = vmatpush2.msra.mxu0 0.0
  %3727 = vmatprep.subr.mxu0 0.0
  %3728 = vmatpush2.msra.mxu0 0.0
  %3729 = vmatprep.subr.mxu0 0.0
  %3730 = vmatpush2.msra.mxu0 0.0
  %3731 = vmatprep.subr.mxu0 0.0
  %3732 = vmatpush2.msra.mxu0 0.0
  %3733 = vmatprep.subr.mxu0 0.0
  %3734 = vmatpush2.msra.mxu0 0.0
  %3735 = vmatprep.subr.mxu0 0.0
  %3736 = vmatpush2.msra.mxu0 0.0
  %3737 = vmatprep.subr.mxu0 0.0
  %3738 = vmatpush2.msra.mxu0 0.0
  %3739 = vmatprep.subr.mxu0 0.0
  %3740 = vmatpush2.msra.mxu0 0.0
  %3741 = vmatprep.subr.mxu0 0.0
  %3742 = vmatpush2.msra.mxu0 0.0
  %3743 = vmatprep.subr.mxu0 0.0
  %3744 = vmatpush2.msra.mxu0 0.0
  %3745 = vmatprep.subr.mxu0 0.0
  %3746 = vmatpush2.msra.mxu0 0.0
  %3747 = vmatprep.subr.mxu0 0.0
  %3748 = vmatpush2.msra.mxu0 0.0
  %3749 = vmatprep.subr.mxu0 0.0
  %3750 = vmatpush2.msra.mxu0 0.0
  %3751 = vmatprep.subr.mxu0 0.0
  %3752 = vmatpush2.msra.mxu0 0.0
  %3753 = vmatprep.mubr.f32.mxu0 0.0
  %3754 = vmatmul.mubr.f32.gmra.mxu0 %v3687
  %v3755 = vpop.f32.mrf.mxu0
  %v3756 = vadd.f32 0.0, %v3755
  %v3757 = vpop.f32.mrf.mxu0
  %3758 = vdwg.mxu0
  %3759 = vrot.lane.b32.xlu0 %v871, 32
  %v3760 = vpop.permute.xlu0 %3759
  %3761 = vrot.lane.b32.xlu0 %v872, 32
  %v3762 = vpop.permute.xlu0 %3761
  %v3766 = vsel %vm149, %v2807, 0
  %3768 = vmatprep.subr.mxu0 0.0
  %3769 = vmatpush1.msra.mxu0 0.0
  %3770 = vmatprep.subr.mxu0 0.0
  %3771 = vmatpush1.msra.mxu0 0.0
  %3772 = vmatprep.subr.mxu0 0.0
  %3773 = vmatpush1.msra.mxu0 0.0
  %3774 = vmatprep.subr.mxu0 0.0
  %3775 = vmatpush1.msra.mxu0 0.0
  %3776 = vmatprep.subr.mxu0 0.0
  %3777 = vmatpush1.msra.mxu0 0.0
  %3778 = vmatprep.subr.mxu0 0.0
  %3779 = vmatpush1.msra.mxu0 0.0
  %3780 = vmatprep.subr.mxu0 0.0
  %3781 = vmatpush1.msra.mxu0 0.0
  %3782 = vmatprep.subr.mxu0 0.0
  %3783 = vmatpush1.msra.mxu0 0.0
  %3784 = vmatprep.subr.mxu0 0.0
  %3785 = vmatpush1.msra.mxu0 0.0
  %3786 = vmatprep.subr.mxu0 0.0
  %3787 = vmatpush1.msra.mxu0 0.0
  %3788 = vmatprep.subr.mxu0 0.0
  %3789 = vmatpush1.msra.mxu0 0.0
  %3790 = vmatprep.subr.mxu0 0.0
  %3791 = vmatpush1.msra.mxu0 0.0
  %3792 = vmatprep.subr.mxu0 0.0
  %3793 = vmatpush1.msra.mxu0 0.0
  %3794 = vmatprep.subr.mxu0 0.0
  %3795 = vmatpush1.msra.mxu0 0.0
  %3796 = vmatprep.subr.mxu0 0.0
  %3797 = vmatpush1.msra.mxu0 %v3762
  %3798 = vmatprep.subr.mxu0 0.0
  %3799 = vmatpush1.msra.mxu0 %v3760
  %3800 = vmatprep.subr.mxu0 0.0
  %3801 = vmatpush2.msra.mxu0 0.0
  %3802 = vmatprep.subr.mxu0 0.0
  %3803 = vmatpush2.msra.mxu0 0.0
  %3804 = vmatprep.subr.mxu0 0.0
  %3805 = vmatpush2.msra.mxu0 0.0
  %3806 = vmatprep.subr.mxu0 0.0
  %3807 = vmatpush2.msra.mxu0 0.0
  %3808 = vmatprep.subr.mxu0 0.0
  %3809 = vmatpush2.msra.mxu0 0.0
  %3810 = vmatprep.subr.mxu0 0.0
  %3811 = vmatpush2.msra.mxu0 0.0
  %3812 = vmatprep.subr.mxu0 0.0
  %3813 = vmatpush2.msra.mxu0 0.0
  %3814 = vmatprep.subr.mxu0 0.0
  %3815 = vmatpush2.msra.mxu0 0.0
  %3816 = vmatprep.subr.mxu0 0.0
  %3817 = vmatpush2.msra.mxu0 0.0
  %3818 = vmatprep.subr.mxu0 0.0
  %3819 = vmatpush2.msra.mxu0 0.0
  %3820 = vmatprep.subr.mxu0 0.0
  %3821 = vmatpush2.msra.mxu0 0.0
  %3822 = vmatprep.subr.mxu0 0.0
  %3823 = vmatpush2.msra.mxu0 0.0
  %3824 = vmatprep.subr.mxu0 0.0
  %3825 = vmatpush2.msra.mxu0 0.0
  %3826 = vmatprep.subr.mxu0 0.0
  %3827 = vmatpush2.msra.mxu0 0.0
  %3828 = vmatprep.subr.mxu0 0.0
  %3829 = vmatpush2.msra.mxu0 0.0
  %3830 = vmatprep.subr.mxu0 0.0
  %3831 = vmatpush2.msra.mxu0 0.0
  %3832 = vmatprep.mubr.f32.mxu0 0.0
  %3833 = vmatmul.mubr.f32.gmra.mxu0 %v3766
  %v3834 = vpop.f32.mrf.mxu0
  %v3835 = vadd.f32 0.0, %v3834
  %v3836 = vpop.f32.mrf.mxu0
  %3837 = vdwg.mxu0
  %3838 = vrot.lane.b32.xlu0 %v873, 32
  %v3839 = vpop.permute.xlu0 %3838
  %3840 = vrot.lane.b32.xlu0 %v874, 32
  %v3841 = vpop.permute.xlu0 %3840
  %v3845 = vsel %vm149, %v2808, 0
  %3847 = vmatprep.subr.mxu0 0.0
  %3848 = vmatpush1.msra.mxu0 0.0
  %3849 = vmatprep.subr.mxu0 0.0
  %3850 = vmatpush1.msra.mxu0 0.0
  %3851 = vmatprep.subr.mxu0 0.0
  %3852 = vmatpush1.msra.mxu0 0.0
  %3853 = vmatprep.subr.mxu0 0.0
  %3854 = vmatpush1.msra.mxu0 0.0
  %3855 = vmatprep.subr.mxu0 0.0
  %3856 = vmatpush1.msra.mxu0 0.0
  %3857 = vmatprep.subr.mxu0 0.0
  %3858 = vmatpush1.msra.mxu0 0.0
  %3859 = vmatprep.subr.mxu0 0.0
  %3860 = vmatpush1.msra.mxu0 0.0
  %3861 = vmatprep.subr.mxu0 0.0
  %3862 = vmatpush1.msra.mxu0 0.0
  %3863 = vmatprep.subr.mxu0 0.0
  %3864 = vmatpush1.msra.mxu0 0.0
  %3865 = vmatprep.subr.mxu0 0.0
  %3866 = vmatpush1.msra.mxu0 0.0
  %3867 = vmatprep.subr.mxu0 0.0
  %3868 = vmatpush1.msra.mxu0 0.0
  %3869 = vmatprep.subr.mxu0 0.0
  %3870 = vmatpush1.msra.mxu0 0.0
  %3871 = vmatprep.subr.mxu0 0.0
  %3872 = vmatpush1.msra.mxu0 0.0
  %3873 = vmatprep.subr.mxu0 0.0
  %3874 = vmatpush1.msra.mxu0 0.0
  %3875 = vmatprep.subr.mxu0 0.0
  %3876 = vmatpush1.msra.mxu0 %v3841
  %3877 = vmatprep.subr.mxu0 0.0
  %3878 = vmatpush1.msra.mxu0 %v3839
  %3879 = vmatprep.subr.mxu0 0.0
  %3880 = vmatpush2.msra.mxu0 0.0
  %3881 = vmatprep.subr.mxu0 0.0
  %3882 = vmatpush2.msra.mxu0 0.0
  %3883 = vmatprep.subr.mxu0 0.0
  %3884 = vmatpush2.msra.mxu0 0.0
  %3885 = vmatprep.subr.mxu0 0.0
  %3886 = vmatpush2.msra.mxu0 0.0
  %3887 = vmatprep.subr.mxu0 0.0
  %3888 = vmatpush2.msra.mxu0 0.0
  %3889 = vmatprep.subr.mxu0 0.0
  %3890 = vmatpush2.msra.mxu0 0.0
  %3891 = vmatprep.subr.mxu0 0.0
  %3892 = vmatpush2.msra.mxu0 0.0
  %3893 = vmatprep.subr.mxu0 0.0
  %3894 = vmatpush2.msra.mxu0 0.0
  %3895 = vmatprep.subr.mxu0 0.0
  %3896 = vmatpush2.msra.mxu0 0.0
  %3897 = vmatprep.subr.mxu0 0.0
  %3898 = vmatpush2.msra.mxu0 0.0
  %3899 = vmatprep.subr.mxu0 0.0
  %3900 = vmatpush2.msra.mxu0 0.0
  %3901 = vmatprep.subr.mxu0 0.0
  %3902 = vmatpush2.msra.mxu0 0.0
  %3903 = vmatprep.subr.mxu0 0.0
  %3904 = vmatpush2.msra.mxu0 0.0
  %3905 = vmatprep.subr.mxu0 0.0
  %3906 = vmatpush2.msra.mxu0 0.0
  %3907 = vmatprep.subr.mxu0 0.0
  %3908 = vmatpush2.msra.mxu0 0.0
  %3909 = vmatprep.subr.mxu0 0.0
  %3910 = vmatpush2.msra.mxu0 0.0
  %3911 = vmatprep.mubr.f32.mxu0 0.0
  %3912 = vmatmul.mubr.f32.gmra.mxu0 %v3845
  %v3913 = vpop.f32.mrf.mxu0
  %v3914 = vadd.f32 0.0, %v3913
  %v3915 = vpop.f32.mrf.mxu0
  %3916 = vdwg.mxu0
  %3917 = vrot.lane.b32.xlu0 %v875, 32
  %v3918 = vpop.permute.xlu0 %3917
  %3919 = vrot.lane.b32.xlu0 %v876, 32
  %v3920 = vpop.permute.xlu0 %3919
  %v3924 = vsel %vm149, %v2809, 0
  %3926 = vmatprep.subr.mxu0 0.0
  %3927 = vmatpush1.msra.mxu0 0.0
  %3928 = vmatprep.subr.mxu0 0.0
  %3929 = vmatpush1.msra.mxu0 0.0
  %3930 = vmatprep.subr.mxu0 0.0
  %3931 = vmatpush1.msra.mxu0 0.0
  %3932 = vmatprep.subr.mxu0 0.0
  %3933 = vmatpush1.msra.mxu0 0.0
  %3934 = vmatprep.subr.mxu0 0.0
  %3935 = vmatpush1.msra.mxu0 0.0
  %3936 = vmatprep.subr.mxu0 0.0
  %3937 = vmatpush1.msra.mxu0 0.0
  %3938 = vmatprep.subr.mxu0 0.0
  %3939 = vmatpush1.msra.mxu0 0.0
  %3940 = vmatprep.subr.mxu0 0.0
  %3941 = vmatpush1.msra.mxu0 0.0
  %3942 = vmatprep.subr.mxu0 0.0
  %3943 = vmatpush1.msra.mxu0 0.0
  %3944 = vmatprep.subr.mxu0 0.0
  %3945 = vmatpush1.msra.mxu0 0.0
  %3946 = vmatprep.subr.mxu0 0.0
  %3947 = vmatpush1.msra.mxu0 0.0
  %3948 = vmatprep.subr.mxu0 0.0
  %3949 = vmatpush1.msra.mxu0 0.0
  %3950 = vmatprep.subr.mxu0 0.0
  %3951 = vmatpush1.msra.mxu0 0.0
  %3952 = vmatprep.subr.mxu0 0.0
  %3953 = vmatpush1.msra.mxu0 0.0
  %3954 = vmatprep.subr.mxu0 0.0
  %3955 = vmatpush1.msra.mxu0 %v3920
  %3956 = vmatprep.subr.mxu0 0.0
  %3957 = vmatpush1.msra.mxu0 %v3918
  %3958 = vmatprep.subr.mxu0 0.0
  %3959 = vmatpush2.msra.mxu0 0.0
  %3960 = vmatprep.subr.mxu0 0.0
  %3961 = vmatpush2.msra.mxu0 0.0
  %3962 = vmatprep.subr.mxu0 0.0
  %3963 = vmatpush2.msra.mxu0 0.0
  %3964 = vmatprep.subr.mxu0 0.0
  %3965 = vmatpush2.msra.mxu0 0.0
  %3966 = vmatprep.subr.mxu0 0.0
  %3967 = vmatpush2.msra.mxu0 0.0
  %3968 = vmatprep.subr.mxu0 0.0
  %3969 = vmatpush2.msra.mxu0 0.0
  %3970 = vmatprep.subr.mxu0 0.0
  %3971 = vmatpush2.msra.mxu0 0.0
  %3972 = vmatprep.subr.mxu0 0.0
  %3973 = vmatpush2.msra.mxu0 0.0
  %3974 = vmatprep.subr.mxu0 0.0
  %3975 = vmatpush2.msra.mxu0 0.0
  %3976 = vmatprep.subr.mxu0 0.0
  %3977 = vmatpush2.msra.mxu0 0.0
  %3978 = vmatprep.subr.mxu0 0.0
  %3979 = vmatpush2.msra.mxu0 0.0
  %3980 = vmatprep.subr.mxu0 0.0
  %3981 = vmatpush2.msra.mxu0 0.0
  %3982 = vmatprep.subr.mxu0 0.0
  %3983 = vmatpush2.msra.mxu0 0.0
  %3984 = vmatprep.subr.mxu0 0.0
  %3985 = vmatpush2.msra.mxu0 0.0
  %3986 = vmatprep.subr.mxu0 0.0
  %3987 = vmatpush2.msra.mxu0 0.0
  %3988 = vmatprep.subr.mxu0 0.0
  %3989 = vmatpush2.msra.mxu0 0.0
  %3990 = vmatprep.mubr.f32.mxu0 0.0
  %3991 = vmatmul.mubr.f32.gmra.mxu0 %v3924
  %v3992 = vpop.f32.mrf.mxu0
  %v3993 = vadd.f32 0.0, %v3992
  %v3994 = vpop.f32.mrf.mxu0
  %3995 = vdwg.mxu0
  %3996 = vrot.lane.b32.xlu0 %v877, 32
  %v3997 = vpop.permute.xlu0 %3996
  %3998 = vrot.lane.b32.xlu0 %v878, 32
  %v3999 = vpop.permute.xlu0 %3998
  %v4003 = vsel %vm149, %v2810, 0
  %4005 = vmatprep.subr.mxu0 0.0
  %4006 = vmatpush1.msra.mxu0 0.0
  %4007 = vmatprep.subr.mxu0 0.0
  %4008 = vmatpush1.msra.mxu0 0.0
  %4009 = vmatprep.subr.mxu0 0.0
  %4010 = vmatpush1.msra.mxu0 0.0
  %4011 = vmatprep.subr.mxu0 0.0
  %4012 = vmatpush1.msra.mxu0 0.0
  %4013 = vmatprep.subr.mxu0 0.0
  %4014 = vmatpush1.msra.mxu0 0.0
  %4015 = vmatprep.subr.mxu0 0.0
  %4016 = vmatpush1.msra.mxu0 0.0
  %4017 = vmatprep.subr.mxu0 0.0
  %4018 = vmatpush1.msra.mxu0 0.0
  %4019 = vmatprep.subr.mxu0 0.0
  %4020 = vmatpush1.msra.mxu0 0.0
  %4021 = vmatprep.subr.mxu0 0.0
  %4022 = vmatpush1.msra.mxu0 0.0
  %4023 = vmatprep.subr.mxu0 0.0
  %4024 = vmatpush1.msra.mxu0 0.0
  %4025 = vmatprep.subr.mxu0 0.0
  %4026 = vmatpush1.msra.mxu0 0.0
  %4027 = vmatprep.subr.mxu0 0.0
  %4028 = vmatpush1.msra.mxu0 0.0
  %4029 = vmatprep.subr.mxu0 0.0
  %4030 = vmatpush1.msra.mxu0 0.0
  %4031 = vmatprep.subr.mxu0 0.0
  %4032 = vmatpush1.msra.mxu0 0.0
  %4033 = vmatprep.subr.mxu0 0.0
  %4034 = vmatpush1.msra.mxu0 %v3999
  %4035 = vmatprep.subr.mxu0 0.0
  %4036 = vmatpush1.msra.mxu0 %v3997
  %4037 = vmatprep.subr.mxu0 0.0
  %4038 = vmatpush2.msra.mxu0 0.0
  %4039 = vmatprep.subr.mxu0 0.0
  %4040 = vmatpush2.msra.mxu0 0.0
  %4041 = vmatprep.subr.mxu0 0.0
  %4042 = vmatpush2.msra.mxu0 0.0
  %4043 = vmatprep.subr.mxu0 0.0
  %4044 = vmatpush2.msra.mxu0 0.0
  %4045 = vmatprep.subr.mxu0 0.0
  %4046 = vmatpush2.msra.mxu0 0.0
  %4047 = vmatprep.subr.mxu0 0.0
  %4048 = vmatpush2.msra.mxu0 0.0
  %4049 = vmatprep.subr.mxu0 0.0
  %4050 = vmatpush2.msra.mxu0 0.0
  %4051 = vmatprep.subr.mxu0 0.0
  %4052 = vmatpush2.msra.mxu0 0.0
  %4053 = vmatprep.subr.mxu0 0.0
  %4054 = vmatpush2.msra.mxu0 0.0
  %4055 = vmatprep.subr.mxu0 0.0
  %4056 = vmatpush2.msra.mxu0 0.0
  %4057 = vmatprep.subr.mxu0 0.0
  %4058 = vmatpush2.msra.mxu0 0.0
  %4059 = vmatprep.subr.mxu0 0.0
  %4060 = vmatpush2.msra.mxu0 0.0
  %4061 = vmatprep.subr.mxu0 0.0
  %4062 = vmatpush2.msra.mxu0 0.0
  %4063 = vmatprep.subr.mxu0 0.0
  %4064 = vmatpush2.msra.mxu0 0.0
  %4065 = vmatprep.subr.mxu0 0.0
  %4066 = vmatpush2.msra.mxu0 0.0
  %4067 = vmatprep.subr.mxu0 0.0
  %4068 = vmatpush2.msra.mxu0 0.0
  %4069 = vmatprep.mubr.f32.mxu0 0.0
  %4070 = vmatmul.mubr.f32.gmra.mxu0 %v4003
  %v4071 = vpop.f32.mrf.mxu0
  %v4072 = vadd.f32 0.0, %v4071
  %v4073 = vpop.f32.mrf.mxu0
  %4074 = vdwg.mxu0
  %v4075 = vadd.f32 %v2763, %v2887
  %v4076 = vadd.f32 %v2764, %v2966
  %v4077 = vadd.f32 %v2765, %v3045
  %v4078 = vadd.f32 %v2766, %v3124
  %v4079 = vadd.f32 %v2767, %v3203
  %v4080 = vadd.f32 %v2768, %v3282
  %v4081 = vadd.f32 %v2769, %v3361
  %v4082 = vadd.f32 %v2770, %v3440
  %v4083 = vadd.f32 %v2771, %v3519
  %v4084 = vadd.f32 %v2772, %v3598
  %v4085 = vadd.f32 %v2773, %v3677
  %v4086 = vadd.f32 %v2774, %v3756
  %v4087 = vadd.f32 %v2775, %v3835
  %v4088 = vadd.f32 %v2776, %v3914
  %v4089 = vadd.f32 %v2777, %v3993
  %v4090 = vadd.f32 %v2778, %v4072
  %4091 = vst.msk [vmem:[#allocation3] sm:$0xff] %vm883, %v4075
  %4092 = vst.msk [vmem:[#allocation3 + $0x8] sm:$0xff] %vm883, %v4076
  %4093 = vst.msk [vmem:[#allocation3 + $0x10] sm:$0xff] %vm883, %v4077
  %4094 = vst.msk [vmem:[#allocation3 + $0x18] sm:$0xff] %vm883, %v4078
  %4095 = vst.msk [vmem:[#allocation3 + $0x20] sm:$0xff] %vm883, %v4079
  %4096 = vst.msk [vmem:[#allocation3 + $0x28] sm:$0xff] %vm883, %v4080
  %4097 = vst.msk [vmem:[#allocation3 + $0x30] sm:$0xff] %vm883, %v4081
  %4098 = vst.msk [vmem:[#allocation3 + $0x38] sm:$0xff] %vm883, %v4082
  %4099 = vst.msk [vmem:[#allocation3 + $0x40] sm:$0xff] %vm883, %v4083
  %4100 = vst.msk [vmem:[#allocation3 + $0x48] sm:$0xff] %vm883, %v4084
  %4101 = vst.msk [vmem:[#allocation3 + $0x50] sm:$0xff] %vm883, %v4085
  %4102 = vst.msk [vmem:[#allocation3 + $0x58] sm:$0xff] %vm883, %v4086
  %4103 = vst.msk [vmem:[#allocation3 + $0x60] sm:$0xff] %vm883, %v4087
  %4104 = vst.msk [vmem:[#allocation3 + $0x68] sm:$0xff] %vm883, %v4088
  %4105 = vst.msk [vmem:[#allocation3 + $0x70] sm:$0xff] %vm883, %v4089
  %4106 = vst.msk [vmem:[#allocation3 + $0x78] sm:$0xff] %vm883, %v4090
  // Predicated region
  $region70: #{torchmd_et_forward.4} parent=0 // pred_check
    %p4107 = pneg %p53
  $region71: #{torchmd_et_forward.4} parent=0 // pred_check_branch
    %4109 = sbr.rel (%p4107) target = $region73
  $region72: #{torchmd_et_forward.4} parent=0 // pred_region
    %v4110 = vld [vmem:[#allocation2] sm:$0xff]
    %v4111 = vld [vmem:[#allocation2 + $0x8] sm:$0xff]
    %v4112 = vld [vmem:[#allocation3] sm:$0xff]
    %v4113 = vld [vmem:[#allocation3 + $0x8] sm:$0xff]
    %v4114 = vld [vmem:[#allocation3 + $0x10] sm:$0xff]
    %v4115 = vld [vmem:[#allocation3 + $0x18] sm:$0xff]
    %v4116 = vld [vmem:[#allocation3 + $0x20] sm:$0xff]
    %v4117 = vld [vmem:[#allocation3 + $0x28] sm:$0xff]
    %v4118 = vld [vmem:[#allocation3 + $0x30] sm:$0xff]
    %v4119 = vld [vmem:[#allocation3 + $0x38] sm:$0xff]
    %v4120 = vld [vmem:[#allocation3 + $0x40] sm:$0xff]
    %v4121 = vld [vmem:[#allocation3 + $0x48] sm:$0xff]
    %v4122 = vld [vmem:[#allocation3 + $0x50] sm:$0xff]
    %v4123 = vld [vmem:[#allocation3 + $0x58] sm:$0xff]
    %v4124 = vld [vmem:[#allocation3 + $0x60] sm:$0xff]
    %v4125 = vld [vmem:[#allocation3 + $0x68] sm:$0xff]
    %v4126 = vld [vmem:[#allocation3 + $0x70] sm:$0xff]
    %v4127 = vld [vmem:[#allocation3 + $0x78] sm:$0xff]
    %v4128 = vld [vmem:[%s14] sm:$0xff]
    %v4129 = vld [vmem:[%s14 + $0x8] sm:$0xff]
    %v4130 = vld [vmem:[%s14 + $0x10] sm:$0xff]
    %v4131 = vld [vmem:[%s14 + $0x18] sm:$0xff]
    %v4132 = vld [vmem:[%s15] sm:$0x1]
    %v4134 = vlaneseq
    %v4135 = vshrl.u32 %v4134, 7
    %v4136 = vsub.s32 0, %v4135
    %v4137 = vrot.slane %v4132, %v4136
    %v4140 = vsel %vm883, %v4110, 0
    %v4143 = vsel %vm883, %v4111, 0
    %4145 = vmatprep.subr.mxu0 0.0
    %4146 = vmatpush1.msra.mxu0 0.0
    %4147 = vmatprep.subr.mxu0 0.0
    %4148 = vmatpush1.msra.mxu0 0.0
    %4149 = vmatprep.subr.mxu0 0.0
    %4150 = vmatpush1.msra.mxu0 0.0
    %4151 = vmatprep.subr.mxu0 0.0
    %4152 = vmatpush1.msra.mxu0 0.0
    %4153 = vmatprep.subr.mxu0 0.0
    %4154 = vmatpush1.msra.mxu0 0.0
    %4155 = vmatprep.subr.mxu0 0.0
    %4156 = vmatpush1.msra.mxu0 0.0
    %4157 = vmatprep.subr.mxu0 0.0
    %4158 = vmatpush1.msra.mxu0 0.0
    %4159 = vmatprep.subr.mxu0 0.0
    %4160 = vmatpush1.msra.mxu0 0.0
    %4161 = vmatprep.subr.mxu0 0.0
    %4162 = vmatpush1.msra.mxu0 0.0
    %4163 = vmatprep.subr.mxu0 0.0
    %4164 = vmatpush1.msra.mxu0 0.0
    %4165 = vmatprep.subr.mxu0 0.0
    %4166 = vmatpush1.msra.mxu0 0.0
    %4167 = vmatprep.subr.mxu0 0.0
    %4168 = vmatpush1.msra.mxu0 0.0
    %4169 = vmatprep.subr.mxu0 0.0
    %4170 = vmatpush1.msra.mxu0 %v4131
    %4171 = vmatprep.subr.mxu0 0.0
    %4172 = vmatpush1.msra.mxu0 %v4130
    %4173 = vmatprep.subr.mxu0 0.0
    %4174 = vmatpush1.msra.mxu0 %v4129
    %4175 = vmatprep.subr.mxu0 0.0
    %4176 = vmatpush1.msra.mxu0 %v4128
    %4177 = vmatprep.subr.mxu0 0.0
    %4178 = vmatpush2.msra.mxu0 0.0
    %4179 = vmatprep.subr.mxu0 0.0
    %4180 = vmatpush2.msra.mxu0 0.0
    %4181 = vmatprep.subr.mxu0 0.0
    %4182 = vmatpush2.msra.mxu0 0.0
    %4183 = vmatprep.subr.mxu0 0.0
    %4184 = vmatpush2.msra.mxu0 0.0
    %4185 = vmatprep.subr.mxu0 0.0
    %4186 = vmatpush2.msra.mxu0 0.0
    %4187 = vmatprep.subr.mxu0 0.0
    %4188 = vmatpush2.msra.mxu0 0.0
    %4189 = vmatprep.subr.mxu0 0.0
    %4190 = vmatpush2.msra.mxu0 0.0
    %4191 = vmatprep.subr.mxu0 0.0
    %4192 = vmatpush2.msra.mxu0 0.0
    %4193 = vmatprep.subr.mxu0 0.0
    %4194 = vmatpush2.msra.mxu0 0.0
    %4195 = vmatprep.subr.mxu0 0.0
    %4196 = vmatpush2.msra.mxu0 0.0
    %4197 = vmatprep.subr.mxu0 0.0
    %4198 = vmatpush2.msra.mxu0 0.0
    %4199 = vmatprep.subr.mxu0 0.0
    %4200 = vmatpush2.msra.mxu0 0.0
    %4201 = vmatprep.subr.mxu0 0.0
    %4202 = vmatpush2.msra.mxu0 0.0
    %4203 = vmatprep.subr.mxu0 0.0
    %4204 = vmatpush2.msra.mxu0 0.0
    %4205 = vmatprep.subr.mxu0 0.0
    %4206 = vmatpush2.msra.mxu0 0.0
    %4207 = vmatprep.subr.mxu0 0.0
    %4208 = vmatpush2.msra.mxu0 0.0
    %4209 = vmatprep.mubr.f32.mxu0 0.0
    %4210 = vmatmul.mubr.f32.gmra.mxu0 %v4140
    %v4211 = vpop.f32.mrf.mxu0
    %v4212 = vadd.f32 %v4137, %v4211
    %v4213 = vpop.f32.mrf.mxu0
    %4214 = vmatprep.mubr.f32.mxu0 0.0
    %4215 = vmatmul.mubr.f32.gmra.mxu0 %v4143
    %v4216 = vpop.f32.mrf.mxu0
    %v4217 = vadd.f32 %v4137, %v4216
    %v4218 = vpop.f32.mrf.mxu0
    %4219 = vdwg.mxu0
    %v4220 = vld [vmem:[%s0] sm:$0xff]
    %v4221 = vld [vmem:[%s0 + $0x8] sm:$0xff]
    %v4222 = vld [vmem:[%s2] sm:$0xff]
    %v4223 = vld [vmem:[%s2 + $0x8] sm:$0xff]
    %4226 = vrot.lane.b32.xlu0 %v4212, 96
    %v4227 = vpop.permute.xlu0 %4226
    %4228 = vrot.lane.b32.xlu0 %v4217, 96
    %v4229 = vpop.permute.xlu0 %4228
    %v4232 = vmul.f32 %v4222, %v4227
    %v4233 = vmul.f32 %v4223, %v4229
    %v4234 = vadd.f32 %v4220, %v4232
    %v4235 = vadd.f32 %v4221, %v4233
    %4236 = vrot.lane.b32.xlu0 %v4212, 64
    %v4237 = vpop.permute.xlu0 %4236
    %4238 = vrot.lane.b32.xlu0 %v4217, 64
    %v4239 = vpop.permute.xlu0 %4238
    %v4242 = vadd.f32 %v4234, %v4237
    %v4243 = vadd.f32 %v4235, %v4239
    %v4244 = vsel %vm883, %v4242, 0.0
    %4245 = vadd.xlane.f32.xlu0 %v4244
    %v4246 = vpop.xlane.xlu0 %4245
    %v4247 = vsel %vm883, %v4243, 0.0
    %4248 = vadd.xlane.f32.xlu0 %v4247
    %v4249 = vpop.xlane.xlu0 %4248
    %v4250 = vrcp.pop 32.0
    %v4251 = vmul.f32 %v4246, %v4250
    %v4252 = vmul.f32 %v4249, %v4250
    %v4253 = vsub.f32 %v4242, %v4251
    %v4254 = vsub.f32 %v4243, %v4252
    %v4255 = vmul.f32 %v4253, %v4253
    %v4256 = vmul.f32 %v4254, %v4254
    %v4257 = vsel %vm883, %v4255, 0.0
    %4258 = vadd.xlane.f32.xlu0 %v4257
    %v4259 = vpop.xlane.xlu0 %4258
    %v4260 = vsel %vm883, %v4256, 0.0
    %4261 = vadd.xlane.f32.xlu0 %v4260
    %v4262 = vpop.xlane.xlu0 %4261
    %v4263 = vmul.f32 %v4259, %v4250
    %v4264 = vmul.f32 %v4262, %v4250
    %v4265 = vadd.f32 %v4263, 1e-05
    %v4266 = vadd.f32 %v4264, 1e-05
    %v4267 = vrsqrt.pop %v4265
    %v4268 = vrsqrt.pop %v4266
    %v4269 = vmul.f32 %v4253, %v4267
    %v4270 = vmul.f32 %v4254, %v4268
    %v4271 = vld [vmem:[%s3] sm:$0xff]
    %v4272 = vld [vmem:[%s3 + $0x8] sm:$0xff]
    %v4273 = vmul.f32 %v4271, %v4212
    %v4274 = vmul.f32 %v4272, %v4217
    %4275 = vrot.lane.b32.xlu0 %v4110, 96
    %v4276 = vpop.permute.xlu0 %4275
    %4277 = vrot.lane.b32.xlu0 %v4111, 96
    %v4278 = vpop.permute.xlu0 %4277
    %v4281 = vadd.f32 %v4273, %v4276
    %v4282 = vadd.f32 %v4274, %v4278
    %v4299 = vrot.slane %v4113, 7
    %v4300 = vsel %vm2624, %v4299, %v4112
    %v4301 = vrot.slane %v4114, 6
    %v4302 = vsel %vm2626, %v4301, %v4300
    %v4303 = vrot.slane %v4115, 5
    %v4304 = vsel %vm2628, %v4303, %v4302
    %v4305 = vrot.slane %v4116, 4
    %v4306 = vsel %vm2630, %v4305, %v4304
    %v4307 = vrot.slane %v4117, 3
    %v4308 = vsel %vm2632, %v4307, %v4306
    %v4309 = vrot.slane %v4118, 2
    %v4310 = vsel %vm2634, %v4309, %v4308
    %v4311 = vrot.slane %v4119, 1
    %v4312 = vsel %vm2636, %v4311, %v4310
    %v4313 = vrot.slane %v4121, 7
    %v4314 = vsel %vm2624, %v4313, %v4120
    %v4315 = vrot.slane %v4122, 6
    %v4316 = vsel %vm2626, %v4315, %v4314
    %v4317 = vrot.slane %v4123, 5
    %v4318 = vsel %vm2628, %v4317, %v4316
    %v4319 = vrot.slane %v4124, 4
    %v4320 = vsel %vm2630, %v4319, %v4318
    %v4321 = vrot.slane %v4125, 3
    %v4322 = vsel %vm2632, %v4321, %v4320
    %v4323 = vrot.slane %v4126, 2
    %v4324 = vsel %vm2634, %v4323, %v4322
    %v4325 = vrot.slane %v4127, 1
    %v4326 = vsel %vm2636, %v4325, %v4324
    %v4329 = vadd.f32 %v4281, %v4312
    %v4330 = vadd.f32 %v4282, %v4326
    %4331 = vrot.lane.b32.xlu0 %v4212, 32
    %v4332 = vpop.permute.xlu0 %4331
    %4333 = vrot.lane.b32.xlu0 %v4217, 32
    %v4334 = vpop.permute.xlu0 %4333
    %v4337 = vmul.f32 %v4271, %v4332
    %v4338 = vmul.f32 %v4272, %v4334
    %v4339 = vadd.f32 %v4337, %v4276
    %v4340 = vadd.f32 %v4338, %v4278
    %v4341 = vrot.slane %v4112, 1
    %v4342 = vsel %vm2624, %v4113, %v4341
    %v4343 = vrot.slane %v4114, 7
    %v4344 = vsel %vm2626, %v4343, %v4342
    %v4345 = vrot.slane %v4115, 6
    %v4346 = vsel %vm2628, %v4345, %v4344
    %v4347 = vrot.slane %v4116, 5
    %v4348 = vsel %vm2630, %v4347, %v4346
    %v4349 = vrot.slane %v4117, 4
    %v4350 = vsel %vm2632, %v4349, %v4348
    %v4351 = vrot.slane %v4118, 3
    %v4352 = vsel %vm2634, %v4351, %v4350
    %v4353 = vrot.slane %v4119, 2
    %v4354 = vsel %vm2636, %v4353, %v4352
    %v4355 = vrot.slane %v4120, 1
    %v4356 = vsel %vm2624, %v4121, %v4355
    %v4357 = vrot.slane %v4122, 7
    %v4358 = vsel %vm2626, %v4357, %v4356
    %v4359 = vrot.slane %v4123, 6
    %v4360 = vsel %vm2628, %v4359, %v4358
    %v4361 = vrot.slane %v4124, 5
    %v4362 = vsel %vm2630, %v4361, %v4360
    %v4363 = vrot.slane %v4125, 4
    %v4364 = vsel %vm2632, %v4363, %v4362
    %v4365 = vrot.slane %v4126, 3
    %v4366 = vsel %vm2634, %v4365, %v4364
    %v4367 = vrot.slane %v4127, 2
    %v4368 = vsel %vm2636, %v4367, %v4366
    %4369 = vrot.lane.b32.xlu0 %v4354, 32
    %v4370 = vpop.permute.xlu0 %4369
    %4371 = vrot.lane.b32.xlu0 %v4368, 32
    %v4372 = vpop.permute.xlu0 %4371
    %v4375 = vadd.f32 %v4339, %v4370
    %v4376 = vadd.f32 %v4340, %v4372
    %v4377 = vmul.f32 %v4271, %v4237
    %v4378 = vmul.f32 %v4272, %v4239
    %v4379 = vadd.f32 %v4377, %v4276
    %v4380 = vadd.f32 %v4378, %v4278
    %v4381 = vrot.slane %v4112, 2
    %v4382 = vrot.slane %v4113, 1
    %v4383 = vsel %vm2624, %v4382, %v4381
    %v4384 = vsel %vm2626, %v4114, %v4383
    %v4385 = vrot.slane %v4115, 7
    %v4386 = vsel %vm2628, %v4385, %v4384
    %v4387 = vrot.slane %v4116, 6
    %v4388 = vsel %vm2630, %v4387, %v4386
    %v4389 = vrot.slane %v4117, 5
    %v4390 = vsel %vm2632, %v4389, %v4388
    %v4391 = vrot.slane %v4118, 4
    %v4392 = vsel %vm2634, %v4391, %v4390
    %v4393 = vrot.slane %v4119, 3
    %v4394 = vsel %vm2636, %v4393, %v4392
    %v4395 = vrot.slane %v4120, 2
    %v4396 = vrot.slane %v4121, 1
    %v4397 = vsel %vm2624, %v4396, %v4395
    %v4398 = vsel %vm2626, %v4122, %v4397
    %v4399 = vrot.slane %v4123, 7
    %v4400 = vsel %vm2628, %v4399, %v4398
    %v4401 = vrot.slane %v4124, 6
    %v4402 = vsel %vm2630, %v4401, %v4400
    %v4403 = vrot.slane %v4125, 5
    %v4404 = vsel %vm2632, %v4403, %v4402
    %v4405 = vrot.slane %v4126, 4
    %v4406 = vsel %vm2634, %v4405, %v4404
    %v4407 = vrot.slane %v4127, 3
    %v4408 = vsel %vm2636, %v4407, %v4406
    %4409 = vrot.lane.b32.xlu0 %v4394, 64
    %v4410 = vpop.permute.xlu0 %4409
    %4411 = vrot.lane.b32.xlu0 %v4408, 64
    %v4412 = vpop.permute.xlu0 %4411
    %v4415 = vadd.f32 %v4379, %v4410
    %v4416 = vadd.f32 %v4380, %v4412
    %v4417 = vsel %vm883, %v4329, %v4375
    %v4418 = vsel %vm883, %v4330, %v4376
    %v4419 = vsel %vm2753, %v4417, %v4415
    %v4420 = vsel %vm2753, %v4418, %v4416
    %v4421 = vld [vmem:[%s4] sm:$0xff]
    %v4422 = vld [vmem:[%s4 + $0x8] sm:$0xff]
    %v4423 = vadd.f32 %v4421, %v4419
    %v4424 = vadd.f32 %v4422, %v4420
    %4427 = vrot.lane.b32.xlu0 %v4423, 32
    %v4428 = vpop.permute.xlu0 %4427
    %4429 = vrot.lane.b32.xlu0 %v4424, 32
    %v4430 = vpop.permute.xlu0 %4429
    %v4433 = vsel %vm883, %v4269, %v4428
    %v4434 = vsel %vm883, %v4270, %v4430
    %4435 = vst [vmem:[%s16] sm:$0xff] %v4433
    %4436 = vst [vmem:[%s16 + $0x8] sm:$0xff] %v4434
  $region73: #{torchmd_et_forward.4} parent=0 // pred_fallthru
    _
  // Predicated region
  $region74: #{torchmd_et_forward.4} parent=0 // pred_check
    _
  $region75: #{torchmd_et_forward.4} parent=0 // pred_check_branch
    %4438 = sbr.rel (0) target = $region77
  $region76: #{torchmd_et_forward.4} parent=0 // pred_region
    _
  $region77: #{torchmd_et_forward.4} parent=0 // pred_fallthru
    _
  // Predicated region
  $region78: #{torchmd_et_forward.4} parent=0 // pred_check
    _
  $region79: #{torchmd_et_forward.4} parent=0 // pred_check_branch
    %4440 = sbr.rel (0) target = $region81
  $region80: #{torchmd_et_forward.4} parent=0 // pred_region
    _
  $region81: #{torchmd_et_forward.4} parent=0 // pred_fallthru
    _

</llo_original>
